<compile_context>
chip_gen: v7x
topology: tpu7x:2x2x1
jax: 0.10.0
libtpu: 0.0.40
codegen_flags: <defaults>
</compile_context>

<pallas_src>
import functools
import math

import jax
import jax.numpy as jnp
from jax.experimental import pallas as pl
from jax.experimental.pallas import tpu as pltpu


# int32 views of the murmur3 / golden-ratio mixing constants.
_GOLDEN = -1640531527      # 0x9E3779B9
_MIX1 = -2048144789        # 0x85EBCA6B
_MIX2 = -1028477387        # 0xC2B2AE35


def _uniform24(shape2d, seed, tile_offset):
    """Hash-based uniform ints in [0, 2**24) -- works on TPU and in interpret mode."""
    r = jax.lax.broadcasted_iota(jnp.int32, shape2d, 0)
    c = jax.lax.broadcasted_iota(jnp.int32, shape2d, 1)
    h = tile_offset + r * jnp.int32(shape2d[1]) + c
    h = h ^ (seed * jnp.int32(_GOLDEN))
    # murmur3 finalizer; logical shifts emulated via masks (int32 >> is arithmetic).
    h = h ^ ((h >> 16) & jnp.int32(0xFFFF))
    h = h * jnp.int32(_MIX1)
    h = h ^ ((h >> 13) & jnp.int32(0x7FFFF))
    h = h * jnp.int32(_MIX2)
    h = h ^ ((h >> 16) & jnp.int32(0xFFFF))
    return h & jnp.int32(0x00FFFFFF)


def _kairos_fused_kernel(seed_ref, x_ref, *refs, num_blocks, p, eps, c_total):
    """Fused: [4x] Linear->BN(batch stats)->Dropout(p)->ReLU, then Linear(F,1)+mean(dim=1)."""
    o_ref = refs[-1]
    params = refs[:-1]
    block_params = params[: 4 * num_blocks]
    w_head_ref = params[4 * num_blocks]
    b_head_ref = params[4 * num_blocks + 1]

    B, Ct, _ = x_ref.shape
    tile = pl.program_id(0)
    keep_scale = jnp.float32(1.0 / (1.0 - p))
    thresh = jnp.int32(int(round(p * (1 << 24))))

    x = x_ref[...].astype(jnp.float32)                       # [B, Ct, Fin]

    for i in range(num_blocks):
        w_ref, b_ref, g_ref, be_ref = block_params[4 * i: 4 * i + 4]
        fin, fout = w_ref.shape

        # Linear over the feature axis: bf16 MXU matmul, f32 accumulation.
        y = jnp.dot(
            x.reshape(B * Ct, fin).astype(jnp.bfloat16),
            w_ref[...],                                      # stored bf16 (PyTorch weight^T)
            preferred_element_type=jnp.float32,
        )
        y = y.reshape(B, Ct, fout) + b_ref[...][None]        # [B, Ct, Fout]

        # BatchNorm1d(C): per-channel training-mode stats over (batch, feature),
        # computed in a single sum / sum-of-squares pass (biased variance).
        n = B * fout
        s1 = jnp.sum(jnp.sum(y, axis=2, keepdims=True), axis=0, keepdims=True)
        s2 = jnp.sum(jnp.sum(y * y, axis=2, keepdims=True), axis=0, keepdims=True)
        mean = s1 * (1.0 / n)
        var = jnp.maximum(s2 * (1.0 / n) - mean * mean, 0.0)
        scale = jax.lax.rsqrt(var + eps) * g_ref[...][None]  # [1, Ct, 1]
        y = (y - mean) * scale + be_ref[...][None]

        # Dropout (F.dropout defaults to training=True in the reference), inverted scaling.
        rows = B * Ct
        u = _uniform24((rows, fout), seed_ref[i], tile * (rows * fout))
        keep = (u >= thresh).reshape(B, Ct, fout)
        y = jnp.where(keep, y * keep_scale, jnp.float32(0.0))

        # ReLU
        x = jnp.maximum(y, jnp.float32(0.0))

    # Final Linear(F_last, 1) + mean over channels, folded:
    #   mean_c(x @ w + b) = (sum_c x) @ w / C + b
    xs = jnp.sum(x, axis=1)                                      # [B, F_last]
    part = jnp.sum(xs * w_head_ref[...], axis=1, keepdims=True)  # [B, 1] partial channel-sum

    @pl.when(tile == 0)
    def _init():
        o_ref[...] = jnp.zeros_like(o_ref)

    o_ref[...] += part

    @pl.when(tile == pl.num_programs(0) - 1)
    def _finalize():
        o_ref[...] = o_ref[...] * jnp.float32(1.0 / c_total) + b_head_ref[...]


def _pick_channel_tile(B, C, F, itemsize=4, max_block_bytes=8 * 2**20):
    """Channel tile: multiple of 8, divides C, keeps the x block within budget."""
    ct = C
    if C > 128 and C % 128 == 0:
        ct = 128
    while (ct % 2 == 0 and (ct // 2) % 8 == 0 and C % (ct // 2) == 0
           and B * ct * F * itemsize > max_block_bytes):
        ct //= 2
    if C % ct != 0:
        ct = C
    return ct


def kairos_head(x, blocks, head, seeds, *, p=0.1, eps=1e-5):
    """x: [B, C, F] flattened embeddings.  Returns [B, 1]."""
    B, C, F = x.shape
    Ct = _pick_channel_tile(B, C, F)
    grid = (C // Ct,)
    num_blocks = len(blocks)

    flat_params = []
    # index_maps receive (grid idx, scalar-prefetch seed ref) positionally.
    in_specs = [pl.BlockSpec((B, Ct, F), lambda t, s: (0, t, 0))]
    for (w, b, g, be) in blocks:
        fin, fout = w.shape
        in_specs += [
            pl.BlockSpec((fin, fout), lambda t, s: (0, 0)),
            pl.BlockSpec((1, fout), lambda t, s: (0, 0)),
            pl.BlockSpec((Ct, 1), lambda t, s: (t, 0)),
            pl.BlockSpec((Ct, 1), lambda t, s: (t, 0)),
        ]
        flat_params += [w, b, g, be]
    w_head, b_head = head
    in_specs += [
        pl.BlockSpec(w_head.shape, lambda t, s: (0, 0)),
        pl.BlockSpec(b_head.shape, lambda t, s: (0, 0)),
    ]
    flat_params += [w_head, b_head]

    out_spec = pl.BlockSpec((B, 1), lambda t, s: (0, 0))   # resident accumulator output

    x_block_bytes = B * Ct * F * 4
    param_bytes = sum(int(a.size) * a.dtype.itemsize for a in flat_params)
    vmem_limit = int(min(100 * 2**20, max(16 * 2**20, 10 * x_block_bytes + 2 * param_bytes)))

    kernel = functools.partial(
        _kairos_fused_kernel, num_blocks=num_blocks, p=p, eps=eps, c_total=C)

    return pl.pallas_call(
        kernel,
        out_shape=jax.ShapeDtypeStruct((B, 1), jnp.float32),
        grid_spec=pltpu.PrefetchScalarGridSpec(
            num_scalar_prefetch=1,
            grid=grid,
            in_specs=in_specs,
            out_specs=out_spec,
        ),
        compiler_params=pltpu.CompilerParams(
            # channel axis is a reduction axis for the final [B,1] output
            dimension_semantics=("arbitrary",),
            vmem_limit_bytes=vmem_limit,
        ),
    )(seeds, x, *flat_params)


def init_kairos_params(key, in_features, channels=256, number_of_blocks=5, divider=2):
    """Deterministic stand-in for the PyTorch __init__ parameter shapes."""
    blocks = []
    fin = in_features
    for _ in range(number_of_blocks - 1):
        fout = fin // divider
        key, kw, kb = jax.random.split(key, 3)
        bound = 1.0 / math.sqrt(fin)
        # Linear weight^T, stored bf16 for the MXU (f32 accumulate in-kernel).
        w = jax.random.uniform(kw, (fin, fout), jnp.float32, -bound, bound).astype(jnp.bfloat16)
        b = jax.random.uniform(kb, (1, fout), jnp.float32, -bound, bound)
        gamma = jnp.ones((channels, 1), jnp.float32)   # BN weight init
        beta = jnp.zeros((channels, 1), jnp.float32)   # BN bias init
        blocks.append((w, b, gamma, beta))
        fin = fout
    key, kw, kb = jax.random.split(key, 3)
    bound = 1.0 / math.sqrt(fin)
    w_head = jax.random.uniform(kw, (1, fin), jnp.float32, -bound, bound)   # Linear(fin, 1) weight
    b_head = jax.random.uniform(kb, (1, 1), jnp.float32, -bound, bound)     # Linear(fin, 1) bias
    return blocks, (w_head, b_head)


@jax.jit
def kairos_ad_forward(embeddings, blocks, head, seeds):
    """embeddings: [B, 256, H, W] (concatenated MobileSAM outputs); seeds: int32[num_blocks]."""
    B, C, H, W = embeddings.shape
    x = embeddings.reshape(B, C, H * W)            # x.reshape(-1, 256, H*W)
    return kairos_head(x, blocks, head, seeds)     # [B, 1]


if __name__ == "__main__":
    B, C, H, W = 2, 256, 16, 16                    # small spatial; channel dim fixed at 256
    key = jax.random.PRNGKey(0)
    k_emb, k_par, k_seed = jax.random.split(key, 3)

    # Stand-in for the MobileSAM embeddings (the encoder itself is out of scope).
    embeddings = jax.random.normal(k_emb, (B, C, H, W), jnp.float32)
    blocks, head = init_kairos_params(k_par, in_features=H * W, channels=C)
    seeds = jax.random.randint(k_seed, (len(blocks),), 0, 2**31 - 1, dtype=jnp.int32)

    out = kairos_ad_forward(embeddings, blocks, head, seeds)
    out = jax.block_until_ready(out)

    assert out.shape == (B, 1), out.shape
    assert bool(jnp.all(jnp.isfinite(out)))
    print("KERNEL_OK")
</pallas_src>

<mosaic_0001>
module attributes {stable_mosaic.version = 11 : i64} {
  func.func @_kairos_fused_kernel(%arg0: i32, %arg1: memref<4xi32, #tpu.memory_space<smem>>, %arg2: memref<2x128x256xf32, #tpu.memory_space<vmem>>, %arg3: memref<256x128xbf16, #tpu.memory_space<vmem>>, %arg4: memref<1x128xf32, #tpu.memory_space<vmem>>, %arg5: memref<128x1xf32, #tpu.memory_space<vmem>>, %arg6: memref<128x1xf32, #tpu.memory_space<vmem>>, %arg7: memref<128x64xbf16, #tpu.memory_space<vmem>>, %arg8: memref<1x64xf32, #tpu.memory_space<vmem>>, %arg9: memref<128x1xf32, #tpu.memory_space<vmem>>, %arg10: memref<128x1xf32, #tpu.memory_space<vmem>>, %arg11: memref<64x32xbf16, #tpu.memory_space<vmem>>, %arg12: memref<1x32xf32, #tpu.memory_space<vmem>>, %arg13: memref<128x1xf32, #tpu.memory_space<vmem>>, %arg14: memref<128x1xf32, #tpu.memory_space<vmem>>, %arg15: memref<32x16xbf16, #tpu.memory_space<vmem>>, %arg16: memref<1x16xf32, #tpu.memory_space<vmem>>, %arg17: memref<128x1xf32, #tpu.memory_space<vmem>>, %arg18: memref<128x1xf32, #tpu.memory_space<vmem>>, %arg19: memref<1x16xf32, #tpu.memory_space<vmem>>, %arg20: memref<1x1xf32, #tpu.memory_space<vmem>>, %arg21: memref<2x1xf32, #tpu.memory_space<vmem>>) attributes {dimension_semantics = [#tpu.dimension_semantics<arbitrary>], iteration_bounds = array<i64: 2>, scalar_prefetch = 1 : i64, scratch_operands = 0 : i64, tpu.core_type = #tpu.core_type<tc>, window_params = [{transform_indices = @transform_0, window_bounds = array<i64: 2, 128, 256>}, {pipeline_mode = #tpu.pipeline_mode<synchronous>, transform_indices = @transform_1, window_bounds = array<i64: 256, 128>}, {pipeline_mode = #tpu.pipeline_mode<synchronous>, transform_indices = @transform_2, window_bounds = array<i64: 1, 128>}, {transform_indices = @transform_3, window_bounds = array<i64: 128, 1>}, {transform_indices = @transform_4, window_bounds = array<i64: 128, 1>}, {pipeline_mode = #tpu.pipeline_mode<synchronous>, transform_indices = @transform_5, window_bounds = array<i64: 128, 64>}, {pipeline_mode = #tpu.pipeline_mode<synchronous>, transform_indices = @transform_6, window_bounds = array<i64: 1, 64>}, {transform_indices = @transform_7, window_bounds = array<i64: 128, 1>}, {transform_indices = @transform_8, window_bounds = array<i64: 128, 1>}, {pipeline_mode = #tpu.pipeline_mode<synchronous>, transform_indices = @transform_9, window_bounds = array<i64: 64, 32>}, {pipeline_mode = #tpu.pipeline_mode<synchronous>, transform_indices = @transform_10, window_bounds = array<i64: 1, 32>}, {transform_indices = @transform_11, window_bounds = array<i64: 128, 1>}, {transform_indices = @transform_12, window_bounds = array<i64: 128, 1>}, {pipeline_mode = #tpu.pipeline_mode<synchronous>, transform_indices = @transform_13, window_bounds = array<i64: 32, 16>}, {pipeline_mode = #tpu.pipeline_mode<synchronous>, transform_indices = @transform_14, window_bounds = array<i64: 1, 16>}, {transform_indices = @transform_15, window_bounds = array<i64: 128, 1>}, {transform_indices = @transform_16, window_bounds = array<i64: 128, 1>}, {pipeline_mode = #tpu.pipeline_mode<synchronous>, transform_indices = @transform_17, window_bounds = array<i64: 1, 16>}, {pipeline_mode = #tpu.pipeline_mode<synchronous>, transform_indices = @transform_18, window_bounds = array<i64: 1, 1>}, {pipeline_mode = #tpu.pipeline_mode<synchronous>, transform_indices = @transform_19, window_bounds = array<i64: 2, 1>}]} {
    %c0 = arith.constant 0 : index
    %c0_0 = arith.constant 0 : index
    %c0_1 = arith.constant 0 : index
    %0 = vector.load %arg2[%c0, %c0_0, %c0_1] : memref<2x128x256xf32, #tpu.memory_space<vmem>>, vector<2x128x256xf32>
    %1 = vector.shape_cast %0 : vector<2x128x256xf32> to vector<256x256xf32>
    %2 = arith.truncf %1 : vector<256x256xf32> to vector<256x256xbf16>
    %c0_2 = arith.constant 0 : index
    %c0_3 = arith.constant 0 : index
    %3 = vector.load %arg3[%c0_2, %c0_3] : memref<256x128xbf16, #tpu.memory_space<vmem>>, vector<256x128xbf16>
    %cst = arith.constant dense<0.000000e+00> : vector<256x128xf32>
    %4 = tpu.matmul %2, %3, %cst {dimension_numbers = #tpu.dot_dimension_numbers<[1], [0], [0], [1], [0, 0, 1, 1], [], []>} : vector<256x256xbf16>, vector<256x128xbf16>, vector<256x128xf32> -> vector<256x128xf32>
    %5 = vector.shape_cast %4 : vector<256x128xf32> to vector<2x128x128xf32>
    %c0_4 = arith.constant 0 : index
    %c0_5 = arith.constant 0 : index
    %6 = vector.load %arg4[%c0_4, %c0_5] : memref<1x128xf32, #tpu.memory_space<vmem>>, vector<1x128xf32>
    %7 = vector.shape_cast %6 : vector<1x128xf32> to vector<1x1x128xf32>
    %8 = vector.broadcast %7 : vector<1x1x128xf32> to vector<2x128x128xf32>
    %9 = arith.addf %5, %8 : vector<2x128x128xf32>
    %cst_6 = arith.constant dense<0.000000e+00> : vector<2x128xf32>
    %10 = vector.multi_reduction <add>, %9, %cst_6 [2] : vector<2x128x128xf32> to vector<2x128xf32>
    %11 = vector.shape_cast %10 : vector<2x128xf32> to vector<2x128x1xf32>
    %cst_7 = arith.constant dense<0.000000e+00> : vector<128x1xf32>
    %12 = vector.multi_reduction <add>, %11, %cst_7 [0] : vector<2x128x1xf32> to vector<128x1xf32>
    %13 = vector.shape_cast %12 : vector<128x1xf32> to vector<1x128x1xf32>
    %14 = arith.mulf %9, %9 : vector<2x128x128xf32>
    %cst_8 = arith.constant dense<0.000000e+00> : vector<2x128xf32>
    %15 = vector.multi_reduction <add>, %14, %cst_8 [2] : vector<2x128x128xf32> to vector<2x128xf32>
    %16 = vector.shape_cast %15 : vector<2x128xf32> to vector<2x128x1xf32>
    %cst_9 = arith.constant dense<0.000000e+00> : vector<128x1xf32>
    %17 = vector.multi_reduction <add>, %16, %cst_9 [0] : vector<2x128x1xf32> to vector<128x1xf32>
    %18 = vector.shape_cast %17 : vector<128x1xf32> to vector<1x128x1xf32>
    %cst_10 = arith.constant 3.906250e-03 : f32
    %19 = vector.broadcast %cst_10 : f32 to vector<1x128x1xf32>
    %20 = arith.mulf %13, %19 : vector<1x128x1xf32>
    %cst_11 = arith.constant 3.906250e-03 : f32
    %21 = vector.broadcast %cst_11 : f32 to vector<1x128x1xf32>
    %22 = arith.mulf %18, %21 : vector<1x128x1xf32>
    %23 = arith.mulf %20, %20 : vector<1x128x1xf32>
    %24 = arith.subf %22, %23 : vector<1x128x1xf32>
    %cst_12 = arith.constant 0.000000e+00 : f32
    %25 = vector.broadcast %cst_12 : f32 to vector<1x128x1xf32>
    %26 = arith.maximumf %24, %25 : vector<1x128x1xf32>
    %cst_13 = arith.constant 9.99999974E-6 : f32
    %27 = vector.broadcast %cst_13 : f32 to vector<1x128x1xf32>
    %28 = arith.addf %26, %27 : vector<1x128x1xf32>
    %29 = math.rsqrt %28 : vector<1x128x1xf32>
    %c0_14 = arith.constant 0 : index
    %c0_15 = arith.constant 0 : index
    %30 = vector.load %arg5[%c0_14, %c0_15] : memref<128x1xf32, #tpu.memory_space<vmem>>, vector<128x1xf32>
    %31 = vector.shape_cast %30 : vector<128x1xf32> to vector<1x128x1xf32>
    %32 = arith.mulf %29, %31 : vector<1x128x1xf32>
    %33 = vector.broadcast %20 : vector<1x128x1xf32> to vector<2x128x128xf32>
    %34 = arith.subf %9, %33 : vector<2x128x128xf32>
    %35 = vector.broadcast %32 : vector<1x128x1xf32> to vector<2x128x128xf32>
    %36 = arith.mulf %34, %35 : vector<2x128x128xf32>
    %c0_16 = arith.constant 0 : index
    %c0_17 = arith.constant 0 : index
    %37 = vector.load %arg6[%c0_16, %c0_17] : memref<128x1xf32, #tpu.memory_space<vmem>>, vector<128x1xf32>
    %38 = vector.shape_cast %37 : vector<128x1xf32> to vector<1x128x1xf32>
    %39 = vector.broadcast %38 : vector<1x128x1xf32> to vector<2x128x128xf32>
    %40 = arith.addf %36, %39 : vector<2x128x128xf32>
    %c0_18 = arith.constant 0 : index
    %41 = memref.load %arg1[%c0_18] : memref<4xi32, #tpu.memory_space<smem>>
    %c32768_i32 = arith.constant 32768 : i32
    %42 = arith.muli %arg0, %c32768_i32 : i32
    %43 = tpu.iota {dimensions = array<i32: 0>} : vector<256x128xi32>
    %44 = tpu.iota {dimensions = array<i32: 1>} : vector<256x128xi32>
    %c128_i32 = arith.constant 128 : i32
    %45 = vector.broadcast %c128_i32 : i32 to vector<256x128xi32>
    %46 = arith.muli %43, %45 : vector<256x128xi32>
    %47 = vector.broadcast %42 : i32 to vector<256x128xi32>
    %48 = arith.addi %47, %46 : vector<256x128xi32>
    %49 = arith.addi %48, %44 : vector<256x128xi32>
    %c-1640531527_i32 = arith.constant -1640531527 : i32
    %50 = arith.muli %41, %c-1640531527_i32 : i32
    %51 = vector.broadcast %50 : i32 to vector<256x128xi32>
    %52 = arith.xori %49, %51 : vector<256x128xi32>
    %c16_i32 = arith.constant 16 : i32
    %53 = vector.broadcast %c16_i32 : i32 to vector<256x128xi32>
    %54 = arith.shrsi %52, %53 : vector<256x128xi32>
    %c65535_i32 = arith.constant 65535 : i32
    %55 = vector.broadcast %c65535_i32 : i32 to vector<256x128xi32>
    %56 = arith.andi %54, %55 : vector<256x128xi32>
    %57 = arith.xori %52, %56 : vector<256x128xi32>
    %c-2048144789_i32 = arith.constant -2048144789 : i32
    %58 = vector.broadcast %c-2048144789_i32 : i32 to vector<256x128xi32>
    %59 = arith.muli %57, %58 : vector<256x128xi32>
    %c13_i32 = arith.constant 13 : i32
    %60 = vector.broadcast %c13_i32 : i32 to vector<256x128xi32>
    %61 = arith.shrsi %59, %60 : vector<256x128xi32>
    %c524287_i32 = arith.constant 524287 : i32
    %62 = vector.broadcast %c524287_i32 : i32 to vector<256x128xi32>
    %63 = arith.andi %61, %62 : vector<256x128xi32>
    %64 = arith.xori %59, %63 : vector<256x128xi32>
    %c-1028477387_i32 = arith.constant -1028477387 : i32
    %65 = vector.broadcast %c-1028477387_i32 : i32 to vector<256x128xi32>
    %66 = arith.muli %64, %65 : vector<256x128xi32>
    %c16_i32_19 = arith.constant 16 : i32
    %67 = vector.broadcast %c16_i32_19 : i32 to vector<256x128xi32>
    %68 = arith.shrsi %66, %67 : vector<256x128xi32>
    %c65535_i32_20 = arith.constant 65535 : i32
    %69 = vector.broadcast %c65535_i32_20 : i32 to vector<256x128xi32>
    %70 = arith.andi %68, %69 : vector<256x128xi32>
    %71 = arith.xori %66, %70 : vector<256x128xi32>
    %c16777215_i32 = arith.constant 16777215 : i32
    %72 = vector.broadcast %c16777215_i32 : i32 to vector<256x128xi32>
    %73 = arith.andi %71, %72 : vector<256x128xi32>
    %c1677722_i32 = arith.constant 1677722 : i32
    %74 = vector.broadcast %c1677722_i32 : i32 to vector<256x128xi32>
    %75 = arith.cmpi sge, %73, %74 : vector<256x128xi32>
    %76 = vector.shape_cast %75 : vector<256x128xi1> to vector<2x128x128xi1>
    %cst_21 = arith.constant 1.11111116 : f32
    %77 = vector.broadcast %cst_21 : f32 to vector<2x128x128xf32>
    %78 = arith.mulf %40, %77 : vector<2x128x128xf32>
    %cst_22 = arith.constant 0.000000e+00 : f32
    %79 = vector.broadcast %cst_22 : f32 to vector<2x128x128xf32>
    %80 = arith.select %76, %78, %79 : vector<2x128x128xi1>, vector<2x128x128xf32>
    %cst_23 = arith.constant 0.000000e+00 : f32
    %81 = vector.broadcast %cst_23 : f32 to vector<2x128x128xf32>
    %82 = arith.maximumf %80, %81 : vector<2x128x128xf32>
    %83 = vector.shape_cast %82 : vector<2x128x128xf32> to vector<256x128xf32>
    %84 = arith.truncf %83 : vector<256x128xf32> to vector<256x128xbf16>
    %c0_24 = arith.constant 0 : index
    %c0_25 = arith.constant 0 : index
    %85 = vector.load %arg7[%c0_24, %c0_25] : memref<128x64xbf16, #tpu.memory_space<vmem>>, vector<128x64xbf16>
    %cst_26 = arith.constant dense<0.000000e+00> : vector<256x64xf32>
    %86 = tpu.matmul %84, %85, %cst_26 {dimension_numbers = #tpu.dot_dimension_numbers<[1], [0], [0], [1], [0, 0, 1, 1], [], []>} : vector<256x128xbf16>, vector<128x64xbf16>, vector<256x64xf32> -> vector<256x64xf32>
    %87 = vector.shape_cast %86 : vector<256x64xf32> to vector<2x128x64xf32>
    %c0_27 = arith.constant 0 : index
    %c0_28 = arith.constant 0 : index
    %88 = vector.load %arg8[%c0_27, %c0_28] : memref<1x64xf32, #tpu.memory_space<vmem>>, vector<1x64xf32>
    %89 = vector.shape_cast %88 : vector<1x64xf32> to vector<1x1x64xf32>
    %90 = vector.broadcast %89 : vector<1x1x64xf32> to vector<2x128x64xf32>
    %91 = arith.addf %87, %90 : vector<2x128x64xf32>
    %cst_29 = arith.constant dense<0.000000e+00> : vector<2x128xf32>
    %92 = vector.multi_reduction <add>, %91, %cst_29 [2] : vector<2x128x64xf32> to vector<2x128xf32>
    %93 = vector.shape_cast %92 : vector<2x128xf32> to vector<2x128x1xf32>
    %cst_30 = arith.constant dense<0.000000e+00> : vector<128x1xf32>
    %94 = vector.multi_reduction <add>, %93, %cst_30 [0] : vector<2x128x1xf32> to vector<128x1xf32>
    %95 = vector.shape_cast %94 : vector<128x1xf32> to vector<1x128x1xf32>
    %96 = arith.mulf %91, %91 : vector<2x128x64xf32>
    %cst_31 = arith.constant dense<0.000000e+00> : vector<2x128xf32>
    %97 = vector.multi_reduction <add>, %96, %cst_31 [2] : vector<2x128x64xf32> to vector<2x128xf32>
    %98 = vector.shape_cast %97 : vector<2x128xf32> to vector<2x128x1xf32>
    %cst_32 = arith.constant dense<0.000000e+00> : vector<128x1xf32>
    %99 = vector.multi_reduction <add>, %98, %cst_32 [0] : vector<2x128x1xf32> to vector<128x1xf32>
    %100 = vector.shape_cast %99 : vector<128x1xf32> to vector<1x128x1xf32>
    %cst_33 = arith.constant 7.812500e-03 : f32
    %101 = vector.broadcast %cst_33 : f32 to vector<1x128x1xf32>
    %102 = arith.mulf %95, %101 : vector<1x128x1xf32>
    %cst_34 = arith.constant 7.812500e-03 : f32
    %103 = vector.broadcast %cst_34 : f32 to vector<1x128x1xf32>
    %104 = arith.mulf %100, %103 : vector<1x128x1xf32>
    %105 = arith.mulf %102, %102 : vector<1x128x1xf32>
    %106 = arith.subf %104, %105 : vector<1x128x1xf32>
    %cst_35 = arith.constant 0.000000e+00 : f32
    %107 = vector.broadcast %cst_35 : f32 to vector<1x128x1xf32>
    %108 = arith.maximumf %106, %107 : vector<1x128x1xf32>
    %cst_36 = arith.constant 9.99999974E-6 : f32
    %109 = vector.broadcast %cst_36 : f32 to vector<1x128x1xf32>
    %110 = arith.addf %108, %109 : vector<1x128x1xf32>
    %111 = math.rsqrt %110 : vector<1x128x1xf32>
    %c0_37 = arith.constant 0 : index
    %c0_38 = arith.constant 0 : index
    %112 = vector.load %arg9[%c0_37, %c0_38] : memref<128x1xf32, #tpu.memory_space<vmem>>, vector<128x1xf32>
    %113 = vector.shape_cast %112 : vector<128x1xf32> to vector<1x128x1xf32>
    %114 = arith.mulf %111, %113 : vector<1x128x1xf32>
    %115 = vector.broadcast %102 : vector<1x128x1xf32> to vector<2x128x64xf32>
    %116 = arith.subf %91, %115 : vector<2x128x64xf32>
    %117 = vector.broadcast %114 : vector<1x128x1xf32> to vector<2x128x64xf32>
    %118 = arith.mulf %116, %117 : vector<2x128x64xf32>
    %c0_39 = arith.constant 0 : index
    %c0_40 = arith.constant 0 : index
    %119 = vector.load %arg10[%c0_39, %c0_40] : memref<128x1xf32, #tpu.memory_space<vmem>>, vector<128x1xf32>
    %120 = vector.shape_cast %119 : vector<128x1xf32> to vector<1x128x1xf32>
    %121 = vector.broadcast %120 : vector<1x128x1xf32> to vector<2x128x64xf32>
    %122 = arith.addf %118, %121 : vector<2x128x64xf32>
    %c1 = arith.constant 1 : index
    %123 = memref.load %arg1[%c1] : memref<4xi32, #tpu.memory_space<smem>>
    %c16384_i32 = arith.constant 16384 : i32
    %124 = arith.muli %arg0, %c16384_i32 : i32
    %125 = tpu.iota {dimensions = array<i32: 0>} : vector<256x64xi32>
    %126 = tpu.iota {dimensions = array<i32: 1>} : vector<256x64xi32>
    %c64_i32 = arith.constant 64 : i32
    %127 = vector.broadcast %c64_i32 : i32 to vector<256x64xi32>
    %128 = arith.muli %125, %127 : vector<256x64xi32>
    %129 = vector.broadcast %124 : i32 to vector<256x64xi32>
    %130 = arith.addi %129, %128 : vector<256x64xi32>
    %131 = arith.addi %130, %126 : vector<256x64xi32>
    %c-1640531527_i32_41 = arith.constant -1640531527 : i32
    %132 = arith.muli %123, %c-1640531527_i32_41 : i32
    %133 = vector.broadcast %132 : i32 to vector<256x64xi32>
    %134 = arith.xori %131, %133 : vector<256x64xi32>
    %c16_i32_42 = arith.constant 16 : i32
    %135 = vector.broadcast %c16_i32_42 : i32 to vector<256x64xi32>
    %136 = arith.shrsi %134, %135 : vector<256x64xi32>
    %c65535_i32_43 = arith.constant 65535 : i32
    %137 = vector.broadcast %c65535_i32_43 : i32 to vector<256x64xi32>
    %138 = arith.andi %136, %137 : vector<256x64xi32>
    %139 = arith.xori %134, %138 : vector<256x64xi32>
    %c-2048144789_i32_44 = arith.constant -2048144789 : i32
    %140 = vector.broadcast %c-2048144789_i32_44 : i32 to vector<256x64xi32>
    %141 = arith.muli %139, %140 : vector<256x64xi32>
    %c13_i32_45 = arith.constant 13 : i32
    %142 = vector.broadcast %c13_i32_45 : i32 to vector<256x64xi32>
    %143 = arith.shrsi %141, %142 : vector<256x64xi32>
    %c524287_i32_46 = arith.constant 524287 : i32
    %144 = vector.broadcast %c524287_i32_46 : i32 to vector<256x64xi32>
    %145 = arith.andi %143, %144 : vector<256x64xi32>
    %146 = arith.xori %141, %145 : vector<256x64xi32>
    %c-1028477387_i32_47 = arith.constant -1028477387 : i32
    %147 = vector.broadcast %c-1028477387_i32_47 : i32 to vector<256x64xi32>
    %148 = arith.muli %146, %147 : vector<256x64xi32>
    %c16_i32_48 = arith.constant 16 : i32
    %149 = vector.broadcast %c16_i32_48 : i32 to vector<256x64xi32>
    %150 = arith.shrsi %148, %149 : vector<256x64xi32>
    %c65535_i32_49 = arith.constant 65535 : i32
    %151 = vector.broadcast %c65535_i32_49 : i32 to vector<256x64xi32>
    %152 = arith.andi %150, %151 : vector<256x64xi32>
    %153 = arith.xori %148, %152 : vector<256x64xi32>
    %c16777215_i32_50 = arith.constant 16777215 : i32
    %154 = vector.broadcast %c16777215_i32_50 : i32 to vector<256x64xi32>
    %155 = arith.andi %153, %154 : vector<256x64xi32>
    %c1677722_i32_51 = arith.constant 1677722 : i32
    %156 = vector.broadcast %c1677722_i32_51 : i32 to vector<256x64xi32>
    %157 = arith.cmpi sge, %155, %156 : vector<256x64xi32>
    %158 = vector.shape_cast %157 : vector<256x64xi1> to vector<2x128x64xi1>
    %cst_52 = arith.constant 1.11111116 : f32
    %159 = vector.broadcast %cst_52 : f32 to vector<2x128x64xf32>
    %160 = arith.mulf %122, %159 : vector<2x128x64xf32>
    %cst_53 = arith.constant 0.000000e+00 : f32
    %161 = vector.broadcast %cst_53 : f32 to vector<2x128x64xf32>
    %162 = arith.select %158, %160, %161 : vector<2x128x64xi1>, vector<2x128x64xf32>
    %cst_54 = arith.constant 0.000000e+00 : f32
    %163 = vector.broadcast %cst_54 : f32 to vector<2x128x64xf32>
    %164 = arith.maximumf %162, %163 : vector<2x128x64xf32>
    %165 = vector.shape_cast %164 : vector<2x128x64xf32> to vector<256x64xf32>
    %166 = arith.truncf %165 : vector<256x64xf32> to vector<256x64xbf16>
    %c0_55 = arith.constant 0 : index
    %c0_56 = arith.constant 0 : index
    %167 = vector.load %arg11[%c0_55, %c0_56] : memref<64x32xbf16, #tpu.memory_space<vmem>>, vector<64x32xbf16>
    %cst_57 = arith.constant dense<0.000000e+00> : vector<256x32xf32>
    %168 = tpu.matmul %166, %167, %cst_57 {dimension_numbers = #tpu.dot_dimension_numbers<[1], [0], [0], [1], [0, 0, 1, 1], [], []>} : vector<256x64xbf16>, vector<64x32xbf16>, vector<256x32xf32> -> vector<256x32xf32>
    %169 = vector.shape_cast %168 : vector<256x32xf32> to vector<2x128x32xf32>
    %c0_58 = arith.constant 0 : index
    %c0_59 = arith.constant 0 : index
    %170 = vector.load %arg12[%c0_58, %c0_59] : memref<1x32xf32, #tpu.memory_space<vmem>>, vector<1x32xf32>
    %171 = vector.shape_cast %170 : vector<1x32xf32> to vector<1x1x32xf32>
    %172 = vector.broadcast %171 : vector<1x1x32xf32> to vector<2x128x32xf32>
    %173 = arith.addf %169, %172 : vector<2x128x32xf32>
    %cst_60 = arith.constant dense<0.000000e+00> : vector<2x128xf32>
    %174 = vector.multi_reduction <add>, %173, %cst_60 [2] : vector<2x128x32xf32> to vector<2x128xf32>
    %175 = vector.shape_cast %174 : vector<2x128xf32> to vector<2x128x1xf32>
    %cst_61 = arith.constant dense<0.000000e+00> : vector<128x1xf32>
    %176 = vector.multi_reduction <add>, %175, %cst_61 [0] : vector<2x128x1xf32> to vector<128x1xf32>
    %177 = vector.shape_cast %176 : vector<128x1xf32> to vector<1x128x1xf32>
    %178 = arith.mulf %173, %173 : vector<2x128x32xf32>
    %cst_62 = arith.constant dense<0.000000e+00> : vector<2x128xf32>
    %179 = vector.multi_reduction <add>, %178, %cst_62 [2] : vector<2x128x32xf32> to vector<2x128xf32>
    %180 = vector.shape_cast %179 : vector<2x128xf32> to vector<2x128x1xf32>
    %cst_63 = arith.constant dense<0.000000e+00> : vector<128x1xf32>
    %181 = vector.multi_reduction <add>, %180, %cst_63 [0] : vector<2x128x1xf32> to vector<128x1xf32>
    %182 = vector.shape_cast %181 : vector<128x1xf32> to vector<1x128x1xf32>
    %cst_64 = arith.constant 1.562500e-02 : f32
    %183 = vector.broadcast %cst_64 : f32 to vector<1x128x1xf32>
    %184 = arith.mulf %177, %183 : vector<1x128x1xf32>
    %cst_65 = arith.constant 1.562500e-02 : f32
    %185 = vector.broadcast %cst_65 : f32 to vector<1x128x1xf32>
    %186 = arith.mulf %182, %185 : vector<1x128x1xf32>
    %187 = arith.mulf %184, %184 : vector<1x128x1xf32>
    %188 = arith.subf %186, %187 : vector<1x128x1xf32>
    %cst_66 = arith.constant 0.000000e+00 : f32
    %189 = vector.broadcast %cst_66 : f32 to vector<1x128x1xf32>
    %190 = arith.maximumf %188, %189 : vector<1x128x1xf32>
    %cst_67 = arith.constant 9.99999974E-6 : f32
    %191 = vector.broadcast %cst_67 : f32 to vector<1x128x1xf32>
    %192 = arith.addf %190, %191 : vector<1x128x1xf32>
    %193 = math.rsqrt %192 : vector<1x128x1xf32>
    %c0_68 = arith.constant 0 : index
    %c0_69 = arith.constant 0 : index
    %194 = vector.load %arg13[%c0_68, %c0_69] : memref<128x1xf32, #tpu.memory_space<vmem>>, vector<128x1xf32>
    %195 = vector.shape_cast %194 : vector<128x1xf32> to vector<1x128x1xf32>
    %196 = arith.mulf %193, %195 : vector<1x128x1xf32>
    %197 = vector.broadcast %184 : vector<1x128x1xf32> to vector<2x128x32xf32>
    %198 = arith.subf %173, %197 : vector<2x128x32xf32>
    %199 = vector.broadcast %196 : vector<1x128x1xf32> to vector<2x128x32xf32>
    %200 = arith.mulf %198, %199 : vector<2x128x32xf32>
    %c0_70 = arith.constant 0 : index
    %c0_71 = arith.constant 0 : index
    %201 = vector.load %arg14[%c0_70, %c0_71] : memref<128x1xf32, #tpu.memory_space<vmem>>, vector<128x1xf32>
    %202 = vector.shape_cast %201 : vector<128x1xf32> to vector<1x128x1xf32>
    %203 = vector.broadcast %202 : vector<1x128x1xf32> to vector<2x128x32xf32>
    %204 = arith.addf %200, %203 : vector<2x128x32xf32>
    %c2 = arith.constant 2 : index
    %205 = memref.load %arg1[%c2] : memref<4xi32, #tpu.memory_space<smem>>
    %c8192_i32 = arith.constant 8192 : i32
    %206 = arith.muli %arg0, %c8192_i32 : i32
    %207 = tpu.iota {dimensions = array<i32: 0>} : vector<256x32xi32>
    %208 = tpu.iota {dimensions = array<i32: 1>} : vector<256x32xi32>
    %c32_i32 = arith.constant 32 : i32
    %209 = vector.broadcast %c32_i32 : i32 to vector<256x32xi32>
    %210 = arith.muli %207, %209 : vector<256x32xi32>
    %211 = vector.broadcast %206 : i32 to vector<256x32xi32>
    %212 = arith.addi %211, %210 : vector<256x32xi32>
    %213 = arith.addi %212, %208 : vector<256x32xi32>
    %c-1640531527_i32_72 = arith.constant -1640531527 : i32
    %214 = arith.muli %205, %c-1640531527_i32_72 : i32
    %215 = vector.broadcast %214 : i32 to vector<256x32xi32>
    %216 = arith.xori %213, %215 : vector<256x32xi32>
    %c16_i32_73 = arith.constant 16 : i32
    %217 = vector.broadcast %c16_i32_73 : i32 to vector<256x32xi32>
    %218 = arith.shrsi %216, %217 : vector<256x32xi32>
    %c65535_i32_74 = arith.constant 65535 : i32
    %219 = vector.broadcast %c65535_i32_74 : i32 to vector<256x32xi32>
    %220 = arith.andi %218, %219 : vector<256x32xi32>
    %221 = arith.xori %216, %220 : vector<256x32xi32>
    %c-2048144789_i32_75 = arith.constant -2048144789 : i32
    %222 = vector.broadcast %c-2048144789_i32_75 : i32 to vector<256x32xi32>
    %223 = arith.muli %221, %222 : vector<256x32xi32>
    %c13_i32_76 = arith.constant 13 : i32
    %224 = vector.broadcast %c13_i32_76 : i32 to vector<256x32xi32>
    %225 = arith.shrsi %223, %224 : vector<256x32xi32>
    %c524287_i32_77 = arith.constant 524287 : i32
    %226 = vector.broadcast %c524287_i32_77 : i32 to vector<256x32xi32>
    %227 = arith.andi %225, %226 : vector<256x32xi32>
    %228 = arith.xori %223, %227 : vector<256x32xi32>
    %c-1028477387_i32_78 = arith.constant -1028477387 : i32
    %229 = vector.broadcast %c-1028477387_i32_78 : i32 to vector<256x32xi32>
    %230 = arith.muli %228, %229 : vector<256x32xi32>
    %c16_i32_79 = arith.constant 16 : i32
    %231 = vector.broadcast %c16_i32_79 : i32 to vector<256x32xi32>
    %232 = arith.shrsi %230, %231 : vector<256x32xi32>
    %c65535_i32_80 = arith.constant 65535 : i32
    %233 = vector.broadcast %c65535_i32_80 : i32 to vector<256x32xi32>
    %234 = arith.andi %232, %233 : vector<256x32xi32>
    %235 = arith.xori %230, %234 : vector<256x32xi32>
    %c16777215_i32_81 = arith.constant 16777215 : i32
    %236 = vector.broadcast %c16777215_i32_81 : i32 to vector<256x32xi32>
    %237 = arith.andi %235, %236 : vector<256x32xi32>
    %c1677722_i32_82 = arith.constant 1677722 : i32
    %238 = vector.broadcast %c1677722_i32_82 : i32 to vector<256x32xi32>
    %239 = arith.cmpi sge, %237, %238 : vector<256x32xi32>
    %240 = vector.shape_cast %239 : vector<256x32xi1> to vector<2x128x32xi1>
    %cst_83 = arith.constant 1.11111116 : f32
    %241 = vector.broadcast %cst_83 : f32 to vector<2x128x32xf32>
    %242 = arith.mulf %204, %241 : vector<2x128x32xf32>
    %cst_84 = arith.constant 0.000000e+00 : f32
    %243 = vector.broadcast %cst_84 : f32 to vector<2x128x32xf32>
    %244 = arith.select %240, %242, %243 : vector<2x128x32xi1>, vector<2x128x32xf32>
    %cst_85 = arith.constant 0.000000e+00 : f32
    %245 = vector.broadcast %cst_85 : f32 to vector<2x128x32xf32>
    %246 = arith.maximumf %244, %245 : vector<2x128x32xf32>
    %247 = vector.shape_cast %246 : vector<2x128x32xf32> to vector<256x32xf32>
    %248 = arith.truncf %247 : vector<256x32xf32> to vector<256x32xbf16>
    %c0_86 = arith.constant 0 : index
    %c0_87 = arith.constant 0 : index
    %249 = vector.load %arg15[%c0_86, %c0_87] : memref<32x16xbf16, #tpu.memory_space<vmem>>, vector<32x16xbf16>
    %cst_88 = arith.constant dense<0.000000e+00> : vector<256x16xf32>
    %250 = tpu.matmul %248, %249, %cst_88 {dimension_numbers = #tpu.dot_dimension_numbers<[1], [0], [0], [1], [0, 0, 1, 1], [], []>} : vector<256x32xbf16>, vector<32x16xbf16>, vector<256x16xf32> -> vector<256x16xf32>
    %251 = vector.shape_cast %250 : vector<256x16xf32> to vector<2x128x16xf32>
    %c0_89 = arith.constant 0 : index
    %c0_90 = arith.constant 0 : index
    %252 = vector.load %arg16[%c0_89, %c0_90] : memref<1x16xf32, #tpu.memory_space<vmem>>, vector<1x16xf32>
    %253 = vector.shape_cast %252 : vector<1x16xf32> to vector<1x1x16xf32>
    %254 = vector.broadcast %253 : vector<1x1x16xf32> to vector<2x128x16xf32>
    %255 = arith.addf %251, %254 : vector<2x128x16xf32>
    %cst_91 = arith.constant dense<0.000000e+00> : vector<2x128xf32>
    %256 = vector.multi_reduction <add>, %255, %cst_91 [2] : vector<2x128x16xf32> to vector<2x128xf32>
    %257 = vector.shape_cast %256 : vector<2x128xf32> to vector<2x128x1xf32>
    %cst_92 = arith.constant dense<0.000000e+00> : vector<128x1xf32>
    %258 = vector.multi_reduction <add>, %257, %cst_92 [0] : vector<2x128x1xf32> to vector<128x1xf32>
    %259 = vector.shape_cast %258 : vector<128x1xf32> to vector<1x128x1xf32>
    %260 = arith.mulf %255, %255 : vector<2x128x16xf32>
    %cst_93 = arith.constant dense<0.000000e+00> : vector<2x128xf32>
    %261 = vector.multi_reduction <add>, %260, %cst_93 [2] : vector<2x128x16xf32> to vector<2x128xf32>
    %262 = vector.shape_cast %261 : vector<2x128xf32> to vector<2x128x1xf32>
    %cst_94 = arith.constant dense<0.000000e+00> : vector<128x1xf32>
    %263 = vector.multi_reduction <add>, %262, %cst_94 [0] : vector<2x128x1xf32> to vector<128x1xf32>
    %264 = vector.shape_cast %263 : vector<128x1xf32> to vector<1x128x1xf32>
    %cst_95 = arith.constant 3.125000e-02 : f32
    %265 = vector.broadcast %cst_95 : f32 to vector<1x128x1xf32>
    %266 = arith.mulf %259, %265 : vector<1x128x1xf32>
    %cst_96 = arith.constant 3.125000e-02 : f32
    %267 = vector.broadcast %cst_96 : f32 to vector<1x128x1xf32>
    %268 = arith.mulf %264, %267 : vector<1x128x1xf32>
    %269 = arith.mulf %266, %266 : vector<1x128x1xf32>
    %270 = arith.subf %268, %269 : vector<1x128x1xf32>
    %cst_97 = arith.constant 0.000000e+00 : f32
    %271 = vector.broadcast %cst_97 : f32 to vector<1x128x1xf32>
    %272 = arith.maximumf %270, %271 : vector<1x128x1xf32>
    %cst_98 = arith.constant 9.99999974E-6 : f32
    %273 = vector.broadcast %cst_98 : f32 to vector<1x128x1xf32>
    %274 = arith.addf %272, %273 : vector<1x128x1xf32>
    %275 = math.rsqrt %274 : vector<1x128x1xf32>
    %c0_99 = arith.constant 0 : index
    %c0_100 = arith.constant 0 : index
    %276 = vector.load %arg17[%c0_99, %c0_100] : memref<128x1xf32, #tpu.memory_space<vmem>>, vector<128x1xf32>
    %277 = vector.shape_cast %276 : vector<128x1xf32> to vector<1x128x1xf32>
    %278 = arith.mulf %275, %277 : vector<1x128x1xf32>
    %279 = vector.broadcast %266 : vector<1x128x1xf32> to vector<2x128x16xf32>
    %280 = arith.subf %255, %279 : vector<2x128x16xf32>
    %281 = vector.broadcast %278 : vector<1x128x1xf32> to vector<2x128x16xf32>
    %282 = arith.mulf %280, %281 : vector<2x128x16xf32>
    %c0_101 = arith.constant 0 : index
    %c0_102 = arith.constant 0 : index
    %283 = vector.load %arg18[%c0_101, %c0_102] : memref<128x1xf32, #tpu.memory_space<vmem>>, vector<128x1xf32>
    %284 = vector.shape_cast %283 : vector<128x1xf32> to vector<1x128x1xf32>
    %285 = vector.broadcast %284 : vector<1x128x1xf32> to vector<2x128x16xf32>
    %286 = arith.addf %282, %285 : vector<2x128x16xf32>
    %c3 = arith.constant 3 : index
    %287 = memref.load %arg1[%c3] : memref<4xi32, #tpu.memory_space<smem>>
    %c4096_i32 = arith.constant 4096 : i32
    %288 = arith.muli %arg0, %c4096_i32 : i32
    %289 = tpu.iota {dimensions = array<i32: 0>} : vector<256x16xi32>
    %290 = tpu.iota {dimensions = array<i32: 1>} : vector<256x16xi32>
    %c16_i32_103 = arith.constant 16 : i32
    %291 = vector.broadcast %c16_i32_103 : i32 to vector<256x16xi32>
    %292 = arith.muli %289, %291 : vector<256x16xi32>
    %293 = vector.broadcast %288 : i32 to vector<256x16xi32>
    %294 = arith.addi %293, %292 : vector<256x16xi32>
    %295 = arith.addi %294, %290 : vector<256x16xi32>
    %c-1640531527_i32_104 = arith.constant -1640531527 : i32
    %296 = arith.muli %287, %c-1640531527_i32_104 : i32
    %297 = vector.broadcast %296 : i32 to vector<256x16xi32>
    %298 = arith.xori %295, %297 : vector<256x16xi32>
    %c16_i32_105 = arith.constant 16 : i32
    %299 = vector.broadcast %c16_i32_105 : i32 to vector<256x16xi32>
    %300 = arith.shrsi %298, %299 : vector<256x16xi32>
    %c65535_i32_106 = arith.constant 65535 : i32
    %301 = vector.broadcast %c65535_i32_106 : i32 to vector<256x16xi32>
    %302 = arith.andi %300, %301 : vector<256x16xi32>
    %303 = arith.xori %298, %302 : vector<256x16xi32>
    %c-2048144789_i32_107 = arith.constant -2048144789 : i32
    %304 = vector.broadcast %c-2048144789_i32_107 : i32 to vector<256x16xi32>
    %305 = arith.muli %303, %304 : vector<256x16xi32>
    %c13_i32_108 = arith.constant 13 : i32
    %306 = vector.broadcast %c13_i32_108 : i32 to vector<256x16xi32>
    %307 = arith.shrsi %305, %306 : vector<256x16xi32>
    %c524287_i32_109 = arith.constant 524287 : i32
    %308 = vector.broadcast %c524287_i32_109 : i32 to vector<256x16xi32>
    %309 = arith.andi %307, %308 : vector<256x16xi32>
    %310 = arith.xori %305, %309 : vector<256x16xi32>
    %c-1028477387_i32_110 = arith.constant -1028477387 : i32
    %311 = vector.broadcast %c-1028477387_i32_110 : i32 to vector<256x16xi32>
    %312 = arith.muli %310, %311 : vector<256x16xi32>
    %c16_i32_111 = arith.constant 16 : i32
    %313 = vector.broadcast %c16_i32_111 : i32 to vector<256x16xi32>
    %314 = arith.shrsi %312, %313 : vector<256x16xi32>
    %c65535_i32_112 = arith.constant 65535 : i32
    %315 = vector.broadcast %c65535_i32_112 : i32 to vector<256x16xi32>
    %316 = arith.andi %314, %315 : vector<256x16xi32>
    %317 = arith.xori %312, %316 : vector<256x16xi32>
    %c16777215_i32_113 = arith.constant 16777215 : i32
    %318 = vector.broadcast %c16777215_i32_113 : i32 to vector<256x16xi32>
    %319 = arith.andi %317, %318 : vector<256x16xi32>
    %c1677722_i32_114 = arith.constant 1677722 : i32
    %320 = vector.broadcast %c1677722_i32_114 : i32 to vector<256x16xi32>
    %321 = arith.cmpi sge, %319, %320 : vector<256x16xi32>
    %322 = vector.shape_cast %321 : vector<256x16xi1> to vector<2x128x16xi1>
    %cst_115 = arith.constant 1.11111116 : f32
    %323 = vector.broadcast %cst_115 : f32 to vector<2x128x16xf32>
    %324 = arith.mulf %286, %323 : vector<2x128x16xf32>
    %cst_116 = arith.constant 0.000000e+00 : f32
    %325 = vector.broadcast %cst_116 : f32 to vector<2x128x16xf32>
    %326 = arith.select %322, %324, %325 : vector<2x128x16xi1>, vector<2x128x16xf32>
    %cst_117 = arith.constant 0.000000e+00 : f32
    %327 = vector.broadcast %cst_117 : f32 to vector<2x128x16xf32>
    %328 = arith.maximumf %326, %327 : vector<2x128x16xf32>
    %cst_118 = arith.constant dense<0.000000e+00> : vector<2x16xf32>
    %329 = vector.multi_reduction <add>, %328, %cst_118 [1] : vector<2x128x16xf32> to vector<2x16xf32>
    %c0_119 = arith.constant 0 : index
    %c0_120 = arith.constant 0 : index
    %330 = vector.load %arg19[%c0_119, %c0_120] : memref<1x16xf32, #tpu.memory_space<vmem>>, vector<1x16xf32>
    %331 = vector.broadcast %330 : vector<1x16xf32> to vector<2x16xf32>
    %332 = arith.mulf %329, %331 : vector<2x16xf32>
    %cst_121 = arith.constant dense<0.000000e+00> : vector<2xf32>
    %333 = vector.multi_reduction <add>, %332, %cst_121 [1] : vector<2x16xf32> to vector<2xf32>
    %334 = vector.shape_cast %333 : vector<2xf32> to vector<2x1xf32>
    %c0_i32 = arith.constant 0 : i32
    %335 = arith.cmpi eq, %arg0, %c0_i32 : i32
    %336 = arith.extui %335 : i1 to i32
    %c0_i32_122 = arith.constant 0 : i32
    %337 = arith.cmpi ne, %336, %c0_i32_122 : i32
    scf.if %337 {
      %cst_128 = arith.constant 0.000000e+00 : f32
      %344 = vector.broadcast %cst_128 : f32 to vector<2x1xf32>
      %c0_129 = arith.constant 0 : index
      %c0_130 = arith.constant 0 : index
      %345 = vector.load %arg21[%c0_129, %c0_130] : memref<2x1xf32, #tpu.memory_space<vmem>>, vector<2x1xf32>
      tpu.vector_store %arg21[%c0_129, %c0_130], %344 {strides = array<i32>} : memref<2x1xf32, #tpu.memory_space<vmem>>, vector<2x1xf32>,
    } else {
    }
    %c0_123 = arith.constant 0 : index
    %c0_124 = arith.constant 0 : index
    %338 = vector.load %arg21[%c0_123, %c0_124] : memref<2x1xf32, #tpu.memory_space<vmem>>, vector<2x1xf32>
    %339 = arith.addf %338, %334 : vector<2x1xf32>
    %c0_125 = arith.constant 0 : index
    %c0_126 = arith.constant 0 : index
    %340 = vector.load %arg21[%c0_125, %c0_126] : memref<2x1xf32, #tpu.memory_space<vmem>>, vector<2x1xf32>
    tpu.vector_store %arg21[%c0_125, %c0_126], %339 {strides = array<i32>} : memref<2x1xf32, #tpu.memory_space<vmem>>, vector<2x1xf32>,
    %c1_i32 = arith.constant 1 : i32
    %341 = arith.cmpi eq, %arg0, %c1_i32 : i32
    %342 = arith.extui %341 : i1 to i32
    %c0_i32_127 = arith.constant 0 : i32
    %343 = arith.cmpi ne, %342, %c0_i32_127 : i32
    scf.if %343 {
      %c0_128 = arith.constant 0 : index
      %c0_129 = arith.constant 0 : index
      %344 = vector.load %arg21[%c0_128, %c0_129] : memref<2x1xf32, #tpu.memory_space<vmem>>, vector<2x1xf32>
      %cst_130 = arith.constant 3.906250e-03 : f32
      %345 = vector.broadcast %cst_130 : f32 to vector<2x1xf32>
      %346 = arith.mulf %344, %345 : vector<2x1xf32>
      %c0_131 = arith.constant 0 : index
      %c0_132 = arith.constant 0 : index
      %347 = vector.load %arg20[%c0_131, %c0_132] : memref<1x1xf32, #tpu.memory_space<vmem>>, vector<1x1xf32>
      %348 = vector.broadcast %347 : vector<1x1xf32> to vector<2x1xf32>
      %349 = arith.addf %346, %348 : vector<2x1xf32>
      %c0_133 = arith.constant 0 : index
      %c0_134 = arith.constant 0 : index
      %350 = vector.load %arg21[%c0_133, %c0_134] : memref<2x1xf32, #tpu.memory_space<vmem>>, vector<2x1xf32>
      tpu.vector_store %arg21[%c0_133, %c0_134], %349 {strides = array<i32>} : memref<2x1xf32, #tpu.memory_space<vmem>>, vector<2x1xf32>,
    } else {
    }
    return
  }
  func.func @transform_0(%arg0: i32, %arg1: memref<4xi32, #tpu.memory_space<smem>>) -> (i32, i32, i32) {
    %c0_i32 = arith.constant 0 : i32
    %c0_i32_0 = arith.constant 0 : i32
    %c0_i32_1 = arith.constant 0 : i32
    return %c0_i32, %arg0, %c0_i32_0 : i32, i32, i32
  }
  func.func @transform_1(%arg0: i32, %arg1: memref<4xi32, #tpu.memory_space<smem>>) -> (i32, i32) {
    %c0_i32 = arith.constant 0 : i32
    %c0_i32_0 = arith.constant 0 : i32
    %c0_i32_1 = arith.constant 0 : i32
    return %c0_i32, %c0_i32_0 : i32, i32
  }
  func.func @transform_2(%arg0: i32, %arg1: memref<4xi32, #tpu.memory_space<smem>>) -> (i32, i32) {
    %c0_i32 = arith.constant 0 : i32
    %c0_i32_0 = arith.constant 0 : i32
    %c0_i32_1 = arith.constant 0 : i32
    return %c0_i32, %c0_i32_0 : i32, i32
  }
  func.func @transform_3(%arg0: i32, %arg1: memref<4xi32, #tpu.memory_space<smem>>) -> (i32, i32) {
    %c0_i32 = arith.constant 0 : i32
    %c0_i32_0 = arith.constant 0 : i32
    return %arg0, %c0_i32 : i32, i32
  }
  func.func @transform_4(%arg0: i32, %arg1: memref<4xi32, #tpu.memory_space<smem>>) -> (i32, i32) {
    %c0_i32 = arith.constant 0 : i32
    %c0_i32_0 = arith.constant 0 : i32
    return %arg0, %c0_i32 : i32, i32
  }
  func.func @transform_5(%arg0: i32, %arg1: memref<4xi32, #tpu.memory_space<smem>>) -> (i32, i32) {
    %c0_i32 = arith.constant 0 : i32
    %c0_i32_0 = arith.constant 0 : i32
    %c0_i32_1 = arith.constant 0 : i32
    return %c0_i32, %c0_i32_0 : i32, i32
  }
  func.func @transform_6(%arg0: i32, %arg1: memref<4xi32, #tpu.memory_space<smem>>) -> (i32, i32) {
    %c0_i32 = arith.constant 0 : i32
    %c0_i32_0 = arith.constant 0 : i32
    %c0_i32_1 = arith.constant 0 : i32
    return %c0_i32, %c0_i32_0 : i32, i32
  }
  func.func @transform_7(%arg0: i32, %arg1: memref<4xi32, #tpu.memory_space<smem>>) -> (i32, i32) {
    %c0_i32 = arith.constant 0 : i32
    %c0_i32_0 = arith.constant 0 : i32
    return %arg0, %c0_i32 : i32, i32
  }
  func.func @transform_8(%arg0: i32, %arg1: memref<4xi32, #tpu.memory_space<smem>>) -> (i32, i32) {
    %c0_i32 = arith.constant 0 : i32
    %c0_i32_0 = arith.constant 0 : i32
    return %arg0, %c0_i32 : i32, i32
  }
  func.func @transform_9(%arg0: i32, %arg1: memref<4xi32, #tpu.memory_space<smem>>) -> (i32, i32) {
    %c0_i32 = arith.constant 0 : i32
    %c0_i32_0 = arith.constant 0 : i32
    %c0_i32_1 = arith.constant 0 : i32
    return %c0_i32, %c0_i32_0 : i32, i32
  }
  func.func @transform_10(%arg0: i32, %arg1: memref<4xi32, #tpu.memory_space<smem>>) -> (i32, i32) {
    %c0_i32 = arith.constant 0 : i32
    %c0_i32_0 = arith.constant 0 : i32
    %c0_i32_1 = arith.constant 0 : i32
    return %c0_i32, %c0_i32_0 : i32, i32
  }
  func.func @transform_11(%arg0: i32, %arg1: memref<4xi32, #tpu.memory_space<smem>>) -> (i32, i32) {
    %c0_i32 = arith.constant 0 : i32
    %c0_i32_0 = arith.constant 0 : i32
    return %arg0, %c0_i32 : i32, i32
  }
  func.func @transform_12(%arg0: i32, %arg1: memref<4xi32, #tpu.memory_space<smem>>) -> (i32, i32) {
    %c0_i32 = arith.constant 0 : i32
    %c0_i32_0 = arith.constant 0 : i32
    return %arg0, %c0_i32 : i32, i32
  }
  func.func @transform_13(%arg0: i32, %arg1: memref<4xi32, #tpu.memory_space<smem>>) -> (i32, i32) {
    %c0_i32 = arith.constant 0 : i32
    %c0_i32_0 = arith.constant 0 : i32
    %c0_i32_1 = arith.constant 0 : i32
    return %c0_i32, %c0_i32_0 : i32, i32
  }
  func.func @transform_14(%arg0: i32, %arg1: memref<4xi32, #tpu.memory_space<smem>>) -> (i32, i32) {
    %c0_i32 = arith.constant 0 : i32
    %c0_i32_0 = arith.constant 0 : i32
    %c0_i32_1 = arith.constant 0 : i32
    return %c0_i32, %c0_i32_0 : i32, i32
  }
  func.func @transform_15(%arg0: i32, %arg1: memref<4xi32, #tpu.memory_space<smem>>) -> (i32, i32) {
    %c0_i32 = arith.constant 0 : i32
    %c0_i32_0 = arith.constant 0 : i32
    return %arg0, %c0_i32 : i32, i32
  }
  func.func @transform_16(%arg0: i32, %arg1: memref<4xi32, #tpu.memory_space<smem>>) -> (i32, i32) {
    %c0_i32 = arith.constant 0 : i32
    %c0_i32_0 = arith.constant 0 : i32
    return %arg0, %c0_i32 : i32, i32
  }
  func.func @transform_17(%arg0: i32, %arg1: memref<4xi32, #tpu.memory_space<smem>>) -> (i32, i32) {
    %c0_i32 = arith.constant 0 : i32
    %c0_i32_0 = arith.constant 0 : i32
    %c0_i32_1 = arith.constant 0 : i32
    return %c0_i32, %c0_i32_0 : i32, i32
  }
  func.func @transform_18(%arg0: i32, %arg1: memref<4xi32, #tpu.memory_space<smem>>) -> (i32, i32) {
    %c0_i32 = arith.constant 0 : i32
    %c0_i32_0 = arith.constant 0 : i32
    %c0_i32_1 = arith.constant 0 : i32
    return %c0_i32, %c0_i32_0 : i32, i32
  }
  func.func @transform_19(%arg0: i32, %arg1: memref<4xi32, #tpu.memory_space<smem>>) -> (i32, i32) {
    %c0_i32 = arith.constant 0 : i32
    %c0_i32_0 = arith.constant 0 : i32
    %c0_i32_1 = arith.constant 0 : i32
    return %c0_i32, %c0_i32_0 : i32, i32
  }
}

</mosaic_0001>

<llo_original>
// kernel: kairos_ad_forward.1
$region0: #{kairos_ad_forward.1}
  #allocation0 [shape = 'u32[]', space=smem, size = 0x4, offset = 0x4, fixed_abs, tag = 'smem constant byte address 0x4 - core index']
  #allocation1 [shape = 'u32[144,128]{1,0:T(1,128)}', space=vmem, size = 0x12000, scoped, tag = 'internal scratch']
  #allocation2 [shape = 's32[1]{0}', space=sflag, size = 0x4, scoped, tag = 'scoped memory for kairos_ad_forward.1']
  #allocation3 [shape = 'u8[512]{0}', space=smem, size = 0x200, scoped, tag = 'prefetched SMEM operand 0']
  #allocation4 [shape = 'f32[1,1]{1,0:T(1,128)S(1)}', space=vmem, size = 0x200, scoped, tag = 'scoped memory for kairos_ad_forward.1']
  %s0 = inlined_call_operand.vmem [shape: s32[4], index: 0, kind: input, shape index: {}]
  %s1 = inlined_call_operand.vmem [shape: f32[2,256,256], index: 1, kind: input, shape index: {}]
  %s2 = inlined_call_operand.vmem [shape: bf16[256,128], index: 2, kind: input, shape index: {}]
  %s3 = inlined_call_operand.vmem [shape: f32[1,128], index: 3, kind: input, shape index: {}]
  %s4 = inlined_call_operand.vmem [shape: f32[256,1], index: 4, kind: input, shape index: {}]
  %s5 = inlined_call_operand.vmem [shape: f32[256,1], index: 5, kind: input, shape index: {}]
  %s6 = inlined_call_operand.vmem [shape: bf16[128,64], index: 6, kind: input, shape index: {}]
  %s7 = inlined_call_operand.vmem [shape: f32[1,64], index: 7, kind: input, shape index: {}]
  %s8 = inlined_call_operand.vmem [shape: f32[256,1], index: 8, kind: input, shape index: {}]
  %s9 = inlined_call_operand.vmem [shape: f32[256,1], index: 9, kind: input, shape index: {}]
  %s10 = inlined_call_operand.vmem [shape: bf16[64,32], index: 10, kind: input, shape index: {}]
  %s11 = inlined_call_operand.vmem [shape: f32[1,32], index: 11, kind: input, shape index: {}]
  %s12 = inlined_call_operand.vmem [shape: f32[256,1], index: 12, kind: input, shape index: {}]
  %s13 = inlined_call_operand.vmem [shape: f32[256,1], index: 13, kind: input, shape index: {}]
  %s14 = inlined_call_operand.vmem [shape: bf16[32,16], index: 14, kind: input, shape index: {}]
  %s15 = inlined_call_operand.vmem [shape: f32[1,16], index: 15, kind: input, shape index: {}]
  %s16 = inlined_call_operand.vmem [shape: f32[256,1], index: 16, kind: input, shape index: {}]
  %s17 = inlined_call_operand.vmem [shape: f32[256,1], index: 17, kind: input, shape index: {}]
  %s18 = inlined_call_operand.vmem [shape: f32[1,16], index: 18, kind: input, shape index: {}]
  %s19 = inlined_call_operand.<no memory space> [shape: f32[1,1], index: 19, kind: input, shape index: {}]
  %s20 = inlined_call_operand.vmem [shape: f32[2,1], index: 20, kind: output, shape index: {}]
  %s21 = sld [smem:[#allocation0]]
  $region140: #{kairos_ad_forward.1} parent=0
    _
  %s23 = ssub.s32 1, %s21
  %s24 = scalar_select 0, %s23, %s21
  %s25 = sshll.u32 %s0, 4
  %s26 = int_to_ptr.vmem [resolvable:$true] %s25
  %28 = dma.vmem_to_smem %s26, 16, [#allocation3], [#allocation2]
  %v29 = vstv %s19
  %30 = vst [vmem:[#allocation4] sm:$0x1] %v29
  %31 = dma.done [#allocation2], 16
  %32 = sfence
  $region1: #{kairos_ad_forward.1} parent=0
    #allocation5 [shape = 'u8[524288]{0}', space=vmem, size = 0x80000, scoped, tag = 'input window, operand 1']
    loop: start=0, step=1, limit=4
    $region2: #{kairos_ad_forward.1} parent=1 // loop_pre_header
      _
    $region3: #{kairos_ad_forward.1} parent=1 // loop_header
      %s34 = sphi 0, %s38
      %p35 = scmp.ge.s32.totalorder %s34, 4
      %s44 = sphi 0, %s46
      %s47 = sphi 0, %s44
      %s48 = sphi 0, %s47
      %s64 = sphi 0, %s48
      %s68 = sphi 0, %s68
      %s70 = sphi 0, %s68
      %s71 = sphi 0, %s70
      %s85 = sphi 0, %s71
      %s89 = sphi 0, %s89
      %s91 = sphi 0, %s89
      %s92 = sphi 0, %s91
      %s106 = sphi 0, %s92
      %s112 = sphi 0, %s114
      %s115 = sphi 0, %s112
      %s116 = sphi 0, %s115
      %s132 = sphi 0, %s116
      %s138 = sphi 0, %s140
      %s141 = sphi 0, %s138
      %s142 = sphi 0, %s141
      %s158 = sphi 0, %s142
      %s162 = sphi 0, %s162
      %s164 = sphi 0, %s162
      %s165 = sphi 0, %s164
      %s179 = sphi 0, %s165
      %s183 = sphi 0, %s183
      %s185 = sphi 0, %s183
      %s186 = sphi 0, %s185
      %s200 = sphi 0, %s186
      %s206 = sphi 0, %s208
      %s209 = sphi 0, %s206
      %s210 = sphi 0, %s209
      %s226 = sphi 0, %s210
      %s232 = sphi 0, %s234
      %s235 = sphi 0, %s232
      %s236 = sphi 0, %s235
      %s252 = sphi 0, %s236
      %s256 = sphi 0, %s256
      %s258 = sphi 0, %s256
      %s259 = sphi 0, %s258
      %s273 = sphi 0, %s259
      %s277 = sphi 0, %s277
      %s279 = sphi 0, %s277
      %s280 = sphi 0, %s279
      %s294 = sphi 0, %s280
      %s300 = sphi 0, %s302
      %s303 = sphi 0, %s300
      %s304 = sphi 0, %s303
      %s320 = sphi 0, %s304
      %s326 = sphi 0, %s328
      %s329 = sphi 0, %s326
      %s330 = sphi 0, %s329
      %s346 = sphi 0, %s330
      %s350 = sphi 0, %s350
      %s352 = sphi 0, %s350
      %s353 = sphi 0, %s352
      %s367 = sphi 0, %s353
      %s371 = sphi 0, %s371
      %s373 = sphi 0, %s371
      %s374 = sphi 0, %s373
      %s388 = sphi 0, %s374
      %s394 = sphi 0, %s396
      %s397 = sphi 0, %s394
      %s398 = sphi 0, %s397
      %s414 = sphi 0, %s398
      %s420 = sphi 0, %s422
      %s423 = sphi 0, %s420
      %s424 = sphi 0, %s423
      %s440 = sphi 0, %s424
      %s444 = sphi 0, %s444
      %s446 = sphi 0, %s444
      %s447 = sphi 0, %s446
      %s461 = sphi 0, %s447
      %s465 = sphi 0, %s465
      %s467 = sphi 0, %s465
      %s468 = sphi 0, %s467
      %s482 = sphi 0, %s468
      %s486 = sphi 0, %s486
      %s488 = sphi 0, %s486
      %s489 = sphi 0, %s488
      %s503 = sphi 0, %s489
    $region4: #{kairos_ad_forward.1} parent=1 // loop_header_branch
      %37 = sbr.rel (%p35) target = $region8
    $region5: #{kairos_ad_forward.1} parent=1 // loop_body
      %s39 = ssub.s32 %s34, 1
      %s40 = ssub.s32 %s34, 2
      %s41 = sadd.s32 %s34, 1
      %s42 = ssub.s32 %s34, %s41
      %p43 = scmp.eq.s32.totalorder %s42, 0
      %s45 = sadd.s32 %s44, 1
      %s46 = scalar_select %p43, %s44, %s45
      %p49 = pneg %p43
      %p50 = scmp.eq.s32.totalorder %s34, 1
      %p51 = por %p49, %p50
      %p52 = scmp.ne.s32.totalorder %s44, %s47
      %p53 = scmp.eq.s32.totalorder %s34, 0
      %p54 = por %p52, %p53
      %p55 = scmp.ne.s32.totalorder %s44, %s47
      %p56 = scmp.eq.s32.totalorder %s39, 1
      %p57 = por %p55, %p56
      %p58 = scmp.ne.s32.totalorder %s47, %s48
      %p59 = scmp.eq.s32.totalorder %s39, 0
      %p60 = por %p58, %p59
      %p61 = scmp.ne.s32.totalorder %s47, %s48
      %p62 = scmp.eq.s32.totalorder %s40, 1
      %p63 = por %p61, %p62
      %p65 = scmp.ne.s32.totalorder %s48, %s64
      %p66 = scmp.eq.s32.totalorder %s40, 0
      %p67 = por %p65, %p66
      %s69 = sadd.s32 %s68, 1
      %p72 = scmp.eq.s32.totalorder %s34, 1
      %p73 = scmp.ne.s32.totalorder %s68, %s70
      %p74 = scmp.eq.s32.totalorder %s34, 0
      %p75 = por %p73, %p74
      %p76 = scmp.ne.s32.totalorder %s68, %s70
      %p77 = scmp.eq.s32.totalorder %s39, 1
      %p78 = por %p76, %p77
      %p79 = scmp.ne.s32.totalorder %s70, %s71
      %p80 = scmp.eq.s32.totalorder %s39, 0
      %p81 = por %p79, %p80
      %p82 = scmp.ne.s32.totalorder %s70, %s71
      %p83 = scmp.eq.s32.totalorder %s40, 1
      %p84 = por %p82, %p83
      %p86 = scmp.ne.s32.totalorder %s71, %s85
      %p87 = scmp.eq.s32.totalorder %s40, 0
      %p88 = por %p86, %p87
      %s90 = sadd.s32 %s89, 1
      %p93 = scmp.eq.s32.totalorder %s34, 1
      %p94 = scmp.ne.s32.totalorder %s89, %s91
      %p95 = scmp.eq.s32.totalorder %s34, 0
      %p96 = por %p94, %p95
      %p97 = scmp.ne.s32.totalorder %s89, %s91
      %p98 = scmp.eq.s32.totalorder %s39, 1
      %p99 = por %p97, %p98
      %p100 = scmp.ne.s32.totalorder %s91, %s92
      %p101 = scmp.eq.s32.totalorder %s39, 0
      %p102 = por %p100, %p101
      %p103 = scmp.ne.s32.totalorder %s91, %s92
      %p104 = scmp.eq.s32.totalorder %s40, 1
      %p105 = por %p103, %p104
      %p107 = scmp.ne.s32.totalorder %s92, %s106
      %p108 = scmp.eq.s32.totalorder %s40, 0
      %p109 = por %p107, %p108
      %s110 = ssub.s32 %s34, %s41
      %p111 = scmp.eq.s32.totalorder %s110, 0
      %s113 = sadd.s32 %s112, 1
      %s114 = scalar_select %p111, %s112, %s113
      %p117 = pneg %p111
      %p118 = scmp.eq.s32.totalorder %s34, 1
      %p119 = por %p117, %p118
      %p120 = scmp.ne.s32.totalorder %s112, %s115
      %p121 = scmp.eq.s32.totalorder %s34, 0
      %p122 = por %p120, %p121
      %p123 = scmp.ne.s32.totalorder %s112, %s115
      %p124 = scmp.eq.s32.totalorder %s39, 1
      %p125 = por %p123, %p124
      %p126 = scmp.ne.s32.totalorder %s115, %s116
      %p127 = scmp.eq.s32.totalorder %s39, 0
      %p128 = por %p126, %p127
      %p129 = scmp.ne.s32.totalorder %s115, %s116
      %p130 = scmp.eq.s32.totalorder %s40, 1
      %p131 = por %p129, %p130
      %p133 = scmp.ne.s32.totalorder %s116, %s132
      %p134 = scmp.eq.s32.totalorder %s40, 0
      %p135 = por %p133, %p134
      %s136 = ssub.s32 %s34, %s41
      %p137 = scmp.eq.s32.totalorder %s136, 0
      %s139 = sadd.s32 %s138, 1
      %s140 = scalar_select %p137, %s138, %s139
      %p143 = pneg %p137
      %p144 = scmp.eq.s32.totalorder %s34, 1
      %p145 = por %p143, %p144
      %p146 = scmp.ne.s32.totalorder %s138, %s141
      %p147 = scmp.eq.s32.totalorder %s34, 0
      %p148 = por %p146, %p147
      %p149 = scmp.ne.s32.totalorder %s138, %s141
      %p150 = scmp.eq.s32.totalorder %s39, 1
      %p151 = por %p149, %p150
      %p152 = scmp.ne.s32.totalorder %s141, %s142
      %p153 = scmp.eq.s32.totalorder %s39, 0
      %p154 = por %p152, %p153
      %p155 = scmp.ne.s32.totalorder %s141, %s142
      %p156 = scmp.eq.s32.totalorder %s40, 1
      %p157 = por %p155, %p156
      %p159 = scmp.ne.s32.totalorder %s142, %s158
      %p160 = scmp.eq.s32.totalorder %s40, 0
      %p161 = por %p159, %p160
      %s163 = sadd.s32 %s162, 1
      %p166 = scmp.eq.s32.totalorder %s34, 1
      %p167 = scmp.ne.s32.totalorder %s162, %s164
      %p168 = scmp.eq.s32.totalorder %s34, 0
      %p169 = por %p167, %p168
      %p170 = scmp.ne.s32.totalorder %s162, %s164
      %p171 = scmp.eq.s32.totalorder %s39, 1
      %p172 = por %p170, %p171
      %p173 = scmp.ne.s32.totalorder %s164, %s165
      %p174 = scmp.eq.s32.totalorder %s39, 0
      %p175 = por %p173, %p174
      %p176 = scmp.ne.s32.totalorder %s164, %s165
      %p177 = scmp.eq.s32.totalorder %s40, 1
      %p178 = por %p176, %p177
      %p180 = scmp.ne.s32.totalorder %s165, %s179
      %p181 = scmp.eq.s32.totalorder %s40, 0
      %p182 = por %p180, %p181
      %s184 = sadd.s32 %s183, 1
      %p187 = scmp.eq.s32.totalorder %s34, 1
      %p188 = scmp.ne.s32.totalorder %s183, %s185
      %p189 = scmp.eq.s32.totalorder %s34, 0
      %p190 = por %p188, %p189
      %p191 = scmp.ne.s32.totalorder %s183, %s185
      %p192 = scmp.eq.s32.totalorder %s39, 1
      %p193 = por %p191, %p192
      %p194 = scmp.ne.s32.totalorder %s185, %s186
      %p195 = scmp.eq.s32.totalorder %s39, 0
      %p196 = por %p194, %p195
      %p197 = scmp.ne.s32.totalorder %s185, %s186
      %p198 = scmp.eq.s32.totalorder %s40, 1
      %p199 = por %p197, %p198
      %p201 = scmp.ne.s32.totalorder %s186, %s200
      %p202 = scmp.eq.s32.totalorder %s40, 0
      %p203 = por %p201, %p202
      %s204 = ssub.s32 %s34, %s41
      %p205 = scmp.eq.s32.totalorder %s204, 0
      %s207 = sadd.s32 %s206, 1
      %s208 = scalar_select %p205, %s206, %s207
      %p211 = pneg %p205
      %p212 = scmp.eq.s32.totalorder %s34, 1
      %p213 = por %p211, %p212
      %p214 = scmp.ne.s32.totalorder %s206, %s209
      %p215 = scmp.eq.s32.totalorder %s34, 0
      %p216 = por %p214, %p215
      %p217 = scmp.ne.s32.totalorder %s206, %s209
      %p218 = scmp.eq.s32.totalorder %s39, 1
      %p219 = por %p217, %p218
      %p220 = scmp.ne.s32.totalorder %s209, %s210
      %p221 = scmp.eq.s32.totalorder %s39, 0
      %p222 = por %p220, %p221
      %p223 = scmp.ne.s32.totalorder %s209, %s210
      %p224 = scmp.eq.s32.totalorder %s40, 1
      %p225 = por %p223, %p224
      %p227 = scmp.ne.s32.totalorder %s210, %s226
      %p228 = scmp.eq.s32.totalorder %s40, 0
      %p229 = por %p227, %p228
      %s230 = ssub.s32 %s34, %s41
      %p231 = scmp.eq.s32.totalorder %s230, 0
      %s233 = sadd.s32 %s232, 1
      %s234 = scalar_select %p231, %s232, %s233
      %p237 = pneg %p231
      %p238 = scmp.eq.s32.totalorder %s34, 1
      %p239 = por %p237, %p238
      %p240 = scmp.ne.s32.totalorder %s232, %s235
      %p241 = scmp.eq.s32.totalorder %s34, 0
      %p242 = por %p240, %p241
      %p243 = scmp.ne.s32.totalorder %s232, %s235
      %p244 = scmp.eq.s32.totalorder %s39, 1
      %p245 = por %p243, %p244
      %p246 = scmp.ne.s32.totalorder %s235, %s236
      %p247 = scmp.eq.s32.totalorder %s39, 0
      %p248 = por %p246, %p247
      %p249 = scmp.ne.s32.totalorder %s235, %s236
      %p250 = scmp.eq.s32.totalorder %s40, 1
      %p251 = por %p249, %p250
      %p253 = scmp.ne.s32.totalorder %s236, %s252
      %p254 = scmp.eq.s32.totalorder %s40, 0
      %p255 = por %p253, %p254
      %s257 = sadd.s32 %s256, 1
      %p260 = scmp.eq.s32.totalorder %s34, 1
      %p261 = scmp.ne.s32.totalorder %s256, %s258
      %p262 = scmp.eq.s32.totalorder %s34, 0
      %p263 = por %p261, %p262
      %p264 = scmp.ne.s32.totalorder %s256, %s258
      %p265 = scmp.eq.s32.totalorder %s39, 1
      %p266 = por %p264, %p265
      %p267 = scmp.ne.s32.totalorder %s258, %s259
      %p268 = scmp.eq.s32.totalorder %s39, 0
      %p269 = por %p267, %p268
      %p270 = scmp.ne.s32.totalorder %s258, %s259
      %p271 = scmp.eq.s32.totalorder %s40, 1
      %p272 = por %p270, %p271
      %p274 = scmp.ne.s32.totalorder %s259, %s273
      %p275 = scmp.eq.s32.totalorder %s40, 0
      %p276 = por %p274, %p275
      %s278 = sadd.s32 %s277, 1
      %p281 = scmp.eq.s32.totalorder %s34, 1
      %p282 = scmp.ne.s32.totalorder %s277, %s279
      %p283 = scmp.eq.s32.totalorder %s34, 0
      %p284 = por %p282, %p283
      %p285 = scmp.ne.s32.totalorder %s277, %s279
      %p286 = scmp.eq.s32.totalorder %s39, 1
      %p287 = por %p285, %p286
      %p288 = scmp.ne.s32.totalorder %s279, %s280
      %p289 = scmp.eq.s32.totalorder %s39, 0
      %p290 = por %p288, %p289
      %p291 = scmp.ne.s32.totalorder %s279, %s280
      %p292 = scmp.eq.s32.totalorder %s40, 1
      %p293 = por %p291, %p292
      %p295 = scmp.ne.s32.totalorder %s280, %s294
      %p296 = scmp.eq.s32.totalorder %s40, 0
      %p297 = por %p295, %p296
      %s298 = ssub.s32 %s34, %s41
      %p299 = scmp.eq.s32.totalorder %s298, 0
      %s301 = sadd.s32 %s300, 1
      %s302 = scalar_select %p299, %s300, %s301
      %p305 = pneg %p299
      %p306 = scmp.eq.s32.totalorder %s34, 1
      %p307 = por %p305, %p306
      %p308 = scmp.ne.s32.totalorder %s300, %s303
      %p309 = scmp.eq.s32.totalorder %s34, 0
      %p310 = por %p308, %p309
      %p311 = scmp.ne.s32.totalorder %s300, %s303
      %p312 = scmp.eq.s32.totalorder %s39, 1
      %p313 = por %p311, %p312
      %p314 = scmp.ne.s32.totalorder %s303, %s304
      %p315 = scmp.eq.s32.totalorder %s39, 0
      %p316 = por %p314, %p315
      %p317 = scmp.ne.s32.totalorder %s303, %s304
      %p318 = scmp.eq.s32.totalorder %s40, 1
      %p319 = por %p317, %p318
      %p321 = scmp.ne.s32.totalorder %s304, %s320
      %p322 = scmp.eq.s32.totalorder %s40, 0
      %p323 = por %p321, %p322
      %s324 = ssub.s32 %s34, %s41
      %p325 = scmp.eq.s32.totalorder %s324, 0
      %s327 = sadd.s32 %s326, 1
      %s328 = scalar_select %p325, %s326, %s327
      %p331 = pneg %p325
      %p332 = scmp.eq.s32.totalorder %s34, 1
      %p333 = por %p331, %p332
      %p334 = scmp.ne.s32.totalorder %s326, %s329
      %p335 = scmp.eq.s32.totalorder %s34, 0
      %p336 = por %p334, %p335
      %p337 = scmp.ne.s32.totalorder %s326, %s329
      %p338 = scmp.eq.s32.totalorder %s39, 1
      %p339 = por %p337, %p338
      %p340 = scmp.ne.s32.totalorder %s329, %s330
      %p341 = scmp.eq.s32.totalorder %s39, 0
      %p342 = por %p340, %p341
      %p343 = scmp.ne.s32.totalorder %s329, %s330
      %p344 = scmp.eq.s32.totalorder %s40, 1
      %p345 = por %p343, %p344
      %p347 = scmp.ne.s32.totalorder %s330, %s346
      %p348 = scmp.eq.s32.totalorder %s40, 0
      %p349 = por %p347, %p348
      %s351 = sadd.s32 %s350, 1
      %p354 = scmp.eq.s32.totalorder %s34, 1
      %p355 = scmp.ne.s32.totalorder %s350, %s352
      %p356 = scmp.eq.s32.totalorder %s34, 0
      %p357 = por %p355, %p356
      %p358 = scmp.ne.s32.totalorder %s350, %s352
      %p359 = scmp.eq.s32.totalorder %s39, 1
      %p360 = por %p358, %p359
      %p361 = scmp.ne.s32.totalorder %s352, %s353
      %p362 = scmp.eq.s32.totalorder %s39, 0
      %p363 = por %p361, %p362
      %p364 = scmp.ne.s32.totalorder %s352, %s353
      %p365 = scmp.eq.s32.totalorder %s40, 1
      %p366 = por %p364, %p365
      %p368 = scmp.ne.s32.totalorder %s353, %s367
      %p369 = scmp.eq.s32.totalorder %s40, 0
      %p370 = por %p368, %p369
      %s372 = sadd.s32 %s371, 1
      %p375 = scmp.eq.s32.totalorder %s34, 1
      %p376 = scmp.ne.s32.totalorder %s371, %s373
      %p377 = scmp.eq.s32.totalorder %s34, 0
      %p378 = por %p376, %p377
      %p379 = scmp.ne.s32.totalorder %s371, %s373
      %p380 = scmp.eq.s32.totalorder %s39, 1
      %p381 = por %p379, %p380
      %p382 = scmp.ne.s32.totalorder %s373, %s374
      %p383 = scmp.eq.s32.totalorder %s39, 0
      %p384 = por %p382, %p383
      %p385 = scmp.ne.s32.totalorder %s373, %s374
      %p386 = scmp.eq.s32.totalorder %s40, 1
      %p387 = por %p385, %p386
      %p389 = scmp.ne.s32.totalorder %s374, %s388
      %p390 = scmp.eq.s32.totalorder %s40, 0
      %p391 = por %p389, %p390
      %s392 = ssub.s32 %s34, %s41
      %p393 = scmp.eq.s32.totalorder %s392, 0
      %s395 = sadd.s32 %s394, 1
      %s396 = scalar_select %p393, %s394, %s395
      %p399 = pneg %p393
      %p400 = scmp.eq.s32.totalorder %s34, 1
      %p401 = por %p399, %p400
      %p402 = scmp.ne.s32.totalorder %s394, %s397
      %p403 = scmp.eq.s32.totalorder %s34, 0
      %p404 = por %p402, %p403
      %p405 = scmp.ne.s32.totalorder %s394, %s397
      %p406 = scmp.eq.s32.totalorder %s39, 1
      %p407 = por %p405, %p406
      %p408 = scmp.ne.s32.totalorder %s397, %s398
      %p409 = scmp.eq.s32.totalorder %s39, 0
      %p410 = por %p408, %p409
      %p411 = scmp.ne.s32.totalorder %s397, %s398
      %p412 = scmp.eq.s32.totalorder %s40, 1
      %p413 = por %p411, %p412
      %p415 = scmp.ne.s32.totalorder %s398, %s414
      %p416 = scmp.eq.s32.totalorder %s40, 0
      %p417 = por %p415, %p416
      %s418 = ssub.s32 %s34, %s41
      %p419 = scmp.eq.s32.totalorder %s418, 0
      %s421 = sadd.s32 %s420, 1
      %s422 = scalar_select %p419, %s420, %s421
      %p425 = pneg %p419
      %p426 = scmp.eq.s32.totalorder %s34, 1
      %p427 = por %p425, %p426
      %p428 = scmp.ne.s32.totalorder %s420, %s423
      %p429 = scmp.eq.s32.totalorder %s34, 0
      %p430 = por %p428, %p429
      %p431 = scmp.ne.s32.totalorder %s420, %s423
      %p432 = scmp.eq.s32.totalorder %s39, 1
      %p433 = por %p431, %p432
      %p434 = scmp.ne.s32.totalorder %s423, %s424
      %p435 = scmp.eq.s32.totalorder %s39, 0
      %p436 = por %p434, %p435
      %p437 = scmp.ne.s32.totalorder %s423, %s424
      %p438 = scmp.eq.s32.totalorder %s40, 1
      %p439 = por %p437, %p438
      %p441 = scmp.ne.s32.totalorder %s424, %s440
      %p442 = scmp.eq.s32.totalorder %s40, 0
      %p443 = por %p441, %p442
      %s445 = sadd.s32 %s444, 1
      %p448 = scmp.eq.s32.totalorder %s34, 1
      %p449 = scmp.ne.s32.totalorder %s444, %s446
      %p450 = scmp.eq.s32.totalorder %s34, 0
      %p451 = por %p449, %p450
      %p452 = scmp.ne.s32.totalorder %s444, %s446
      %p453 = scmp.eq.s32.totalorder %s39, 1
      %p454 = por %p452, %p453
      %p455 = scmp.ne.s32.totalorder %s446, %s447
      %p456 = scmp.eq.s32.totalorder %s39, 0
      %p457 = por %p455, %p456
      %p458 = scmp.ne.s32.totalorder %s446, %s447
      %p459 = scmp.eq.s32.totalorder %s40, 1
      %p460 = por %p458, %p459
      %p462 = scmp.ne.s32.totalorder %s447, %s461
      %p463 = scmp.eq.s32.totalorder %s40, 0
      %p464 = por %p462, %p463
      %s466 = sadd.s32 %s465, 1
      %p469 = scmp.eq.s32.totalorder %s34, 1
      %p470 = scmp.ne.s32.totalorder %s465, %s467
      %p471 = scmp.eq.s32.totalorder %s34, 0
      %p472 = por %p470, %p471
      %p473 = scmp.ne.s32.totalorder %s465, %s467
      %p474 = scmp.eq.s32.totalorder %s39, 1
      %p475 = por %p473, %p474
      %p476 = scmp.ne.s32.totalorder %s467, %s468
      %p477 = scmp.eq.s32.totalorder %s39, 0
      %p478 = por %p476, %p477
      %p479 = scmp.ne.s32.totalorder %s467, %s468
      %p480 = scmp.eq.s32.totalorder %s40, 1
      %p481 = por %p479, %p480
      %p483 = scmp.ne.s32.totalorder %s468, %s482
      %p484 = scmp.eq.s32.totalorder %s40, 0
      %p485 = por %p483, %p484
      %s487 = sadd.s32 %s486, 1
      %p490 = scmp.eq.s32.totalorder %s34, 1
      %p491 = scmp.ne.s32.totalorder %s486, %s488
      %p492 = scmp.eq.s32.totalorder %s34, 0
      %p493 = por %p491, %p492
      %p494 = scmp.ne.s32.totalorder %s486, %s488
      %p495 = scmp.eq.s32.totalorder %s39, 1
      %p496 = por %p494, %p495
      %p497 = scmp.ne.s32.totalorder %s488, %s489
      %p498 = scmp.eq.s32.totalorder %s39, 0
      %p499 = por %p497, %p498
      %p500 = scmp.ne.s32.totalorder %s488, %s489
      %p501 = scmp.eq.s32.totalorder %s40, 1
      %p502 = por %p500, %p501
      %p504 = scmp.ne.s32.totalorder %s489, %s503
      %p505 = scmp.eq.s32.totalorder %s40, 0
      %p506 = por %p504, %p505
      %p507 = scmp.le.s32.totalorder 1, %s34
      %p508 = scmp.lt.s32.totalorder %s34, 3
      %p509 = pnand %p507, %p508
      %p510 = pneg %p509
      // Predicated region
      $region9: #{kairos_ad_forward.1} parent=5 // pred_check
        _
      $region10: #{kairos_ad_forward.1} parent=5 // pred_check_branch
        %512 = sbr.rel (%p509) target = $region12
      $region11: #{kairos_ad_forward.1} parent=5 // pred_region
        %s513 = ssub.s32 %s34, 1
        // Predicated region
        $region13: #{kairos_ad_forward.1} parent=11 // pred_check
          %p514 = pneg %p81
        $region14: #{kairos_ad_forward.1} parent=11 // pred_check_branch
          %516 = sbr.rel (%p514) target = $region16
        $region15: #{kairos_ad_forward.1} parent=11 // pred_region
          _
        $region16: #{kairos_ad_forward.1} parent=11 // pred_fallthru
          _
        // Predicated region
        $region17: #{kairos_ad_forward.1} parent=11 // pred_check
          %p517 = pneg %p102
        $region18: #{kairos_ad_forward.1} parent=11 // pred_check_branch
          %519 = sbr.rel (%p517) target = $region20
        $region19: #{kairos_ad_forward.1} parent=11 // pred_region
          _
        $region20: #{kairos_ad_forward.1} parent=11 // pred_fallthru
          _
        // Predicated region
        $region21: #{kairos_ad_forward.1} parent=11 // pred_check
          %p520 = pneg %p175
        $region22: #{kairos_ad_forward.1} parent=11 // pred_check_branch
          %522 = sbr.rel (%p520) target = $region24
        $region23: #{kairos_ad_forward.1} parent=11 // pred_region
          _
        $region24: #{kairos_ad_forward.1} parent=11 // pred_fallthru
          _
        // Predicated region
        $region25: #{kairos_ad_forward.1} parent=11 // pred_check
          %p523 = pneg %p196
        $region26: #{kairos_ad_forward.1} parent=11 // pred_check_branch
          %525 = sbr.rel (%p523) target = $region28
        $region27: #{kairos_ad_forward.1} parent=11 // pred_region
          _
        $region28: #{kairos_ad_forward.1} parent=11 // pred_fallthru
          _
        // Predicated region
        $region29: #{kairos_ad_forward.1} parent=11 // pred_check
          %p526 = pneg %p269
        $region30: #{kairos_ad_forward.1} parent=11 // pred_check_branch
          %528 = sbr.rel (%p526) target = $region32
        $region31: #{kairos_ad_forward.1} parent=11 // pred_region
          _
        $region32: #{kairos_ad_forward.1} parent=11 // pred_fallthru
          _
        // Predicated region
        $region33: #{kairos_ad_forward.1} parent=11 // pred_check
          %p529 = pneg %p290
        $region34: #{kairos_ad_forward.1} parent=11 // pred_check_branch
          %531 = sbr.rel (%p529) target = $region36
        $region35: #{kairos_ad_forward.1} parent=11 // pred_region
          _
        $region36: #{kairos_ad_forward.1} parent=11 // pred_fallthru
          _
        // Predicated region
        $region37: #{kairos_ad_forward.1} parent=11 // pred_check
          %p532 = pneg %p363
        $region38: #{kairos_ad_forward.1} parent=11 // pred_check_branch
          %534 = sbr.rel (%p532) target = $region40
        $region39: #{kairos_ad_forward.1} parent=11 // pred_region
          _
        $region40: #{kairos_ad_forward.1} parent=11 // pred_fallthru
          _
        // Predicated region
        $region41: #{kairos_ad_forward.1} parent=11 // pred_check
          %p535 = pneg %p384
        $region42: #{kairos_ad_forward.1} parent=11 // pred_check_branch
          %537 = sbr.rel (%p535) target = $region44
        $region43: #{kairos_ad_forward.1} parent=11 // pred_region
          _
        $region44: #{kairos_ad_forward.1} parent=11 // pred_fallthru
          _
        // Predicated region
        $region45: #{kairos_ad_forward.1} parent=11 // pred_check
          %p538 = pneg %p457
        $region46: #{kairos_ad_forward.1} parent=11 // pred_check_branch
          %540 = sbr.rel (%p538) target = $region48
        $region47: #{kairos_ad_forward.1} parent=11 // pred_region
          _
        $region48: #{kairos_ad_forward.1} parent=11 // pred_fallthru
          _
        // Predicated region
        $region49: #{kairos_ad_forward.1} parent=11 // pred_check
          %p541 = pneg %p478
        $region50: #{kairos_ad_forward.1} parent=11 // pred_check_branch
          %543 = sbr.rel (%p541) target = $region52
        $region51: #{kairos_ad_forward.1} parent=11 // pred_region
          _
        $region52: #{kairos_ad_forward.1} parent=11 // pred_fallthru
          _
      $region12: #{kairos_ad_forward.1} parent=5 // pred_fallthru
        _
      %p544 = scmp.lt.s32.totalorder %s34, 2
      // Predicated region
      $region53: #{kairos_ad_forward.1} parent=5 // pred_check
        %p545 = pneg %p544
      $region54: #{kairos_ad_forward.1} parent=5 // pred_check_branch
        %547 = sbr.rel (%p545) target = $region56
      $region55: #{kairos_ad_forward.1} parent=5 // pred_region
        // Predicated region
        $region57: #{kairos_ad_forward.1} parent=55 // pred_check
          %p548 = pneg %p54
        $region58: #{kairos_ad_forward.1} parent=55 // pred_check_branch
          %550 = sbr.rel (%p548) target = $region60
        $region59: #{kairos_ad_forward.1} parent=55 // pred_region
          %s551 = sand.u32 %s44, 1
          %s552 = sand.u32 %s44, 1
          %s553 = smul.addr %s552, 512
          %s554 = scalar_lea.vmem [#allocation5], %s553
          %s555 = smul.u32 16, %s34
          %s556 = smul.addr %s555, 2
          %s557 = smul.addr %s556, 8
          %s558 = scalar_lea.vmem %s1, %s557
          // Predicated region
          $region61: #{kairos_ad_forward.1} parent=59 // pred_check
            _
          $region62: #{kairos_ad_forward.1} parent=59 // pred_check_branch
            %560 = sbr.rel (0) target = $region64
          $region63: #{kairos_ad_forward.1} parent=59 // pred_region
            // Predicated region
            $region65: #{kairos_ad_forward.1} parent=63 // pred_check
              _
            $region66: #{kairos_ad_forward.1} parent=63 // pred_check_branch
              %562 = sbr.rel (0) target = $region68
            $region67: #{kairos_ad_forward.1} parent=63 // pred_region
              loop: start=0, step=1, limit=1
              $region69: #{kairos_ad_forward.1} parent=67 // loop_pre_header
                _
              $region70: #{kairos_ad_forward.1} parent=67 // loop_header
                %s564 = sphi 0, %s568
                %p565 = scmp.ge.s32.totalorder %s564, 1
                %s569 = sphi %s558, %s558
                %s570 = sphi %s554, %s554
              $region71: #{kairos_ad_forward.1} parent=67 // loop_header_branch
                %567 = sbr.rel (%p565) target = $region75
              $region72: #{kairos_ad_forward.1} parent=67 // loop_body
                %v571 = vld [vmem:[%s569] sm:$0xff]
                %572 = vst [vmem:[%s570] sm:$0xff] %v571
                %v573 = vld [vmem:[%s569 + $0x8] sm:$0xff]
                %574 = vst [vmem:[%s570 + $0x8] sm:$0xff] %v573
                %v575 = vld [vmem:[%s569 + $0x10] sm:$0xff]
                %576 = vst [vmem:[%s570 + $0x10] sm:$0xff] %v575
                %v577 = vld [vmem:[%s569 + $0x18] sm:$0xff]
                %578 = vst [vmem:[%s570 + $0x18] sm:$0xff] %v577
                %v579 = vld [vmem:[%s569 + $0x20] sm:$0xff]
                %580 = vst [vmem:[%s570 + $0x20] sm:$0xff] %v579
                %v581 = vld [vmem:[%s569 + $0x28] sm:$0xff]
                %582 = vst [vmem:[%s570 + $0x28] sm:$0xff] %v581
                %v583 = vld [vmem:[%s569 + $0x30] sm:$0xff]
                %584 = vst [vmem:[%s570 + $0x30] sm:$0xff] %v583
                %v585 = vld [vmem:[%s569 + $0x38] sm:$0xff]
                %586 = vst [vmem:[%s570 + $0x38] sm:$0xff] %v585
                %v587 = vld [vmem:[%s569 + $0x40] sm:$0xff]
                %588 = vst [vmem:[%s570 + $0x40] sm:$0xff] %v587
                %v589 = vld [vmem:[%s569 + $0x48] sm:$0xff]
                %590 = vst [vmem:[%s570 + $0x48] sm:$0xff] %v589
                %v591 = vld [vmem:[%s569 + $0x50] sm:$0xff]
                %592 = vst [vmem:[%s570 + $0x50] sm:$0xff] %v591
                %v593 = vld [vmem:[%s569 + $0x58] sm:$0xff]
                %594 = vst [vmem:[%s570 + $0x58] sm:$0xff] %v593
                %v595 = vld [vmem:[%s569 + $0x60] sm:$0xff]
                %596 = vst [vmem:[%s570 + $0x60] sm:$0xff] %v595
                %v597 = vld [vmem:[%s569 + $0x68] sm:$0xff]
                %598 = vst [vmem:[%s570 + $0x68] sm:$0xff] %v597
                %v599 = vld [vmem:[%s569 + $0x70] sm:$0xff]
                %600 = vst [vmem:[%s570 + $0x70] sm:$0xff] %v599
                %v601 = vld [vmem:[%s569 + $0x78] sm:$0xff]
                %602 = vst [vmem:[%s570 + $0x78] sm:$0xff] %v601
                %v603 = vld [vmem:[%s569 + $0x80] sm:$0xff]
                %604 = vst [vmem:[%s570 + $0x80] sm:$0xff] %v603
                %v605 = vld [vmem:[%s569 + $0x88] sm:$0xff]
                %606 = vst [vmem:[%s570 + $0x88] sm:$0xff] %v605
                %v607 = vld [vmem:[%s569 + $0x90] sm:$0xff]
                %608 = vst [vmem:[%s570 + $0x90] sm:$0xff] %v607
                %v609 = vld [vmem:[%s569 + $0x98] sm:$0xff]
                %610 = vst [vmem:[%s570 + $0x98] sm:$0xff] %v609
                %v611 = vld [vmem:[%s569 + $0xa0] sm:$0xff]
                %612 = vst [vmem:[%s570 + $0xa0] sm:$0xff] %v611
                %v613 = vld [vmem:[%s569 + $0xa8] sm:$0xff]
                %614 = vst [vmem:[%s570 + $0xa8] sm:$0xff] %v613
                %v615 = vld [vmem:[%s569 + $0xb0] sm:$0xff]
                %616 = vst [vmem:[%s570 + $0xb0] sm:$0xff] %v615
                %v617 = vld [vmem:[%s569 + $0xb8] sm:$0xff]
                %618 = vst [vmem:[%s570 + $0xb8] sm:$0xff] %v617
                %v619 = vld [vmem:[%s569 + $0xc0] sm:$0xff]
                %620 = vst [vmem:[%s570 + $0xc0] sm:$0xff] %v619
                %v621 = vld [vmem:[%s569 + $0xc8] sm:$0xff]
                %622 = vst [vmem:[%s570 + $0xc8] sm:$0xff] %v621
                %v623 = vld [vmem:[%s569 + $0xd0] sm:$0xff]
                %624 = vst [vmem:[%s570 + $0xd0] sm:$0xff] %v623
                %v625 = vld [vmem:[%s569 + $0xd8] sm:$0xff]
                %626 = vst [vmem:[%s570 + $0xd8] sm:$0xff] %v625
                %v627 = vld [vmem:[%s569 + $0xe0] sm:$0xff]
                %628 = vst [vmem:[%s570 + $0xe0] sm:$0xff] %v627
                %v629 = vld [vmem:[%s569 + $0xe8] sm:$0xff]
                %630 = vst [vmem:[%s570 + $0xe8] sm:$0xff] %v629
                %v631 = vld [vmem:[%s569 + $0xf0] sm:$0xff]
                %632 = vst [vmem:[%s570 + $0xf0] sm:$0xff] %v631
                %v633 = vld [vmem:[%s569 + $0xf8] sm:$0xff]
                %634 = vst [vmem:[%s570 + $0xf8] sm:$0xff] %v633
                %v635 = vld [vmem:[%s569 + $0x200] sm:$0xff]
                %636 = vst [vmem:[%s570 + $0x100] sm:$0xff] %v635
                %v637 = vld [vmem:[%s569 + $0x208] sm:$0xff]
                %638 = vst [vmem:[%s570 + $0x108] sm:$0xff] %v637
                %v639 = vld [vmem:[%s569 + $0x210] sm:$0xff]
                %640 = vst [vmem:[%s570 + $0x110] sm:$0xff] %v639
                %v641 = vld [vmem:[%s569 + $0x218] sm:$0xff]
                %642 = vst [vmem:[%s570 + $0x118] sm:$0xff] %v641
                %v643 = vld [vmem:[%s569 + $0x220] sm:$0xff]
                %644 = vst [vmem:[%s570 + $0x120] sm:$0xff] %v643
                %v645 = vld [vmem:[%s569 + $0x228] sm:$0xff]
                %646 = vst [vmem:[%s570 + $0x128] sm:$0xff] %v645
                %v647 = vld [vmem:[%s569 + $0x230] sm:$0xff]
                %648 = vst [vmem:[%s570 + $0x130] sm:$0xff] %v647
                %v649 = vld [vmem:[%s569 + $0x238] sm:$0xff]
                %650 = vst [vmem:[%s570 + $0x138] sm:$0xff] %v649
                %v651 = vld [vmem:[%s569 + $0x240] sm:$0xff]
                %652 = vst [vmem:[%s570 + $0x140] sm:$0xff] %v651
                %v653 = vld [vmem:[%s569 + $0x248] sm:$0xff]
                %654 = vst [vmem:[%s570 + $0x148] sm:$0xff] %v653
                %v655 = vld [vmem:[%s569 + $0x250] sm:$0xff]
                %656 = vst [vmem:[%s570 + $0x150] sm:$0xff] %v655
                %v657 = vld [vmem:[%s569 + $0x258] sm:$0xff]
                %658 = vst [vmem:[%s570 + $0x158] sm:$0xff] %v657
                %v659 = vld [vmem:[%s569 + $0x260] sm:$0xff]
                %660 = vst [vmem:[%s570 + $0x160] sm:$0xff] %v659
                %v661 = vld [vmem:[%s569 + $0x268] sm:$0xff]
                %662 = vst [vmem:[%s570 + $0x168] sm:$0xff] %v661
                %v663 = vld [vmem:[%s569 + $0x270] sm:$0xff]
                %664 = vst [vmem:[%s570 + $0x170] sm:$0xff] %v663
                %v665 = vld [vmem:[%s569 + $0x278] sm:$0xff]
                %666 = vst [vmem:[%s570 + $0x178] sm:$0xff] %v665
                %v667 = vld [vmem:[%s569 + $0x280] sm:$0xff]
                %668 = vst [vmem:[%s570 + $0x180] sm:$0xff] %v667
                %v669 = vld [vmem:[%s569 + $0x288] sm:$0xff]
                %670 = vst [vmem:[%s570 + $0x188] sm:$0xff] %v669
                %v671 = vld [vmem:[%s569 + $0x290] sm:$0xff]
                %672 = vst [vmem:[%s570 + $0x190] sm:$0xff] %v671
                %v673 = vld [vmem:[%s569 + $0x298] sm:$0xff]
                %674 = vst [vmem:[%s570 + $0x198] sm:$0xff] %v673
                %v675 = vld [vmem:[%s569 + $0x2a0] sm:$0xff]
                %676 = vst [vmem:[%s570 + $0x1a0] sm:$0xff] %v675
                %v677 = vld [vmem:[%s569 + $0x2a8] sm:$0xff]
                %678 = vst [vmem:[%s570 + $0x1a8] sm:$0xff] %v677
                %v679 = vld [vmem:[%s569 + $0x2b0] sm:$0xff]
                %680 = vst [vmem:[%s570 + $0x1b0] sm:$0xff] %v679
                %v681 = vld [vmem:[%s569 + $0x2b8] sm:$0xff]
                %682 = vst [vmem:[%s570 + $0x1b8] sm:$0xff] %v681
                %v683 = vld [vmem:[%s569 + $0x2c0] sm:$0xff]
                %684 = vst [vmem:[%s570 + $0x1c0] sm:$0xff] %v683
                %v685 = vld [vmem:[%s569 + $0x2c8] sm:$0xff]
                %686 = vst [vmem:[%s570 + $0x1c8] sm:$0xff] %v685
                %v687 = vld [vmem:[%s569 + $0x2d0] sm:$0xff]
                %688 = vst [vmem:[%s570 + $0x1d0] sm:$0xff] %v687
                %v689 = vld [vmem:[%s569 + $0x2d8] sm:$0xff]
                %690 = vst [vmem:[%s570 + $0x1d8] sm:$0xff] %v689
                %v691 = vld [vmem:[%s569 + $0x2e0] sm:$0xff]
                %692 = vst [vmem:[%s570 + $0x1e0] sm:$0xff] %v691
                %v693 = vld [vmem:[%s569 + $0x2e8] sm:$0xff]
                %694 = vst [vmem:[%s570 + $0x1e8] sm:$0xff] %v693
                %v695 = vld [vmem:[%s569 + $0x2f0] sm:$0xff]
                %696 = vst [vmem:[%s570 + $0x1f0] sm:$0xff] %v695
                %v697 = vld [vmem:[%s569 + $0x2f8] sm:$0xff]
                %698 = vst [vmem:[%s570 + $0x1f8] sm:$0xff] %v697
              $region73: #{kairos_ad_forward.1} parent=67 // loop_footer
                %s568 = sadd.s32 1, %s564
              $region74: #{kairos_ad_forward.1} parent=67 // loop_footer_branch
                %563 = sbr.rel target = $region70
              $region75: #{kairos_ad_forward.1} parent=67 // loop_exit
                _
            $region68: #{kairos_ad_forward.1} parent=63 // pred_fallthru
              _
            // Predicated region
            $region76: #{kairos_ad_forward.1} parent=63 // pred_check
              _
            $region77: #{kairos_ad_forward.1} parent=63 // pred_check_branch
              %700 = sbr.rel target = $region79
            $region78: #{kairos_ad_forward.1} parent=63 // pred_region
              _
            $region79: #{kairos_ad_forward.1} parent=63 // pred_fallthru
              _
          $region64: #{kairos_ad_forward.1} parent=59 // pred_fallthru
            _
          %701 = vnop
        $region60: #{kairos_ad_forward.1} parent=55 // pred_fallthru
          _
        // Predicated region
        $region80: #{kairos_ad_forward.1} parent=55 // pred_check
          %p702 = pneg %p122
        $region81: #{kairos_ad_forward.1} parent=55 // pred_check_branch
          %704 = sbr.rel (%p702) target = $region83
        $region82: #{kairos_ad_forward.1} parent=55 // pred_region
          %s705 = smul.u32 16, %s34
          %p706 = scmp.lt.s32.totalorder %s705, 31
          %s707 = scalar_select %p706, %s705, 31
          %s708 = smul.addr %s707, 8
          %s709 = scalar_lea.vmem %s4, %s708
          %s710 = smul.u32 16, %s34
        $region83: #{kairos_ad_forward.1} parent=55 // pred_fallthru
          _
        // Predicated region
        $region84: #{kairos_ad_forward.1} parent=55 // pred_check
          %p711 = pneg %p148
        $region85: #{kairos_ad_forward.1} parent=55 // pred_check_branch
          %713 = sbr.rel (%p711) target = $region87
        $region86: #{kairos_ad_forward.1} parent=55 // pred_region
          %s714 = smul.u32 16, %s34
          %p715 = scmp.lt.s32.totalorder %s714, 31
          %s716 = scalar_select %p715, %s714, 31
          %s717 = smul.addr %s716, 8
          %s718 = scalar_lea.vmem %s5, %s717
          %s719 = smul.u32 16, %s34
        $region87: #{kairos_ad_forward.1} parent=55 // pred_fallthru
          _
        // Predicated region
        $region88: #{kairos_ad_forward.1} parent=55 // pred_check
          %p720 = pneg %p216
        $region89: #{kairos_ad_forward.1} parent=55 // pred_check_branch
          %722 = sbr.rel (%p720) target = $region91
        $region90: #{kairos_ad_forward.1} parent=55 // pred_region
          %s723 = smul.u32 16, %s34
          %p724 = scmp.lt.s32.totalorder %s723, 31
          %s725 = scalar_select %p724, %s723, 31
          %s726 = smul.addr %s725, 8
          %s727 = scalar_lea.vmem %s8, %s726
          %s728 = smul.u32 16, %s34
        $region91: #{kairos_ad_forward.1} parent=55 // pred_fallthru
          _
        // Predicated region
        $region92: #{kairos_ad_forward.1} parent=55 // pred_check
          %p729 = pneg %p242
        $region93: #{kairos_ad_forward.1} parent=55 // pred_check_branch
          %731 = sbr.rel (%p729) target = $region95
        $region94: #{kairos_ad_forward.1} parent=55 // pred_region
          %s732 = smul.u32 16, %s34
          %p733 = scmp.lt.s32.totalorder %s732, 31
          %s734 = scalar_select %p733, %s732, 31
          %s735 = smul.addr %s734, 8
          %s736 = scalar_lea.vmem %s9, %s735
          %s737 = smul.u32 16, %s34
        $region95: #{kairos_ad_forward.1} parent=55 // pred_fallthru
          _
        // Predicated region
        $region96: #{kairos_ad_forward.1} parent=55 // pred_check
          %p738 = pneg %p310
        $region97: #{kairos_ad_forward.1} parent=55 // pred_check_branch
          %740 = sbr.rel (%p738) target = $region99
        $region98: #{kairos_ad_forward.1} parent=55 // pred_region
          %s741 = smul.u32 16, %s34
          %p742 = scmp.lt.s32.totalorder %s741, 31
          %s743 = scalar_select %p742, %s741, 31
          %s744 = smul.addr %s743, 8
          %s745 = scalar_lea.vmem %s12, %s744
          %s746 = smul.u32 16, %s34
        $region99: #{kairos_ad_forward.1} parent=55 // pred_fallthru
          _
        // Predicated region
        $region100: #{kairos_ad_forward.1} parent=55 // pred_check
          %p747 = pneg %p336
        $region101: #{kairos_ad_forward.1} parent=55 // pred_check_branch
          %749 = sbr.rel (%p747) target = $region103
        $region102: #{kairos_ad_forward.1} parent=55 // pred_region
          %s750 = smul.u32 16, %s34
          %p751 = scmp.lt.s32.totalorder %s750, 31
          %s752 = scalar_select %p751, %s750, 31
          %s753 = smul.addr %s752, 8
          %s754 = scalar_lea.vmem %s13, %s753
          %s755 = smul.u32 16, %s34
        $region103: #{kairos_ad_forward.1} parent=55 // pred_fallthru
          _
        // Predicated region
        $region104: #{kairos_ad_forward.1} parent=55 // pred_check
          %p756 = pneg %p404
        $region105: #{kairos_ad_forward.1} parent=55 // pred_check_branch
          %758 = sbr.rel (%p756) target = $region107
        $region106: #{kairos_ad_forward.1} parent=55 // pred_region
          %s759 = smul.u32 16, %s34
          %p760 = scmp.lt.s32.totalorder %s759, 31
          %s761 = scalar_select %p760, %s759, 31
          %s762 = smul.addr %s761, 8
          %s763 = scalar_lea.vmem %s16, %s762
          %s764 = smul.u32 16, %s34
        $region107: #{kairos_ad_forward.1} parent=55 // pred_fallthru
          _
        // Predicated region
        $region108: #{kairos_ad_forward.1} parent=55 // pred_check
          %p765 = pneg %p430
        $region109: #{kairos_ad_forward.1} parent=55 // pred_check_branch
          %767 = sbr.rel (%p765) target = $region111
        $region110: #{kairos_ad_forward.1} parent=55 // pred_region
          %s768 = smul.u32 16, %s34
          %p769 = scmp.lt.s32.totalorder %s768, 31
          %s770 = scalar_select %p769, %s768, 31
          %s771 = smul.addr %s770, 8
          %s772 = scalar_lea.vmem %s17, %s771
          %s773 = smul.u32 16, %s34
        $region111: #{kairos_ad_forward.1} parent=55 // pred_fallthru
          _
      $region56: #{kairos_ad_forward.1} parent=5 // pred_fallthru
        _
      %p774 = scmp.le.s32.totalorder 1, %s34
      %p775 = scmp.lt.s32.totalorder %s34, 3
      %p776 = pnand %p774, %p775
      %p777 = pneg %p776
      // Predicated region
      $region112: #{kairos_ad_forward.1} parent=5 // pred_check
        _
      $region113: #{kairos_ad_forward.1} parent=5 // pred_check_branch
        %779 = sbr.rel (%p776) target = $region115
      $region114: #{kairos_ad_forward.1} parent=5 // pred_region
        %s780 = ssub.s32 %s34, 1
        %s781 = sand.u32 %s47, 1
        %s782 = sand.u32 %s47, 1
        %s783 = smul.addr %s782, 512
        %s784 = scalar_lea.vmem [#allocation5], %s783
        // Predicated region
        $region116: #{kairos_ad_forward.1} parent=114 // pred_check
          %p785 = pneg %p60
        $region117: #{kairos_ad_forward.1} parent=114 // pred_check_branch
          %787 = sbr.rel (%p785) target = $region119
        $region118: #{kairos_ad_forward.1} parent=114 // pred_region
          _
        $region119: #{kairos_ad_forward.1} parent=114 // pred_fallthru
          _
        %s788 = sand.u32 %s47, 1
        %s789 = sand.u32 %s47, 1
        %s790 = smul.addr %s789, 512
        %s791 = scalar_lea.vmem [#allocation5], %s790
        %p792 = pneg %p60
        %p793 = pneg %p57
        %p794 = pneg %p81
        %p795 = pneg %p78
        %p796 = pneg %p102
        %p797 = pneg %p99
        %s798 = smul.u32 16, %s39
        %p799 = scmp.lt.s32.totalorder %s798, 31
        %s800 = scalar_select %p799, %s798, 31
        %s801 = smul.addr %s800, 8
        %s802 = scalar_lea.vmem %s4, %s801
        %p803 = pneg %p128
        %p804 = pneg %p125
        %s805 = smul.u32 16, %s39
        %p806 = scmp.lt.s32.totalorder %s805, 31
        %s807 = scalar_select %p806, %s805, 31
        %s808 = smul.addr %s807, 8
        %s809 = scalar_lea.vmem %s5, %s808
        %p810 = pneg %p154
        %p811 = pneg %p151
        %p812 = pneg %p175
        %p813 = pneg %p172
        %p814 = pneg %p196
        %p815 = pneg %p193
        %s816 = smul.u32 16, %s39
        %p817 = scmp.lt.s32.totalorder %s816, 31
        %s818 = scalar_select %p817, %s816, 31
        %s819 = smul.addr %s818, 8
        %s820 = scalar_lea.vmem %s8, %s819
        %p821 = pneg %p222
        %p822 = pneg %p219
        %s823 = smul.u32 16, %s39
        %p824 = scmp.lt.s32.totalorder %s823, 31
        %s825 = scalar_select %p824, %s823, 31
        %s826 = smul.addr %s825, 8
        %s827 = scalar_lea.vmem %s9, %s826
        %p828 = pneg %p248
        %p829 = pneg %p245
        %p830 = pneg %p269
        %p831 = pneg %p266
        %p832 = pneg %p290
        %p833 = pneg %p287
        %s834 = smul.u32 16, %s39
        %p835 = scmp.lt.s32.totalorder %s834, 31
        %s836 = scalar_select %p835, %s834, 31
        %s837 = smul.addr %s836, 8
        %s838 = scalar_lea.vmem %s12, %s837
        %p839 = pneg %p316
        %p840 = pneg %p313
        %s841 = smul.u32 16, %s39
        %p842 = scmp.lt.s32.totalorder %s841, 31
        %s843 = scalar_select %p842, %s841, 31
        %s844 = smul.addr %s843, 8
        %s845 = scalar_lea.vmem %s13, %s844
        %p846 = pneg %p342
        %p847 = pneg %p339
        %p848 = pneg %p363
        %p849 = pneg %p360
        %p850 = pneg %p384
        %p851 = pneg %p381
        %s852 = smul.u32 16, %s39
        %p853 = scmp.lt.s32.totalorder %s852, 31
        %s854 = scalar_select %p853, %s852, 31
        %s855 = smul.addr %s854, 8
        %s856 = scalar_lea.vmem %s16, %s855
        %p857 = pneg %p410
        %p858 = pneg %p407
        %s859 = smul.u32 16, %s39
        %p860 = scmp.lt.s32.totalorder %s859, 31
        %s861 = scalar_select %p860, %s859, 31
        %s862 = smul.addr %s861, 8
        %s863 = scalar_lea.vmem %s17, %s862
        %p864 = pneg %p436
        %p865 = pneg %p433
        %p866 = pneg %p457
        %p867 = pneg %p454
        %p868 = pneg %p478
        %p869 = pneg %p475
        %p870 = pneg %p499
        %p871 = pneg %p496
        %s872 = smul.u32 16, %s39
        %s873 = smul.u32 16, %s39
        %p874 = scmp.lt.s32.totalorder %s873, 31
        %s875 = scalar_select %p874, %s873, 31
        %s876 = smul.addr %s875, 8
        %s877 = scalar_lea.vmem %s4, %s876
        %s878 = smul.u32 16, %s39
        %s879 = smul.u32 16, %s39
        %p880 = scmp.lt.s32.totalorder %s879, 31
        %s881 = scalar_select %p880, %s879, 31
        %s882 = smul.addr %s881, 8
        %s883 = scalar_lea.vmem %s5, %s882
        %s884 = smul.u32 16, %s39
        %s885 = smul.u32 16, %s39
        %p886 = scmp.lt.s32.totalorder %s885, 31
        %s887 = scalar_select %p886, %s885, 31
        %s888 = smul.addr %s887, 8
        %s889 = scalar_lea.vmem %s8, %s888
        %s890 = smul.u32 16, %s39
        %s891 = smul.u32 16, %s39
        %p892 = scmp.lt.s32.totalorder %s891, 31
        %s893 = scalar_select %p892, %s891, 31
        %s894 = smul.addr %s893, 8
        %s895 = scalar_lea.vmem %s9, %s894
        %s896 = smul.u32 16, %s39
        %s897 = smul.u32 16, %s39
        %p898 = scmp.lt.s32.totalorder %s897, 31
        %s899 = scalar_select %p898, %s897, 31
        %s900 = smul.addr %s899, 8
        %s901 = scalar_lea.vmem %s12, %s900
        %s902 = smul.u32 16, %s39
        %s903 = smul.u32 16, %s39
        %p904 = scmp.lt.s32.totalorder %s903, 31
        %s905 = scalar_select %p904, %s903, 31
        %s906 = smul.addr %s905, 8
        %s907 = scalar_lea.vmem %s13, %s906
        %s908 = smul.u32 16, %s39
        %s909 = smul.u32 16, %s39
        %p910 = scmp.lt.s32.totalorder %s909, 31
        %s911 = scalar_select %p910, %s909, 31
        %s912 = smul.addr %s911, 8
        %s913 = scalar_lea.vmem %s16, %s912
        %s914 = smul.u32 16, %s39
        %s915 = smul.u32 16, %s39
        %p916 = scmp.lt.s32.totalorder %s915, 31
        %s917 = scalar_select %p916, %s915, 31
        %s918 = smul.addr %s917, 8
        %s919 = scalar_lea.vmem %s17, %s918
        %s920 = smul.u32 16, %s39
        %v922 = vld [vmem:[%s784] sm:$0xff]
        %v923 = vld [vmem:[%s784 + $0x8] sm:$0xff]
        %v924 = vld [vmem:[%s784 + $0x10] sm:$0xff]
        %v925 = vld [vmem:[%s784 + $0x18] sm:$0xff]
        %v926 = vld [vmem:[%s784 + $0x20] sm:$0xff]
        %v927 = vld [vmem:[%s784 + $0x28] sm:$0xff]
        %v928 = vld [vmem:[%s784 + $0x30] sm:$0xff]
        %v929 = vld [vmem:[%s784 + $0x38] sm:$0xff]
        %v930 = vld [vmem:[%s784 + $0x40] sm:$0xff]
        %v931 = vld [vmem:[%s784 + $0x48] sm:$0xff]
        %v932 = vld [vmem:[%s784 + $0x50] sm:$0xff]
        %v933 = vld [vmem:[%s784 + $0x58] sm:$0xff]
        %v934 = vld [vmem:[%s784 + $0x60] sm:$0xff]
        %v935 = vld [vmem:[%s784 + $0x68] sm:$0xff]
        %v936 = vld [vmem:[%s784 + $0x70] sm:$0xff]
        %v937 = vld [vmem:[%s784 + $0x78] sm:$0xff]
        %v938 = vld [vmem:[%s784 + $0x80] sm:$0xff]
        %v939 = vld [vmem:[%s784 + $0x88] sm:$0xff]
        %v940 = vld [vmem:[%s784 + $0x90] sm:$0xff]
        %v941 = vld [vmem:[%s784 + $0x98] sm:$0xff]
        %v942 = vld [vmem:[%s784 + $0xa0] sm:$0xff]
        %v943 = vld [vmem:[%s784 + $0xa8] sm:$0xff]
        %v944 = vld [vmem:[%s784 + $0xb0] sm:$0xff]
        %v945 = vld [vmem:[%s784 + $0xb8] sm:$0xff]
        %v946 = vld [vmem:[%s784 + $0xc0] sm:$0xff]
        %v947 = vld [vmem:[%s784 + $0xc8] sm:$0xff]
        %v948 = vld [vmem:[%s784 + $0xd0] sm:$0xff]
        %v949 = vld [vmem:[%s784 + $0xd8] sm:$0xff]
        %v950 = vld [vmem:[%s784 + $0xe0] sm:$0xff]
        %v951 = vld [vmem:[%s784 + $0xe8] sm:$0xff]
        %v952 = vld [vmem:[%s784 + $0xf0] sm:$0xff]
        %v953 = vld [vmem:[%s784 + $0xf8] sm:$0xff]
        %v954 = vld [vmem:[%s784 + $0x100] sm:$0xff]
        %v955 = vld [vmem:[%s784 + $0x108] sm:$0xff]
        %v956 = vld [vmem:[%s784 + $0x110] sm:$0xff]
        %v957 = vld [vmem:[%s784 + $0x118] sm:$0xff]
        %v958 = vld [vmem:[%s784 + $0x120] sm:$0xff]
        %v959 = vld [vmem:[%s784 + $0x128] sm:$0xff]
        %v960 = vld [vmem:[%s784 + $0x130] sm:$0xff]
        %v961 = vld [vmem:[%s784 + $0x138] sm:$0xff]
        %v962 = vld [vmem:[%s784 + $0x140] sm:$0xff]
        %v963 = vld [vmem:[%s784 + $0x148] sm:$0xff]
        %v964 = vld [vmem:[%s784 + $0x150] sm:$0xff]
        %v965 = vld [vmem:[%s784 + $0x158] sm:$0xff]
        %v966 = vld [vmem:[%s784 + $0x160] sm:$0xff]
        %v967 = vld [vmem:[%s784 + $0x168] sm:$0xff]
        %v968 = vld [vmem:[%s784 + $0x170] sm:$0xff]
        %v969 = vld [vmem:[%s784 + $0x178] sm:$0xff]
        %v970 = vld [vmem:[%s784 + $0x180] sm:$0xff]
        %v971 = vld [vmem:[%s784 + $0x188] sm:$0xff]
        %v972 = vld [vmem:[%s784 + $0x190] sm:$0xff]
        %v973 = vld [vmem:[%s784 + $0x198] sm:$0xff]
        %v974 = vld [vmem:[%s784 + $0x1a0] sm:$0xff]
        %v975 = vld [vmem:[%s784 + $0x1a8] sm:$0xff]
        %v976 = vld [vmem:[%s784 + $0x1b0] sm:$0xff]
        %v977 = vld [vmem:[%s784 + $0x1b8] sm:$0xff]
        %v978 = vld [vmem:[%s784 + $0x1c0] sm:$0xff]
        %v979 = vld [vmem:[%s784 + $0x1c8] sm:$0xff]
        %v980 = vld [vmem:[%s784 + $0x1d0] sm:$0xff]
        %v981 = vld [vmem:[%s784 + $0x1d8] sm:$0xff]
        %v982 = vld [vmem:[%s784 + $0x1e0] sm:$0xff]
        %v983 = vld [vmem:[%s784 + $0x1e8] sm:$0xff]
        %v984 = vld [vmem:[%s784 + $0x1f0] sm:$0xff]
        %v985 = vld [vmem:[%s784 + $0x1f8] sm:$0xff]
        %v986 = vpack.c.bf16 %v924, %v922
        %v987 = vpack.c.bf16 %v925, %v923
        %v988 = vpack.c.bf16 %v928, %v926
        %v989 = vpack.c.bf16 %v929, %v927
        %v990 = vpack.c.bf16 %v932, %v930
        %v991 = vpack.c.bf16 %v933, %v931
        %v992 = vpack.c.bf16 %v936, %v934
        %v993 = vpack.c.bf16 %v937, %v935
        %v994 = vpack.c.bf16 %v940, %v938
        %v995 = vpack.c.bf16 %v941, %v939
        %v996 = vpack.c.bf16 %v944, %v942
        %v997 = vpack.c.bf16 %v945, %v943
        %v998 = vpack.c.bf16 %v948, %v946
        %v999 = vpack.c.bf16 %v949, %v947
        %v1000 = vpack.c.bf16 %v952, %v950
        %v1001 = vpack.c.bf16 %v953, %v951
        %v1002 = vpack.c.bf16 %v956, %v954
        %v1003 = vpack.c.bf16 %v957, %v955
        %v1004 = vpack.c.bf16 %v960, %v958
        %v1005 = vpack.c.bf16 %v961, %v959
        %v1006 = vpack.c.bf16 %v964, %v962
        %v1007 = vpack.c.bf16 %v965, %v963
        %v1008 = vpack.c.bf16 %v968, %v966
        %v1009 = vpack.c.bf16 %v969, %v967
        %v1010 = vpack.c.bf16 %v972, %v970
        %v1011 = vpack.c.bf16 %v973, %v971
        %v1012 = vpack.c.bf16 %v976, %v974
        %v1013 = vpack.c.bf16 %v977, %v975
        %v1014 = vpack.c.bf16 %v980, %v978
        %v1015 = vpack.c.bf16 %v981, %v979
        %v1016 = vpack.c.bf16 %v984, %v982
        %v1017 = vpack.c.bf16 %v985, %v983
        %v1018 = vld [vmem:[%s2] sm:$0xf]
        %v1019 = vld [vmem:[%s2 + $0x4] sm:$0xf]
        %v1020 = vld [vmem:[%s2 + $0x8] sm:$0xf]
        %v1021 = vld [vmem:[%s2 + $0xc] sm:$0xf]
        %v1022 = vld [vmem:[%s2 + $0x10] sm:$0xf]
        %v1023 = vld [vmem:[%s2 + $0x14] sm:$0xf]
        %v1024 = vld [vmem:[%s2 + $0x18] sm:$0xf]
        %v1025 = vld [vmem:[%s2 + $0x1c] sm:$0xf]
        %v1026 = vld [vmem:[%s2 + $0x20] sm:$0xf]
        %v1027 = vld [vmem:[%s2 + $0x24] sm:$0xf]
        %v1028 = vld [vmem:[%s2 + $0x28] sm:$0xf]
        %v1029 = vld [vmem:[%s2 + $0x2c] sm:$0xf]
        %v1030 = vld [vmem:[%s2 + $0x30] sm:$0xf]
        %v1031 = vld [vmem:[%s2 + $0x34] sm:$0xf]
        %v1032 = vld [vmem:[%s2 + $0x38] sm:$0xf]
        %v1033 = vld [vmem:[%s2 + $0x3c] sm:$0xf]
        %v1034 = vld [vmem:[%s2 + $0x40] sm:$0xf]
        %v1035 = vld [vmem:[%s2 + $0x44] sm:$0xf]
        %v1036 = vld [vmem:[%s2 + $0x48] sm:$0xf]
        %v1037 = vld [vmem:[%s2 + $0x4c] sm:$0xf]
        %v1038 = vld [vmem:[%s2 + $0x50] sm:$0xf]
        %v1039 = vld [vmem:[%s2 + $0x54] sm:$0xf]
        %v1040 = vld [vmem:[%s2 + $0x58] sm:$0xf]
        %v1041 = vld [vmem:[%s2 + $0x5c] sm:$0xf]
        %v1042 = vld [vmem:[%s2 + $0x60] sm:$0xf]
        %v1043 = vld [vmem:[%s2 + $0x64] sm:$0xf]
        %v1044 = vld [vmem:[%s2 + $0x68] sm:$0xf]
        %v1045 = vld [vmem:[%s2 + $0x6c] sm:$0xf]
        %v1046 = vld [vmem:[%s2 + $0x70] sm:$0xf]
        %v1047 = vld [vmem:[%s2 + $0x74] sm:$0xf]
        %v1048 = vld [vmem:[%s2 + $0x78] sm:$0xf]
        %v1049 = vld [vmem:[%s2 + $0x7c] sm:$0xf]
        %v1082 = vunpack.c.l.b16 %v1018
        %v1083 = vunpack.c.l.b16 %v1019
        %v1084 = vunpack.c.l.b16 %v1020
        %v1085 = vunpack.c.l.b16 %v1021
        %v1086 = vunpack.c.l.b16 %v1022
        %v1087 = vunpack.c.l.b16 %v1023
        %v1088 = vunpack.c.l.b16 %v1024
        %v1089 = vunpack.c.l.b16 %v1025
        %v1090 = vunpack.c.l.b16 %v1026
        %v1091 = vunpack.c.l.b16 %v1027
        %v1092 = vunpack.c.l.b16 %v1028
        %v1093 = vunpack.c.l.b16 %v1029
        %v1094 = vunpack.c.l.b16 %v1030
        %v1095 = vunpack.c.l.b16 %v1031
        %v1096 = vunpack.c.l.b16 %v1032
        %v1097 = vunpack.c.l.b16 %v1033
        %v1098 = vunpack.c.l.b16 %v1034
        %v1099 = vunpack.c.l.b16 %v1035
        %v1100 = vunpack.c.l.b16 %v1036
        %v1101 = vunpack.c.l.b16 %v1037
        %v1102 = vunpack.c.l.b16 %v1038
        %v1103 = vunpack.c.l.b16 %v1039
        %v1104 = vunpack.c.l.b16 %v1040
        %v1105 = vunpack.c.l.b16 %v1041
        %v1106 = vunpack.c.l.b16 %v1042
        %v1107 = vunpack.c.l.b16 %v1043
        %v1108 = vunpack.c.l.b16 %v1044
        %v1109 = vunpack.c.l.b16 %v1045
        %v1110 = vunpack.c.l.b16 %v1046
        %v1111 = vunpack.c.l.b16 %v1047
        %v1112 = vunpack.c.l.b16 %v1048
        %v1113 = vunpack.c.l.b16 %v1049
        %v1114 = vpack.c.b16 %v1083, %v1082
        %v1115 = vpack.c.b16 %v1085, %v1084
        %v1116 = vpack.c.b16 %v1087, %v1086
        %v1117 = vpack.c.b16 %v1089, %v1088
        %v1118 = vpack.c.b16 %v1091, %v1090
        %v1119 = vpack.c.b16 %v1093, %v1092
        %v1120 = vpack.c.b16 %v1095, %v1094
        %v1121 = vpack.c.b16 %v1097, %v1096
        %v1122 = vpack.c.b16 %v1099, %v1098
        %v1123 = vpack.c.b16 %v1101, %v1100
        %v1124 = vpack.c.b16 %v1103, %v1102
        %v1125 = vpack.c.b16 %v1105, %v1104
        %v1126 = vpack.c.b16 %v1107, %v1106
        %v1127 = vpack.c.b16 %v1109, %v1108
        %v1128 = vpack.c.b16 %v1111, %v1110
        %v1129 = vpack.c.b16 %v1113, %v1112
        %1146 = vmatprep.subr.bf16.mxu0 0
        %1147 = vmatpush1.bf16.msra.mxu0 %v1114
        %1148 = vmatprep.subr.bf16.mxu0 0
        %1149 = vmatpush1.bf16.msra.mxu0 %v1115
        %1150 = vmatprep.subr.bf16.mxu0 0
        %1151 = vmatpush1.bf16.msra.mxu0 %v1116
        %1152 = vmatprep.subr.bf16.mxu0 0
        %1153 = vmatpush1.bf16.msra.mxu0 %v1117
        %1154 = vmatprep.subr.bf16.mxu0 0
        %1155 = vmatpush1.bf16.msra.mxu0 %v1118
        %1156 = vmatprep.subr.bf16.mxu0 0
        %1157 = vmatpush1.bf16.msra.mxu0 %v1119
        %1158 = vmatprep.subr.bf16.mxu0 0
        %1159 = vmatpush1.bf16.msra.mxu0 %v1120
        %1160 = vmatprep.subr.bf16.mxu0 0
        %1161 = vmatpush1.bf16.msra.mxu0 %v1121
        %1162 = vmatprep.subr.bf16.mxu0 0
        %1163 = vmatpush1.bf16.msra.mxu0 %v1122
        %1164 = vmatprep.subr.bf16.mxu0 0
        %1165 = vmatpush1.bf16.msra.mxu0 %v1123
        %1166 = vmatprep.subr.bf16.mxu0 0
        %1167 = vmatpush1.bf16.msra.mxu0 %v1124
        %1168 = vmatprep.subr.bf16.mxu0 0
        %1169 = vmatpush1.bf16.msra.mxu0 %v1125
        %1170 = vmatprep.subr.bf16.mxu0 0
        %1171 = vmatpush1.bf16.msra.mxu0 %v1126
        %1172 = vmatprep.subr.bf16.mxu0 0
        %1173 = vmatpush1.bf16.msra.mxu0 %v1127
        %1174 = vmatprep.subr.bf16.mxu0 0
        %1175 = vmatpush1.bf16.msra.mxu0 %v1128
        %1176 = vmatprep.subr.bf16.mxu0 0
        %1177 = vmatpush1.bf16.msra.mxu0 %v1129
        %1178 = vmatprep.mubr.bf16.mxu0 %v987
        %1179 = vmatmul.mubr.bf16.gmra.mrb[0].mxu0 %v986
        %v1180 = vpop.f32.mrb[0].mxu0
        %v1181 = vadd.f32 0.0, %v1180
        %v1182 = vpop.f32.mrb[0].mxu0
        %v1183 = vpop.f32.mrb[0].mxu0
        %v1184 = vadd.f32 0.0, %v1183
        %v1185 = vpop.f32.mrb[0].mxu0
        %1186 = vmatprep.mubr.bf16.mxu0 %v989
        %1187 = vmatmul.mubr.bf16.gmra.mrb[0].mxu0 %v988
        %v1188 = vpop.f32.mrb[0].mxu0
        %v1189 = vadd.f32 0.0, %v1188
        %v1190 = vpop.f32.mrb[0].mxu0
        %v1191 = vpop.f32.mrb[0].mxu0
        %v1192 = vadd.f32 0.0, %v1191
        %v1193 = vpop.f32.mrb[0].mxu0
        %1194 = vmatprep.mubr.bf16.mxu0 %v991
        %1195 = vmatmul.mubr.bf16.gmra.mrb[0].mxu0 %v990
        %v1196 = vpop.f32.mrb[0].mxu0
        %v1197 = vadd.f32 0.0, %v1196
        %v1198 = vpop.f32.mrb[0].mxu0
        %v1199 = vpop.f32.mrb[0].mxu0
        %v1200 = vadd.f32 0.0, %v1199
        %v1201 = vpop.f32.mrb[0].mxu0
        %1202 = vmatprep.mubr.bf16.mxu0 %v993
        %1203 = vmatmul.mubr.bf16.gmra.mrb[0].mxu0 %v992
        %v1204 = vpop.f32.mrb[0].mxu0
        %v1205 = vadd.f32 0.0, %v1204
        %v1206 = vpop.f32.mrb[0].mxu0
        %v1207 = vpop.f32.mrb[0].mxu0
        %v1208 = vadd.f32 0.0, %v1207
        %v1209 = vpop.f32.mrb[0].mxu0
        %1210 = vmatprep.mubr.bf16.mxu0 %v995
        %1211 = vmatmul.mubr.bf16.gmra.mrb[0].mxu0 %v994
        %v1212 = vpop.f32.mrb[0].mxu0
        %v1213 = vadd.f32 0.0, %v1212
        %v1214 = vpop.f32.mrb[0].mxu0
        %v1215 = vpop.f32.mrb[0].mxu0
        %v1216 = vadd.f32 0.0, %v1215
        %v1217 = vpop.f32.mrb[0].mxu0
        %1218 = vmatprep.mubr.bf16.mxu0 %v997
        %1219 = vmatmul.mubr.bf16.gmra.mrb[0].mxu0 %v996
        %v1220 = vpop.f32.mrb[0].mxu0
        %v1221 = vadd.f32 0.0, %v1220
        %v1222 = vpop.f32.mrb[0].mxu0
        %v1223 = vpop.f32.mrb[0].mxu0
        %v1224 = vadd.f32 0.0, %v1223
        %v1225 = vpop.f32.mrb[0].mxu0
        %1226 = vmatprep.mubr.bf16.mxu0 %v999
        %1227 = vmatmul.mubr.bf16.gmra.mrb[0].mxu0 %v998
        %v1228 = vpop.f32.mrb[0].mxu0
        %v1229 = vadd.f32 0.0, %v1228
        %v1230 = vpop.f32.mrb[0].mxu0
        %v1231 = vpop.f32.mrb[0].mxu0
        %v1232 = vadd.f32 0.0, %v1231
        %v1233 = vpop.f32.mrb[0].mxu0
        %1234 = vmatprep.mubr.bf16.mxu0 %v1001
        %1235 = vmatmul.mubr.bf16.gmra.mrb[0].mxu0 %v1000
        %v1236 = vpop.f32.mrb[0].mxu0
        %v1237 = vadd.f32 0.0, %v1236
        %v1238 = vpop.f32.mrb[0].mxu0
        %v1239 = vpop.f32.mrb[0].mxu0
        %v1240 = vadd.f32 0.0, %v1239
        %v1241 = vpop.f32.mrb[0].mxu0
        %1242 = vmatprep.mubr.bf16.mxu0 %v1003
        %1243 = vmatmul.mubr.bf16.gmra.mrb[0].mxu0 %v1002
        %v1244 = vpop.f32.mrb[0].mxu0
        %v1245 = vadd.f32 0.0, %v1244
        %v1246 = vpop.f32.mrb[0].mxu0
        %v1247 = vpop.f32.mrb[0].mxu0
        %v1248 = vadd.f32 0.0, %v1247
        %v1249 = vpop.f32.mrb[0].mxu0
        %1250 = vmatprep.mubr.bf16.mxu0 %v1005
        %1251 = vmatmul.mubr.bf16.gmra.mrb[0].mxu0 %v1004
        %v1252 = vpop.f32.mrb[0].mxu0
        %v1253 = vadd.f32 0.0, %v1252
        %v1254 = vpop.f32.mrb[0].mxu0
        %v1255 = vpop.f32.mrb[0].mxu0
        %v1256 = vadd.f32 0.0, %v1255
        %v1257 = vpop.f32.mrb[0].mxu0
        %1258 = vmatprep.mubr.bf16.mxu0 %v1007
        %1259 = vmatmul.mubr.bf16.gmra.mrb[0].mxu0 %v1006
        %v1260 = vpop.f32.mrb[0].mxu0
        %v1261 = vadd.f32 0.0, %v1260
        %v1262 = vpop.f32.mrb[0].mxu0
        %v1263 = vpop.f32.mrb[0].mxu0
        %v1264 = vadd.f32 0.0, %v1263
        %v1265 = vpop.f32.mrb[0].mxu0
        %1266 = vmatprep.mubr.bf16.mxu0 %v1009
        %1267 = vmatmul.mubr.bf16.gmra.mrb[0].mxu0 %v1008
        %v1268 = vpop.f32.mrb[0].mxu0
        %v1269 = vadd.f32 0.0, %v1268
        %v1270 = vpop.f32.mrb[0].mxu0
        %v1271 = vpop.f32.mrb[0].mxu0
        %v1272 = vadd.f32 0.0, %v1271
        %v1273 = vpop.f32.mrb[0].mxu0
        %1274 = vmatprep.mubr.bf16.mxu0 %v1011
        %1275 = vmatmul.mubr.bf16.gmra.mrb[0].mxu0 %v1010
        %v1276 = vpop.f32.mrb[0].mxu0
        %v1277 = vadd.f32 0.0, %v1276
        %v1278 = vpop.f32.mrb[0].mxu0
        %v1279 = vpop.f32.mrb[0].mxu0
        %v1280 = vadd.f32 0.0, %v1279
        %v1281 = vpop.f32.mrb[0].mxu0
        %1282 = vmatprep.mubr.bf16.mxu0 %v1013
        %1283 = vmatmul.mubr.bf16.gmra.mrb[0].mxu0 %v1012
        %v1284 = vpop.f32.mrb[0].mxu0
        %v1285 = vadd.f32 0.0, %v1284
        %v1286 = vpop.f32.mrb[0].mxu0
        %v1287 = vpop.f32.mrb[0].mxu0
        %v1288 = vadd.f32 0.0, %v1287
        %v1289 = vpop.f32.mrb[0].mxu0
        %1290 = vmatprep.mubr.bf16.mxu0 %v1015
        %1291 = vmatmul.mubr.bf16.gmra.mrb[0].mxu0 %v1014
        %v1292 = vpop.f32.mrb[0].mxu0
        %v1293 = vadd.f32 0.0, %v1292
        %v1294 = vpop.f32.mrb[0].mxu0
        %v1295 = vpop.f32.mrb[0].mxu0
        %v1296 = vadd.f32 0.0, %v1295
        %v1297 = vpop.f32.mrb[0].mxu0
        %1298 = vmatprep.mubr.bf16.mxu0 %v1017
        %1299 = vmatmul.mubr.bf16.gmra.mrb[0].mxu0 %v1016
        %v1300 = vpop.f32.mrb[0].mxu0
        %v1301 = vadd.f32 0.0, %v1300
        %v1302 = vpop.f32.mrb[0].mxu0
        %v1303 = vpop.f32.mrb[0].mxu0
        %v1304 = vadd.f32 0.0, %v1303
        %v1305 = vpop.f32.mrb[0].mxu0
        %1306 = vdwg.mxu0
        %v1307 = vld [vmem:[%s3] sm:$0x1]
        %v1309 = vlaneseq
        %v1310 = vshrl.u32 %v1309, 7
        %v1311 = vsub.s32 0, %v1310
        %v1312 = vrot.slane %v1307, %v1311
        %v1314 = vadd.f32 %v1181, %v1312
        %v1315 = vadd.f32 %v1184, %v1312
        %v1316 = vadd.f32 %v1189, %v1312
        %v1317 = vadd.f32 %v1192, %v1312
        %v1318 = vadd.f32 %v1197, %v1312
        %v1319 = vadd.f32 %v1200, %v1312
        %v1320 = vadd.f32 %v1205, %v1312
        %v1321 = vadd.f32 %v1208, %v1312
        %v1322 = vadd.f32 %v1213, %v1312
        %v1323 = vadd.f32 %v1216, %v1312
        %v1324 = vadd.f32 %v1221, %v1312
        %v1325 = vadd.f32 %v1224, %v1312
        %v1326 = vadd.f32 %v1229, %v1312
        %v1327 = vadd.f32 %v1232, %v1312
        %v1328 = vadd.f32 %v1237, %v1312
        %v1329 = vadd.f32 %v1240, %v1312
        %v1330 = vadd.f32 %v1245, %v1312
        %v1331 = vadd.f32 %v1248, %v1312
        %v1332 = vadd.f32 %v1253, %v1312
        %v1333 = vadd.f32 %v1256, %v1312
        %v1334 = vadd.f32 %v1261, %v1312
        %v1335 = vadd.f32 %v1264, %v1312
        %v1336 = vadd.f32 %v1269, %v1312
        %v1337 = vadd.f32 %v1272, %v1312
        %v1338 = vadd.f32 %v1277, %v1312
        %v1339 = vadd.f32 %v1280, %v1312
        %v1340 = vadd.f32 %v1285, %v1312
        %v1341 = vadd.f32 %v1288, %v1312
        %v1342 = vadd.f32 %v1293, %v1312
        %v1343 = vadd.f32 %v1296, %v1312
        %v1344 = vadd.f32 %v1301, %v1312
        %v1345 = vadd.f32 %v1304, %v1312
        %1346 = vadd.xlane.f32.xlu0 %v1314
        %v1347 = vpop.xlane.xlu0 %1346
        %1348 = vadd.xlane.f32.xlu0 %v1315
        %v1349 = vpop.xlane.xlu0 %1348
        %1350 = vadd.xlane.f32.xlu0 %v1316
        %v1351 = vpop.xlane.xlu0 %1350
        %1352 = vadd.xlane.f32.xlu0 %v1317
        %v1353 = vpop.xlane.xlu0 %1352
        %1354 = vadd.xlane.f32.xlu0 %v1318
        %v1355 = vpop.xlane.xlu0 %1354
        %1356 = vadd.xlane.f32.xlu0 %v1319
        %v1357 = vpop.xlane.xlu0 %1356
        %1358 = vadd.xlane.f32.xlu0 %v1320
        %v1359 = vpop.xlane.xlu0 %1358
        %1360 = vadd.xlane.f32.xlu0 %v1321
        %v1361 = vpop.xlane.xlu0 %1360
        %1362 = vadd.xlane.f32.xlu0 %v1322
        %v1363 = vpop.xlane.xlu0 %1362
        %1364 = vadd.xlane.f32.xlu0 %v1323
        %v1365 = vpop.xlane.xlu0 %1364
        %1366 = vadd.xlane.f32.xlu0 %v1324
        %v1367 = vpop.xlane.xlu0 %1366
        %1368 = vadd.xlane.f32.xlu0 %v1325
        %v1369 = vpop.xlane.xlu0 %1368
        %1370 = vadd.xlane.f32.xlu0 %v1326
        %v1371 = vpop.xlane.xlu0 %1370
        %1372 = vadd.xlane.f32.xlu0 %v1327
        %v1373 = vpop.xlane.xlu0 %1372
        %1374 = vadd.xlane.f32.xlu0 %v1328
        %v1375 = vpop.xlane.xlu0 %1374
        %1376 = vadd.xlane.f32.xlu0 %v1329
        %v1377 = vpop.xlane.xlu0 %1376
        %1378 = vadd.xlane.f32.xlu0 %v1330
        %v1379 = vpop.xlane.xlu0 %1378
        %1380 = vadd.xlane.f32.xlu0 %v1331
        %v1381 = vpop.xlane.xlu0 %1380
        %1382 = vadd.xlane.f32.xlu0 %v1332
        %v1383 = vpop.xlane.xlu0 %1382
        %1384 = vadd.xlane.f32.xlu0 %v1333
        %v1385 = vpop.xlane.xlu0 %1384
        %1386 = vadd.xlane.f32.xlu0 %v1334
        %v1387 = vpop.xlane.xlu0 %1386
        %1388 = vadd.xlane.f32.xlu0 %v1335
        %v1389 = vpop.xlane.xlu0 %1388
        %1390 = vadd.xlane.f32.xlu0 %v1336
        %v1391 = vpop.xlane.xlu0 %1390
        %1392 = vadd.xlane.f32.xlu0 %v1337
        %v1393 = vpop.xlane.xlu0 %1392
        %1394 = vadd.xlane.f32.xlu0 %v1338
        %v1395 = vpop.xlane.xlu0 %1394
        %1396 = vadd.xlane.f32.xlu0 %v1339
        %v1397 = vpop.xlane.xlu0 %1396
        %1398 = vadd.xlane.f32.xlu0 %v1340
        %v1399 = vpop.xlane.xlu0 %1398
        %1400 = vadd.xlane.f32.xlu0 %v1341
        %v1401 = vpop.xlane.xlu0 %1400
        %1402 = vadd.xlane.f32.xlu0 %v1342
        %v1403 = vpop.xlane.xlu0 %1402
        %1404 = vadd.xlane.f32.xlu0 %v1343
        %v1405 = vpop.xlane.xlu0 %1404
        %1406 = vadd.xlane.f32.xlu0 %v1344
        %v1407 = vpop.xlane.xlu0 %1406
        %1408 = vadd.xlane.f32.xlu0 %v1345
        %v1409 = vpop.xlane.xlu0 %1408
        %v1410 = vadd.f32 %v1347, %v1379
        %v1411 = vadd.f32 %v1349, %v1381
        %v1412 = vadd.f32 %v1351, %v1383
        %v1413 = vadd.f32 %v1353, %v1385
        %v1414 = vadd.f32 %v1355, %v1387
        %v1415 = vadd.f32 %v1357, %v1389
        %v1416 = vadd.f32 %v1359, %v1391
        %v1417 = vadd.f32 %v1361, %v1393
        %v1418 = vadd.f32 %v1363, %v1395
        %v1419 = vadd.f32 %v1365, %v1397
        %v1420 = vadd.f32 %v1367, %v1399
        %v1421 = vadd.f32 %v1369, %v1401
        %v1422 = vadd.f32 %v1371, %v1403
        %v1423 = vadd.f32 %v1373, %v1405
        %v1424 = vadd.f32 %v1375, %v1407
        %v1425 = vadd.f32 %v1377, %v1409
        %v1426 = vmul.f32 %v1314, %v1314
        %v1427 = vmul.f32 %v1315, %v1315
        %v1428 = vmul.f32 %v1316, %v1316
        %v1429 = vmul.f32 %v1317, %v1317
        %v1430 = vmul.f32 %v1318, %v1318
        %v1431 = vmul.f32 %v1319, %v1319
        %v1432 = vmul.f32 %v1320, %v1320
        %v1433 = vmul.f32 %v1321, %v1321
        %v1434 = vmul.f32 %v1322, %v1322
        %v1435 = vmul.f32 %v1323, %v1323
        %v1436 = vmul.f32 %v1324, %v1324
        %v1437 = vmul.f32 %v1325, %v1325
        %v1438 = vmul.f32 %v1326, %v1326
        %v1439 = vmul.f32 %v1327, %v1327
        %v1440 = vmul.f32 %v1328, %v1328
        %v1441 = vmul.f32 %v1329, %v1329
        %v1442 = vmul.f32 %v1330, %v1330
        %v1443 = vmul.f32 %v1331, %v1331
        %v1444 = vmul.f32 %v1332, %v1332
        %v1445 = vmul.f32 %v1333, %v1333
        %v1446 = vmul.f32 %v1334, %v1334
        %v1447 = vmul.f32 %v1335, %v1335
        %v1448 = vmul.f32 %v1336, %v1336
        %v1449 = vmul.f32 %v1337, %v1337
        %v1450 = vmul.f32 %v1338, %v1338
        %v1451 = vmul.f32 %v1339, %v1339
        %v1452 = vmul.f32 %v1340, %v1340
        %v1453 = vmul.f32 %v1341, %v1341
        %v1454 = vmul.f32 %v1342, %v1342
        %v1455 = vmul.f32 %v1343, %v1343
        %v1456 = vmul.f32 %v1344, %v1344
        %v1457 = vmul.f32 %v1345, %v1345
        %1458 = vadd.xlane.f32.xlu0 %v1426
        %v1459 = vpop.xlane.xlu0 %1458
        %1460 = vadd.xlane.f32.xlu0 %v1427
        %v1461 = vpop.xlane.xlu0 %1460
        %1462 = vadd.xlane.f32.xlu0 %v1428
        %v1463 = vpop.xlane.xlu0 %1462
        %1464 = vadd.xlane.f32.xlu0 %v1429
        %v1465 = vpop.xlane.xlu0 %1464
        %1466 = vadd.xlane.f32.xlu0 %v1430
        %v1467 = vpop.xlane.xlu0 %1466
        %1468 = vadd.xlane.f32.xlu0 %v1431
        %v1469 = vpop.xlane.xlu0 %1468
        %1470 = vadd.xlane.f32.xlu0 %v1432
        %v1471 = vpop.xlane.xlu0 %1470
        %1472 = vadd.xlane.f32.xlu0 %v1433
        %v1473 = vpop.xlane.xlu0 %1472
        %1474 = vadd.xlane.f32.xlu0 %v1434
        %v1475 = vpop.xlane.xlu0 %1474
        %1476 = vadd.xlane.f32.xlu0 %v1435
        %v1477 = vpop.xlane.xlu0 %1476
        %1478 = vadd.xlane.f32.xlu0 %v1436
        %v1479 = vpop.xlane.xlu0 %1478
        %1480 = vadd.xlane.f32.xlu0 %v1437
        %v1481 = vpop.xlane.xlu0 %1480
        %1482 = vadd.xlane.f32.xlu0 %v1438
        %v1483 = vpop.xlane.xlu0 %1482
        %1484 = vadd.xlane.f32.xlu0 %v1439
        %v1485 = vpop.xlane.xlu0 %1484
        %1486 = vadd.xlane.f32.xlu0 %v1440
        %v1487 = vpop.xlane.xlu0 %1486
        %1488 = vadd.xlane.f32.xlu0 %v1441
        %v1489 = vpop.xlane.xlu0 %1488
        %1490 = vadd.xlane.f32.xlu0 %v1442
        %v1491 = vpop.xlane.xlu0 %1490
        %1492 = vadd.xlane.f32.xlu0 %v1443
        %v1493 = vpop.xlane.xlu0 %1492
        %1494 = vadd.xlane.f32.xlu0 %v1444
        %v1495 = vpop.xlane.xlu0 %1494
        %1496 = vadd.xlane.f32.xlu0 %v1445
        %v1497 = vpop.xlane.xlu0 %1496
        %1498 = vadd.xlane.f32.xlu0 %v1446
        %v1499 = vpop.xlane.xlu0 %1498
        %1500 = vadd.xlane.f32.xlu0 %v1447
        %v1501 = vpop.xlane.xlu0 %1500
        %1502 = vadd.xlane.f32.xlu0 %v1448
        %v1503 = vpop.xlane.xlu0 %1502
        %1504 = vadd.xlane.f32.xlu0 %v1449
        %v1505 = vpop.xlane.xlu0 %1504
        %1506 = vadd.xlane.f32.xlu0 %v1450
        %v1507 = vpop.xlane.xlu0 %1506
        %1508 = vadd.xlane.f32.xlu0 %v1451
        %v1509 = vpop.xlane.xlu0 %1508
        %1510 = vadd.xlane.f32.xlu0 %v1452
        %v1511 = vpop.xlane.xlu0 %1510
        %1512 = vadd.xlane.f32.xlu0 %v1453
        %v1513 = vpop.xlane.xlu0 %1512
        %1514 = vadd.xlane.f32.xlu0 %v1454
        %v1515 = vpop.xlane.xlu0 %1514
        %1516 = vadd.xlane.f32.xlu0 %v1455
        %v1517 = vpop.xlane.xlu0 %1516
        %1518 = vadd.xlane.f32.xlu0 %v1456
        %v1519 = vpop.xlane.xlu0 %1518
        %1520 = vadd.xlane.f32.xlu0 %v1457
        %v1521 = vpop.xlane.xlu0 %1520
        %v1522 = vadd.f32 %v1459, %v1491
        %v1523 = vadd.f32 %v1461, %v1493
        %v1524 = vadd.f32 %v1463, %v1495
        %v1525 = vadd.f32 %v1465, %v1497
        %v1526 = vadd.f32 %v1467, %v1499
        %v1527 = vadd.f32 %v1469, %v1501
        %v1528 = vadd.f32 %v1471, %v1503
        %v1529 = vadd.f32 %v1473, %v1505
        %v1530 = vadd.f32 %v1475, %v1507
        %v1531 = vadd.f32 %v1477, %v1509
        %v1532 = vadd.f32 %v1479, %v1511
        %v1533 = vadd.f32 %v1481, %v1513
        %v1534 = vadd.f32 %v1483, %v1515
        %v1535 = vadd.f32 %v1485, %v1517
        %v1536 = vadd.f32 %v1487, %v1519
        %v1537 = vadd.f32 %v1489, %v1521
        %v1538 = vmul.f32 %v1410, 0.00390625
        %v1539 = vmul.f32 %v1411, 0.00390625
        %v1540 = vmul.f32 %v1412, 0.00390625
        %v1541 = vmul.f32 %v1413, 0.00390625
        %v1542 = vmul.f32 %v1414, 0.00390625
        %v1543 = vmul.f32 %v1415, 0.00390625
        %v1544 = vmul.f32 %v1416, 0.00390625
        %v1545 = vmul.f32 %v1417, 0.00390625
        %v1546 = vmul.f32 %v1418, 0.00390625
        %v1547 = vmul.f32 %v1419, 0.00390625
        %v1548 = vmul.f32 %v1420, 0.00390625
        %v1549 = vmul.f32 %v1421, 0.00390625
        %v1550 = vmul.f32 %v1422, 0.00390625
        %v1551 = vmul.f32 %v1423, 0.00390625
        %v1552 = vmul.f32 %v1424, 0.00390625
        %v1553 = vmul.f32 %v1425, 0.00390625
        %v1554 = vmul.f32 %v1522, 0.00390625
        %v1555 = vmul.f32 %v1523, 0.00390625
        %v1556 = vmul.f32 %v1524, 0.00390625
        %v1557 = vmul.f32 %v1525, 0.00390625
        %v1558 = vmul.f32 %v1526, 0.00390625
        %v1559 = vmul.f32 %v1527, 0.00390625
        %v1560 = vmul.f32 %v1528, 0.00390625
        %v1561 = vmul.f32 %v1529, 0.00390625
        %v1562 = vmul.f32 %v1530, 0.00390625
        %v1563 = vmul.f32 %v1531, 0.00390625
        %v1564 = vmul.f32 %v1532, 0.00390625
        %v1565 = vmul.f32 %v1533, 0.00390625
        %v1566 = vmul.f32 %v1534, 0.00390625
        %v1567 = vmul.f32 %v1535, 0.00390625
        %v1568 = vmul.f32 %v1536, 0.00390625
        %v1569 = vmul.f32 %v1537, 0.00390625
        %v1570 = vmul.f32 %v1538, %v1538
        %v1571 = vmul.f32 %v1539, %v1539
        %v1572 = vmul.f32 %v1540, %v1540
        %v1573 = vmul.f32 %v1541, %v1541
        %v1574 = vmul.f32 %v1542, %v1542
        %v1575 = vmul.f32 %v1543, %v1543
        %v1576 = vmul.f32 %v1544, %v1544
        %v1577 = vmul.f32 %v1545, %v1545
        %v1578 = vmul.f32 %v1546, %v1546
        %v1579 = vmul.f32 %v1547, %v1547
        %v1580 = vmul.f32 %v1548, %v1548
        %v1581 = vmul.f32 %v1549, %v1549
        %v1582 = vmul.f32 %v1550, %v1550
        %v1583 = vmul.f32 %v1551, %v1551
        %v1584 = vmul.f32 %v1552, %v1552
        %v1585 = vmul.f32 %v1553, %v1553
        %v1586 = vsub.f32 %v1554, %v1570
        %v1587 = vsub.f32 %v1555, %v1571
        %v1588 = vsub.f32 %v1556, %v1572
        %v1589 = vsub.f32 %v1557, %v1573
        %v1590 = vsub.f32 %v1558, %v1574
        %v1591 = vsub.f32 %v1559, %v1575
        %v1592 = vsub.f32 %v1560, %v1576
        %v1593 = vsub.f32 %v1561, %v1577
        %v1594 = vsub.f32 %v1562, %v1578
        %v1595 = vsub.f32 %v1563, %v1579
        %v1596 = vsub.f32 %v1564, %v1580
        %v1597 = vsub.f32 %v1565, %v1581
        %v1598 = vsub.f32 %v1566, %v1582
        %v1599 = vsub.f32 %v1567, %v1583
        %v1600 = vsub.f32 %v1568, %v1584
        %v1601 = vsub.f32 %v1569, %v1585
        %v1602 = vmax.f32 %v1586, 0.0
        %v1603 = vmax.f32 %v1587, 0.0
        %v1604 = vmax.f32 %v1588, 0.0
        %v1605 = vmax.f32 %v1589, 0.0
        %v1606 = vmax.f32 %v1590, 0.0
        %v1607 = vmax.f32 %v1591, 0.0
        %v1608 = vmax.f32 %v1592, 0.0
        %v1609 = vmax.f32 %v1593, 0.0
        %v1610 = vmax.f32 %v1594, 0.0
        %v1611 = vmax.f32 %v1595, 0.0
        %v1612 = vmax.f32 %v1596, 0.0
        %v1613 = vmax.f32 %v1597, 0.0
        %v1614 = vmax.f32 %v1598, 0.0
        %v1615 = vmax.f32 %v1599, 0.0
        %v1616 = vmax.f32 %v1600, 0.0
        %v1617 = vmax.f32 %v1601, 0.0
        %v1618 = vadd.f32 %v1602, 1e-05
        %v1619 = vadd.f32 %v1603, 1e-05
        %v1620 = vadd.f32 %v1604, 1e-05
        %v1621 = vadd.f32 %v1605, 1e-05
        %v1622 = vadd.f32 %v1606, 1e-05
        %v1623 = vadd.f32 %v1607, 1e-05
        %v1624 = vadd.f32 %v1608, 1e-05
        %v1625 = vadd.f32 %v1609, 1e-05
        %v1626 = vadd.f32 %v1610, 1e-05
        %v1627 = vadd.f32 %v1611, 1e-05
        %v1628 = vadd.f32 %v1612, 1e-05
        %v1629 = vadd.f32 %v1613, 1e-05
        %v1630 = vadd.f32 %v1614, 1e-05
        %v1631 = vadd.f32 %v1615, 1e-05
        %v1632 = vadd.f32 %v1616, 1e-05
        %v1633 = vadd.f32 %v1617, 1e-05
        %v1634 = vrsqrt.pop %v1618
        %v1635 = vrsqrt.pop %v1619
        %v1636 = vrsqrt.pop %v1620
        %v1637 = vrsqrt.pop %v1621
        %v1638 = vrsqrt.pop %v1622
        %v1639 = vrsqrt.pop %v1623
        %v1640 = vrsqrt.pop %v1624
        %v1641 = vrsqrt.pop %v1625
        %v1642 = vrsqrt.pop %v1626
        %v1643 = vrsqrt.pop %v1627
        %v1644 = vrsqrt.pop %v1628
        %v1645 = vrsqrt.pop %v1629
        %v1646 = vrsqrt.pop %v1630
        %v1647 = vrsqrt.pop %v1631
        %v1648 = vrsqrt.pop %v1632
        %v1649 = vrsqrt.pop %v1633
        %v1650 = vld [vmem:[%s877] sm:$0xff]
        %v1651 = vld [vmem:[%s877 + $0x8] sm:$0xff]
        %v1652 = vld [vmem:[%s877 + $0x10] sm:$0xff]
        %v1653 = vld [vmem:[%s877 + $0x18] sm:$0xff]
        %v1654 = vld [vmem:[%s877 + $0x20] sm:$0xff]
        %v1655 = vld [vmem:[%s877 + $0x28] sm:$0xff]
        %v1656 = vld [vmem:[%s877 + $0x30] sm:$0xff]
        %v1657 = vld [vmem:[%s877 + $0x38] sm:$0xff]
        %v1658 = vld [vmem:[%s877 + $0x40] sm:$0xff]
        %v1659 = vld [vmem:[%s877 + $0x48] sm:$0xff]
        %v1660 = vld [vmem:[%s877 + $0x50] sm:$0xff]
        %v1661 = vld [vmem:[%s877 + $0x58] sm:$0xff]
        %v1662 = vld [vmem:[%s877 + $0x60] sm:$0xff]
        %v1663 = vld [vmem:[%s877 + $0x68] sm:$0xff]
        %v1664 = vld [vmem:[%s877 + $0x70] sm:$0xff]
        %v1665 = vld [vmem:[%s877 + $0x78] sm:$0xff]
        %v1666 = vmul.f32 %v1634, %v1650
        %v1667 = vmul.f32 %v1635, %v1651
        %v1668 = vmul.f32 %v1636, %v1652
        %v1669 = vmul.f32 %v1637, %v1653
        %v1670 = vmul.f32 %v1638, %v1654
        %v1671 = vmul.f32 %v1639, %v1655
        %v1672 = vmul.f32 %v1640, %v1656
        %v1673 = vmul.f32 %v1641, %v1657
        %v1674 = vmul.f32 %v1642, %v1658
        %v1675 = vmul.f32 %v1643, %v1659
        %v1676 = vmul.f32 %v1644, %v1660
        %v1677 = vmul.f32 %v1645, %v1661
        %v1678 = vmul.f32 %v1646, %v1662
        %v1679 = vmul.f32 %v1647, %v1663
        %v1680 = vmul.f32 %v1648, %v1664
        %v1681 = vmul.f32 %v1649, %v1665
        %v1682 = vsub.f32 %v1314, %v1538
        %v1683 = vsub.f32 %v1315, %v1539
        %v1684 = vsub.f32 %v1316, %v1540
        %v1685 = vsub.f32 %v1317, %v1541
        %v1686 = vsub.f32 %v1318, %v1542
        %v1687 = vsub.f32 %v1319, %v1543
        %v1688 = vsub.f32 %v1320, %v1544
        %v1689 = vsub.f32 %v1321, %v1545
        %v1690 = vsub.f32 %v1322, %v1546
        %v1691 = vsub.f32 %v1323, %v1547
        %v1692 = vsub.f32 %v1324, %v1548
        %v1693 = vsub.f32 %v1325, %v1549
        %v1694 = vsub.f32 %v1326, %v1550
        %v1695 = vsub.f32 %v1327, %v1551
        %v1696 = vsub.f32 %v1328, %v1552
        %v1697 = vsub.f32 %v1329, %v1553
        %v1698 = vsub.f32 %v1330, %v1538
        %v1699 = vsub.f32 %v1331, %v1539
        %v1700 = vsub.f32 %v1332, %v1540
        %v1701 = vsub.f32 %v1333, %v1541
        %v1702 = vsub.f32 %v1334, %v1542
        %v1703 = vsub.f32 %v1335, %v1543
        %v1704 = vsub.f32 %v1336, %v1544
        %v1705 = vsub.f32 %v1337, %v1545
        %v1706 = vsub.f32 %v1338, %v1546
        %v1707 = vsub.f32 %v1339, %v1547
        %v1708 = vsub.f32 %v1340, %v1548
        %v1709 = vsub.f32 %v1341, %v1549
        %v1710 = vsub.f32 %v1342, %v1550
        %v1711 = vsub.f32 %v1343, %v1551
        %v1712 = vsub.f32 %v1344, %v1552
        %v1713 = vsub.f32 %v1345, %v1553
        %1715 = vset.pattern.permute.xlu0 0
        %1716 = vperm.xlu0 %1715, %v1666
        %v1717 = vpop.permute.xlu0 %1716
        %1720 = vset.pattern.permute.xlu0 0
        %1721 = vperm.xlu0 %1720, %v1667
        %v1722 = vpop.permute.xlu0 %1721
        %1725 = vset.pattern.permute.xlu0 0
        %1726 = vperm.xlu0 %1725, %v1668
        %v1727 = vpop.permute.xlu0 %1726
        %1730 = vset.pattern.permute.xlu0 0
        %1731 = vperm.xlu0 %1730, %v1669
        %v1732 = vpop.permute.xlu0 %1731
        %1735 = vset.pattern.permute.xlu0 0
        %1736 = vperm.xlu0 %1735, %v1670
        %v1737 = vpop.permute.xlu0 %1736
        %1740 = vset.pattern.permute.xlu0 0
        %1741 = vperm.xlu0 %1740, %v1671
        %v1742 = vpop.permute.xlu0 %1741
        %1745 = vset.pattern.permute.xlu0 0
        %1746 = vperm.xlu0 %1745, %v1672
        %v1747 = vpop.permute.xlu0 %1746
        %1750 = vset.pattern.permute.xlu0 0
        %1751 = vperm.xlu0 %1750, %v1673
        %v1752 = vpop.permute.xlu0 %1751
        %1755 = vset.pattern.permute.xlu0 0
        %1756 = vperm.xlu0 %1755, %v1674
        %v1757 = vpop.permute.xlu0 %1756
        %1760 = vset.pattern.permute.xlu0 0
        %1761 = vperm.xlu0 %1760, %v1675
        %v1762 = vpop.permute.xlu0 %1761
        %1765 = vset.pattern.permute.xlu0 0
        %1766 = vperm.xlu0 %1765, %v1676
        %v1767 = vpop.permute.xlu0 %1766
        %1770 = vset.pattern.permute.xlu0 0
        %1771 = vperm.xlu0 %1770, %v1677
        %v1772 = vpop.permute.xlu0 %1771
        %1775 = vset.pattern.permute.xlu0 0
        %1776 = vperm.xlu0 %1775, %v1678
        %v1777 = vpop.permute.xlu0 %1776
        %1780 = vset.pattern.permute.xlu0 0
        %1781 = vperm.xlu0 %1780, %v1679
        %v1782 = vpop.permute.xlu0 %1781
        %1785 = vset.pattern.permute.xlu0 0
        %1786 = vperm.xlu0 %1785, %v1680
        %v1787 = vpop.permute.xlu0 %1786
        %1790 = vset.pattern.permute.xlu0 0
        %1791 = vperm.xlu0 %1790, %v1681
        %v1792 = vpop.permute.xlu0 %1791
        %v1794 = vmul.f32 %v1682, %v1717
        %v1795 = vmul.f32 %v1683, %v1722
        %v1796 = vmul.f32 %v1684, %v1727
        %v1797 = vmul.f32 %v1685, %v1732
        %v1798 = vmul.f32 %v1686, %v1737
        %v1799 = vmul.f32 %v1687, %v1742
        %v1800 = vmul.f32 %v1688, %v1747
        %v1801 = vmul.f32 %v1689, %v1752
        %v1802 = vmul.f32 %v1690, %v1757
        %v1803 = vmul.f32 %v1691, %v1762
        %v1804 = vmul.f32 %v1692, %v1767
        %v1805 = vmul.f32 %v1693, %v1772
        %v1806 = vmul.f32 %v1694, %v1777
        %v1807 = vmul.f32 %v1695, %v1782
        %v1808 = vmul.f32 %v1696, %v1787
        %v1809 = vmul.f32 %v1697, %v1792
        %v1810 = vmul.f32 %v1698, %v1717
        %v1811 = vmul.f32 %v1699, %v1722
        %v1812 = vmul.f32 %v1700, %v1727
        %v1813 = vmul.f32 %v1701, %v1732
        %v1814 = vmul.f32 %v1702, %v1737
        %v1815 = vmul.f32 %v1703, %v1742
        %v1816 = vmul.f32 %v1704, %v1747
        %v1817 = vmul.f32 %v1705, %v1752
        %v1818 = vmul.f32 %v1706, %v1757
        %v1819 = vmul.f32 %v1707, %v1762
        %v1820 = vmul.f32 %v1708, %v1767
        %v1821 = vmul.f32 %v1709, %v1772
        %v1822 = vmul.f32 %v1710, %v1777
        %v1823 = vmul.f32 %v1711, %v1782
        %v1824 = vmul.f32 %v1712, %v1787
        %v1825 = vmul.f32 %v1713, %v1792
        %v1826 = vld [vmem:[%s883] sm:$0xff]
        %v1827 = vld [vmem:[%s883 + $0x8] sm:$0xff]
        %v1828 = vld [vmem:[%s883 + $0x10] sm:$0xff]
        %v1829 = vld [vmem:[%s883 + $0x18] sm:$0xff]
        %v1830 = vld [vmem:[%s883 + $0x20] sm:$0xff]
        %v1831 = vld [vmem:[%s883 + $0x28] sm:$0xff]
        %v1832 = vld [vmem:[%s883 + $0x30] sm:$0xff]
        %v1833 = vld [vmem:[%s883 + $0x38] sm:$0xff]
        %v1834 = vld [vmem:[%s883 + $0x40] sm:$0xff]
        %v1835 = vld [vmem:[%s883 + $0x48] sm:$0xff]
        %v1836 = vld [vmem:[%s883 + $0x50] sm:$0xff]
        %v1837 = vld [vmem:[%s883 + $0x58] sm:$0xff]
        %v1838 = vld [vmem:[%s883 + $0x60] sm:$0xff]
        %v1839 = vld [vmem:[%s883 + $0x68] sm:$0xff]
        %v1840 = vld [vmem:[%s883 + $0x70] sm:$0xff]
        %v1841 = vld [vmem:[%s883 + $0x78] sm:$0xff]
        %1843 = vset.pattern.permute.xlu0 0
        %1844 = vperm.xlu0 %1843, %v1826
        %v1845 = vpop.permute.xlu0 %1844
        %1848 = vset.pattern.permute.xlu0 0
        %1849 = vperm.xlu0 %1848, %v1827
        %v1850 = vpop.permute.xlu0 %1849
        %1853 = vset.pattern.permute.xlu0 0
        %1854 = vperm.xlu0 %1853, %v1828
        %v1855 = vpop.permute.xlu0 %1854
        %1858 = vset.pattern.permute.xlu0 0
        %1859 = vperm.xlu0 %1858, %v1829
        %v1860 = vpop.permute.xlu0 %1859
        %1863 = vset.pattern.permute.xlu0 0
        %1864 = vperm.xlu0 %1863, %v1830
        %v1865 = vpop.permute.xlu0 %1864
        %1868 = vset.pattern.permute.xlu0 0
        %1869 = vperm.xlu0 %1868, %v1831
        %v1870 = vpop.permute.xlu0 %1869
        %1873 = vset.pattern.permute.xlu0 0
        %1874 = vperm.xlu0 %1873, %v1832
        %v1875 = vpop.permute.xlu0 %1874
        %1878 = vset.pattern.permute.xlu0 0
        %1879 = vperm.xlu0 %1878, %v1833
        %v1880 = vpop.permute.xlu0 %1879
        %1883 = vset.pattern.permute.xlu0 0
        %1884 = vperm.xlu0 %1883, %v1834
        %v1885 = vpop.permute.xlu0 %1884
        %1888 = vset.pattern.permute.xlu0 0
        %1889 = vperm.xlu0 %1888, %v1835
        %v1890 = vpop.permute.xlu0 %1889
        %1893 = vset.pattern.permute.xlu0 0
        %1894 = vperm.xlu0 %1893, %v1836
        %v1895 = vpop.permute.xlu0 %1894
        %1898 = vset.pattern.permute.xlu0 0
        %1899 = vperm.xlu0 %1898, %v1837
        %v1900 = vpop.permute.xlu0 %1899
        %1903 = vset.pattern.permute.xlu0 0
        %1904 = vperm.xlu0 %1903, %v1838
        %v1905 = vpop.permute.xlu0 %1904
        %1908 = vset.pattern.permute.xlu0 0
        %1909 = vperm.xlu0 %1908, %v1839
        %v1910 = vpop.permute.xlu0 %1909
        %1913 = vset.pattern.permute.xlu0 0
        %1914 = vperm.xlu0 %1913, %v1840
        %v1915 = vpop.permute.xlu0 %1914
        %1918 = vset.pattern.permute.xlu0 0
        %1919 = vperm.xlu0 %1918, %v1841
        %v1920 = vpop.permute.xlu0 %1919
        %v1922 = vadd.f32 %v1794, %v1845
        %v1923 = vadd.f32 %v1795, %v1850
        %v1924 = vadd.f32 %v1796, %v1855
        %v1925 = vadd.f32 %v1797, %v1860
        %v1926 = vadd.f32 %v1798, %v1865
        %v1927 = vadd.f32 %v1799, %v1870
        %v1928 = vadd.f32 %v1800, %v1875
        %v1929 = vadd.f32 %v1801, %v1880
        %v1930 = vadd.f32 %v1802, %v1885
        %v1931 = vadd.f32 %v1803, %v1890
        %v1932 = vadd.f32 %v1804, %v1895
        %v1933 = vadd.f32 %v1805, %v1900
        %v1934 = vadd.f32 %v1806, %v1905
        %v1935 = vadd.f32 %v1807, %v1910
        %v1936 = vadd.f32 %v1808, %v1915
        %v1937 = vadd.f32 %v1809, %v1920
        %v1938 = vadd.f32 %v1810, %v1845
        %v1939 = vadd.f32 %v1811, %v1850
        %v1940 = vadd.f32 %v1812, %v1855
        %v1941 = vadd.f32 %v1813, %v1860
        %v1942 = vadd.f32 %v1814, %v1865
        %v1943 = vadd.f32 %v1815, %v1870
        %v1944 = vadd.f32 %v1816, %v1875
        %v1945 = vadd.f32 %v1817, %v1880
        %v1946 = vadd.f32 %v1818, %v1885
        %v1947 = vadd.f32 %v1819, %v1890
        %v1948 = vadd.f32 %v1820, %v1895
        %v1949 = vadd.f32 %v1821, %v1900
        %v1950 = vadd.f32 %v1822, %v1905
        %v1951 = vadd.f32 %v1823, %v1910
        %v1952 = vadd.f32 %v1824, %v1915
        %v1953 = vadd.f32 %v1825, %v1920
        %s1954 = sld [smem:[#allocation3]]
        %s1955 = smul.u32 %s39, 32768
        %v1956 = vlaneseq
        %v1957 = vshrl.u32 %v1956, 7
        %v1958 = vadd.s32 %v1957, 8
        %v1959 = vadd.s32 %v1957, 16
        %v1960 = vadd.s32 %v1957, 24
        %v1961 = vadd.s32 %v1957, 32
        %v1962 = vadd.s32 %v1957, 40
        %v1963 = vadd.s32 %v1957, 48
        %v1964 = vadd.s32 %v1957, 56
        %v1965 = vadd.s32 %v1957, 64
        %v1966 = vadd.s32 %v1957, 72
        %v1967 = vadd.s32 %v1957, 80
        %v1968 = vadd.s32 %v1957, 88
        %v1969 = vadd.s32 %v1957, 96
        %v1970 = vadd.s32 %v1957, 104
        %v1971 = vadd.s32 %v1957, 112
        %v1972 = vadd.s32 %v1957, 120
        %v1973 = vadd.s32 %v1957, 128
        %v1974 = vadd.s32 %v1957, 136
        %v1975 = vadd.s32 %v1957, 144
        %v1976 = vadd.s32 %v1957, 152
        %v1977 = vadd.s32 %v1957, 160
        %v1978 = vadd.s32 %v1957, 168
        %v1979 = vadd.s32 %v1957, 176
        %v1980 = vadd.s32 %v1957, 184
        %v1981 = vadd.s32 %v1957, 192
        %v1982 = vadd.s32 %v1957, 200
        %v1983 = vadd.s32 %v1957, 208
        %v1984 = vadd.s32 %v1957, 216
        %v1985 = vadd.s32 %v1957, 224
        %v1986 = vadd.s32 %v1957, 232
        %v1987 = vadd.s32 %v1957, 240
        %v1988 = vadd.s32 %v1957, 248
        %v1989 = vlaneseq
        %v1990 = vand.u32 %v1989, 127
        %v1991 = vmul.u32 %v1957, 128
        %v1992 = vmul.u32 %v1958, 128
        %v1993 = vmul.u32 %v1959, 128
        %v1994 = vmul.u32 %v1960, 128
        %v1995 = vmul.u32 %v1961, 128
        %v1996 = vmul.u32 %v1962, 128
        %v1997 = vmul.u32 %v1963, 128
        %v1998 = vmul.u32 %v1964, 128
        %v1999 = vmul.u32 %v1965, 128
        %v2000 = vmul.u32 %v1966, 128
        %v2001 = vmul.u32 %v1967, 128
        %v2002 = vmul.u32 %v1968, 128
        %v2003 = vmul.u32 %v1969, 128
        %v2004 = vmul.u32 %v1970, 128
        %v2005 = vmul.u32 %v1971, 128
        %v2006 = vmul.u32 %v1972, 128
        %v2007 = vmul.u32 %v1973, 128
        %v2008 = vmul.u32 %v1974, 128
        %v2009 = vmul.u32 %v1975, 128
        %v2010 = vmul.u32 %v1976, 128
        %v2011 = vmul.u32 %v1977, 128
        %v2012 = vmul.u32 %v1978, 128
        %v2013 = vmul.u32 %v1979, 128
        %v2014 = vmul.u32 %v1980, 128
        %v2015 = vmul.u32 %v1981, 128
        %v2016 = vmul.u32 %v1982, 128
        %v2017 = vmul.u32 %v1983, 128
        %v2018 = vmul.u32 %v1984, 128
        %v2019 = vmul.u32 %v1985, 128
        %v2020 = vmul.u32 %v1986, 128
        %v2021 = vmul.u32 %v1987, 128
        %v2022 = vmul.u32 %v1988, 128
        %v2023 = vstv %s1955
        %v2024 = vadd.s32 %v2023, %v1991
        %v2025 = vadd.s32 %v2023, %v1992
        %v2026 = vadd.s32 %v2023, %v1993
        %v2027 = vadd.s32 %v2023, %v1994
        %v2028 = vadd.s32 %v2023, %v1995
        %v2029 = vadd.s32 %v2023, %v1996
        %v2030 = vadd.s32 %v2023, %v1997
        %v2031 = vadd.s32 %v2023, %v1998
        %v2032 = vadd.s32 %v2023, %v1999
        %v2033 = vadd.s32 %v2023, %v2000
        %v2034 = vadd.s32 %v2023, %v2001
        %v2035 = vadd.s32 %v2023, %v2002
        %v2036 = vadd.s32 %v2023, %v2003
        %v2037 = vadd.s32 %v2023, %v2004
        %v2038 = vadd.s32 %v2023, %v2005
        %v2039 = vadd.s32 %v2023, %v2006
        %v2040 = vadd.s32 %v2023, %v2007
        %v2041 = vadd.s32 %v2023, %v2008
        %v2042 = vadd.s32 %v2023, %v2009
        %v2043 = vadd.s32 %v2023, %v2010
        %v2044 = vadd.s32 %v2023, %v2011
        %v2045 = vadd.s32 %v2023, %v2012
        %v2046 = vadd.s32 %v2023, %v2013
        %v2047 = vadd.s32 %v2023, %v2014
        %v2048 = vadd.s32 %v2023, %v2015
        %v2049 = vadd.s32 %v2023, %v2016
        %v2050 = vadd.s32 %v2023, %v2017
        %v2051 = vadd.s32 %v2023, %v2018
        %v2052 = vadd.s32 %v2023, %v2019
        %v2053 = vadd.s32 %v2023, %v2020
        %v2054 = vadd.s32 %v2023, %v2021
        %v2055 = vadd.s32 %v2023, %v2022
        %v2056 = vadd.s32 %v2024, %v1990
        %v2057 = vadd.s32 %v2025, %v1990
        %v2058 = vadd.s32 %v2026, %v1990
        %v2059 = vadd.s32 %v2027, %v1990
        %v2060 = vadd.s32 %v2028, %v1990
        %v2061 = vadd.s32 %v2029, %v1990
        %v2062 = vadd.s32 %v2030, %v1990
        %v2063 = vadd.s32 %v2031, %v1990
        %v2064 = vadd.s32 %v2032, %v1990
        %v2065 = vadd.s32 %v2033, %v1990
        %v2066 = vadd.s32 %v2034, %v1990
        %v2067 = vadd.s32 %v2035, %v1990
        %v2068 = vadd.s32 %v2036, %v1990
        %v2069 = vadd.s32 %v2037, %v1990
        %v2070 = vadd.s32 %v2038, %v1990
        %v2071 = vadd.s32 %v2039, %v1990
        %v2072 = vadd.s32 %v2040, %v1990
        %v2073 = vadd.s32 %v2041, %v1990
        %v2074 = vadd.s32 %v2042, %v1990
        %v2075 = vadd.s32 %v2043, %v1990
        %v2076 = vadd.s32 %v2044, %v1990
        %v2077 = vadd.s32 %v2045, %v1990
        %v2078 = vadd.s32 %v2046, %v1990
        %v2079 = vadd.s32 %v2047, %v1990
        %v2080 = vadd.s32 %v2048, %v1990
        %v2081 = vadd.s32 %v2049, %v1990
        %v2082 = vadd.s32 %v2050, %v1990
        %v2083 = vadd.s32 %v2051, %v1990
        %v2084 = vadd.s32 %v2052, %v1990
        %v2085 = vadd.s32 %v2053, %v1990
        %v2086 = vadd.s32 %v2054, %v1990
        %v2087 = vadd.s32 %v2055, %v1990
        %s2088 = smul.u32 %s1954, 2654435769
        %v2089 = vstv %s2088
        %v2090 = vxor.u32 %v2056, %v2089
        %v2091 = vxor.u32 %v2057, %v2089
        %v2092 = vxor.u32 %v2058, %v2089
        %v2093 = vxor.u32 %v2059, %v2089
        %v2094 = vxor.u32 %v2060, %v2089
        %v2095 = vxor.u32 %v2061, %v2089
        %v2096 = vxor.u32 %v2062, %v2089
        %v2097 = vxor.u32 %v2063, %v2089
        %v2098 = vxor.u32 %v2064, %v2089
        %v2099 = vxor.u32 %v2065, %v2089
        %v2100 = vxor.u32 %v2066, %v2089
        %v2101 = vxor.u32 %v2067, %v2089
        %v2102 = vxor.u32 %v2068, %v2089
        %v2103 = vxor.u32 %v2069, %v2089
        %v2104 = vxor.u32 %v2070, %v2089
        %v2105 = vxor.u32 %v2071, %v2089
        %v2106 = vxor.u32 %v2072, %v2089
        %v2107 = vxor.u32 %v2073, %v2089
        %v2108 = vxor.u32 %v2074, %v2089
        %v2109 = vxor.u32 %v2075, %v2089
        %v2110 = vxor.u32 %v2076, %v2089
        %v2111 = vxor.u32 %v2077, %v2089
        %v2112 = vxor.u32 %v2078, %v2089
        %v2113 = vxor.u32 %v2079, %v2089
        %v2114 = vxor.u32 %v2080, %v2089
        %v2115 = vxor.u32 %v2081, %v2089
        %v2116 = vxor.u32 %v2082, %v2089
        %v2117 = vxor.u32 %v2083, %v2089
        %v2118 = vxor.u32 %v2084, %v2089
        %v2119 = vxor.u32 %v2085, %v2089
        %v2120 = vxor.u32 %v2086, %v2089
        %v2121 = vxor.u32 %v2087, %v2089
        %v2122 = vshra.s32 %v2090, 16
        %v2123 = vshra.s32 %v2091, 16
        %v2124 = vshra.s32 %v2092, 16
        %v2125 = vshra.s32 %v2093, 16
        %v2126 = vshra.s32 %v2094, 16
        %v2127 = vshra.s32 %v2095, 16
        %v2128 = vshra.s32 %v2096, 16
        %v2129 = vshra.s32 %v2097, 16
        %v2130 = vshra.s32 %v2098, 16
        %v2131 = vshra.s32 %v2099, 16
        %v2132 = vshra.s32 %v2100, 16
        %v2133 = vshra.s32 %v2101, 16
        %v2134 = vshra.s32 %v2102, 16
        %v2135 = vshra.s32 %v2103, 16
        %v2136 = vshra.s32 %v2104, 16
        %v2137 = vshra.s32 %v2105, 16
        %v2138 = vshra.s32 %v2106, 16
        %v2139 = vshra.s32 %v2107, 16
        %v2140 = vshra.s32 %v2108, 16
        %v2141 = vshra.s32 %v2109, 16
        %v2142 = vshra.s32 %v2110, 16
        %v2143 = vshra.s32 %v2111, 16
        %v2144 = vshra.s32 %v2112, 16
        %v2145 = vshra.s32 %v2113, 16
        %v2146 = vshra.s32 %v2114, 16
        %v2147 = vshra.s32 %v2115, 16
        %v2148 = vshra.s32 %v2116, 16
        %v2149 = vshra.s32 %v2117, 16
        %v2150 = vshra.s32 %v2118, 16
        %v2151 = vshra.s32 %v2119, 16
        %v2152 = vshra.s32 %v2120, 16
        %v2153 = vshra.s32 %v2121, 16
        %v2154 = vand.u32 %v2122, 65535
        %v2155 = vand.u32 %v2123, 65535
        %v2156 = vand.u32 %v2124, 65535
        %v2157 = vand.u32 %v2125, 65535
        %v2158 = vand.u32 %v2126, 65535
        %v2159 = vand.u32 %v2127, 65535
        %v2160 = vand.u32 %v2128, 65535
        %v2161 = vand.u32 %v2129, 65535
        %v2162 = vand.u32 %v2130, 65535
        %v2163 = vand.u32 %v2131, 65535
        %v2164 = vand.u32 %v2132, 65535
        %v2165 = vand.u32 %v2133, 65535
        %v2166 = vand.u32 %v2134, 65535
        %v2167 = vand.u32 %v2135, 65535
        %v2168 = vand.u32 %v2136, 65535
        %v2169 = vand.u32 %v2137, 65535
        %v2170 = vand.u32 %v2138, 65535
        %v2171 = vand.u32 %v2139, 65535
        %v2172 = vand.u32 %v2140, 65535
        %v2173 = vand.u32 %v2141, 65535
        %v2174 = vand.u32 %v2142, 65535
        %v2175 = vand.u32 %v2143, 65535
        %v2176 = vand.u32 %v2144, 65535
        %v2177 = vand.u32 %v2145, 65535
        %v2178 = vand.u32 %v2146, 65535
        %v2179 = vand.u32 %v2147, 65535
        %v2180 = vand.u32 %v2148, 65535
        %v2181 = vand.u32 %v2149, 65535
        %v2182 = vand.u32 %v2150, 65535
        %v2183 = vand.u32 %v2151, 65535
        %v2184 = vand.u32 %v2152, 65535
        %v2185 = vand.u32 %v2153, 65535
        %v2186 = vxor.u32 %v2090, %v2154
        %v2187 = vxor.u32 %v2091, %v2155
        %v2188 = vxor.u32 %v2092, %v2156
        %v2189 = vxor.u32 %v2093, %v2157
        %v2190 = vxor.u32 %v2094, %v2158
        %v2191 = vxor.u32 %v2095, %v2159
        %v2192 = vxor.u32 %v2096, %v2160
        %v2193 = vxor.u32 %v2097, %v2161
        %v2194 = vxor.u32 %v2098, %v2162
        %v2195 = vxor.u32 %v2099, %v2163
        %v2196 = vxor.u32 %v2100, %v2164
        %v2197 = vxor.u32 %v2101, %v2165
        %v2198 = vxor.u32 %v2102, %v2166
        %v2199 = vxor.u32 %v2103, %v2167
        %v2200 = vxor.u32 %v2104, %v2168
        %v2201 = vxor.u32 %v2105, %v2169
        %v2202 = vxor.u32 %v2106, %v2170
        %v2203 = vxor.u32 %v2107, %v2171
        %v2204 = vxor.u32 %v2108, %v2172
        %v2205 = vxor.u32 %v2109, %v2173
        %v2206 = vxor.u32 %v2110, %v2174
        %v2207 = vxor.u32 %v2111, %v2175
        %v2208 = vxor.u32 %v2112, %v2176
        %v2209 = vxor.u32 %v2113, %v2177
        %v2210 = vxor.u32 %v2114, %v2178
        %v2211 = vxor.u32 %v2115, %v2179
        %v2212 = vxor.u32 %v2116, %v2180
        %v2213 = vxor.u32 %v2117, %v2181
        %v2214 = vxor.u32 %v2118, %v2182
        %v2215 = vxor.u32 %v2119, %v2183
        %v2216 = vxor.u32 %v2120, %v2184
        %v2217 = vxor.u32 %v2121, %v2185
        %v2218 = vmul.u32 %v2186, 2246822507
        %v2219 = vmul.u32 %v2187, 2246822507
        %v2220 = vmul.u32 %v2188, 2246822507
        %v2221 = vmul.u32 %v2189, 2246822507
        %v2222 = vmul.u32 %v2190, 2246822507
        %v2223 = vmul.u32 %v2191, 2246822507
        %v2224 = vmul.u32 %v2192, 2246822507
        %v2225 = vmul.u32 %v2193, 2246822507
        %v2226 = vmul.u32 %v2194, 2246822507
        %v2227 = vmul.u32 %v2195, 2246822507
        %v2228 = vmul.u32 %v2196, 2246822507
        %v2229 = vmul.u32 %v2197, 2246822507
        %v2230 = vmul.u32 %v2198, 2246822507
        %v2231 = vmul.u32 %v2199, 2246822507
        %v2232 = vmul.u32 %v2200, 2246822507
        %v2233 = vmul.u32 %v2201, 2246822507
        %v2234 = vmul.u32 %v2202, 2246822507
        %v2235 = vmul.u32 %v2203, 2246822507
        %v2236 = vmul.u32 %v2204, 2246822507
        %v2237 = vmul.u32 %v2205, 2246822507
        %v2238 = vmul.u32 %v2206, 2246822507
        %v2239 = vmul.u32 %v2207, 2246822507
        %v2240 = vmul.u32 %v2208, 2246822507
        %v2241 = vmul.u32 %v2209, 2246822507
        %v2242 = vmul.u32 %v2210, 2246822507
        %v2243 = vmul.u32 %v2211, 2246822507
        %v2244 = vmul.u32 %v2212, 2246822507
        %v2245 = vmul.u32 %v2213, 2246822507
        %v2246 = vmul.u32 %v2214, 2246822507
        %v2247 = vmul.u32 %v2215, 2246822507
        %v2248 = vmul.u32 %v2216, 2246822507
        %v2249 = vmul.u32 %v2217, 2246822507
        %v2250 = vshra.s32 %v2218, 13
        %v2251 = vshra.s32 %v2219, 13
        %v2252 = vshra.s32 %v2220, 13
        %v2253 = vshra.s32 %v2221, 13
        %v2254 = vshra.s32 %v2222, 13
        %v2255 = vshra.s32 %v2223, 13
        %v2256 = vshra.s32 %v2224, 13
        %v2257 = vshra.s32 %v2225, 13
        %v2258 = vshra.s32 %v2226, 13
        %v2259 = vshra.s32 %v2227, 13
        %v2260 = vshra.s32 %v2228, 13
        %v2261 = vshra.s32 %v2229, 13
        %v2262 = vshra.s32 %v2230, 13
        %v2263 = vshra.s32 %v2231, 13
        %v2264 = vshra.s32 %v2232, 13
        %v2265 = vshra.s32 %v2233, 13
        %v2266 = vshra.s32 %v2234, 13
        %v2267 = vshra.s32 %v2235, 13
        %v2268 = vshra.s32 %v2236, 13
        %v2269 = vshra.s32 %v2237, 13
        %v2270 = vshra.s32 %v2238, 13
        %v2271 = vshra.s32 %v2239, 13
        %v2272 = vshra.s32 %v2240, 13
        %v2273 = vshra.s32 %v2241, 13
        %v2274 = vshra.s32 %v2242, 13
        %v2275 = vshra.s32 %v2243, 13
        %v2276 = vshra.s32 %v2244, 13
        %v2277 = vshra.s32 %v2245, 13
        %v2278 = vshra.s32 %v2246, 13
        %v2279 = vshra.s32 %v2247, 13
        %v2280 = vshra.s32 %v2248, 13
        %v2281 = vshra.s32 %v2249, 13
        %v2282 = vand.u32 %v2250, 524287
        %v2283 = vand.u32 %v2251, 524287
        %v2284 = vand.u32 %v2252, 524287
        %v2285 = vand.u32 %v2253, 524287
        %v2286 = vand.u32 %v2254, 524287
        %v2287 = vand.u32 %v2255, 524287
        %v2288 = vand.u32 %v2256, 524287
        %v2289 = vand.u32 %v2257, 524287
        %v2290 = vand.u32 %v2258, 524287
        %v2291 = vand.u32 %v2259, 524287
        %v2292 = vand.u32 %v2260, 524287
        %v2293 = vand.u32 %v2261, 524287
        %v2294 = vand.u32 %v2262, 524287
        %v2295 = vand.u32 %v2263, 524287
        %v2296 = vand.u32 %v2264, 524287
        %v2297 = vand.u32 %v2265, 524287
        %v2298 = vand.u32 %v2266, 524287
        %v2299 = vand.u32 %v2267, 524287
        %v2300 = vand.u32 %v2268, 524287
        %v2301 = vand.u32 %v2269, 524287
        %v2302 = vand.u32 %v2270, 524287
        %v2303 = vand.u32 %v2271, 524287
        %v2304 = vand.u32 %v2272, 524287
        %v2305 = vand.u32 %v2273, 524287
        %v2306 = vand.u32 %v2274, 524287
        %v2307 = vand.u32 %v2275, 524287
        %v2308 = vand.u32 %v2276, 524287
        %v2309 = vand.u32 %v2277, 524287
        %v2310 = vand.u32 %v2278, 524287
        %v2311 = vand.u32 %v2279, 524287
        %v2312 = vand.u32 %v2280, 524287
        %v2313 = vand.u32 %v2281, 524287
        %v2314 = vxor.u32 %v2218, %v2282
        %v2315 = vxor.u32 %v2219, %v2283
        %v2316 = vxor.u32 %v2220, %v2284
        %v2317 = vxor.u32 %v2221, %v2285
        %v2318 = vxor.u32 %v2222, %v2286
        %v2319 = vxor.u32 %v2223, %v2287
        %v2320 = vxor.u32 %v2224, %v2288
        %v2321 = vxor.u32 %v2225, %v2289
        %v2322 = vxor.u32 %v2226, %v2290
        %v2323 = vxor.u32 %v2227, %v2291
        %v2324 = vxor.u32 %v2228, %v2292
        %v2325 = vxor.u32 %v2229, %v2293
        %v2326 = vxor.u32 %v2230, %v2294
        %v2327 = vxor.u32 %v2231, %v2295
        %v2328 = vxor.u32 %v2232, %v2296
        %v2329 = vxor.u32 %v2233, %v2297
        %v2330 = vxor.u32 %v2234, %v2298
        %v2331 = vxor.u32 %v2235, %v2299
        %v2332 = vxor.u32 %v2236, %v2300
        %v2333 = vxor.u32 %v2237, %v2301
        %v2334 = vxor.u32 %v2238, %v2302
        %v2335 = vxor.u32 %v2239, %v2303
        %v2336 = vxor.u32 %v2240, %v2304
        %v2337 = vxor.u32 %v2241, %v2305
        %v2338 = vxor.u32 %v2242, %v2306
        %v2339 = vxor.u32 %v2243, %v2307
        %v2340 = vxor.u32 %v2244, %v2308
        %v2341 = vxor.u32 %v2245, %v2309
        %v2342 = vxor.u32 %v2246, %v2310
        %v2343 = vxor.u32 %v2247, %v2311
        %v2344 = vxor.u32 %v2248, %v2312
        %v2345 = vxor.u32 %v2249, %v2313
        %v2346 = vmul.u32 %v2314, 3266489909
        %v2347 = vmul.u32 %v2315, 3266489909
        %v2348 = vmul.u32 %v2316, 3266489909
        %v2349 = vmul.u32 %v2317, 3266489909
        %v2350 = vmul.u32 %v2318, 3266489909
        %v2351 = vmul.u32 %v2319, 3266489909
        %v2352 = vmul.u32 %v2320, 3266489909
        %v2353 = vmul.u32 %v2321, 3266489909
        %v2354 = vmul.u32 %v2322, 3266489909
        %v2355 = vmul.u32 %v2323, 3266489909
        %v2356 = vmul.u32 %v2324, 3266489909
        %v2357 = vmul.u32 %v2325, 3266489909
        %v2358 = vmul.u32 %v2326, 3266489909
        %v2359 = vmul.u32 %v2327, 3266489909
        %v2360 = vmul.u32 %v2328, 3266489909
        %v2361 = vmul.u32 %v2329, 3266489909
        %v2362 = vmul.u32 %v2330, 3266489909
        %v2363 = vmul.u32 %v2331, 3266489909
        %v2364 = vmul.u32 %v2332, 3266489909
        %v2365 = vmul.u32 %v2333, 3266489909
        %v2366 = vmul.u32 %v2334, 3266489909
        %v2367 = vmul.u32 %v2335, 3266489909
        %v2368 = vmul.u32 %v2336, 3266489909
        %v2369 = vmul.u32 %v2337, 3266489909
        %v2370 = vmul.u32 %v2338, 3266489909
        %v2371 = vmul.u32 %v2339, 3266489909
        %v2372 = vmul.u32 %v2340, 3266489909
        %v2373 = vmul.u32 %v2341, 3266489909
        %v2374 = vmul.u32 %v2342, 3266489909
        %v2375 = vmul.u32 %v2343, 3266489909
        %v2376 = vmul.u32 %v2344, 3266489909
        %v2377 = vmul.u32 %v2345, 3266489909
        %v2378 = vshra.s32 %v2346, 16
        %v2379 = vshra.s32 %v2347, 16
        %v2380 = vshra.s32 %v2348, 16
        %v2381 = vshra.s32 %v2349, 16
        %v2382 = vshra.s32 %v2350, 16
        %v2383 = vshra.s32 %v2351, 16
        %v2384 = vshra.s32 %v2352, 16
        %v2385 = vshra.s32 %v2353, 16
        %v2386 = vshra.s32 %v2354, 16
        %v2387 = vshra.s32 %v2355, 16
        %v2388 = vshra.s32 %v2356, 16
        %v2389 = vshra.s32 %v2357, 16
        %v2390 = vshra.s32 %v2358, 16
        %v2391 = vshra.s32 %v2359, 16
        %v2392 = vshra.s32 %v2360, 16
        %v2393 = vshra.s32 %v2361, 16
        %v2394 = vshra.s32 %v2362, 16
        %v2395 = vshra.s32 %v2363, 16
        %v2396 = vshra.s32 %v2364, 16
        %v2397 = vshra.s32 %v2365, 16
        %v2398 = vshra.s32 %v2366, 16
        %v2399 = vshra.s32 %v2367, 16
        %v2400 = vshra.s32 %v2368, 16
        %v2401 = vshra.s32 %v2369, 16
        %v2402 = vshra.s32 %v2370, 16
        %v2403 = vshra.s32 %v2371, 16
        %v2404 = vshra.s32 %v2372, 16
        %v2405 = vshra.s32 %v2373, 16
        %v2406 = vshra.s32 %v2374, 16
        %v2407 = vshra.s32 %v2375, 16
        %v2408 = vshra.s32 %v2376, 16
        %v2409 = vshra.s32 %v2377, 16
        %v2410 = vand.u32 %v2378, 65535
        %v2411 = vand.u32 %v2379, 65535
        %v2412 = vand.u32 %v2380, 65535
        %v2413 = vand.u32 %v2381, 65535
        %v2414 = vand.u32 %v2382, 65535
        %v2415 = vand.u32 %v2383, 65535
        %v2416 = vand.u32 %v2384, 65535
        %v2417 = vand.u32 %v2385, 65535
        %v2418 = vand.u32 %v2386, 65535
        %v2419 = vand.u32 %v2387, 65535
        %v2420 = vand.u32 %v2388, 65535
        %v2421 = vand.u32 %v2389, 65535
        %v2422 = vand.u32 %v2390, 65535
        %v2423 = vand.u32 %v2391, 65535
        %v2424 = vand.u32 %v2392, 65535
        %v2425 = vand.u32 %v2393, 65535
        %v2426 = vand.u32 %v2394, 65535
        %v2427 = vand.u32 %v2395, 65535
        %v2428 = vand.u32 %v2396, 65535
        %v2429 = vand.u32 %v2397, 65535
        %v2430 = vand.u32 %v2398, 65535
        %v2431 = vand.u32 %v2399, 65535
        %v2432 = vand.u32 %v2400, 65535
        %v2433 = vand.u32 %v2401, 65535
        %v2434 = vand.u32 %v2402, 65535
        %v2435 = vand.u32 %v2403, 65535
        %v2436 = vand.u32 %v2404, 65535
        %v2437 = vand.u32 %v2405, 65535
        %v2438 = vand.u32 %v2406, 65535
        %v2439 = vand.u32 %v2407, 65535
        %v2440 = vand.u32 %v2408, 65535
        %v2441 = vand.u32 %v2409, 65535
        %v2442 = vxor.u32 %v2346, %v2410
        %v2443 = vxor.u32 %v2347, %v2411
        %v2444 = vxor.u32 %v2348, %v2412
        %v2445 = vxor.u32 %v2349, %v2413
        %v2446 = vxor.u32 %v2350, %v2414
        %v2447 = vxor.u32 %v2351, %v2415
        %v2448 = vxor.u32 %v2352, %v2416
        %v2449 = vxor.u32 %v2353, %v2417
        %v2450 = vxor.u32 %v2354, %v2418
        %v2451 = vxor.u32 %v2355, %v2419
        %v2452 = vxor.u32 %v2356, %v2420
        %v2453 = vxor.u32 %v2357, %v2421
        %v2454 = vxor.u32 %v2358, %v2422
        %v2455 = vxor.u32 %v2359, %v2423
        %v2456 = vxor.u32 %v2360, %v2424
        %v2457 = vxor.u32 %v2361, %v2425
        %v2458 = vxor.u32 %v2362, %v2426
        %v2459 = vxor.u32 %v2363, %v2427
        %v2460 = vxor.u32 %v2364, %v2428
        %v2461 = vxor.u32 %v2365, %v2429
        %v2462 = vxor.u32 %v2366, %v2430
        %v2463 = vxor.u32 %v2367, %v2431
        %v2464 = vxor.u32 %v2368, %v2432
        %v2465 = vxor.u32 %v2369, %v2433
        %v2466 = vxor.u32 %v2370, %v2434
        %v2467 = vxor.u32 %v2371, %v2435
        %v2468 = vxor.u32 %v2372, %v2436
        %v2469 = vxor.u32 %v2373, %v2437
        %v2470 = vxor.u32 %v2374, %v2438
        %v2471 = vxor.u32 %v2375, %v2439
        %v2472 = vxor.u32 %v2376, %v2440
        %v2473 = vxor.u32 %v2377, %v2441
        %v2474 = vand.u32 %v2442, 16777215
        %v2475 = vand.u32 %v2443, 16777215
        %v2476 = vand.u32 %v2444, 16777215
        %v2477 = vand.u32 %v2445, 16777215
        %v2478 = vand.u32 %v2446, 16777215
        %v2479 = vand.u32 %v2447, 16777215
        %v2480 = vand.u32 %v2448, 16777215
        %v2481 = vand.u32 %v2449, 16777215
        %v2482 = vand.u32 %v2450, 16777215
        %v2483 = vand.u32 %v2451, 16777215
        %v2484 = vand.u32 %v2452, 16777215
        %v2485 = vand.u32 %v2453, 16777215
        %v2486 = vand.u32 %v2454, 16777215
        %v2487 = vand.u32 %v2455, 16777215
        %v2488 = vand.u32 %v2456, 16777215
        %v2489 = vand.u32 %v2457, 16777215
        %v2490 = vand.u32 %v2458, 16777215
        %v2491 = vand.u32 %v2459, 16777215
        %v2492 = vand.u32 %v2460, 16777215
        %v2493 = vand.u32 %v2461, 16777215
        %v2494 = vand.u32 %v2462, 16777215
        %v2495 = vand.u32 %v2463, 16777215
        %v2496 = vand.u32 %v2464, 16777215
        %v2497 = vand.u32 %v2465, 16777215
        %v2498 = vand.u32 %v2466, 16777215
        %v2499 = vand.u32 %v2467, 16777215
        %v2500 = vand.u32 %v2468, 16777215
        %v2501 = vand.u32 %v2469, 16777215
        %v2502 = vand.u32 %v2470, 16777215
        %v2503 = vand.u32 %v2471, 16777215
        %v2504 = vand.u32 %v2472, 16777215
        %v2505 = vand.u32 %v2473, 16777215
        %vm2506 = vcmp.ge.s32.totalorder %v2474, 1677722
        %vm2507 = vcmp.ge.s32.totalorder %v2475, 1677722
        %vm2508 = vcmp.ge.s32.totalorder %v2476, 1677722
        %vm2509 = vcmp.ge.s32.totalorder %v2477, 1677722
        %vm2510 = vcmp.ge.s32.totalorder %v2478, 1677722
        %vm2511 = vcmp.ge.s32.totalorder %v2479, 1677722
        %vm2512 = vcmp.ge.s32.totalorder %v2480, 1677722
        %vm2513 = vcmp.ge.s32.totalorder %v2481, 1677722
        %vm2514 = vcmp.ge.s32.totalorder %v2482, 1677722
        %vm2515 = vcmp.ge.s32.totalorder %v2483, 1677722
        %vm2516 = vcmp.ge.s32.totalorder %v2484, 1677722
        %vm2517 = vcmp.ge.s32.totalorder %v2485, 1677722
        %vm2518 = vcmp.ge.s32.totalorder %v2486, 1677722
        %vm2519 = vcmp.ge.s32.totalorder %v2487, 1677722
        %vm2520 = vcmp.ge.s32.totalorder %v2488, 1677722
        %vm2521 = vcmp.ge.s32.totalorder %v2489, 1677722
        %vm2522 = vcmp.ge.s32.totalorder %v2490, 1677722
        %vm2523 = vcmp.ge.s32.totalorder %v2491, 1677722
        %vm2524 = vcmp.ge.s32.totalorder %v2492, 1677722
        %vm2525 = vcmp.ge.s32.totalorder %v2493, 1677722
        %vm2526 = vcmp.ge.s32.totalorder %v2494, 1677722
        %vm2527 = vcmp.ge.s32.totalorder %v2495, 1677722
        %vm2528 = vcmp.ge.s32.totalorder %v2496, 1677722
        %vm2529 = vcmp.ge.s32.totalorder %v2497, 1677722
        %vm2530 = vcmp.ge.s32.totalorder %v2498, 1677722
        %vm2531 = vcmp.ge.s32.totalorder %v2499, 1677722
        %vm2532 = vcmp.ge.s32.totalorder %v2500, 1677722
        %vm2533 = vcmp.ge.s32.totalorder %v2501, 1677722
        %vm2534 = vcmp.ge.s32.totalorder %v2502, 1677722
        %vm2535 = vcmp.ge.s32.totalorder %v2503, 1677722
        %vm2536 = vcmp.ge.s32.totalorder %v2504, 1677722
        %vm2537 = vcmp.ge.s32.totalorder %v2505, 1677722
        %v2538 = vmul.f32 %v1922, 1.1111112
        %v2539 = vmul.f32 %v1923, 1.1111112
        %v2540 = vmul.f32 %v1924, 1.1111112
        %v2541 = vmul.f32 %v1925, 1.1111112
        %v2542 = vmul.f32 %v1926, 1.1111112
        %v2543 = vmul.f32 %v1927, 1.1111112
        %v2544 = vmul.f32 %v1928, 1.1111112
        %v2545 = vmul.f32 %v1929, 1.1111112
        %v2546 = vmul.f32 %v1930, 1.1111112
        %v2547 = vmul.f32 %v1931, 1.1111112
        %v2548 = vmul.f32 %v1932, 1.1111112
        %v2549 = vmul.f32 %v1933, 1.1111112
        %v2550 = vmul.f32 %v1934, 1.1111112
        %v2551 = vmul.f32 %v1935, 1.1111112
        %v2552 = vmul.f32 %v1936, 1.1111112
        %v2553 = vmul.f32 %v1937, 1.1111112
        %v2554 = vmul.f32 %v1938, 1.1111112
        %v2555 = vmul.f32 %v1939, 1.1111112
        %v2556 = vmul.f32 %v1940, 1.1111112
        %v2557 = vmul.f32 %v1941, 1.1111112
        %v2558 = vmul.f32 %v1942, 1.1111112
        %v2559 = vmul.f32 %v1943, 1.1111112
        %v2560 = vmul.f32 %v1944, 1.1111112
        %v2561 = vmul.f32 %v1945, 1.1111112
        %v2562 = vmul.f32 %v1946, 1.1111112
        %v2563 = vmul.f32 %v1947, 1.1111112
        %v2564 = vmul.f32 %v1948, 1.1111112
        %v2565 = vmul.f32 %v1949, 1.1111112
        %v2566 = vmul.f32 %v1950, 1.1111112
        %v2567 = vmul.f32 %v1951, 1.1111112
        %v2568 = vmul.f32 %v1952, 1.1111112
        %v2569 = vmul.f32 %v1953, 1.1111112
        %v2570 = vsel %vm2506, %v2538, 0.0
        %v2571 = vsel %vm2507, %v2539, 0.0
        %v2572 = vsel %vm2508, %v2540, 0.0
        %v2573 = vsel %vm2509, %v2541, 0.0
        %v2574 = vsel %vm2510, %v2542, 0.0
        %v2575 = vsel %vm2511, %v2543, 0.0
        %v2576 = vsel %vm2512, %v2544, 0.0
        %v2577 = vsel %vm2513, %v2545, 0.0
        %v2578 = vsel %vm2514, %v2546, 0.0
        %v2579 = vsel %vm2515, %v2547, 0.0
        %v2580 = vsel %vm2516, %v2548, 0.0
        %v2581 = vsel %vm2517, %v2549, 0.0
        %v2582 = vsel %vm2518, %v2550, 0.0
        %v2583 = vsel %vm2519, %v2551, 0.0
        %v2584 = vsel %vm2520, %v2552, 0.0
        %v2585 = vsel %vm2521, %v2553, 0.0
        %v2586 = vsel %vm2522, %v2554, 0.0
        %v2587 = vsel %vm2523, %v2555, 0.0
        %v2588 = vsel %vm2524, %v2556, 0.0
        %v2589 = vsel %vm2525, %v2557, 0.0
        %v2590 = vsel %vm2526, %v2558, 0.0
        %v2591 = vsel %vm2527, %v2559, 0.0
        %v2592 = vsel %vm2528, %v2560, 0.0
        %v2593 = vsel %vm2529, %v2561, 0.0
        %v2594 = vsel %vm2530, %v2562, 0.0
        %v2595 = vsel %vm2531, %v2563, 0.0
        %v2596 = vsel %vm2532, %v2564, 0.0
        %v2597 = vsel %vm2533, %v2565, 0.0
        %v2598 = vsel %vm2534, %v2566, 0.0
        %v2599 = vsel %vm2535, %v2567, 0.0
        %v2600 = vsel %vm2536, %v2568, 0.0
        %v2601 = vsel %vm2537, %v2569, 0.0
        %v2602 = vmax.f32 %v2570, 0.0
        %v2603 = vmax.f32 %v2571, 0.0
        %v2604 = vmax.f32 %v2572, 0.0
        %v2605 = vmax.f32 %v2573, 0.0
        %v2606 = vmax.f32 %v2574, 0.0
        %v2607 = vmax.f32 %v2575, 0.0
        %v2608 = vmax.f32 %v2576, 0.0
        %v2609 = vmax.f32 %v2577, 0.0
        %v2610 = vmax.f32 %v2578, 0.0
        %v2611 = vmax.f32 %v2579, 0.0
        %v2612 = vmax.f32 %v2580, 0.0
        %v2613 = vmax.f32 %v2581, 0.0
        %v2614 = vmax.f32 %v2582, 0.0
        %v2615 = vmax.f32 %v2583, 0.0
        %v2616 = vmax.f32 %v2584, 0.0
        %v2617 = vmax.f32 %v2585, 0.0
        %v2618 = vmax.f32 %v2586, 0.0
        %v2619 = vmax.f32 %v2587, 0.0
        %v2620 = vmax.f32 %v2588, 0.0
        %v2621 = vmax.f32 %v2589, 0.0
        %v2622 = vmax.f32 %v2590, 0.0
        %v2623 = vmax.f32 %v2591, 0.0
        %v2624 = vmax.f32 %v2592, 0.0
        %v2625 = vmax.f32 %v2593, 0.0
        %v2626 = vmax.f32 %v2594, 0.0
        %v2627 = vmax.f32 %v2595, 0.0
        %v2628 = vmax.f32 %v2596, 0.0
        %v2629 = vmax.f32 %v2597, 0.0
        %v2630 = vmax.f32 %v2598, 0.0
        %v2631 = vmax.f32 %v2599, 0.0
        %v2632 = vmax.f32 %v2600, 0.0
        %v2633 = vmax.f32 %v2601, 0.0
        %v2634 = vpack.c.bf16 %v2603, %v2602
        %v2635 = vpack.c.bf16 %v2605, %v2604
        %v2636 = vpack.c.bf16 %v2607, %v2606
        %v2637 = vpack.c.bf16 %v2609, %v2608
        %v2638 = vpack.c.bf16 %v2611, %v2610
        %v2639 = vpack.c.bf16 %v2613, %v2612
        %v2640 = vpack.c.bf16 %v2615, %v2614
        %v2641 = vpack.c.bf16 %v2617, %v2616
        %v2642 = vpack.c.bf16 %v2619, %v2618
        %v2643 = vpack.c.bf16 %v2621, %v2620
        %v2644 = vpack.c.bf16 %v2623, %v2622
        %v2645 = vpack.c.bf16 %v2625, %v2624
        %v2646 = vpack.c.bf16 %v2627, %v2626
        %v2647 = vpack.c.bf16 %v2629, %v2628
        %v2648 = vpack.c.bf16 %v2631, %v2630
        %v2649 = vpack.c.bf16 %v2633, %v2632
        %v2650 = vld [vmem:[%s6] sm:$0xf]
        %v2651 = vld [vmem:[%s6 + $0x4] sm:$0xf]
        %v2652 = vld [vmem:[%s6 + $0x8] sm:$0xf]
        %v2653 = vld [vmem:[%s6 + $0xc] sm:$0xf]
        %v2654 = vld [vmem:[%s6 + $0x10] sm:$0xf]
        %v2655 = vld [vmem:[%s6 + $0x14] sm:$0xf]
        %v2656 = vld [vmem:[%s6 + $0x18] sm:$0xf]
        %v2657 = vld [vmem:[%s6 + $0x1c] sm:$0xf]
        %v2658 = vld [vmem:[%s6 + $0x20] sm:$0xf]
        %v2659 = vld [vmem:[%s6 + $0x24] sm:$0xf]
        %v2660 = vld [vmem:[%s6 + $0x28] sm:$0xf]
        %v2661 = vld [vmem:[%s6 + $0x2c] sm:$0xf]
        %v2662 = vld [vmem:[%s6 + $0x30] sm:$0xf]
        %v2663 = vld [vmem:[%s6 + $0x34] sm:$0xf]
        %v2664 = vld [vmem:[%s6 + $0x38] sm:$0xf]
        %v2665 = vld [vmem:[%s6 + $0x3c] sm:$0xf]
        %v2682 = vunpack.c.l.b16 %v2650
        %v2683 = vunpack.c.l.b16 %v2651
        %v2684 = vunpack.c.l.b16 %v2652
        %v2685 = vunpack.c.l.b16 %v2653
        %v2686 = vunpack.c.l.b16 %v2654
        %v2687 = vunpack.c.l.b16 %v2655
        %v2688 = vunpack.c.l.b16 %v2656
        %v2689 = vunpack.c.l.b16 %v2657
        %v2690 = vunpack.c.l.b16 %v2658
        %v2691 = vunpack.c.l.b16 %v2659
        %v2692 = vunpack.c.l.b16 %v2660
        %v2693 = vunpack.c.l.b16 %v2661
        %v2694 = vunpack.c.l.b16 %v2662
        %v2695 = vunpack.c.l.b16 %v2663
        %v2696 = vunpack.c.l.b16 %v2664
        %v2697 = vunpack.c.l.b16 %v2665
        %v2698 = vpack.c.b16 %v2683, %v2682
        %v2699 = vpack.c.b16 %v2685, %v2684
        %v2700 = vpack.c.b16 %v2687, %v2686
        %v2701 = vpack.c.b16 %v2689, %v2688
        %v2702 = vpack.c.b16 %v2691, %v2690
        %v2703 = vpack.c.b16 %v2693, %v2692
        %v2704 = vpack.c.b16 %v2695, %v2694
        %v2705 = vpack.c.b16 %v2697, %v2696
        %2714 = vmatprep.subr.bf16.mxu0 0
        %2715 = vmatpush1.bf16.msra.mxu0 %v2698
        %2716 = vmatprep.subr.bf16.mxu0 0
        %2717 = vmatpush1.bf16.msra.mxu0 %v2699
        %2718 = vmatprep.subr.bf16.mxu0 0
        %2719 = vmatpush1.bf16.msra.mxu0 %v2700
        %2720 = vmatprep.subr.bf16.mxu0 0
        %2721 = vmatpush1.bf16.msra.mxu0 %v2701
        %2722 = vmatprep.subr.bf16.mxu0 0
        %2723 = vmatpush1.bf16.msra.mxu0 %v2702
        %2724 = vmatprep.subr.bf16.mxu0 0
        %2725 = vmatpush1.bf16.msra.mxu0 %v2703
        %2726 = vmatprep.subr.bf16.mxu0 0
        %2727 = vmatpush1.bf16.msra.mxu0 %v2704
        %2728 = vmatprep.subr.bf16.mxu0 0
        %2729 = vmatpush1.bf16.msra.mxu0 %v2705
        %2730 = vmatprep.subr.bf16.mxu0 0
        %2731 = vmatpush1.bf16.msra.mxu0 0
        %2732 = vmatprep.subr.bf16.mxu0 0
        %2733 = vmatpush1.bf16.msra.mxu0 0
        %2734 = vmatprep.subr.bf16.mxu0 0
        %2735 = vmatpush1.bf16.msra.mxu0 0
        %2736 = vmatprep.subr.bf16.mxu0 0
        %2737 = vmatpush1.bf16.msra.mxu0 0
        %2738 = vmatprep.subr.bf16.mxu0 0
        %2739 = vmatpush1.bf16.msra.mxu0 0
        %2740 = vmatprep.subr.bf16.mxu0 0
        %2741 = vmatpush1.bf16.msra.mxu0 0
        %2742 = vmatprep.subr.bf16.mxu0 0
        %2743 = vmatpush1.bf16.msra.mxu0 0
        %2744 = vmatprep.subr.bf16.mxu0 0
        %2745 = vmatpush1.bf16.msra.mxu0 0
        %2746 = vmatprep.mubr.bf16.mxu0 0
        %2747 = vmatmul.mubr.bf16.gmra.mrb[0].mxu0 %v2634
        %v2748 = vpop.f32.mrb[0].mxu0
        %v2749 = vadd.f32 0.0, %v2748
        %v2750 = vpop.f32.mrb[0].mxu0
        %v2751 = vpop.f32.mrb[0].mxu0
        %v2752 = vadd.f32 0.0, %v2751
        %v2753 = vpop.f32.mrb[0].mxu0
        %2754 = vmatprep.mubr.bf16.mxu0 0
        %2755 = vmatmul.mubr.bf16.gmra.mrb[0].mxu0 %v2635
        %v2756 = vpop.f32.mrb[0].mxu0
        %v2757 = vadd.f32 0.0, %v2756
        %v2758 = vpop.f32.mrb[0].mxu0
        %v2759 = vpop.f32.mrb[0].mxu0
        %v2760 = vadd.f32 0.0, %v2759
        %v2761 = vpop.f32.mrb[0].mxu0
        %2762 = vmatprep.mubr.bf16.mxu0 0
        %2763 = vmatmul.mubr.bf16.gmra.mrb[0].mxu0 %v2636
        %v2764 = vpop.f32.mrb[0].mxu0
        %v2765 = vadd.f32 0.0, %v2764
        %v2766 = vpop.f32.mrb[0].mxu0
        %v2767 = vpop.f32.mrb[0].mxu0
        %v2768 = vadd.f32 0.0, %v2767
        %v2769 = vpop.f32.mrb[0].mxu0
        %2770 = vmatprep.mubr.bf16.mxu0 0
        %2771 = vmatmul.mubr.bf16.gmra.mrb[0].mxu0 %v2637
        %v2772 = vpop.f32.mrb[0].mxu0
        %v2773 = vadd.f32 0.0, %v2772
        %v2774 = vpop.f32.mrb[0].mxu0
        %v2775 = vpop.f32.mrb[0].mxu0
        %v2776 = vadd.f32 0.0, %v2775
        %v2777 = vpop.f32.mrb[0].mxu0
        %2778 = vmatprep.mubr.bf16.mxu0 0
        %2779 = vmatmul.mubr.bf16.gmra.mrb[0].mxu0 %v2638
        %v2780 = vpop.f32.mrb[0].mxu0
        %v2781 = vadd.f32 0.0, %v2780
        %v2782 = vpop.f32.mrb[0].mxu0
        %v2783 = vpop.f32.mrb[0].mxu0
        %v2784 = vadd.f32 0.0, %v2783
        %v2785 = vpop.f32.mrb[0].mxu0
        %2786 = vmatprep.mubr.bf16.mxu0 0
        %2787 = vmatmul.mubr.bf16.gmra.mrb[0].mxu0 %v2639
        %v2788 = vpop.f32.mrb[0].mxu0
        %v2789 = vadd.f32 0.0, %v2788
        %v2790 = vpop.f32.mrb[0].mxu0
        %v2791 = vpop.f32.mrb[0].mxu0
        %v2792 = vadd.f32 0.0, %v2791
        %v2793 = vpop.f32.mrb[0].mxu0
        %2794 = vmatprep.mubr.bf16.mxu0 0
        %2795 = vmatmul.mubr.bf16.gmra.mrb[0].mxu0 %v2640
        %v2796 = vpop.f32.mrb[0].mxu0
        %v2797 = vadd.f32 0.0, %v2796
        %v2798 = vpop.f32.mrb[0].mxu0
        %v2799 = vpop.f32.mrb[0].mxu0
        %v2800 = vadd.f32 0.0, %v2799
        %v2801 = vpop.f32.mrb[0].mxu0
        %2802 = vmatprep.mubr.bf16.mxu0 0
        %2803 = vmatmul.mubr.bf16.gmra.mrb[0].mxu0 %v2641
        %v2804 = vpop.f32.mrb[0].mxu0
        %v2805 = vadd.f32 0.0, %v2804
        %v2806 = vpop.f32.mrb[0].mxu0
        %v2807 = vpop.f32.mrb[0].mxu0
        %v2808 = vadd.f32 0.0, %v2807
        %v2809 = vpop.f32.mrb[0].mxu0
        %2810 = vmatprep.mubr.bf16.mxu0 0
        %2811 = vmatmul.mubr.bf16.gmra.mrb[0].mxu0 %v2642
        %v2812 = vpop.f32.mrb[0].mxu0
        %v2813 = vadd.f32 0.0, %v2812
        %v2814 = vpop.f32.mrb[0].mxu0
        %v2815 = vpop.f32.mrb[0].mxu0
        %v2816 = vadd.f32 0.0, %v2815
        %v2817 = vpop.f32.mrb[0].mxu0
        %2818 = vmatprep.mubr.bf16.mxu0 0
        %2819 = vmatmul.mubr.bf16.gmra.mrb[0].mxu0 %v2643
        %v2820 = vpop.f32.mrb[0].mxu0
        %v2821 = vadd.f32 0.0, %v2820
        %v2822 = vpop.f32.mrb[0].mxu0
        %v2823 = vpop.f32.mrb[0].mxu0
        %v2824 = vadd.f32 0.0, %v2823
        %v2825 = vpop.f32.mrb[0].mxu0
        %2826 = vmatprep.mubr.bf16.mxu0 0
        %2827 = vmatmul.mubr.bf16.gmra.mrb[0].mxu0 %v2644
        %v2828 = vpop.f32.mrb[0].mxu0
        %v2829 = vadd.f32 0.0, %v2828
        %v2830 = vpop.f32.mrb[0].mxu0
        %v2831 = vpop.f32.mrb[0].mxu0
        %v2832 = vadd.f32 0.0, %v2831
        %v2833 = vpop.f32.mrb[0].mxu0
        %2834 = vmatprep.mubr.bf16.mxu0 0
        %2835 = vmatmul.mubr.bf16.gmra.mrb[0].mxu0 %v2645
        %v2836 = vpop.f32.mrb[0].mxu0
        %v2837 = vadd.f32 0.0, %v2836
        %v2838 = vpop.f32.mrb[0].mxu0
        %v2839 = vpop.f32.mrb[0].mxu0
        %v2840 = vadd.f32 0.0, %v2839
        %v2841 = vpop.f32.mrb[0].mxu0
        %2842 = vmatprep.mubr.bf16.mxu0 0
        %2843 = vmatmul.mubr.bf16.gmra.mrb[0].mxu0 %v2646
        %v2844 = vpop.f32.mrb[0].mxu0
        %v2845 = vadd.f32 0.0, %v2844
        %v2846 = vpop.f32.mrb[0].mxu0
        %v2847 = vpop.f32.mrb[0].mxu0
        %v2848 = vadd.f32 0.0, %v2847
        %v2849 = vpop.f32.mrb[0].mxu0
        %2850 = vmatprep.mubr.bf16.mxu0 0
        %2851 = vmatmul.mubr.bf16.gmra.mrb[0].mxu0 %v2647
        %v2852 = vpop.f32.mrb[0].mxu0
        %v2853 = vadd.f32 0.0, %v2852
        %v2854 = vpop.f32.mrb[0].mxu0
        %v2855 = vpop.f32.mrb[0].mxu0
        %v2856 = vadd.f32 0.0, %v2855
        %v2857 = vpop.f32.mrb[0].mxu0
        %2858 = vmatprep.mubr.bf16.mxu0 0
        %2859 = vmatmul.mubr.bf16.gmra.mrb[0].mxu0 %v2648
        %v2860 = vpop.f32.mrb[0].mxu0
        %v2861 = vadd.f32 0.0, %v2860
        %v2862 = vpop.f32.mrb[0].mxu0
        %v2863 = vpop.f32.mrb[0].mxu0
        %v2864 = vadd.f32 0.0, %v2863
        %v2865 = vpop.f32.mrb[0].mxu0
        %2866 = vmatprep.mubr.bf16.mxu0 0
        %2867 = vmatmul.mubr.bf16.gmra.mrb[0].mxu0 %v2649
        %v2868 = vpop.f32.mrb[0].mxu0
        %v2869 = vadd.f32 0.0, %v2868
        %v2870 = vpop.f32.mrb[0].mxu0
        %v2871 = vpop.f32.mrb[0].mxu0
        %v2872 = vadd.f32 0.0, %v2871
        %v2873 = vpop.f32.mrb[0].mxu0
        %2874 = vdwg.mxu0
        %v2875 = vld [vmem:[%s7] sm:$0x1]
        %v2877 = vlaneseq
        %v2878 = vshrl.u32 %v2877, 7
        %v2879 = vsub.s32 0, %v2878
        %v2880 = vrot.slane %v2875, %v2879
        %v2882 = vadd.f32 %v2749, %v2880
        %v2883 = vadd.f32 %v2752, %v2880
        %v2884 = vadd.f32 %v2757, %v2880
        %v2885 = vadd.f32 %v2760, %v2880
        %v2886 = vadd.f32 %v2765, %v2880
        %v2887 = vadd.f32 %v2768, %v2880
        %v2888 = vadd.f32 %v2773, %v2880
        %v2889 = vadd.f32 %v2776, %v2880
        %v2890 = vadd.f32 %v2781, %v2880
        %v2891 = vadd.f32 %v2784, %v2880
        %v2892 = vadd.f32 %v2789, %v2880
        %v2893 = vadd.f32 %v2792, %v2880
        %v2894 = vadd.f32 %v2797, %v2880
        %v2895 = vadd.f32 %v2800, %v2880
        %v2896 = vadd.f32 %v2805, %v2880
        %v2897 = vadd.f32 %v2808, %v2880
        %v2898 = vadd.f32 %v2813, %v2880
        %v2899 = vadd.f32 %v2816, %v2880
        %v2900 = vadd.f32 %v2821, %v2880
        %v2901 = vadd.f32 %v2824, %v2880
        %v2902 = vadd.f32 %v2829, %v2880
        %v2903 = vadd.f32 %v2832, %v2880
        %v2904 = vadd.f32 %v2837, %v2880
        %v2905 = vadd.f32 %v2840, %v2880
        %v2906 = vadd.f32 %v2845, %v2880
        %v2907 = vadd.f32 %v2848, %v2880
        %v2908 = vadd.f32 %v2853, %v2880
        %v2909 = vadd.f32 %v2856, %v2880
        %v2910 = vadd.f32 %v2861, %v2880
        %v2911 = vadd.f32 %v2864, %v2880
        %v2912 = vadd.f32 %v2869, %v2880
        %v2913 = vadd.f32 %v2872, %v2880
        %vm2914 = vcmask 523264
        %v2915 = vsel %vm2914, %v2882, 0.0
        %2916 = vadd.xlane.f32.xlu0 %v2915
        %v2917 = vpop.xlane.xlu0 %2916
        %v2918 = vsel %vm2914, %v2883, 0.0
        %2919 = vadd.xlane.f32.xlu0 %v2918
        %v2920 = vpop.xlane.xlu0 %2919
        %v2921 = vsel %vm2914, %v2884, 0.0
        %2922 = vadd.xlane.f32.xlu0 %v2921
        %v2923 = vpop.xlane.xlu0 %2922
        %v2924 = vsel %vm2914, %v2885, 0.0
        %2925 = vadd.xlane.f32.xlu0 %v2924
        %v2926 = vpop.xlane.xlu0 %2925
        %v2927 = vsel %vm2914, %v2886, 0.0
        %2928 = vadd.xlane.f32.xlu0 %v2927
        %v2929 = vpop.xlane.xlu0 %2928
        %v2930 = vsel %vm2914, %v2887, 0.0
        %2931 = vadd.xlane.f32.xlu0 %v2930
        %v2932 = vpop.xlane.xlu0 %2931
        %v2933 = vsel %vm2914, %v2888, 0.0
        %2934 = vadd.xlane.f32.xlu0 %v2933
        %v2935 = vpop.xlane.xlu0 %2934
        %v2936 = vsel %vm2914, %v2889, 0.0
        %2937 = vadd.xlane.f32.xlu0 %v2936
        %v2938 = vpop.xlane.xlu0 %2937
        %v2939 = vsel %vm2914, %v2890, 0.0
        %2940 = vadd.xlane.f32.xlu0 %v2939
        %v2941 = vpop.xlane.xlu0 %2940
        %v2942 = vsel %vm2914, %v2891, 0.0
        %2943 = vadd.xlane.f32.xlu0 %v2942
        %v2944 = vpop.xlane.xlu0 %2943
        %v2945 = vsel %vm2914, %v2892, 0.0
        %2946 = vadd.xlane.f32.xlu0 %v2945
        %v2947 = vpop.xlane.xlu0 %2946
        %v2948 = vsel %vm2914, %v2893, 0.0
        %2949 = vadd.xlane.f32.xlu0 %v2948
        %v2950 = vpop.xlane.xlu0 %2949
        %v2951 = vsel %vm2914, %v2894, 0.0
        %2952 = vadd.xlane.f32.xlu0 %v2951
        %v2953 = vpop.xlane.xlu0 %2952
        %v2954 = vsel %vm2914, %v2895, 0.0
        %2955 = vadd.xlane.f32.xlu0 %v2954
        %v2956 = vpop.xlane.xlu0 %2955
        %v2957 = vsel %vm2914, %v2896, 0.0
        %2958 = vadd.xlane.f32.xlu0 %v2957
        %v2959 = vpop.xlane.xlu0 %2958
        %v2960 = vsel %vm2914, %v2897, 0.0
        %2961 = vadd.xlane.f32.xlu0 %v2960
        %v2962 = vpop.xlane.xlu0 %2961
        %v2963 = vsel %vm2914, %v2898, 0.0
        %2964 = vadd.xlane.f32.xlu0 %v2963
        %v2965 = vpop.xlane.xlu0 %2964
        %v2966 = vsel %vm2914, %v2899, 0.0
        %2967 = vadd.xlane.f32.xlu0 %v2966
        %v2968 = vpop.xlane.xlu0 %2967
        %v2969 = vsel %vm2914, %v2900, 0.0
        %2970 = vadd.xlane.f32.xlu0 %v2969
        %v2971 = vpop.xlane.xlu0 %2970
        %v2972 = vsel %vm2914, %v2901, 0.0
        %2973 = vadd.xlane.f32.xlu0 %v2972
        %v2974 = vpop.xlane.xlu0 %2973
        %v2975 = vsel %vm2914, %v2902, 0.0
        %2976 = vadd.xlane.f32.xlu0 %v2975
        %v2977 = vpop.xlane.xlu0 %2976
        %v2978 = vsel %vm2914, %v2903, 0.0
        %2979 = vadd.xlane.f32.xlu0 %v2978
        %v2980 = vpop.xlane.xlu0 %2979
        %v2981 = vsel %vm2914, %v2904, 0.0
        %2982 = vadd.xlane.f32.xlu0 %v2981
        %v2983 = vpop.xlane.xlu0 %2982
        %v2984 = vsel %vm2914, %v2905, 0.0
        %2985 = vadd.xlane.f32.xlu0 %v2984
        %v2986 = vpop.xlane.xlu0 %2985
        %v2987 = vsel %vm2914, %v2906, 0.0
        %2988 = vadd.xlane.f32.xlu0 %v2987
        %v2989 = vpop.xlane.xlu0 %2988
        %v2990 = vsel %vm2914, %v2907, 0.0
        %2991 = vadd.xlane.f32.xlu0 %v2990
        %v2992 = vpop.xlane.xlu0 %2991
        %v2993 = vsel %vm2914, %v2908, 0.0
        %2994 = vadd.xlane.f32.xlu0 %v2993
        %v2995 = vpop.xlane.xlu0 %2994
        %v2996 = vsel %vm2914, %v2909, 0.0
        %2997 = vadd.xlane.f32.xlu0 %v2996
        %v2998 = vpop.xlane.xlu0 %2997
        %v2999 = vsel %vm2914, %v2910, 0.0
        %3000 = vadd.xlane.f32.xlu0 %v2999
        %v3001 = vpop.xlane.xlu0 %3000
        %v3002 = vsel %vm2914, %v2911, 0.0
        %3003 = vadd.xlane.f32.xlu0 %v3002
        %v3004 = vpop.xlane.xlu0 %3003
        %v3005 = vsel %vm2914, %v2912, 0.0
        %3006 = vadd.xlane.f32.xlu0 %v3005
        %v3007 = vpop.xlane.xlu0 %3006
        %v3008 = vsel %vm2914, %v2913, 0.0
        %3009 = vadd.xlane.f32.xlu0 %v3008
        %v3010 = vpop.xlane.xlu0 %3009
        %v3011 = vadd.f32 %v2917, %v2965
        %v3012 = vadd.f32 %v2920, %v2968
        %v3013 = vadd.f32 %v2923, %v2971
        %v3014 = vadd.f32 %v2926, %v2974
        %v3015 = vadd.f32 %v2929, %v2977
        %v3016 = vadd.f32 %v2932, %v2980
        %v3017 = vadd.f32 %v2935, %v2983
        %v3018 = vadd.f32 %v2938, %v2986
        %v3019 = vadd.f32 %v2941, %v2989
        %v3020 = vadd.f32 %v2944, %v2992
        %v3021 = vadd.f32 %v2947, %v2995
        %v3022 = vadd.f32 %v2950, %v2998
        %v3023 = vadd.f32 %v2953, %v3001
        %v3024 = vadd.f32 %v2956, %v3004
        %v3025 = vadd.f32 %v2959, %v3007
        %v3026 = vadd.f32 %v2962, %v3010
        %v3027 = vmul.f32 %v2882, %v2882
        %v3028 = vmul.f32 %v2883, %v2883
        %v3029 = vmul.f32 %v2884, %v2884
        %v3030 = vmul.f32 %v2885, %v2885
        %v3031 = vmul.f32 %v2886, %v2886
        %v3032 = vmul.f32 %v2887, %v2887
        %v3033 = vmul.f32 %v2888, %v2888
        %v3034 = vmul.f32 %v2889, %v2889
        %v3035 = vmul.f32 %v2890, %v2890
        %v3036 = vmul.f32 %v2891, %v2891
        %v3037 = vmul.f32 %v2892, %v2892
        %v3038 = vmul.f32 %v2893, %v2893
        %v3039 = vmul.f32 %v2894, %v2894
        %v3040 = vmul.f32 %v2895, %v2895
        %v3041 = vmul.f32 %v2896, %v2896
        %v3042 = vmul.f32 %v2897, %v2897
        %v3043 = vmul.f32 %v2898, %v2898
        %v3044 = vmul.f32 %v2899, %v2899
        %v3045 = vmul.f32 %v2900, %v2900
        %v3046 = vmul.f32 %v2901, %v2901
        %v3047 = vmul.f32 %v2902, %v2902
        %v3048 = vmul.f32 %v2903, %v2903
        %v3049 = vmul.f32 %v2904, %v2904
        %v3050 = vmul.f32 %v2905, %v2905
        %v3051 = vmul.f32 %v2906, %v2906
        %v3052 = vmul.f32 %v2907, %v2907
        %v3053 = vmul.f32 %v2908, %v2908
        %v3054 = vmul.f32 %v2909, %v2909
        %v3055 = vmul.f32 %v2910, %v2910
        %v3056 = vmul.f32 %v2911, %v2911
        %v3057 = vmul.f32 %v2912, %v2912
        %v3058 = vmul.f32 %v2913, %v2913
        %v3059 = vsel %vm2914, %v3027, 0.0
        %3060 = vadd.xlane.f32.xlu0 %v3059
        %v3061 = vpop.xlane.xlu0 %3060
        %v3062 = vsel %vm2914, %v3028, 0.0
        %3063 = vadd.xlane.f32.xlu0 %v3062
        %v3064 = vpop.xlane.xlu0 %3063
        %v3065 = vsel %vm2914, %v3029, 0.0
        %3066 = vadd.xlane.f32.xlu0 %v3065
        %v3067 = vpop.xlane.xlu0 %3066
        %v3068 = vsel %vm2914, %v3030, 0.0
        %3069 = vadd.xlane.f32.xlu0 %v3068
        %v3070 = vpop.xlane.xlu0 %3069
        %v3071 = vsel %vm2914, %v3031, 0.0
        %3072 = vadd.xlane.f32.xlu0 %v3071
        %v3073 = vpop.xlane.xlu0 %3072
        %v3074 = vsel %vm2914, %v3032, 0.0
        %3075 = vadd.xlane.f32.xlu0 %v3074
        %v3076 = vpop.xlane.xlu0 %3075
        %v3077 = vsel %vm2914, %v3033, 0.0
        %3078 = vadd.xlane.f32.xlu0 %v3077
        %v3079 = vpop.xlane.xlu0 %3078
        %v3080 = vsel %vm2914, %v3034, 0.0
        %3081 = vadd.xlane.f32.xlu0 %v3080
        %v3082 = vpop.xlane.xlu0 %3081
        %v3083 = vsel %vm2914, %v3035, 0.0
        %3084 = vadd.xlane.f32.xlu0 %v3083
        %v3085 = vpop.xlane.xlu0 %3084
        %v3086 = vsel %vm2914, %v3036, 0.0
        %3087 = vadd.xlane.f32.xlu0 %v3086
        %v3088 = vpop.xlane.xlu0 %3087
        %v3089 = vsel %vm2914, %v3037, 0.0
        %3090 = vadd.xlane.f32.xlu0 %v3089
        %v3091 = vpop.xlane.xlu0 %3090
        %v3092 = vsel %vm2914, %v3038, 0.0
        %3093 = vadd.xlane.f32.xlu0 %v3092
        %v3094 = vpop.xlane.xlu0 %3093
        %v3095 = vsel %vm2914, %v3039, 0.0
        %3096 = vadd.xlane.f32.xlu0 %v3095
        %v3097 = vpop.xlane.xlu0 %3096
        %v3098 = vsel %vm2914, %v3040, 0.0
        %3099 = vadd.xlane.f32.xlu0 %v3098
        %v3100 = vpop.xlane.xlu0 %3099
        %v3101 = vsel %vm2914, %v3041, 0.0
        %3102 = vadd.xlane.f32.xlu0 %v3101
        %v3103 = vpop.xlane.xlu0 %3102
        %v3104 = vsel %vm2914, %v3042, 0.0
        %3105 = vadd.xlane.f32.xlu0 %v3104
        %v3106 = vpop.xlane.xlu0 %3105
        %v3107 = vsel %vm2914, %v3043, 0.0
        %3108 = vadd.xlane.f32.xlu0 %v3107
        %v3109 = vpop.xlane.xlu0 %3108
        %v3110 = vsel %vm2914, %v3044, 0.0
        %3111 = vadd.xlane.f32.xlu0 %v3110
        %v3112 = vpop.xlane.xlu0 %3111
        %v3113 = vsel %vm2914, %v3045, 0.0
        %3114 = vadd.xlane.f32.xlu0 %v3113
        %v3115 = vpop.xlane.xlu0 %3114
        %v3116 = vsel %vm2914, %v3046, 0.0
        %3117 = vadd.xlane.f32.xlu0 %v3116
        %v3118 = vpop.xlane.xlu0 %3117
        %v3119 = vsel %vm2914, %v3047, 0.0
        %3120 = vadd.xlane.f32.xlu0 %v3119
        %v3121 = vpop.xlane.xlu0 %3120
        %v3122 = vsel %vm2914, %v3048, 0.0
        %3123 = vadd.xlane.f32.xlu0 %v3122
        %v3124 = vpop.xlane.xlu0 %3123
        %v3125 = vsel %vm2914, %v3049, 0.0
        %3126 = vadd.xlane.f32.xlu0 %v3125
        %v3127 = vpop.xlane.xlu0 %3126
        %v3128 = vsel %vm2914, %v3050, 0.0
        %3129 = vadd.xlane.f32.xlu0 %v3128
        %v3130 = vpop.xlane.xlu0 %3129
        %v3131 = vsel %vm2914, %v3051, 0.0
        %3132 = vadd.xlane.f32.xlu0 %v3131
        %v3133 = vpop.xlane.xlu0 %3132
        %v3134 = vsel %vm2914, %v3052, 0.0
        %3135 = vadd.xlane.f32.xlu0 %v3134
        %v3136 = vpop.xlane.xlu0 %3135
        %v3137 = vsel %vm2914, %v3053, 0.0
        %3138 = vadd.xlane.f32.xlu0 %v3137
        %v3139 = vpop.xlane.xlu0 %3138
        %v3140 = vsel %vm2914, %v3054, 0.0
        %3141 = vadd.xlane.f32.xlu0 %v3140
        %v3142 = vpop.xlane.xlu0 %3141
        %v3143 = vsel %vm2914, %v3055, 0.0
        %3144 = vadd.xlane.f32.xlu0 %v3143
        %v3145 = vpop.xlane.xlu0 %3144
        %v3146 = vsel %vm2914, %v3056, 0.0
        %3147 = vadd.xlane.f32.xlu0 %v3146
        %v3148 = vpop.xlane.xlu0 %3147
        %v3149 = vsel %vm2914, %v3057, 0.0
        %3150 = vadd.xlane.f32.xlu0 %v3149
        %v3151 = vpop.xlane.xlu0 %3150
        %v3152 = vsel %vm2914, %v3058, 0.0
        %3153 = vadd.xlane.f32.xlu0 %v3152
        %v3154 = vpop.xlane.xlu0 %3153
        %v3155 = vadd.f32 %v3061, %v3109
        %v3156 = vadd.f32 %v3064, %v3112
        %v3157 = vadd.f32 %v3067, %v3115
        %v3158 = vadd.f32 %v3070, %v3118
        %v3159 = vadd.f32 %v3073, %v3121
        %v3160 = vadd.f32 %v3076, %v3124
        %v3161 = vadd.f32 %v3079, %v3127
        %v3162 = vadd.f32 %v3082, %v3130
        %v3163 = vadd.f32 %v3085, %v3133
        %v3164 = vadd.f32 %v3088, %v3136
        %v3165 = vadd.f32 %v3091, %v3139
        %v3166 = vadd.f32 %v3094, %v3142
        %v3167 = vadd.f32 %v3097, %v3145
        %v3168 = vadd.f32 %v3100, %v3148
        %v3169 = vadd.f32 %v3103, %v3151
        %v3170 = vadd.f32 %v3106, %v3154
        %v3171 = vmul.f32 %v3011, 0.0078125
        %v3172 = vmul.f32 %v3012, 0.0078125
        %v3173 = vmul.f32 %v3013, 0.0078125
        %v3174 = vmul.f32 %v3014, 0.0078125
        %v3175 = vmul.f32 %v3015, 0.0078125
        %v3176 = vmul.f32 %v3016, 0.0078125
        %v3177 = vmul.f32 %v3017, 0.0078125
        %v3178 = vmul.f32 %v3018, 0.0078125
        %v3179 = vmul.f32 %v3019, 0.0078125
        %v3180 = vmul.f32 %v3020, 0.0078125
        %v3181 = vmul.f32 %v3021, 0.0078125
        %v3182 = vmul.f32 %v3022, 0.0078125
        %v3183 = vmul.f32 %v3023, 0.0078125
        %v3184 = vmul.f32 %v3024, 0.0078125
        %v3185 = vmul.f32 %v3025, 0.0078125
        %v3186 = vmul.f32 %v3026, 0.0078125
        %v3187 = vmul.f32 %v3155, 0.0078125
        %v3188 = vmul.f32 %v3156, 0.0078125
        %v3189 = vmul.f32 %v3157, 0.0078125
        %v3190 = vmul.f32 %v3158, 0.0078125
        %v3191 = vmul.f32 %v3159, 0.0078125
        %v3192 = vmul.f32 %v3160, 0.0078125
        %v3193 = vmul.f32 %v3161, 0.0078125
        %v3194 = vmul.f32 %v3162, 0.0078125
        %v3195 = vmul.f32 %v3163, 0.0078125
        %v3196 = vmul.f32 %v3164, 0.0078125
        %v3197 = vmul.f32 %v3165, 0.0078125
        %v3198 = vmul.f32 %v3166, 0.0078125
        %v3199 = vmul.f32 %v3167, 0.0078125
        %v3200 = vmul.f32 %v3168, 0.0078125
        %v3201 = vmul.f32 %v3169, 0.0078125
        %v3202 = vmul.f32 %v3170, 0.0078125
        %v3203 = vmul.f32 %v3171, %v3171
        %v3204 = vmul.f32 %v3172, %v3172
        %v3205 = vmul.f32 %v3173, %v3173
        %v3206 = vmul.f32 %v3174, %v3174
        %v3207 = vmul.f32 %v3175, %v3175
        %v3208 = vmul.f32 %v3176, %v3176
        %v3209 = vmul.f32 %v3177, %v3177
        %v3210 = vmul.f32 %v3178, %v3178
        %v3211 = vmul.f32 %v3179, %v3179
        %v3212 = vmul.f32 %v3180, %v3180
        %v3213 = vmul.f32 %v3181, %v3181
        %v3214 = vmul.f32 %v3182, %v3182
        %v3215 = vmul.f32 %v3183, %v3183
        %v3216 = vmul.f32 %v3184, %v3184
        %v3217 = vmul.f32 %v3185, %v3185
        %v3218 = vmul.f32 %v3186, %v3186
        %v3219 = vsub.f32 %v3187, %v3203
        %v3220 = vsub.f32 %v3188, %v3204
        %v3221 = vsub.f32 %v3189, %v3205
        %v3222 = vsub.f32 %v3190, %v3206
        %v3223 = vsub.f32 %v3191, %v3207
        %v3224 = vsub.f32 %v3192, %v3208
        %v3225 = vsub.f32 %v3193, %v3209
        %v3226 = vsub.f32 %v3194, %v3210
        %v3227 = vsub.f32 %v3195, %v3211
        %v3228 = vsub.f32 %v3196, %v3212
        %v3229 = vsub.f32 %v3197, %v3213
        %v3230 = vsub.f32 %v3198, %v3214
        %v3231 = vsub.f32 %v3199, %v3215
        %v3232 = vsub.f32 %v3200, %v3216
        %v3233 = vsub.f32 %v3201, %v3217
        %v3234 = vsub.f32 %v3202, %v3218
        %v3235 = vmax.f32 %v3219, 0.0
        %v3236 = vmax.f32 %v3220, 0.0
        %v3237 = vmax.f32 %v3221, 0.0
        %v3238 = vmax.f32 %v3222, 0.0
        %v3239 = vmax.f32 %v3223, 0.0
        %v3240 = vmax.f32 %v3224, 0.0
        %v3241 = vmax.f32 %v3225, 0.0
        %v3242 = vmax.f32 %v3226, 0.0
        %v3243 = vmax.f32 %v3227, 0.0
        %v3244 = vmax.f32 %v3228, 0.0
        %v3245 = vmax.f32 %v3229, 0.0
        %v3246 = vmax.f32 %v3230, 0.0
        %v3247 = vmax.f32 %v3231, 0.0
        %v3248 = vmax.f32 %v3232, 0.0
        %v3249 = vmax.f32 %v3233, 0.0
        %v3250 = vmax.f32 %v3234, 0.0
        %v3251 = vadd.f32 %v3235, 1e-05
        %v3252 = vadd.f32 %v3236, 1e-05
        %v3253 = vadd.f32 %v3237, 1e-05
        %v3254 = vadd.f32 %v3238, 1e-05
        %v3255 = vadd.f32 %v3239, 1e-05
        %v3256 = vadd.f32 %v3240, 1e-05
        %v3257 = vadd.f32 %v3241, 1e-05
        %v3258 = vadd.f32 %v3242, 1e-05
        %v3259 = vadd.f32 %v3243, 1e-05
        %v3260 = vadd.f32 %v3244, 1e-05
        %v3261 = vadd.f32 %v3245, 1e-05
        %v3262 = vadd.f32 %v3246, 1e-05
        %v3263 = vadd.f32 %v3247, 1e-05
        %v3264 = vadd.f32 %v3248, 1e-05
        %v3265 = vadd.f32 %v3249, 1e-05
        %v3266 = vadd.f32 %v3250, 1e-05
        %v3267 = vrsqrt.pop %v3251
        %v3268 = vrsqrt.pop %v3252
        %v3269 = vrsqrt.pop %v3253
        %v3270 = vrsqrt.pop %v3254
        %v3271 = vrsqrt.pop %v3255
        %v3272 = vrsqrt.pop %v3256
        %v3273 = vrsqrt.pop %v3257
        %v3274 = vrsqrt.pop %v3258
        %v3275 = vrsqrt.pop %v3259
        %v3276 = vrsqrt.pop %v3260
        %v3277 = vrsqrt.pop %v3261
        %v3278 = vrsqrt.pop %v3262
        %v3279 = vrsqrt.pop %v3263
        %v3280 = vrsqrt.pop %v3264
        %v3281 = vrsqrt.pop %v3265
        %v3282 = vrsqrt.pop %v3266
        %v3283 = vld [vmem:[%s889] sm:$0xff]
        %v3284 = vld [vmem:[%s889 + $0x8] sm:$0xff]
        %v3285 = vld [vmem:[%s889 + $0x10] sm:$0xff]
        %v3286 = vld [vmem:[%s889 + $0x18] sm:$0xff]
        %v3287 = vld [vmem:[%s889 + $0x20] sm:$0xff]
        %v3288 = vld [vmem:[%s889 + $0x28] sm:$0xff]
        %v3289 = vld [vmem:[%s889 + $0x30] sm:$0xff]
        %v3290 = vld [vmem:[%s889 + $0x38] sm:$0xff]
        %v3291 = vld [vmem:[%s889 + $0x40] sm:$0xff]
        %v3292 = vld [vmem:[%s889 + $0x48] sm:$0xff]
        %v3293 = vld [vmem:[%s889 + $0x50] sm:$0xff]
        %v3294 = vld [vmem:[%s889 + $0x58] sm:$0xff]
        %v3295 = vld [vmem:[%s889 + $0x60] sm:$0xff]
        %v3296 = vld [vmem:[%s889 + $0x68] sm:$0xff]
        %v3297 = vld [vmem:[%s889 + $0x70] sm:$0xff]
        %v3298 = vld [vmem:[%s889 + $0x78] sm:$0xff]
        %v3299 = vmul.f32 %v3267, %v3283
        %v3300 = vmul.f32 %v3268, %v3284
        %v3301 = vmul.f32 %v3269, %v3285
        %v3302 = vmul.f32 %v3270, %v3286
        %v3303 = vmul.f32 %v3271, %v3287
        %v3304 = vmul.f32 %v3272, %v3288
        %v3305 = vmul.f32 %v3273, %v3289
        %v3306 = vmul.f32 %v3274, %v3290
        %v3307 = vmul.f32 %v3275, %v3291
        %v3308 = vmul.f32 %v3276, %v3292
        %v3309 = vmul.f32 %v3277, %v3293
        %v3310 = vmul.f32 %v3278, %v3294
        %v3311 = vmul.f32 %v3279, %v3295
        %v3312 = vmul.f32 %v3280, %v3296
        %v3313 = vmul.f32 %v3281, %v3297
        %v3314 = vmul.f32 %v3282, %v3298
        %v3315 = vsub.f32 %v2882, %v3171
        %v3316 = vsub.f32 %v2883, %v3172
        %v3317 = vsub.f32 %v2884, %v3173
        %v3318 = vsub.f32 %v2885, %v3174
        %v3319 = vsub.f32 %v2886, %v3175
        %v3320 = vsub.f32 %v2887, %v3176
        %v3321 = vsub.f32 %v2888, %v3177
        %v3322 = vsub.f32 %v2889, %v3178
        %v3323 = vsub.f32 %v2890, %v3179
        %v3324 = vsub.f32 %v2891, %v3180
        %v3325 = vsub.f32 %v2892, %v3181
        %v3326 = vsub.f32 %v2893, %v3182
        %v3327 = vsub.f32 %v2894, %v3183
        %v3328 = vsub.f32 %v2895, %v3184
        %v3329 = vsub.f32 %v2896, %v3185
        %v3330 = vsub.f32 %v2897, %v3186
        %v3331 = vsub.f32 %v2898, %v3171
        %v3332 = vsub.f32 %v2899, %v3172
        %v3333 = vsub.f32 %v2900, %v3173
        %v3334 = vsub.f32 %v2901, %v3174
        %v3335 = vsub.f32 %v2902, %v3175
        %v3336 = vsub.f32 %v2903, %v3176
        %v3337 = vsub.f32 %v2904, %v3177
        %v3338 = vsub.f32 %v2905, %v3178
        %v3339 = vsub.f32 %v2906, %v3179
        %v3340 = vsub.f32 %v2907, %v3180
        %v3341 = vsub.f32 %v2908, %v3181
        %v3342 = vsub.f32 %v2909, %v3182
        %v3343 = vsub.f32 %v2910, %v3183
        %v3344 = vsub.f32 %v2911, %v3184
        %v3345 = vsub.f32 %v2912, %v3185
        %v3346 = vsub.f32 %v2913, %v3186
        %3348 = vset.pattern.permute.xlu0 0
        %3349 = vperm.xlu0 %3348, %v3299
        %v3350 = vpop.permute.xlu0 %3349
        %3353 = vset.pattern.permute.xlu0 0
        %3354 = vperm.xlu0 %3353, %v3300
        %v3355 = vpop.permute.xlu0 %3354
        %3358 = vset.pattern.permute.xlu0 0
        %3359 = vperm.xlu0 %3358, %v3301
        %v3360 = vpop.permute.xlu0 %3359
        %3363 = vset.pattern.permute.xlu0 0
        %3364 = vperm.xlu0 %3363, %v3302
        %v3365 = vpop.permute.xlu0 %3364
        %3368 = vset.pattern.permute.xlu0 0
        %3369 = vperm.xlu0 %3368, %v3303
        %v3370 = vpop.permute.xlu0 %3369
        %3373 = vset.pattern.permute.xlu0 0
        %3374 = vperm.xlu0 %3373, %v3304
        %v3375 = vpop.permute.xlu0 %3374
        %3378 = vset.pattern.permute.xlu0 0
        %3379 = vperm.xlu0 %3378, %v3305
        %v3380 = vpop.permute.xlu0 %3379
        %3383 = vset.pattern.permute.xlu0 0
        %3384 = vperm.xlu0 %3383, %v3306
        %v3385 = vpop.permute.xlu0 %3384
        %3388 = vset.pattern.permute.xlu0 0
        %3389 = vperm.xlu0 %3388, %v3307
        %v3390 = vpop.permute.xlu0 %3389
        %3393 = vset.pattern.permute.xlu0 0
        %3394 = vperm.xlu0 %3393, %v3308
        %v3395 = vpop.permute.xlu0 %3394
        %3398 = vset.pattern.permute.xlu0 0
        %3399 = vperm.xlu0 %3398, %v3309
        %v3400 = vpop.permute.xlu0 %3399
        %3403 = vset.pattern.permute.xlu0 0
        %3404 = vperm.xlu0 %3403, %v3310
        %v3405 = vpop.permute.xlu0 %3404
        %3408 = vset.pattern.permute.xlu0 0
        %3409 = vperm.xlu0 %3408, %v3311
        %v3410 = vpop.permute.xlu0 %3409
        %3413 = vset.pattern.permute.xlu0 0
        %3414 = vperm.xlu0 %3413, %v3312
        %v3415 = vpop.permute.xlu0 %3414
        %3418 = vset.pattern.permute.xlu0 0
        %3419 = vperm.xlu0 %3418, %v3313
        %v3420 = vpop.permute.xlu0 %3419
        %3423 = vset.pattern.permute.xlu0 0
        %3424 = vperm.xlu0 %3423, %v3314
        %v3425 = vpop.permute.xlu0 %3424
        %v3427 = vmul.f32 %v3315, %v3350
        %v3428 = vmul.f32 %v3316, %v3355
        %v3429 = vmul.f32 %v3317, %v3360
        %v3430 = vmul.f32 %v3318, %v3365
        %v3431 = vmul.f32 %v3319, %v3370
        %v3432 = vmul.f32 %v3320, %v3375
        %v3433 = vmul.f32 %v3321, %v3380
        %v3434 = vmul.f32 %v3322, %v3385
        %v3435 = vmul.f32 %v3323, %v3390
        %v3436 = vmul.f32 %v3324, %v3395
        %v3437 = vmul.f32 %v3325, %v3400
        %v3438 = vmul.f32 %v3326, %v3405
        %v3439 = vmul.f32 %v3327, %v3410
        %v3440 = vmul.f32 %v3328, %v3415
        %v3441 = vmul.f32 %v3329, %v3420
        %v3442 = vmul.f32 %v3330, %v3425
        %v3443 = vmul.f32 %v3331, %v3350
        %v3444 = vmul.f32 %v3332, %v3355
        %v3445 = vmul.f32 %v3333, %v3360
        %v3446 = vmul.f32 %v3334, %v3365
        %v3447 = vmul.f32 %v3335, %v3370
        %v3448 = vmul.f32 %v3336, %v3375
        %v3449 = vmul.f32 %v3337, %v3380
        %v3450 = vmul.f32 %v3338, %v3385
        %v3451 = vmul.f32 %v3339, %v3390
        %v3452 = vmul.f32 %v3340, %v3395
        %v3453 = vmul.f32 %v3341, %v3400
        %v3454 = vmul.f32 %v3342, %v3405
        %v3455 = vmul.f32 %v3343, %v3410
        %v3456 = vmul.f32 %v3344, %v3415
        %v3457 = vmul.f32 %v3345, %v3420
        %v3458 = vmul.f32 %v3346, %v3425
        %v3459 = vld [vmem:[%s895] sm:$0xff]
        %v3460 = vld [vmem:[%s895 + $0x8] sm:$0xff]
        %v3461 = vld [vmem:[%s895 + $0x10] sm:$0xff]
        %v3462 = vld [vmem:[%s895 + $0x18] sm:$0xff]
        %v3463 = vld [vmem:[%s895 + $0x20] sm:$0xff]
        %v3464 = vld [vmem:[%s895 + $0x28] sm:$0xff]
        %v3465 = vld [vmem:[%s895 + $0x30] sm:$0xff]
        %v3466 = vld [vmem:[%s895 + $0x38] sm:$0xff]
        %v3467 = vld [vmem:[%s895 + $0x40] sm:$0xff]
        %v3468 = vld [vmem:[%s895 + $0x48] sm:$0xff]
        %v3469 = vld [vmem:[%s895 + $0x50] sm:$0xff]
        %v3470 = vld [vmem:[%s895 + $0x58] sm:$0xff]
        %v3471 = vld [vmem:[%s895 + $0x60] sm:$0xff]
        %v3472 = vld [vmem:[%s895 + $0x68] sm:$0xff]
        %v3473 = vld [vmem:[%s895 + $0x70] sm:$0xff]
        %v3474 = vld [vmem:[%s895 + $0x78] sm:$0xff]
        %3476 = vset.pattern.permute.xlu0 0
        %3477 = vperm.xlu0 %3476, %v3459
        %v3478 = vpop.permute.xlu0 %3477
        %3481 = vset.pattern.permute.xlu0 0
        %3482 = vperm.xlu0 %3481, %v3460
        %v3483 = vpop.permute.xlu0 %3482
        %3486 = vset.pattern.permute.xlu0 0
        %3487 = vperm.xlu0 %3486, %v3461
        %v3488 = vpop.permute.xlu0 %3487
        %3491 = vset.pattern.permute.xlu0 0
        %3492 = vperm.xlu0 %3491, %v3462
        %v3493 = vpop.permute.xlu0 %3492
        %3496 = vset.pattern.permute.xlu0 0
        %3497 = vperm.xlu0 %3496, %v3463
        %v3498 = vpop.permute.xlu0 %3497
        %3501 = vset.pattern.permute.xlu0 0
        %3502 = vperm.xlu0 %3501, %v3464
        %v3503 = vpop.permute.xlu0 %3502
        %3506 = vset.pattern.permute.xlu0 0
        %3507 = vperm.xlu0 %3506, %v3465
        %v3508 = vpop.permute.xlu0 %3507
        %3511 = vset.pattern.permute.xlu0 0
        %3512 = vperm.xlu0 %3511, %v3466
        %v3513 = vpop.permute.xlu0 %3512
        %3516 = vset.pattern.permute.xlu0 0
        %3517 = vperm.xlu0 %3516, %v3467
        %v3518 = vpop.permute.xlu0 %3517
        %3521 = vset.pattern.permute.xlu0 0
        %3522 = vperm.xlu0 %3521, %v3468
        %v3523 = vpop.permute.xlu0 %3522
        %3526 = vset.pattern.permute.xlu0 0
        %3527 = vperm.xlu0 %3526, %v3469
        %v3528 = vpop.permute.xlu0 %3527
        %3531 = vset.pattern.permute.xlu0 0
        %3532 = vperm.xlu0 %3531, %v3470
        %v3533 = vpop.permute.xlu0 %3532
        %3536 = vset.pattern.permute.xlu0 0
        %3537 = vperm.xlu0 %3536, %v3471
        %v3538 = vpop.permute.xlu0 %3537
        %3541 = vset.pattern.permute.xlu0 0
        %3542 = vperm.xlu0 %3541, %v3472
        %v3543 = vpop.permute.xlu0 %3542
        %3546 = vset.pattern.permute.xlu0 0
        %3547 = vperm.xlu0 %3546, %v3473
        %v3548 = vpop.permute.xlu0 %3547
        %3551 = vset.pattern.permute.xlu0 0
        %3552 = vperm.xlu0 %3551, %v3474
        %v3553 = vpop.permute.xlu0 %3552
        %v3555 = vadd.f32 %v3427, %v3478
        %v3556 = vadd.f32 %v3428, %v3483
        %v3557 = vadd.f32 %v3429, %v3488
        %v3558 = vadd.f32 %v3430, %v3493
        %v3559 = vadd.f32 %v3431, %v3498
        %v3560 = vadd.f32 %v3432, %v3503
        %v3561 = vadd.f32 %v3433, %v3508
        %v3562 = vadd.f32 %v3434, %v3513
        %v3563 = vadd.f32 %v3435, %v3518
        %v3564 = vadd.f32 %v3436, %v3523
        %v3565 = vadd.f32 %v3437, %v3528
        %v3566 = vadd.f32 %v3438, %v3533
        %v3567 = vadd.f32 %v3439, %v3538
        %v3568 = vadd.f32 %v3440, %v3543
        %v3569 = vadd.f32 %v3441, %v3548
        %v3570 = vadd.f32 %v3442, %v3553
        %v3571 = vadd.f32 %v3443, %v3478
        %v3572 = vadd.f32 %v3444, %v3483
        %v3573 = vadd.f32 %v3445, %v3488
        %v3574 = vadd.f32 %v3446, %v3493
        %v3575 = vadd.f32 %v3447, %v3498
        %v3576 = vadd.f32 %v3448, %v3503
        %v3577 = vadd.f32 %v3449, %v3508
        %v3578 = vadd.f32 %v3450, %v3513
        %v3579 = vadd.f32 %v3451, %v3518
        %v3580 = vadd.f32 %v3452, %v3523
        %v3581 = vadd.f32 %v3453, %v3528
        %v3582 = vadd.f32 %v3454, %v3533
        %v3583 = vadd.f32 %v3455, %v3538
        %v3584 = vadd.f32 %v3456, %v3543
        %v3585 = vadd.f32 %v3457, %v3548
        %v3586 = vadd.f32 %v3458, %v3553
        %s3587 = sld [smem:[#allocation3 + $0x1]]
        %s3588 = smul.u32 %s39, 16384
        %v3589 = vmul.u32 %v1957, 64
        %v3590 = vmul.u32 %v1958, 64
        %v3591 = vmul.u32 %v1959, 64
        %v3592 = vmul.u32 %v1960, 64
        %v3593 = vmul.u32 %v1961, 64
        %v3594 = vmul.u32 %v1962, 64
        %v3595 = vmul.u32 %v1963, 64
        %v3596 = vmul.u32 %v1964, 64
        %v3597 = vmul.u32 %v1965, 64
        %v3598 = vmul.u32 %v1966, 64
        %v3599 = vmul.u32 %v1967, 64
        %v3600 = vmul.u32 %v1968, 64
        %v3601 = vmul.u32 %v1969, 64
        %v3602 = vmul.u32 %v1970, 64
        %v3603 = vmul.u32 %v1971, 64
        %v3604 = vmul.u32 %v1972, 64
        %v3605 = vmul.u32 %v1973, 64
        %v3606 = vmul.u32 %v1974, 64
        %v3607 = vmul.u32 %v1975, 64
        %v3608 = vmul.u32 %v1976, 64
        %v3609 = vmul.u32 %v1977, 64
        %v3610 = vmul.u32 %v1978, 64
        %v3611 = vmul.u32 %v1979, 64
        %v3612 = vmul.u32 %v1980, 64
        %v3613 = vmul.u32 %v1981, 64
        %v3614 = vmul.u32 %v1982, 64
        %v3615 = vmul.u32 %v1983, 64
        %v3616 = vmul.u32 %v1984, 64
        %v3617 = vmul.u32 %v1985, 64
        %v3618 = vmul.u32 %v1986, 64
        %v3619 = vmul.u32 %v1987, 64
        %v3620 = vmul.u32 %v1988, 64
        %v3621 = vstv %s3588
        %v3622 = vadd.s32 %v3621, %v3589
        %v3623 = vadd.s32 %v3621, %v3590
        %v3624 = vadd.s32 %v3621, %v3591
        %v3625 = vadd.s32 %v3621, %v3592
        %v3626 = vadd.s32 %v3621, %v3593
        %v3627 = vadd.s32 %v3621, %v3594
        %v3628 = vadd.s32 %v3621, %v3595
        %v3629 = vadd.s32 %v3621, %v3596
        %v3630 = vadd.s32 %v3621, %v3597
        %v3631 = vadd.s32 %v3621, %v3598
        %v3632 = vadd.s32 %v3621, %v3599
        %v3633 = vadd.s32 %v3621, %v3600
        %v3634 = vadd.s32 %v3621, %v3601
        %v3635 = vadd.s32 %v3621, %v3602
        %v3636 = vadd.s32 %v3621, %v3603
        %v3637 = vadd.s32 %v3621, %v3604
        %v3638 = vadd.s32 %v3621, %v3605
        %v3639 = vadd.s32 %v3621, %v3606
        %v3640 = vadd.s32 %v3621, %v3607
        %v3641 = vadd.s32 %v3621, %v3608
        %v3642 = vadd.s32 %v3621, %v3609
        %v3643 = vadd.s32 %v3621, %v3610
        %v3644 = vadd.s32 %v3621, %v3611
        %v3645 = vadd.s32 %v3621, %v3612
        %v3646 = vadd.s32 %v3621, %v3613
        %v3647 = vadd.s32 %v3621, %v3614
        %v3648 = vadd.s32 %v3621, %v3615
        %v3649 = vadd.s32 %v3621, %v3616
        %v3650 = vadd.s32 %v3621, %v3617
        %v3651 = vadd.s32 %v3621, %v3618
        %v3652 = vadd.s32 %v3621, %v3619
        %v3653 = vadd.s32 %v3621, %v3620
        %v3654 = vadd.s32 %v3622, %v1990
        %v3655 = vadd.s32 %v3623, %v1990
        %v3656 = vadd.s32 %v3624, %v1990
        %v3657 = vadd.s32 %v3625, %v1990
        %v3658 = vadd.s32 %v3626, %v1990
        %v3659 = vadd.s32 %v3627, %v1990
        %v3660 = vadd.s32 %v3628, %v1990
        %v3661 = vadd.s32 %v3629, %v1990
        %v3662 = vadd.s32 %v3630, %v1990
        %v3663 = vadd.s32 %v3631, %v1990
        %v3664 = vadd.s32 %v3632, %v1990
        %v3665 = vadd.s32 %v3633, %v1990
        %v3666 = vadd.s32 %v3634, %v1990
        %v3667 = vadd.s32 %v3635, %v1990
        %v3668 = vadd.s32 %v3636, %v1990
        %v3669 = vadd.s32 %v3637, %v1990
        %v3670 = vadd.s32 %v3638, %v1990
        %v3671 = vadd.s32 %v3639, %v1990
        %v3672 = vadd.s32 %v3640, %v1990
        %v3673 = vadd.s32 %v3641, %v1990
        %v3674 = vadd.s32 %v3642, %v1990
        %v3675 = vadd.s32 %v3643, %v1990
        %v3676 = vadd.s32 %v3644, %v1990
        %v3677 = vadd.s32 %v3645, %v1990
        %v3678 = vadd.s32 %v3646, %v1990
        %v3679 = vadd.s32 %v3647, %v1990
        %v3680 = vadd.s32 %v3648, %v1990
        %v3681 = vadd.s32 %v3649, %v1990
        %v3682 = vadd.s32 %v3650, %v1990
        %v3683 = vadd.s32 %v3651, %v1990
        %v3684 = vadd.s32 %v3652, %v1990
        %v3685 = vadd.s32 %v3653, %v1990
        %s3686 = smul.u32 %s3587, 2654435769
        %v3687 = vstv %s3686
        %v3688 = vxor.u32 %v3654, %v3687
        %v3689 = vxor.u32 %v3655, %v3687
        %v3690 = vxor.u32 %v3656, %v3687
        %v3691 = vxor.u32 %v3657, %v3687
        %v3692 = vxor.u32 %v3658, %v3687
        %v3693 = vxor.u32 %v3659, %v3687
        %v3694 = vxor.u32 %v3660, %v3687
        %v3695 = vxor.u32 %v3661, %v3687
        %v3696 = vxor.u32 %v3662, %v3687
        %v3697 = vxor.u32 %v3663, %v3687
        %v3698 = vxor.u32 %v3664, %v3687
        %v3699 = vxor.u32 %v3665, %v3687
        %v3700 = vxor.u32 %v3666, %v3687
        %v3701 = vxor.u32 %v3667, %v3687
        %v3702 = vxor.u32 %v3668, %v3687
        %v3703 = vxor.u32 %v3669, %v3687
        %v3704 = vxor.u32 %v3670, %v3687
        %v3705 = vxor.u32 %v3671, %v3687
        %v3706 = vxor.u32 %v3672, %v3687
        %v3707 = vxor.u32 %v3673, %v3687
        %v3708 = vxor.u32 %v3674, %v3687
        %v3709 = vxor.u32 %v3675, %v3687
        %v3710 = vxor.u32 %v3676, %v3687
        %v3711 = vxor.u32 %v3677, %v3687
        %v3712 = vxor.u32 %v3678, %v3687
        %v3713 = vxor.u32 %v3679, %v3687
        %v3714 = vxor.u32 %v3680, %v3687
        %v3715 = vxor.u32 %v3681, %v3687
        %v3716 = vxor.u32 %v3682, %v3687
        %v3717 = vxor.u32 %v3683, %v3687
        %v3718 = vxor.u32 %v3684, %v3687
        %v3719 = vxor.u32 %v3685, %v3687
        %v3720 = vshra.s32 %v3688, 16
        %v3721 = vshra.s32 %v3689, 16
        %v3722 = vshra.s32 %v3690, 16
        %v3723 = vshra.s32 %v3691, 16
        %v3724 = vshra.s32 %v3692, 16
        %v3725 = vshra.s32 %v3693, 16
        %v3726 = vshra.s32 %v3694, 16
        %v3727 = vshra.s32 %v3695, 16
        %v3728 = vshra.s32 %v3696, 16
        %v3729 = vshra.s32 %v3697, 16
        %v3730 = vshra.s32 %v3698, 16
        %v3731 = vshra.s32 %v3699, 16
        %v3732 = vshra.s32 %v3700, 16
        %v3733 = vshra.s32 %v3701, 16
        %v3734 = vshra.s32 %v3702, 16
        %v3735 = vshra.s32 %v3703, 16
        %v3736 = vshra.s32 %v3704, 16
        %v3737 = vshra.s32 %v3705, 16
        %v3738 = vshra.s32 %v3706, 16
        %v3739 = vshra.s32 %v3707, 16
        %v3740 = vshra.s32 %v3708, 16
        %v3741 = vshra.s32 %v3709, 16
        %v3742 = vshra.s32 %v3710, 16
        %v3743 = vshra.s32 %v3711, 16
        %v3744 = vshra.s32 %v3712, 16
        %v3745 = vshra.s32 %v3713, 16
        %v3746 = vshra.s32 %v3714, 16
        %v3747 = vshra.s32 %v3715, 16
        %v3748 = vshra.s32 %v3716, 16
        %v3749 = vshra.s32 %v3717, 16
        %v3750 = vshra.s32 %v3718, 16
        %v3751 = vshra.s32 %v3719, 16
        %v3752 = vand.u32 %v3720, 65535
        %v3753 = vand.u32 %v3721, 65535
        %v3754 = vand.u32 %v3722, 65535
        %v3755 = vand.u32 %v3723, 65535
        %v3756 = vand.u32 %v3724, 65535
        %v3757 = vand.u32 %v3725, 65535
        %v3758 = vand.u32 %v3726, 65535
        %v3759 = vand.u32 %v3727, 65535
        %v3760 = vand.u32 %v3728, 65535
        %v3761 = vand.u32 %v3729, 65535
        %v3762 = vand.u32 %v3730, 65535
        %v3763 = vand.u32 %v3731, 65535
        %v3764 = vand.u32 %v3732, 65535
        %v3765 = vand.u32 %v3733, 65535
        %v3766 = vand.u32 %v3734, 65535
        %v3767 = vand.u32 %v3735, 65535
        %v3768 = vand.u32 %v3736, 65535
        %v3769 = vand.u32 %v3737, 65535
        %v3770 = vand.u32 %v3738, 65535
        %v3771 = vand.u32 %v3739, 65535
        %v3772 = vand.u32 %v3740, 65535
        %v3773 = vand.u32 %v3741, 65535
        %v3774 = vand.u32 %v3742, 65535
        %v3775 = vand.u32 %v3743, 65535
        %v3776 = vand.u32 %v3744, 65535
        %v3777 = vand.u32 %v3745, 65535
        %v3778 = vand.u32 %v3746, 65535
        %v3779 = vand.u32 %v3747, 65535
        %v3780 = vand.u32 %v3748, 65535
        %v3781 = vand.u32 %v3749, 65535
        %v3782 = vand.u32 %v3750, 65535
        %v3783 = vand.u32 %v3751, 65535
        %v3784 = vxor.u32 %v3688, %v3752
        %v3785 = vxor.u32 %v3689, %v3753
        %v3786 = vxor.u32 %v3690, %v3754
        %v3787 = vxor.u32 %v3691, %v3755
        %v3788 = vxor.u32 %v3692, %v3756
        %v3789 = vxor.u32 %v3693, %v3757
        %v3790 = vxor.u32 %v3694, %v3758
        %v3791 = vxor.u32 %v3695, %v3759
        %v3792 = vxor.u32 %v3696, %v3760
        %v3793 = vxor.u32 %v3697, %v3761
        %v3794 = vxor.u32 %v3698, %v3762
        %v3795 = vxor.u32 %v3699, %v3763
        %v3796 = vxor.u32 %v3700, %v3764
        %v3797 = vxor.u32 %v3701, %v3765
        %v3798 = vxor.u32 %v3702, %v3766
        %v3799 = vxor.u32 %v3703, %v3767
        %v3800 = vxor.u32 %v3704, %v3768
        %v3801 = vxor.u32 %v3705, %v3769
        %v3802 = vxor.u32 %v3706, %v3770
        %v3803 = vxor.u32 %v3707, %v3771
        %v3804 = vxor.u32 %v3708, %v3772
        %v3805 = vxor.u32 %v3709, %v3773
        %v3806 = vxor.u32 %v3710, %v3774
        %v3807 = vxor.u32 %v3711, %v3775
        %v3808 = vxor.u32 %v3712, %v3776
        %v3809 = vxor.u32 %v3713, %v3777
        %v3810 = vxor.u32 %v3714, %v3778
        %v3811 = vxor.u32 %v3715, %v3779
        %v3812 = vxor.u32 %v3716, %v3780
        %v3813 = vxor.u32 %v3717, %v3781
        %v3814 = vxor.u32 %v3718, %v3782
        %v3815 = vxor.u32 %v3719, %v3783
        %v3816 = vmul.u32 %v3784, 2246822507
        %v3817 = vmul.u32 %v3785, 2246822507
        %v3818 = vmul.u32 %v3786, 2246822507
        %v3819 = vmul.u32 %v3787, 2246822507
        %v3820 = vmul.u32 %v3788, 2246822507
        %v3821 = vmul.u32 %v3789, 2246822507
        %v3822 = vmul.u32 %v3790, 2246822507
        %v3823 = vmul.u32 %v3791, 2246822507
        %v3824 = vmul.u32 %v3792, 2246822507
        %v3825 = vmul.u32 %v3793, 2246822507
        %v3826 = vmul.u32 %v3794, 2246822507
        %v3827 = vmul.u32 %v3795, 2246822507
        %v3828 = vmul.u32 %v3796, 2246822507
        %v3829 = vmul.u32 %v3797, 2246822507
        %v3830 = vmul.u32 %v3798, 2246822507
        %v3831 = vmul.u32 %v3799, 2246822507
        %v3832 = vmul.u32 %v3800, 2246822507
        %v3833 = vmul.u32 %v3801, 2246822507
        %v3834 = vmul.u32 %v3802, 2246822507
        %v3835 = vmul.u32 %v3803, 2246822507
        %v3836 = vmul.u32 %v3804, 2246822507
        %v3837 = vmul.u32 %v3805, 2246822507
        %v3838 = vmul.u32 %v3806, 2246822507
        %v3839 = vmul.u32 %v3807, 2246822507
        %v3840 = vmul.u32 %v3808, 2246822507
        %v3841 = vmul.u32 %v3809, 2246822507
        %v3842 = vmul.u32 %v3810, 2246822507
        %v3843 = vmul.u32 %v3811, 2246822507
        %v3844 = vmul.u32 %v3812, 2246822507
        %v3845 = vmul.u32 %v3813, 2246822507
        %v3846 = vmul.u32 %v3814, 2246822507
        %v3847 = vmul.u32 %v3815, 2246822507
        %v3848 = vshra.s32 %v3816, 13
        %v3849 = vshra.s32 %v3817, 13
        %v3850 = vshra.s32 %v3818, 13
        %v3851 = vshra.s32 %v3819, 13
        %v3852 = vshra.s32 %v3820, 13
        %v3853 = vshra.s32 %v3821, 13
        %v3854 = vshra.s32 %v3822, 13
        %v3855 = vshra.s32 %v3823, 13
        %v3856 = vshra.s32 %v3824, 13
        %v3857 = vshra.s32 %v3825, 13
        %v3858 = vshra.s32 %v3826, 13
        %v3859 = vshra.s32 %v3827, 13
        %v3860 = vshra.s32 %v3828, 13
        %v3861 = vshra.s32 %v3829, 13
        %v3862 = vshra.s32 %v3830, 13
        %v3863 = vshra.s32 %v3831, 13
        %v3864 = vshra.s32 %v3832, 13
        %v3865 = vshra.s32 %v3833, 13
        %v3866 = vshra.s32 %v3834, 13
        %v3867 = vshra.s32 %v3835, 13
        %v3868 = vshra.s32 %v3836, 13
        %v3869 = vshra.s32 %v3837, 13
        %v3870 = vshra.s32 %v3838, 13
        %v3871 = vshra.s32 %v3839, 13
        %v3872 = vshra.s32 %v3840, 13
        %v3873 = vshra.s32 %v3841, 13
        %v3874 = vshra.s32 %v3842, 13
        %v3875 = vshra.s32 %v3843, 13
        %v3876 = vshra.s32 %v3844, 13
        %v3877 = vshra.s32 %v3845, 13
        %v3878 = vshra.s32 %v3846, 13
        %v3879 = vshra.s32 %v3847, 13
        %v3880 = vand.u32 %v3848, 524287
        %v3881 = vand.u32 %v3849, 524287
        %v3882 = vand.u32 %v3850, 524287
        %v3883 = vand.u32 %v3851, 524287
        %v3884 = vand.u32 %v3852, 524287
        %v3885 = vand.u32 %v3853, 524287
        %v3886 = vand.u32 %v3854, 524287
        %v3887 = vand.u32 %v3855, 524287
        %v3888 = vand.u32 %v3856, 524287
        %v3889 = vand.u32 %v3857, 524287
        %v3890 = vand.u32 %v3858, 524287
        %v3891 = vand.u32 %v3859, 524287
        %v3892 = vand.u32 %v3860, 524287
        %v3893 = vand.u32 %v3861, 524287
        %v3894 = vand.u32 %v3862, 524287
        %v3895 = vand.u32 %v3863, 524287
        %v3896 = vand.u32 %v3864, 524287
        %v3897 = vand.u32 %v3865, 524287
        %v3898 = vand.u32 %v3866, 524287
        %v3899 = vand.u32 %v3867, 524287
        %v3900 = vand.u32 %v3868, 524287
        %v3901 = vand.u32 %v3869, 524287
        %v3902 = vand.u32 %v3870, 524287
        %v3903 = vand.u32 %v3871, 524287
        %v3904 = vand.u32 %v3872, 524287
        %v3905 = vand.u32 %v3873, 524287
        %v3906 = vand.u32 %v3874, 524287
        %v3907 = vand.u32 %v3875, 524287
        %v3908 = vand.u32 %v3876, 524287
        %v3909 = vand.u32 %v3877, 524287
        %v3910 = vand.u32 %v3878, 524287
        %v3911 = vand.u32 %v3879, 524287
        %v3912 = vxor.u32 %v3816, %v3880
        %v3913 = vxor.u32 %v3817, %v3881
        %v3914 = vxor.u32 %v3818, %v3882
        %v3915 = vxor.u32 %v3819, %v3883
        %v3916 = vxor.u32 %v3820, %v3884
        %v3917 = vxor.u32 %v3821, %v3885
        %v3918 = vxor.u32 %v3822, %v3886
        %v3919 = vxor.u32 %v3823, %v3887
        %v3920 = vxor.u32 %v3824, %v3888
        %v3921 = vxor.u32 %v3825, %v3889
        %v3922 = vxor.u32 %v3826, %v3890
        %v3923 = vxor.u32 %v3827, %v3891
        %v3924 = vxor.u32 %v3828, %v3892
        %v3925 = vxor.u32 %v3829, %v3893
        %v3926 = vxor.u32 %v3830, %v3894
        %v3927 = vxor.u32 %v3831, %v3895
        %v3928 = vxor.u32 %v3832, %v3896
        %v3929 = vxor.u32 %v3833, %v3897
        %v3930 = vxor.u32 %v3834, %v3898
        %v3931 = vxor.u32 %v3835, %v3899
        %v3932 = vxor.u32 %v3836, %v3900
        %v3933 = vxor.u32 %v3837, %v3901
        %v3934 = vxor.u32 %v3838, %v3902
        %v3935 = vxor.u32 %v3839, %v3903
        %v3936 = vxor.u32 %v3840, %v3904
        %v3937 = vxor.u32 %v3841, %v3905
        %v3938 = vxor.u32 %v3842, %v3906
        %v3939 = vxor.u32 %v3843, %v3907
        %v3940 = vxor.u32 %v3844, %v3908
        %v3941 = vxor.u32 %v3845, %v3909
        %v3942 = vxor.u32 %v3846, %v3910
        %v3943 = vxor.u32 %v3847, %v3911
        %v3944 = vmul.u32 %v3912, 3266489909
        %v3945 = vmul.u32 %v3913, 3266489909
        %v3946 = vmul.u32 %v3914, 3266489909
        %v3947 = vmul.u32 %v3915, 3266489909
        %v3948 = vmul.u32 %v3916, 3266489909
        %v3949 = vmul.u32 %v3917, 3266489909
        %v3950 = vmul.u32 %v3918, 3266489909
        %v3951 = vmul.u32 %v3919, 3266489909
        %v3952 = vmul.u32 %v3920, 3266489909
        %v3953 = vmul.u32 %v3921, 3266489909
        %v3954 = vmul.u32 %v3922, 3266489909
        %v3955 = vmul.u32 %v3923, 3266489909
        %v3956 = vmul.u32 %v3924, 3266489909
        %v3957 = vmul.u32 %v3925, 3266489909
        %v3958 = vmul.u32 %v3926, 3266489909
        %v3959 = vmul.u32 %v3927, 3266489909
        %v3960 = vmul.u32 %v3928, 3266489909
        %v3961 = vmul.u32 %v3929, 3266489909
        %v3962 = vmul.u32 %v3930, 3266489909
        %v3963 = vmul.u32 %v3931, 3266489909
        %v3964 = vmul.u32 %v3932, 3266489909
        %v3965 = vmul.u32 %v3933, 3266489909
        %v3966 = vmul.u32 %v3934, 3266489909
        %v3967 = vmul.u32 %v3935, 3266489909
        %v3968 = vmul.u32 %v3936, 3266489909
        %v3969 = vmul.u32 %v3937, 3266489909
        %v3970 = vmul.u32 %v3938, 3266489909
        %v3971 = vmul.u32 %v3939, 3266489909
        %v3972 = vmul.u32 %v3940, 3266489909
        %v3973 = vmul.u32 %v3941, 3266489909
        %v3974 = vmul.u32 %v3942, 3266489909
        %v3975 = vmul.u32 %v3943, 3266489909
        %v3976 = vshra.s32 %v3944, 16
        %v3977 = vshra.s32 %v3945, 16
        %v3978 = vshra.s32 %v3946, 16
        %v3979 = vshra.s32 %v3947, 16
        %v3980 = vshra.s32 %v3948, 16
        %v3981 = vshra.s32 %v3949, 16
        %v3982 = vshra.s32 %v3950, 16
        %v3983 = vshra.s32 %v3951, 16
        %v3984 = vshra.s32 %v3952, 16
        %v3985 = vshra.s32 %v3953, 16
        %v3986 = vshra.s32 %v3954, 16
        %v3987 = vshra.s32 %v3955, 16
        %v3988 = vshra.s32 %v3956, 16
        %v3989 = vshra.s32 %v3957, 16
        %v3990 = vshra.s32 %v3958, 16
        %v3991 = vshra.s32 %v3959, 16
        %v3992 = vshra.s32 %v3960, 16
        %v3993 = vshra.s32 %v3961, 16
        %v3994 = vshra.s32 %v3962, 16
        %v3995 = vshra.s32 %v3963, 16
        %v3996 = vshra.s32 %v3964, 16
        %v3997 = vshra.s32 %v3965, 16
        %v3998 = vshra.s32 %v3966, 16
        %v3999 = vshra.s32 %v3967, 16
        %v4000 = vshra.s32 %v3968, 16
        %v4001 = vshra.s32 %v3969, 16
        %v4002 = vshra.s32 %v3970, 16
        %v4003 = vshra.s32 %v3971, 16
        %v4004 = vshra.s32 %v3972, 16
        %v4005 = vshra.s32 %v3973, 16
        %v4006 = vshra.s32 %v3974, 16
        %v4007 = vshra.s32 %v3975, 16
        %v4008 = vand.u32 %v3976, 65535
        %v4009 = vand.u32 %v3977, 65535
        %v4010 = vand.u32 %v3978, 65535
        %v4011 = vand.u32 %v3979, 65535
        %v4012 = vand.u32 %v3980, 65535
        %v4013 = vand.u32 %v3981, 65535
        %v4014 = vand.u32 %v3982, 65535
        %v4015 = vand.u32 %v3983, 65535
        %v4016 = vand.u32 %v3984, 65535
        %v4017 = vand.u32 %v3985, 65535
        %v4018 = vand.u32 %v3986, 65535
        %v4019 = vand.u32 %v3987, 65535
        %v4020 = vand.u32 %v3988, 65535
        %v4021 = vand.u32 %v3989, 65535
        %v4022 = vand.u32 %v3990, 65535
        %v4023 = vand.u32 %v3991, 65535
        %v4024 = vand.u32 %v3992, 65535
        %v4025 = vand.u32 %v3993, 65535
        %v4026 = vand.u32 %v3994, 65535
        %v4027 = vand.u32 %v3995, 65535
        %v4028 = vand.u32 %v3996, 65535
        %v4029 = vand.u32 %v3997, 65535
        %v4030 = vand.u32 %v3998, 65535
        %v4031 = vand.u32 %v3999, 65535
        %v4032 = vand.u32 %v4000, 65535
        %v4033 = vand.u32 %v4001, 65535
        %v4034 = vand.u32 %v4002, 65535
        %v4035 = vand.u32 %v4003, 65535
        %v4036 = vand.u32 %v4004, 65535
        %v4037 = vand.u32 %v4005, 65535
        %v4038 = vand.u32 %v4006, 65535
        %v4039 = vand.u32 %v4007, 65535
        %v4040 = vxor.u32 %v3944, %v4008
        %v4041 = vxor.u32 %v3945, %v4009
        %v4042 = vxor.u32 %v3946, %v4010
        %v4043 = vxor.u32 %v3947, %v4011
        %v4044 = vxor.u32 %v3948, %v4012
        %v4045 = vxor.u32 %v3949, %v4013
        %v4046 = vxor.u32 %v3950, %v4014
        %v4047 = vxor.u32 %v3951, %v4015
        %v4048 = vxor.u32 %v3952, %v4016
        %v4049 = vxor.u32 %v3953, %v4017
        %v4050 = vxor.u32 %v3954, %v4018
        %v4051 = vxor.u32 %v3955, %v4019
        %v4052 = vxor.u32 %v3956, %v4020
        %v4053 = vxor.u32 %v3957, %v4021
        %v4054 = vxor.u32 %v3958, %v4022
        %v4055 = vxor.u32 %v3959, %v4023
        %v4056 = vxor.u32 %v3960, %v4024
        %v4057 = vxor.u32 %v3961, %v4025
        %v4058 = vxor.u32 %v3962, %v4026
        %v4059 = vxor.u32 %v3963, %v4027
        %v4060 = vxor.u32 %v3964, %v4028
        %v4061 = vxor.u32 %v3965, %v4029
        %v4062 = vxor.u32 %v3966, %v4030
        %v4063 = vxor.u32 %v3967, %v4031
        %v4064 = vxor.u32 %v3968, %v4032
        %v4065 = vxor.u32 %v3969, %v4033
        %v4066 = vxor.u32 %v3970, %v4034
        %v4067 = vxor.u32 %v3971, %v4035
        %v4068 = vxor.u32 %v3972, %v4036
        %v4069 = vxor.u32 %v3973, %v4037
        %v4070 = vxor.u32 %v3974, %v4038
        %v4071 = vxor.u32 %v3975, %v4039
        %v4072 = vand.u32 %v4040, 16777215
        %v4073 = vand.u32 %v4041, 16777215
        %v4074 = vand.u32 %v4042, 16777215
        %v4075 = vand.u32 %v4043, 16777215
        %v4076 = vand.u32 %v4044, 16777215
        %v4077 = vand.u32 %v4045, 16777215
        %v4078 = vand.u32 %v4046, 16777215
        %v4079 = vand.u32 %v4047, 16777215
        %v4080 = vand.u32 %v4048, 16777215
        %v4081 = vand.u32 %v4049, 16777215
        %v4082 = vand.u32 %v4050, 16777215
        %v4083 = vand.u32 %v4051, 16777215
        %v4084 = vand.u32 %v4052, 16777215
        %v4085 = vand.u32 %v4053, 16777215
        %v4086 = vand.u32 %v4054, 16777215
        %v4087 = vand.u32 %v4055, 16777215
        %v4088 = vand.u32 %v4056, 16777215
        %v4089 = vand.u32 %v4057, 16777215
        %v4090 = vand.u32 %v4058, 16777215
        %v4091 = vand.u32 %v4059, 16777215
        %v4092 = vand.u32 %v4060, 16777215
        %v4093 = vand.u32 %v4061, 16777215
        %v4094 = vand.u32 %v4062, 16777215
        %v4095 = vand.u32 %v4063, 16777215
        %v4096 = vand.u32 %v4064, 16777215
        %v4097 = vand.u32 %v4065, 16777215
        %v4098 = vand.u32 %v4066, 16777215
        %v4099 = vand.u32 %v4067, 16777215
        %v4100 = vand.u32 %v4068, 16777215
        %v4101 = vand.u32 %v4069, 16777215
        %v4102 = vand.u32 %v4070, 16777215
        %v4103 = vand.u32 %v4071, 16777215
        %vm4104 = vcmp.ge.s32.totalorder %v4072, 1677722
        %vm4105 = vcmp.ge.s32.totalorder %v4073, 1677722
        %vm4106 = vcmp.ge.s32.totalorder %v4074, 1677722
        %vm4107 = vcmp.ge.s32.totalorder %v4075, 1677722
        %vm4108 = vcmp.ge.s32.totalorder %v4076, 1677722
        %vm4109 = vcmp.ge.s32.totalorder %v4077, 1677722
        %vm4110 = vcmp.ge.s32.totalorder %v4078, 1677722
        %vm4111 = vcmp.ge.s32.totalorder %v4079, 1677722
        %vm4112 = vcmp.ge.s32.totalorder %v4080, 1677722
        %vm4113 = vcmp.ge.s32.totalorder %v4081, 1677722
        %vm4114 = vcmp.ge.s32.totalorder %v4082, 1677722
        %vm4115 = vcmp.ge.s32.totalorder %v4083, 1677722
        %vm4116 = vcmp.ge.s32.totalorder %v4084, 1677722
        %vm4117 = vcmp.ge.s32.totalorder %v4085, 1677722
        %vm4118 = vcmp.ge.s32.totalorder %v4086, 1677722
        %vm4119 = vcmp.ge.s32.totalorder %v4087, 1677722
        %vm4120 = vcmp.ge.s32.totalorder %v4088, 1677722
        %vm4121 = vcmp.ge.s32.totalorder %v4089, 1677722
        %vm4122 = vcmp.ge.s32.totalorder %v4090, 1677722
        %vm4123 = vcmp.ge.s32.totalorder %v4091, 1677722
        %vm4124 = vcmp.ge.s32.totalorder %v4092, 1677722
        %vm4125 = vcmp.ge.s32.totalorder %v4093, 1677722
        %vm4126 = vcmp.ge.s32.totalorder %v4094, 1677722
        %vm4127 = vcmp.ge.s32.totalorder %v4095, 1677722
        %vm4128 = vcmp.ge.s32.totalorder %v4096, 1677722
        %vm4129 = vcmp.ge.s32.totalorder %v4097, 1677722
        %vm4130 = vcmp.ge.s32.totalorder %v4098, 1677722
        %vm4131 = vcmp.ge.s32.totalorder %v4099, 1677722
        %vm4132 = vcmp.ge.s32.totalorder %v4100, 1677722
        %vm4133 = vcmp.ge.s32.totalorder %v4101, 1677722
        %vm4134 = vcmp.ge.s32.totalorder %v4102, 1677722
        %vm4135 = vcmp.ge.s32.totalorder %v4103, 1677722
        %v4136 = vmul.f32 %v3555, 1.1111112
        %v4137 = vmul.f32 %v3556, 1.1111112
        %v4138 = vmul.f32 %v3557, 1.1111112
        %v4139 = vmul.f32 %v3558, 1.1111112
        %v4140 = vmul.f32 %v3559, 1.1111112
        %v4141 = vmul.f32 %v3560, 1.1111112
        %v4142 = vmul.f32 %v3561, 1.1111112
        %v4143 = vmul.f32 %v3562, 1.1111112
        %v4144 = vmul.f32 %v3563, 1.1111112
        %v4145 = vmul.f32 %v3564, 1.1111112
        %v4146 = vmul.f32 %v3565, 1.1111112
        %v4147 = vmul.f32 %v3566, 1.1111112
        %v4148 = vmul.f32 %v3567, 1.1111112
        %v4149 = vmul.f32 %v3568, 1.1111112
        %v4150 = vmul.f32 %v3569, 1.1111112
        %v4151 = vmul.f32 %v3570, 1.1111112
        %v4152 = vmul.f32 %v3571, 1.1111112
        %v4153 = vmul.f32 %v3572, 1.1111112
        %v4154 = vmul.f32 %v3573, 1.1111112
        %v4155 = vmul.f32 %v3574, 1.1111112
        %v4156 = vmul.f32 %v3575, 1.1111112
        %v4157 = vmul.f32 %v3576, 1.1111112
        %v4158 = vmul.f32 %v3577, 1.1111112
        %v4159 = vmul.f32 %v3578, 1.1111112
        %v4160 = vmul.f32 %v3579, 1.1111112
        %v4161 = vmul.f32 %v3580, 1.1111112
        %v4162 = vmul.f32 %v3581, 1.1111112
        %v4163 = vmul.f32 %v3582, 1.1111112
        %v4164 = vmul.f32 %v3583, 1.1111112
        %v4165 = vmul.f32 %v3584, 1.1111112
        %v4166 = vmul.f32 %v3585, 1.1111112
        %v4167 = vmul.f32 %v3586, 1.1111112
        %v4168 = vsel %vm4104, %v4136, 0.0
        %v4169 = vsel %vm4105, %v4137, 0.0
        %v4170 = vsel %vm4106, %v4138, 0.0
        %v4171 = vsel %vm4107, %v4139, 0.0
        %v4172 = vsel %vm4108, %v4140, 0.0
        %v4173 = vsel %vm4109, %v4141, 0.0
        %v4174 = vsel %vm4110, %v4142, 0.0
        %v4175 = vsel %vm4111, %v4143, 0.0
        %v4176 = vsel %vm4112, %v4144, 0.0
        %v4177 = vsel %vm4113, %v4145, 0.0
        %v4178 = vsel %vm4114, %v4146, 0.0
        %v4179 = vsel %vm4115, %v4147, 0.0
        %v4180 = vsel %vm4116, %v4148, 0.0
        %v4181 = vsel %vm4117, %v4149, 0.0
        %v4182 = vsel %vm4118, %v4150, 0.0
        %v4183 = vsel %vm4119, %v4151, 0.0
        %v4184 = vsel %vm4120, %v4152, 0.0
        %v4185 = vsel %vm4121, %v4153, 0.0
        %v4186 = vsel %vm4122, %v4154, 0.0
        %v4187 = vsel %vm4123, %v4155, 0.0
        %v4188 = vsel %vm4124, %v4156, 0.0
        %v4189 = vsel %vm4125, %v4157, 0.0
        %v4190 = vsel %vm4126, %v4158, 0.0
        %v4191 = vsel %vm4127, %v4159, 0.0
        %v4192 = vsel %vm4128, %v4160, 0.0
        %v4193 = vsel %vm4129, %v4161, 0.0
        %v4194 = vsel %vm4130, %v4162, 0.0
        %v4195 = vsel %vm4131, %v4163, 0.0
        %v4196 = vsel %vm4132, %v4164, 0.0
        %v4197 = vsel %vm4133, %v4165, 0.0
        %v4198 = vsel %vm4134, %v4166, 0.0
        %v4199 = vsel %vm4135, %v4167, 0.0
        %v4200 = vmax.f32 %v4168, 0.0
        %v4201 = vmax.f32 %v4169, 0.0
        %v4202 = vmax.f32 %v4170, 0.0
        %v4203 = vmax.f32 %v4171, 0.0
        %v4204 = vmax.f32 %v4172, 0.0
        %v4205 = vmax.f32 %v4173, 0.0
        %v4206 = vmax.f32 %v4174, 0.0
        %v4207 = vmax.f32 %v4175, 0.0
        %v4208 = vmax.f32 %v4176, 0.0
        %v4209 = vmax.f32 %v4177, 0.0
        %v4210 = vmax.f32 %v4178, 0.0
        %v4211 = vmax.f32 %v4179, 0.0
        %v4212 = vmax.f32 %v4180, 0.0
        %v4213 = vmax.f32 %v4181, 0.0
        %v4214 = vmax.f32 %v4182, 0.0
        %v4215 = vmax.f32 %v4183, 0.0
        %v4216 = vmax.f32 %v4184, 0.0
        %v4217 = vmax.f32 %v4185, 0.0
        %v4218 = vmax.f32 %v4186, 0.0
        %v4219 = vmax.f32 %v4187, 0.0
        %v4220 = vmax.f32 %v4188, 0.0
        %v4221 = vmax.f32 %v4189, 0.0
        %v4222 = vmax.f32 %v4190, 0.0
        %v4223 = vmax.f32 %v4191, 0.0
        %v4224 = vmax.f32 %v4192, 0.0
        %v4225 = vmax.f32 %v4193, 0.0
        %v4226 = vmax.f32 %v4194, 0.0
        %v4227 = vmax.f32 %v4195, 0.0
        %v4228 = vmax.f32 %v4196, 0.0
        %v4229 = vmax.f32 %v4197, 0.0
        %v4230 = vmax.f32 %v4198, 0.0
        %v4231 = vmax.f32 %v4199, 0.0
        %v4232 = vpack.c.bf16 %v4201, %v4200
        %v4233 = vpack.c.bf16 %v4203, %v4202
        %v4234 = vpack.c.bf16 %v4205, %v4204
        %v4235 = vpack.c.bf16 %v4207, %v4206
        %v4236 = vpack.c.bf16 %v4209, %v4208
        %v4237 = vpack.c.bf16 %v4211, %v4210
        %v4238 = vpack.c.bf16 %v4213, %v4212
        %v4239 = vpack.c.bf16 %v4215, %v4214
        %v4240 = vpack.c.bf16 %v4217, %v4216
        %v4241 = vpack.c.bf16 %v4219, %v4218
        %v4242 = vpack.c.bf16 %v4221, %v4220
        %v4243 = vpack.c.bf16 %v4223, %v4222
        %v4244 = vpack.c.bf16 %v4225, %v4224
        %v4245 = vpack.c.bf16 %v4227, %v4226
        %v4246 = vpack.c.bf16 %v4229, %v4228
        %v4247 = vpack.c.bf16 %v4231, %v4230
        %v4248 = vld [vmem:[%s10] sm:$0xf]
        %v4249 = vld [vmem:[%s10 + $0x4] sm:$0xf]
        %v4250 = vld [vmem:[%s10 + $0x8] sm:$0xf]
        %v4251 = vld [vmem:[%s10 + $0xc] sm:$0xf]
        %v4252 = vld [vmem:[%s10 + $0x10] sm:$0xf]
        %v4253 = vld [vmem:[%s10 + $0x14] sm:$0xf]
        %v4254 = vld [vmem:[%s10 + $0x18] sm:$0xf]
        %v4255 = vld [vmem:[%s10 + $0x1c] sm:$0xf]
        %v4264 = vunpack.c.l.b16 %v4248
        %v4265 = vunpack.c.l.b16 %v4249
        %v4266 = vunpack.c.l.b16 %v4250
        %v4267 = vunpack.c.l.b16 %v4251
        %v4268 = vunpack.c.l.b16 %v4252
        %v4269 = vunpack.c.l.b16 %v4253
        %v4270 = vunpack.c.l.b16 %v4254
        %v4271 = vunpack.c.l.b16 %v4255
        %v4272 = vpack.c.b16 %v4265, %v4264
        %v4273 = vpack.c.b16 %v4267, %v4266
        %v4274 = vpack.c.b16 %v4269, %v4268
        %v4275 = vpack.c.b16 %v4271, %v4270
        %v4281 = vsel %vm2914, %v4232, 0
        %v4284 = vsel %vm2914, %v4233, 0
        %v4287 = vsel %vm2914, %v4234, 0
        %v4290 = vsel %vm2914, %v4235, 0
        %v4293 = vsel %vm2914, %v4236, 0
        %v4296 = vsel %vm2914, %v4237, 0
        %v4299 = vsel %vm2914, %v4238, 0
        %v4302 = vsel %vm2914, %v4239, 0
        %v4305 = vsel %vm2914, %v4240, 0
        %v4308 = vsel %vm2914, %v4241, 0
        %v4311 = vsel %vm2914, %v4242, 0
        %v4314 = vsel %vm2914, %v4243, 0
        %v4317 = vsel %vm2914, %v4244, 0
        %v4320 = vsel %vm2914, %v4245, 0
        %v4323 = vsel %vm2914, %v4246, 0
        %v4326 = vsel %vm2914, %v4247, 0
        %4328 = vmatprep.subr.bf16.mxu0 0
        %4329 = vmatpush1.bf16.msra.mxu0 %v4272
        %4330 = vmatprep.subr.bf16.mxu0 0
        %4331 = vmatpush1.bf16.msra.mxu0 %v4273
        %4332 = vmatprep.subr.bf16.mxu0 0
        %4333 = vmatpush1.bf16.msra.mxu0 %v4274
        %4334 = vmatprep.subr.bf16.mxu0 0
        %4335 = vmatpush1.bf16.msra.mxu0 %v4275
        %4336 = vmatprep.subr.bf16.mxu0 0
        %4337 = vmatpush1.bf16.msra.mxu0 0
        %4338 = vmatprep.subr.bf16.mxu0 0
        %4339 = vmatpush1.bf16.msra.mxu0 0
        %4340 = vmatprep.subr.bf16.mxu0 0
        %4341 = vmatpush1.bf16.msra.mxu0 0
        %4342 = vmatprep.subr.bf16.mxu0 0
        %4343 = vmatpush1.bf16.msra.mxu0 0
        %4344 = vmatprep.subr.bf16.mxu0 0
        %4345 = vmatpush1.bf16.msra.mxu0 0
        %4346 = vmatprep.subr.bf16.mxu0 0
        %4347 = vmatpush1.bf16.msra.mxu0 0
        %4348 = vmatprep.subr.bf16.mxu0 0
        %4349 = vmatpush1.bf16.msra.mxu0 0
        %4350 = vmatprep.subr.bf16.mxu0 0
        %4351 = vmatpush1.bf16.msra.mxu0 0
        %4352 = vmatprep.subr.bf16.mxu0 0
        %4353 = vmatpush1.bf16.msra.mxu0 0
        %4354 = vmatprep.subr.bf16.mxu0 0
        %4355 = vmatpush1.bf16.msra.mxu0 0
        %4356 = vmatprep.subr.bf16.mxu0 0
        %4357 = vmatpush1.bf16.msra.mxu0 0
        %4358 = vmatprep.subr.bf16.mxu0 0
        %4359 = vmatpush1.bf16.msra.mxu0 0
        %4360 = vmatprep.mubr.bf16.mxu0 0
        %4361 = vmatmul.mubr.bf16.gmra.mrb[0].mxu0 %v4281
        %v4362 = vpop.f32.mrb[0].mxu0
        %v4363 = vadd.f32 0.0, %v4362
        %v4364 = vpop.f32.mrb[0].mxu0
        %v4365 = vpop.f32.mrb[0].mxu0
        %v4366 = vadd.f32 0.0, %v4365
        %v4367 = vpop.f32.mrb[0].mxu0
        %4368 = vmatprep.mubr.bf16.mxu0 0
        %4369 = vmatmul.mubr.bf16.gmra.mrb[0].mxu0 %v4284
        %v4370 = vpop.f32.mrb[0].mxu0
        %v4371 = vadd.f32 0.0, %v4370
        %v4372 = vpop.f32.mrb[0].mxu0
        %v4373 = vpop.f32.mrb[0].mxu0
        %v4374 = vadd.f32 0.0, %v4373
        %v4375 = vpop.f32.mrb[0].mxu0
        %4376 = vmatprep.mubr.bf16.mxu0 0
        %4377 = vmatmul.mubr.bf16.gmra.mrb[0].mxu0 %v4287
        %v4378 = vpop.f32.mrb[0].mxu0
        %v4379 = vadd.f32 0.0, %v4378
        %v4380 = vpop.f32.mrb[0].mxu0
        %v4381 = vpop.f32.mrb[0].mxu0
        %v4382 = vadd.f32 0.0, %v4381
        %v4383 = vpop.f32.mrb[0].mxu0
        %4384 = vmatprep.mubr.bf16.mxu0 0
        %4385 = vmatmul.mubr.bf16.gmra.mrb[0].mxu0 %v4290
        %v4386 = vpop.f32.mrb[0].mxu0
        %v4387 = vadd.f32 0.0, %v4386
        %v4388 = vpop.f32.mrb[0].mxu0
        %v4389 = vpop.f32.mrb[0].mxu0
        %v4390 = vadd.f32 0.0, %v4389
        %v4391 = vpop.f32.mrb[0].mxu0
        %4392 = vmatprep.mubr.bf16.mxu0 0
        %4393 = vmatmul.mubr.bf16.gmra.mrb[0].mxu0 %v4293
        %v4394 = vpop.f32.mrb[0].mxu0
        %v4395 = vadd.f32 0.0, %v4394
        %v4396 = vpop.f32.mrb[0].mxu0
        %v4397 = vpop.f32.mrb[0].mxu0
        %v4398 = vadd.f32 0.0, %v4397
        %v4399 = vpop.f32.mrb[0].mxu0
        %4400 = vmatprep.mubr.bf16.mxu0 0
        %4401 = vmatmul.mubr.bf16.gmra.mrb[0].mxu0 %v4296
        %v4402 = vpop.f32.mrb[0].mxu0
        %v4403 = vadd.f32 0.0, %v4402
        %v4404 = vpop.f32.mrb[0].mxu0
        %v4405 = vpop.f32.mrb[0].mxu0
        %v4406 = vadd.f32 0.0, %v4405
        %v4407 = vpop.f32.mrb[0].mxu0
        %4408 = vmatprep.mubr.bf16.mxu0 0
        %4409 = vmatmul.mubr.bf16.gmra.mrb[0].mxu0 %v4299
        %v4410 = vpop.f32.mrb[0].mxu0
        %v4411 = vadd.f32 0.0, %v4410
        %v4412 = vpop.f32.mrb[0].mxu0
        %v4413 = vpop.f32.mrb[0].mxu0
        %v4414 = vadd.f32 0.0, %v4413
        %v4415 = vpop.f32.mrb[0].mxu0
        %4416 = vmatprep.mubr.bf16.mxu0 0
        %4417 = vmatmul.mubr.bf16.gmra.mrb[0].mxu0 %v4302
        %v4418 = vpop.f32.mrb[0].mxu0
        %v4419 = vadd.f32 0.0, %v4418
        %v4420 = vpop.f32.mrb[0].mxu0
        %v4421 = vpop.f32.mrb[0].mxu0
        %v4422 = vadd.f32 0.0, %v4421
        %v4423 = vpop.f32.mrb[0].mxu0
        %4424 = vmatprep.mubr.bf16.mxu0 0
        %4425 = vmatmul.mubr.bf16.gmra.mrb[0].mxu0 %v4305
        %v4426 = vpop.f32.mrb[0].mxu0
        %v4427 = vadd.f32 0.0, %v4426
        %v4428 = vpop.f32.mrb[0].mxu0
        %v4429 = vpop.f32.mrb[0].mxu0
        %v4430 = vadd.f32 0.0, %v4429
        %v4431 = vpop.f32.mrb[0].mxu0
        %4432 = vmatprep.mubr.bf16.mxu0 0
        %4433 = vmatmul.mubr.bf16.gmra.mrb[0].mxu0 %v4308
        %v4434 = vpop.f32.mrb[0].mxu0
        %v4435 = vadd.f32 0.0, %v4434
        %v4436 = vpop.f32.mrb[0].mxu0
        %v4437 = vpop.f32.mrb[0].mxu0
        %v4438 = vadd.f32 0.0, %v4437
        %v4439 = vpop.f32.mrb[0].mxu0
        %4440 = vmatprep.mubr.bf16.mxu0 0
        %4441 = vmatmul.mubr.bf16.gmra.mrb[0].mxu0 %v4311
        %v4442 = vpop.f32.mrb[0].mxu0
        %v4443 = vadd.f32 0.0, %v4442
        %v4444 = vpop.f32.mrb[0].mxu0
        %v4445 = vpop.f32.mrb[0].mxu0
        %v4446 = vadd.f32 0.0, %v4445
        %v4447 = vpop.f32.mrb[0].mxu0
        %4448 = vmatprep.mubr.bf16.mxu0 0
        %4449 = vmatmul.mubr.bf16.gmra.mrb[0].mxu0 %v4314
        %v4450 = vpop.f32.mrb[0].mxu0
        %v4451 = vadd.f32 0.0, %v4450
        %v4452 = vpop.f32.mrb[0].mxu0
        %v4453 = vpop.f32.mrb[0].mxu0
        %v4454 = vadd.f32 0.0, %v4453
        %v4455 = vpop.f32.mrb[0].mxu0
        %4456 = vmatprep.mubr.bf16.mxu0 0
        %4457 = vmatmul.mubr.bf16.gmra.mrb[0].mxu0 %v4317
        %v4458 = vpop.f32.mrb[0].mxu0
        %v4459 = vadd.f32 0.0, %v4458
        %v4460 = vpop.f32.mrb[0].mxu0
        %v4461 = vpop.f32.mrb[0].mxu0
        %v4462 = vadd.f32 0.0, %v4461
        %v4463 = vpop.f32.mrb[0].mxu0
        %4464 = vmatprep.mubr.bf16.mxu0 0
        %4465 = vmatmul.mubr.bf16.gmra.mrb[0].mxu0 %v4320
        %v4466 = vpop.f32.mrb[0].mxu0
        %v4467 = vadd.f32 0.0, %v4466
        %v4468 = vpop.f32.mrb[0].mxu0
        %v4469 = vpop.f32.mrb[0].mxu0
        %v4470 = vadd.f32 0.0, %v4469
        %v4471 = vpop.f32.mrb[0].mxu0
        %4472 = vmatprep.mubr.bf16.mxu0 0
        %4473 = vmatmul.mubr.bf16.gmra.mrb[0].mxu0 %v4323
        %v4474 = vpop.f32.mrb[0].mxu0
        %v4475 = vadd.f32 0.0, %v4474
        %v4476 = vpop.f32.mrb[0].mxu0
        %v4477 = vpop.f32.mrb[0].mxu0
        %v4478 = vadd.f32 0.0, %v4477
        %v4479 = vpop.f32.mrb[0].mxu0
        %4480 = vmatprep.mubr.bf16.mxu0 0
        %4481 = vmatmul.mubr.bf16.gmra.mrb[0].mxu0 %v4326
        %v4482 = vpop.f32.mrb[0].mxu0
        %v4483 = vadd.f32 0.0, %v4482
        %v4484 = vpop.f32.mrb[0].mxu0
        %v4485 = vpop.f32.mrb[0].mxu0
        %v4486 = vadd.f32 0.0, %v4485
        %v4487 = vpop.f32.mrb[0].mxu0
        %4488 = vdwg.mxu0
        %v4489 = vld [vmem:[%s11] sm:$0x1]
        %v4491 = vlaneseq
        %v4492 = vshrl.u32 %v4491, 7
        %v4493 = vsub.s32 0, %v4492
        %v4494 = vrot.slane %v4489, %v4493
        %v4496 = vadd.f32 %v4363, %v4494
        %v4497 = vadd.f32 %v4366, %v4494
        %v4498 = vadd.f32 %v4371, %v4494
        %v4499 = vadd.f32 %v4374, %v4494
        %v4500 = vadd.f32 %v4379, %v4494
        %v4501 = vadd.f32 %v4382, %v4494
        %v4502 = vadd.f32 %v4387, %v4494
        %v4503 = vadd.f32 %v4390, %v4494
        %v4504 = vadd.f32 %v4395, %v4494
        %v4505 = vadd.f32 %v4398, %v4494
        %v4506 = vadd.f32 %v4403, %v4494
        %v4507 = vadd.f32 %v4406, %v4494
        %v4508 = vadd.f32 %v4411, %v4494
        %v4509 = vadd.f32 %v4414, %v4494
        %v4510 = vadd.f32 %v4419, %v4494
        %v4511 = vadd.f32 %v4422, %v4494
        %v4512 = vadd.f32 %v4427, %v4494
        %v4513 = vadd.f32 %v4430, %v4494
        %v4514 = vadd.f32 %v4435, %v4494
        %v4515 = vadd.f32 %v4438, %v4494
        %v4516 = vadd.f32 %v4443, %v4494
        %v4517 = vadd.f32 %v4446, %v4494
        %v4518 = vadd.f32 %v4451, %v4494
        %v4519 = vadd.f32 %v4454, %v4494
        %v4520 = vadd.f32 %v4459, %v4494
        %v4521 = vadd.f32 %v4462, %v4494
        %v4522 = vadd.f32 %v4467, %v4494
        %v4523 = vadd.f32 %v4470, %v4494
        %v4524 = vadd.f32 %v4475, %v4494
        %v4525 = vadd.f32 %v4478, %v4494
        %v4526 = vadd.f32 %v4483, %v4494
        %v4527 = vadd.f32 %v4486, %v4494
        %vm4528 = vcmask 261120
        %v4529 = vsel %vm4528, %v4496, 0.0
        %4530 = vadd.xlane.f32.xlu0 %v4529
        %v4531 = vpop.xlane.xlu0 %4530
        %v4532 = vsel %vm4528, %v4497, 0.0
        %4533 = vadd.xlane.f32.xlu0 %v4532
        %v4534 = vpop.xlane.xlu0 %4533
        %v4535 = vsel %vm4528, %v4498, 0.0
        %4536 = vadd.xlane.f32.xlu0 %v4535
        %v4537 = vpop.xlane.xlu0 %4536
        %v4538 = vsel %vm4528, %v4499, 0.0
        %4539 = vadd.xlane.f32.xlu0 %v4538
        %v4540 = vpop.xlane.xlu0 %4539
        %v4541 = vsel %vm4528, %v4500, 0.0
        %4542 = vadd.xlane.f32.xlu0 %v4541
        %v4543 = vpop.xlane.xlu0 %4542
        %v4544 = vsel %vm4528, %v4501, 0.0
        %4545 = vadd.xlane.f32.xlu0 %v4544
        %v4546 = vpop.xlane.xlu0 %4545
        %v4547 = vsel %vm4528, %v4502, 0.0
        %4548 = vadd.xlane.f32.xlu0 %v4547
        %v4549 = vpop.xlane.xlu0 %4548
        %v4550 = vsel %vm4528, %v4503, 0.0
        %4551 = vadd.xlane.f32.xlu0 %v4550
        %v4552 = vpop.xlane.xlu0 %4551
        %v4553 = vsel %vm4528, %v4504, 0.0
        %4554 = vadd.xlane.f32.xlu0 %v4553
        %v4555 = vpop.xlane.xlu0 %4554
        %v4556 = vsel %vm4528, %v4505, 0.0
        %4557 = vadd.xlane.f32.xlu0 %v4556
        %v4558 = vpop.xlane.xlu0 %4557
        %v4559 = vsel %vm4528, %v4506, 0.0
        %4560 = vadd.xlane.f32.xlu0 %v4559
        %v4561 = vpop.xlane.xlu0 %4560
        %v4562 = vsel %vm4528, %v4507, 0.0
        %4563 = vadd.xlane.f32.xlu0 %v4562
        %v4564 = vpop.xlane.xlu0 %4563
        %v4565 = vsel %vm4528, %v4508, 0.0
        %4566 = vadd.xlane.f32.xlu0 %v4565
        %v4567 = vpop.xlane.xlu0 %4566
        %v4568 = vsel %vm4528, %v4509, 0.0
        %4569 = vadd.xlane.f32.xlu0 %v4568
        %v4570 = vpop.xlane.xlu0 %4569
        %v4571 = vsel %vm4528, %v4510, 0.0
        %4572 = vadd.xlane.f32.xlu0 %v4571
        %v4573 = vpop.xlane.xlu0 %4572
        %v4574 = vsel %vm4528, %v4511, 0.0
        %4575 = vadd.xlane.f32.xlu0 %v4574
        %v4576 = vpop.xlane.xlu0 %4575
        %v4577 = vsel %vm4528, %v4512, 0.0
        %4578 = vadd.xlane.f32.xlu0 %v4577
        %v4579 = vpop.xlane.xlu0 %4578
        %v4580 = vsel %vm4528, %v4513, 0.0
        %4581 = vadd.xlane.f32.xlu0 %v4580
        %v4582 = vpop.xlane.xlu0 %4581
        %v4583 = vsel %vm4528, %v4514, 0.0
        %4584 = vadd.xlane.f32.xlu0 %v4583
        %v4585 = vpop.xlane.xlu0 %4584
        %v4586 = vsel %vm4528, %v4515, 0.0
        %4587 = vadd.xlane.f32.xlu0 %v4586
        %v4588 = vpop.xlane.xlu0 %4587
        %v4589 = vsel %vm4528, %v4516, 0.0
        %4590 = vadd.xlane.f32.xlu0 %v4589
        %v4591 = vpop.xlane.xlu0 %4590
        %v4592 = vsel %vm4528, %v4517, 0.0
        %4593 = vadd.xlane.f32.xlu0 %v4592
        %v4594 = vpop.xlane.xlu0 %4593
        %v4595 = vsel %vm4528, %v4518, 0.0
        %4596 = vadd.xlane.f32.xlu0 %v4595
        %v4597 = vpop.xlane.xlu0 %4596
        %v4598 = vsel %vm4528, %v4519, 0.0
        %4599 = vadd.xlane.f32.xlu0 %v4598
        %v4600 = vpop.xlane.xlu0 %4599
        %v4601 = vsel %vm4528, %v4520, 0.0
        %4602 = vadd.xlane.f32.xlu0 %v4601
        %v4603 = vpop.xlane.xlu0 %4602
        %v4604 = vsel %vm4528, %v4521, 0.0
        %4605 = vadd.xlane.f32.xlu0 %v4604
        %v4606 = vpop.xlane.xlu0 %4605
        %v4607 = vsel %vm4528, %v4522, 0.0
        %4608 = vadd.xlane.f32.xlu0 %v4607
        %v4609 = vpop.xlane.xlu0 %4608
        %v4610 = vsel %vm4528, %v4523, 0.0
        %4611 = vadd.xlane.f32.xlu0 %v4610
        %v4612 = vpop.xlane.xlu0 %4611
        %v4613 = vsel %vm4528, %v4524, 0.0
        %4614 = vadd.xlane.f32.xlu0 %v4613
        %v4615 = vpop.xlane.xlu0 %4614
        %v4616 = vsel %vm4528, %v4525, 0.0
        %4617 = vadd.xlane.f32.xlu0 %v4616
        %v4618 = vpop.xlane.xlu0 %4617
        %v4619 = vsel %vm4528, %v4526, 0.0
        %4620 = vadd.xlane.f32.xlu0 %v4619
        %v4621 = vpop.xlane.xlu0 %4620
        %v4622 = vsel %vm4528, %v4527, 0.0
        %4623 = vadd.xlane.f32.xlu0 %v4622
        %v4624 = vpop.xlane.xlu0 %4623
        %v4625 = vadd.f32 %v4531, %v4579
        %v4626 = vadd.f32 %v4534, %v4582
        %v4627 = vadd.f32 %v4537, %v4585
        %v4628 = vadd.f32 %v4540, %v4588
        %v4629 = vadd.f32 %v4543, %v4591
        %v4630 = vadd.f32 %v4546, %v4594
        %v4631 = vadd.f32 %v4549, %v4597
        %v4632 = vadd.f32 %v4552, %v4600
        %v4633 = vadd.f32 %v4555, %v4603
        %v4634 = vadd.f32 %v4558, %v4606
        %v4635 = vadd.f32 %v4561, %v4609
        %v4636 = vadd.f32 %v4564, %v4612
        %v4637 = vadd.f32 %v4567, %v4615
        %v4638 = vadd.f32 %v4570, %v4618
        %v4639 = vadd.f32 %v4573, %v4621
        %v4640 = vadd.f32 %v4576, %v4624
        %v4641 = vmul.f32 %v4496, %v4496
        %v4642 = vmul.f32 %v4497, %v4497
        %v4643 = vmul.f32 %v4498, %v4498
        %v4644 = vmul.f32 %v4499, %v4499
        %v4645 = vmul.f32 %v4500, %v4500
        %v4646 = vmul.f32 %v4501, %v4501
        %v4647 = vmul.f32 %v4502, %v4502
        %v4648 = vmul.f32 %v4503, %v4503
        %v4649 = vmul.f32 %v4504, %v4504
        %v4650 = vmul.f32 %v4505, %v4505
        %v4651 = vmul.f32 %v4506, %v4506
        %v4652 = vmul.f32 %v4507, %v4507
        %v4653 = vmul.f32 %v4508, %v4508
        %v4654 = vmul.f32 %v4509, %v4509
        %v4655 = vmul.f32 %v4510, %v4510
        %v4656 = vmul.f32 %v4511, %v4511
        %v4657 = vmul.f32 %v4512, %v4512
        %v4658 = vmul.f32 %v4513, %v4513
        %v4659 = vmul.f32 %v4514, %v4514
        %v4660 = vmul.f32 %v4515, %v4515
        %v4661 = vmul.f32 %v4516, %v4516
        %v4662 = vmul.f32 %v4517, %v4517
        %v4663 = vmul.f32 %v4518, %v4518
        %v4664 = vmul.f32 %v4519, %v4519
        %v4665 = vmul.f32 %v4520, %v4520
        %v4666 = vmul.f32 %v4521, %v4521
        %v4667 = vmul.f32 %v4522, %v4522
        %v4668 = vmul.f32 %v4523, %v4523
        %v4669 = vmul.f32 %v4524, %v4524
        %v4670 = vmul.f32 %v4525, %v4525
        %v4671 = vmul.f32 %v4526, %v4526
        %v4672 = vmul.f32 %v4527, %v4527
        %v4673 = vsel %vm4528, %v4641, 0.0
        %4674 = vadd.xlane.f32.xlu0 %v4673
        %v4675 = vpop.xlane.xlu0 %4674
        %v4676 = vsel %vm4528, %v4642, 0.0
        %4677 = vadd.xlane.f32.xlu0 %v4676
        %v4678 = vpop.xlane.xlu0 %4677
        %v4679 = vsel %vm4528, %v4643, 0.0
        %4680 = vadd.xlane.f32.xlu0 %v4679
        %v4681 = vpop.xlane.xlu0 %4680
        %v4682 = vsel %vm4528, %v4644, 0.0
        %4683 = vadd.xlane.f32.xlu0 %v4682
        %v4684 = vpop.xlane.xlu0 %4683
        %v4685 = vsel %vm4528, %v4645, 0.0
        %4686 = vadd.xlane.f32.xlu0 %v4685
        %v4687 = vpop.xlane.xlu0 %4686
        %v4688 = vsel %vm4528, %v4646, 0.0
        %4689 = vadd.xlane.f32.xlu0 %v4688
        %v4690 = vpop.xlane.xlu0 %4689
        %v4691 = vsel %vm4528, %v4647, 0.0
        %4692 = vadd.xlane.f32.xlu0 %v4691
        %v4693 = vpop.xlane.xlu0 %4692
        %v4694 = vsel %vm4528, %v4648, 0.0
        %4695 = vadd.xlane.f32.xlu0 %v4694
        %v4696 = vpop.xlane.xlu0 %4695
        %v4697 = vsel %vm4528, %v4649, 0.0
        %4698 = vadd.xlane.f32.xlu0 %v4697
        %v4699 = vpop.xlane.xlu0 %4698
        %v4700 = vsel %vm4528, %v4650, 0.0
        %4701 = vadd.xlane.f32.xlu0 %v4700
        %v4702 = vpop.xlane.xlu0 %4701
        %v4703 = vsel %vm4528, %v4651, 0.0
        %4704 = vadd.xlane.f32.xlu0 %v4703
        %v4705 = vpop.xlane.xlu0 %4704
        %v4706 = vsel %vm4528, %v4652, 0.0
        %4707 = vadd.xlane.f32.xlu0 %v4706
        %v4708 = vpop.xlane.xlu0 %4707
        %v4709 = vsel %vm4528, %v4653, 0.0
        %4710 = vadd.xlane.f32.xlu0 %v4709
        %v4711 = vpop.xlane.xlu0 %4710
        %v4712 = vsel %vm4528, %v4654, 0.0
        %4713 = vadd.xlane.f32.xlu0 %v4712
        %v4714 = vpop.xlane.xlu0 %4713
        %v4715 = vsel %vm4528, %v4655, 0.0
        %4716 = vadd.xlane.f32.xlu0 %v4715
        %v4717 = vpop.xlane.xlu0 %4716
        %v4718 = vsel %vm4528, %v4656, 0.0
        %4719 = vadd.xlane.f32.xlu0 %v4718
        %v4720 = vpop.xlane.xlu0 %4719
        %v4721 = vsel %vm4528, %v4657, 0.0
        %4722 = vadd.xlane.f32.xlu0 %v4721
        %v4723 = vpop.xlane.xlu0 %4722
        %v4724 = vsel %vm4528, %v4658, 0.0
        %4725 = vadd.xlane.f32.xlu0 %v4724
        %v4726 = vpop.xlane.xlu0 %4725
        %v4727 = vsel %vm4528, %v4659, 0.0
        %4728 = vadd.xlane.f32.xlu0 %v4727
        %v4729 = vpop.xlane.xlu0 %4728
        %v4730 = vsel %vm4528, %v4660, 0.0
        %4731 = vadd.xlane.f32.xlu0 %v4730
        %v4732 = vpop.xlane.xlu0 %4731
        %v4733 = vsel %vm4528, %v4661, 0.0
        %4734 = vadd.xlane.f32.xlu0 %v4733
        %v4735 = vpop.xlane.xlu0 %4734
        %v4736 = vsel %vm4528, %v4662, 0.0
        %4737 = vadd.xlane.f32.xlu0 %v4736
        %v4738 = vpop.xlane.xlu0 %4737
        %v4739 = vsel %vm4528, %v4663, 0.0
        %4740 = vadd.xlane.f32.xlu0 %v4739
        %v4741 = vpop.xlane.xlu0 %4740
        %v4742 = vsel %vm4528, %v4664, 0.0
        %4743 = vadd.xlane.f32.xlu0 %v4742
        %v4744 = vpop.xlane.xlu0 %4743
        %v4745 = vsel %vm4528, %v4665, 0.0
        %4746 = vadd.xlane.f32.xlu0 %v4745
        %v4747 = vpop.xlane.xlu0 %4746
        %v4748 = vsel %vm4528, %v4666, 0.0
        %4749 = vadd.xlane.f32.xlu0 %v4748
        %v4750 = vpop.xlane.xlu0 %4749
        %v4751 = vsel %vm4528, %v4667, 0.0
        %4752 = vadd.xlane.f32.xlu0 %v4751
        %v4753 = vpop.xlane.xlu0 %4752
        %v4754 = vsel %vm4528, %v4668, 0.0
        %4755 = vadd.xlane.f32.xlu0 %v4754
        %v4756 = vpop.xlane.xlu0 %4755
        %v4757 = vsel %vm4528, %v4669, 0.0
        %4758 = vadd.xlane.f32.xlu0 %v4757
        %v4759 = vpop.xlane.xlu0 %4758
        %v4760 = vsel %vm4528, %v4670, 0.0
        %4761 = vadd.xlane.f32.xlu0 %v4760
        %v4762 = vpop.xlane.xlu0 %4761
        %v4763 = vsel %vm4528, %v4671, 0.0
        %4764 = vadd.xlane.f32.xlu0 %v4763
        %v4765 = vpop.xlane.xlu0 %4764
        %v4766 = vsel %vm4528, %v4672, 0.0
        %4767 = vadd.xlane.f32.xlu0 %v4766
        %v4768 = vpop.xlane.xlu0 %4767
        %v4769 = vadd.f32 %v4675, %v4723
        %v4770 = vadd.f32 %v4678, %v4726
        %v4771 = vadd.f32 %v4681, %v4729
        %v4772 = vadd.f32 %v4684, %v4732
        %v4773 = vadd.f32 %v4687, %v4735
        %v4774 = vadd.f32 %v4690, %v4738
        %v4775 = vadd.f32 %v4693, %v4741
        %v4776 = vadd.f32 %v4696, %v4744
        %v4777 = vadd.f32 %v4699, %v4747
        %v4778 = vadd.f32 %v4702, %v4750
        %v4779 = vadd.f32 %v4705, %v4753
        %v4780 = vadd.f32 %v4708, %v4756
        %v4781 = vadd.f32 %v4711, %v4759
        %v4782 = vadd.f32 %v4714, %v4762
        %v4783 = vadd.f32 %v4717, %v4765
        %v4784 = vadd.f32 %v4720, %v4768
        %v4785 = vmul.f32 %v4625, 0.015625
        %v4786 = vmul.f32 %v4626, 0.015625
        %v4787 = vmul.f32 %v4627, 0.015625
        %v4788 = vmul.f32 %v4628, 0.015625
        %v4789 = vmul.f32 %v4629, 0.015625
        %v4790 = vmul.f32 %v4630, 0.015625
        %v4791 = vmul.f32 %v4631, 0.015625
        %v4792 = vmul.f32 %v4632, 0.015625
        %v4793 = vmul.f32 %v4633, 0.015625
        %v4794 = vmul.f32 %v4634, 0.015625
        %v4795 = vmul.f32 %v4635, 0.015625
        %v4796 = vmul.f32 %v4636, 0.015625
        %v4797 = vmul.f32 %v4637, 0.015625
        %v4798 = vmul.f32 %v4638, 0.015625
        %v4799 = vmul.f32 %v4639, 0.015625
        %v4800 = vmul.f32 %v4640, 0.015625
        %v4801 = vmul.f32 %v4769, 0.015625
        %v4802 = vmul.f32 %v4770, 0.015625
        %v4803 = vmul.f32 %v4771, 0.015625
        %v4804 = vmul.f32 %v4772, 0.015625
        %v4805 = vmul.f32 %v4773, 0.015625
        %v4806 = vmul.f32 %v4774, 0.015625
        %v4807 = vmul.f32 %v4775, 0.015625
        %v4808 = vmul.f32 %v4776, 0.015625
        %v4809 = vmul.f32 %v4777, 0.015625
        %v4810 = vmul.f32 %v4778, 0.015625
        %v4811 = vmul.f32 %v4779, 0.015625
        %v4812 = vmul.f32 %v4780, 0.015625
        %v4813 = vmul.f32 %v4781, 0.015625
        %v4814 = vmul.f32 %v4782, 0.015625
        %v4815 = vmul.f32 %v4783, 0.015625
        %v4816 = vmul.f32 %v4784, 0.015625
        %v4817 = vmul.f32 %v4785, %v4785
        %v4818 = vmul.f32 %v4786, %v4786
        %v4819 = vmul.f32 %v4787, %v4787
        %v4820 = vmul.f32 %v4788, %v4788
        %v4821 = vmul.f32 %v4789, %v4789
        %v4822 = vmul.f32 %v4790, %v4790
        %v4823 = vmul.f32 %v4791, %v4791
        %v4824 = vmul.f32 %v4792, %v4792
        %v4825 = vmul.f32 %v4793, %v4793
        %v4826 = vmul.f32 %v4794, %v4794
        %v4827 = vmul.f32 %v4795, %v4795
        %v4828 = vmul.f32 %v4796, %v4796
        %v4829 = vmul.f32 %v4797, %v4797
        %v4830 = vmul.f32 %v4798, %v4798
        %v4831 = vmul.f32 %v4799, %v4799
        %v4832 = vmul.f32 %v4800, %v4800
        %v4833 = vsub.f32 %v4801, %v4817
        %v4834 = vsub.f32 %v4802, %v4818
        %v4835 = vsub.f32 %v4803, %v4819
        %v4836 = vsub.f32 %v4804, %v4820
        %v4837 = vsub.f32 %v4805, %v4821
        %v4838 = vsub.f32 %v4806, %v4822
        %v4839 = vsub.f32 %v4807, %v4823
        %v4840 = vsub.f32 %v4808, %v4824
        %v4841 = vsub.f32 %v4809, %v4825
        %v4842 = vsub.f32 %v4810, %v4826
        %v4843 = vsub.f32 %v4811, %v4827
        %v4844 = vsub.f32 %v4812, %v4828
        %v4845 = vsub.f32 %v4813, %v4829
        %v4846 = vsub.f32 %v4814, %v4830
        %v4847 = vsub.f32 %v4815, %v4831
        %v4848 = vsub.f32 %v4816, %v4832
        %v4849 = vmax.f32 %v4833, 0.0
        %v4850 = vmax.f32 %v4834, 0.0
        %v4851 = vmax.f32 %v4835, 0.0
        %v4852 = vmax.f32 %v4836, 0.0
        %v4853 = vmax.f32 %v4837, 0.0
        %v4854 = vmax.f32 %v4838, 0.0
        %v4855 = vmax.f32 %v4839, 0.0
        %v4856 = vmax.f32 %v4840, 0.0
        %v4857 = vmax.f32 %v4841, 0.0
        %v4858 = vmax.f32 %v4842, 0.0
        %v4859 = vmax.f32 %v4843, 0.0
        %v4860 = vmax.f32 %v4844, 0.0
        %v4861 = vmax.f32 %v4845, 0.0
        %v4862 = vmax.f32 %v4846, 0.0
        %v4863 = vmax.f32 %v4847, 0.0
        %v4864 = vmax.f32 %v4848, 0.0
        %v4865 = vadd.f32 %v4849, 1e-05
        %v4866 = vadd.f32 %v4850, 1e-05
        %v4867 = vadd.f32 %v4851, 1e-05
        %v4868 = vadd.f32 %v4852, 1e-05
        %v4869 = vadd.f32 %v4853, 1e-05
        %v4870 = vadd.f32 %v4854, 1e-05
        %v4871 = vadd.f32 %v4855, 1e-05
        %v4872 = vadd.f32 %v4856, 1e-05
        %v4873 = vadd.f32 %v4857, 1e-05
        %v4874 = vadd.f32 %v4858, 1e-05
        %v4875 = vadd.f32 %v4859, 1e-05
        %v4876 = vadd.f32 %v4860, 1e-05
        %v4877 = vadd.f32 %v4861, 1e-05
        %v4878 = vadd.f32 %v4862, 1e-05
        %v4879 = vadd.f32 %v4863, 1e-05
        %v4880 = vadd.f32 %v4864, 1e-05
        %v4881 = vrsqrt.pop %v4865
        %v4882 = vrsqrt.pop %v4866
        %v4883 = vrsqrt.pop %v4867
        %v4884 = vrsqrt.pop %v4868
        %v4885 = vrsqrt.pop %v4869
        %v4886 = vrsqrt.pop %v4870
        %v4887 = vrsqrt.pop %v4871
        %v4888 = vrsqrt.pop %v4872
        %v4889 = vrsqrt.pop %v4873
        %v4890 = vrsqrt.pop %v4874
        %v4891 = vrsqrt.pop %v4875
        %v4892 = vrsqrt.pop %v4876
        %v4893 = vrsqrt.pop %v4877
        %v4894 = vrsqrt.pop %v4878
        %v4895 = vrsqrt.pop %v4879
        %v4896 = vrsqrt.pop %v4880
        %v4897 = vld [vmem:[%s901] sm:$0xff]
        %v4898 = vld [vmem:[%s901 + $0x8] sm:$0xff]
        %v4899 = vld [vmem:[%s901 + $0x10] sm:$0xff]
        %v4900 = vld [vmem:[%s901 + $0x18] sm:$0xff]
        %v4901 = vld [vmem:[%s901 + $0x20] sm:$0xff]
        %v4902 = vld [vmem:[%s901 + $0x28] sm:$0xff]
        %v4903 = vld [vmem:[%s901 + $0x30] sm:$0xff]
        %v4904 = vld [vmem:[%s901 + $0x38] sm:$0xff]
        %v4905 = vld [vmem:[%s901 + $0x40] sm:$0xff]
        %v4906 = vld [vmem:[%s901 + $0x48] sm:$0xff]
        %v4907 = vld [vmem:[%s901 + $0x50] sm:$0xff]
        %v4908 = vld [vmem:[%s901 + $0x58] sm:$0xff]
        %v4909 = vld [vmem:[%s901 + $0x60] sm:$0xff]
        %v4910 = vld [vmem:[%s901 + $0x68] sm:$0xff]
        %v4911 = vld [vmem:[%s901 + $0x70] sm:$0xff]
        %v4912 = vld [vmem:[%s901 + $0x78] sm:$0xff]
        %v4913 = vmul.f32 %v4881, %v4897
        %v4914 = vmul.f32 %v4882, %v4898
        %v4915 = vmul.f32 %v4883, %v4899
        %v4916 = vmul.f32 %v4884, %v4900
        %v4917 = vmul.f32 %v4885, %v4901
        %v4918 = vmul.f32 %v4886, %v4902
        %v4919 = vmul.f32 %v4887, %v4903
        %v4920 = vmul.f32 %v4888, %v4904
        %v4921 = vmul.f32 %v4889, %v4905
        %v4922 = vmul.f32 %v4890, %v4906
        %v4923 = vmul.f32 %v4891, %v4907
        %v4924 = vmul.f32 %v4892, %v4908
        %v4925 = vmul.f32 %v4893, %v4909
        %v4926 = vmul.f32 %v4894, %v4910
        %v4927 = vmul.f32 %v4895, %v4911
        %v4928 = vmul.f32 %v4896, %v4912
        %v4929 = vsub.f32 %v4496, %v4785
        %v4930 = vsub.f32 %v4497, %v4786
        %v4931 = vsub.f32 %v4498, %v4787
        %v4932 = vsub.f32 %v4499, %v4788
        %v4933 = vsub.f32 %v4500, %v4789
        %v4934 = vsub.f32 %v4501, %v4790
        %v4935 = vsub.f32 %v4502, %v4791
        %v4936 = vsub.f32 %v4503, %v4792
        %v4937 = vsub.f32 %v4504, %v4793
        %v4938 = vsub.f32 %v4505, %v4794
        %v4939 = vsub.f32 %v4506, %v4795
        %v4940 = vsub.f32 %v4507, %v4796
        %v4941 = vsub.f32 %v4508, %v4797
        %v4942 = vsub.f32 %v4509, %v4798
        %v4943 = vsub.f32 %v4510, %v4799
        %v4944 = vsub.f32 %v4511, %v4800
        %v4945 = vsub.f32 %v4512, %v4785
        %v4946 = vsub.f32 %v4513, %v4786
        %v4947 = vsub.f32 %v4514, %v4787
        %v4948 = vsub.f32 %v4515, %v4788
        %v4949 = vsub.f32 %v4516, %v4789
        %v4950 = vsub.f32 %v4517, %v4790
        %v4951 = vsub.f32 %v4518, %v4791
        %v4952 = vsub.f32 %v4519, %v4792
        %v4953 = vsub.f32 %v4520, %v4793
        %v4954 = vsub.f32 %v4521, %v4794
        %v4955 = vsub.f32 %v4522, %v4795
        %v4956 = vsub.f32 %v4523, %v4796
        %v4957 = vsub.f32 %v4524, %v4797
        %v4958 = vsub.f32 %v4525, %v4798
        %v4959 = vsub.f32 %v4526, %v4799
        %v4960 = vsub.f32 %v4527, %v4800
        %4962 = vset.pattern.permute.xlu0 0
        %4963 = vperm.xlu0 %4962, %v4913
        %v4964 = vpop.permute.xlu0 %4963
        %4967 = vset.pattern.permute.xlu0 0
        %4968 = vperm.xlu0 %4967, %v4914
        %v4969 = vpop.permute.xlu0 %4968
        %4972 = vset.pattern.permute.xlu0 0
        %4973 = vperm.xlu0 %4972, %v4915
        %v4974 = vpop.permute.xlu0 %4973
        %4977 = vset.pattern.permute.xlu0 0
        %4978 = vperm.xlu0 %4977, %v4916
        %v4979 = vpop.permute.xlu0 %4978
        %4982 = vset.pattern.permute.xlu0 0
        %4983 = vperm.xlu0 %4982, %v4917
        %v4984 = vpop.permute.xlu0 %4983
        %4987 = vset.pattern.permute.xlu0 0
        %4988 = vperm.xlu0 %4987, %v4918
        %v4989 = vpop.permute.xlu0 %4988
        %4992 = vset.pattern.permute.xlu0 0
        %4993 = vperm.xlu0 %4992, %v4919
        %v4994 = vpop.permute.xlu0 %4993
        %4997 = vset.pattern.permute.xlu0 0
        %4998 = vperm.xlu0 %4997, %v4920
        %v4999 = vpop.permute.xlu0 %4998
        %5002 = vset.pattern.permute.xlu0 0
        %5003 = vperm.xlu0 %5002, %v4921
        %v5004 = vpop.permute.xlu0 %5003
        %5007 = vset.pattern.permute.xlu0 0
        %5008 = vperm.xlu0 %5007, %v4922
        %v5009 = vpop.permute.xlu0 %5008
        %5012 = vset.pattern.permute.xlu0 0
        %5013 = vperm.xlu0 %5012, %v4923
        %v5014 = vpop.permute.xlu0 %5013
        %5017 = vset.pattern.permute.xlu0 0
        %5018 = vperm.xlu0 %5017, %v4924
        %v5019 = vpop.permute.xlu0 %5018
        %5022 = vset.pattern.permute.xlu0 0
        %5023 = vperm.xlu0 %5022, %v4925
        %v5024 = vpop.permute.xlu0 %5023
        %5027 = vset.pattern.permute.xlu0 0
        %5028 = vperm.xlu0 %5027, %v4926
        %v5029 = vpop.permute.xlu0 %5028
        %5032 = vset.pattern.permute.xlu0 0
        %5033 = vperm.xlu0 %5032, %v4927
        %v5034 = vpop.permute.xlu0 %5033
        %5037 = vset.pattern.permute.xlu0 0
        %5038 = vperm.xlu0 %5037, %v4928
        %v5039 = vpop.permute.xlu0 %5038
        %v5041 = vmul.f32 %v4929, %v4964
        %v5042 = vmul.f32 %v4930, %v4969
        %v5043 = vmul.f32 %v4931, %v4974
        %v5044 = vmul.f32 %v4932, %v4979
        %v5045 = vmul.f32 %v4933, %v4984
        %v5046 = vmul.f32 %v4934, %v4989
        %v5047 = vmul.f32 %v4935, %v4994
        %v5048 = vmul.f32 %v4936, %v4999
        %v5049 = vmul.f32 %v4937, %v5004
        %v5050 = vmul.f32 %v4938, %v5009
        %v5051 = vmul.f32 %v4939, %v5014
        %v5052 = vmul.f32 %v4940, %v5019
        %v5053 = vmul.f32 %v4941, %v5024
        %v5054 = vmul.f32 %v4942, %v5029
        %v5055 = vmul.f32 %v4943, %v5034
        %v5056 = vmul.f32 %v4944, %v5039
        %v5057 = vmul.f32 %v4945, %v4964
        %v5058 = vmul.f32 %v4946, %v4969
        %v5059 = vmul.f32 %v4947, %v4974
        %v5060 = vmul.f32 %v4948, %v4979
        %v5061 = vmul.f32 %v4949, %v4984
        %v5062 = vmul.f32 %v4950, %v4989
        %v5063 = vmul.f32 %v4951, %v4994
        %v5064 = vmul.f32 %v4952, %v4999
        %v5065 = vmul.f32 %v4953, %v5004
        %v5066 = vmul.f32 %v4954, %v5009
        %v5067 = vmul.f32 %v4955, %v5014
        %v5068 = vmul.f32 %v4956, %v5019
        %v5069 = vmul.f32 %v4957, %v5024
        %v5070 = vmul.f32 %v4958, %v5029
        %v5071 = vmul.f32 %v4959, %v5034
        %v5072 = vmul.f32 %v4960, %v5039
        %v5073 = vld [vmem:[%s907] sm:$0xff]
        %v5074 = vld [vmem:[%s907 + $0x8] sm:$0xff]
        %v5075 = vld [vmem:[%s907 + $0x10] sm:$0xff]
        %v5076 = vld [vmem:[%s907 + $0x18] sm:$0xff]
        %v5077 = vld [vmem:[%s907 + $0x20] sm:$0xff]
        %v5078 = vld [vmem:[%s907 + $0x28] sm:$0xff]
        %v5079 = vld [vmem:[%s907 + $0x30] sm:$0xff]
        %v5080 = vld [vmem:[%s907 + $0x38] sm:$0xff]
        %v5081 = vld [vmem:[%s907 + $0x40] sm:$0xff]
        %v5082 = vld [vmem:[%s907 + $0x48] sm:$0xff]
        %v5083 = vld [vmem:[%s907 + $0x50] sm:$0xff]
        %v5084 = vld [vmem:[%s907 + $0x58] sm:$0xff]
        %v5085 = vld [vmem:[%s907 + $0x60] sm:$0xff]
        %v5086 = vld [vmem:[%s907 + $0x68] sm:$0xff]
        %v5087 = vld [vmem:[%s907 + $0x70] sm:$0xff]
        %v5088 = vld [vmem:[%s907 + $0x78] sm:$0xff]
        %5090 = vset.pattern.permute.xlu0 0
        %5091 = vperm.xlu0 %5090, %v5073
        %v5092 = vpop.permute.xlu0 %5091
        %5095 = vset.pattern.permute.xlu0 0
        %5096 = vperm.xlu0 %5095, %v5074
        %v5097 = vpop.permute.xlu0 %5096
        %5100 = vset.pattern.permute.xlu0 0
        %5101 = vperm.xlu0 %5100, %v5075
        %v5102 = vpop.permute.xlu0 %5101
        %5105 = vset.pattern.permute.xlu0 0
        %5106 = vperm.xlu0 %5105, %v5076
        %v5107 = vpop.permute.xlu0 %5106
        %5110 = vset.pattern.permute.xlu0 0
        %5111 = vperm.xlu0 %5110, %v5077
        %v5112 = vpop.permute.xlu0 %5111
        %5115 = vset.pattern.permute.xlu0 0
        %5116 = vperm.xlu0 %5115, %v5078
        %v5117 = vpop.permute.xlu0 %5116
        %5120 = vset.pattern.permute.xlu0 0
        %5121 = vperm.xlu0 %5120, %v5079
        %v5122 = vpop.permute.xlu0 %5121
        %5125 = vset.pattern.permute.xlu0 0
        %5126 = vperm.xlu0 %5125, %v5080
        %v5127 = vpop.permute.xlu0 %5126
        %5130 = vset.pattern.permute.xlu0 0
        %5131 = vperm.xlu0 %5130, %v5081
        %v5132 = vpop.permute.xlu0 %5131
        %5135 = vset.pattern.permute.xlu0 0
        %5136 = vperm.xlu0 %5135, %v5082
        %v5137 = vpop.permute.xlu0 %5136
        %5140 = vset.pattern.permute.xlu0 0
        %5141 = vperm.xlu0 %5140, %v5083
        %v5142 = vpop.permute.xlu0 %5141
        %5145 = vset.pattern.permute.xlu0 0
        %5146 = vperm.xlu0 %5145, %v5084
        %v5147 = vpop.permute.xlu0 %5146
        %5150 = vset.pattern.permute.xlu0 0
        %5151 = vperm.xlu0 %5150, %v5085
        %v5152 = vpop.permute.xlu0 %5151
        %5155 = vset.pattern.permute.xlu0 0
        %5156 = vperm.xlu0 %5155, %v5086
        %v5157 = vpop.permute.xlu0 %5156
        %5160 = vset.pattern.permute.xlu0 0
        %5161 = vperm.xlu0 %5160, %v5087
        %v5162 = vpop.permute.xlu0 %5161
        %5165 = vset.pattern.permute.xlu0 0
        %5166 = vperm.xlu0 %5165, %v5088
        %v5167 = vpop.permute.xlu0 %5166
        %v5169 = vadd.f32 %v5041, %v5092
        %v5170 = vadd.f32 %v5042, %v5097
        %v5171 = vadd.f32 %v5043, %v5102
        %v5172 = vadd.f32 %v5044, %v5107
        %v5173 = vadd.f32 %v5045, %v5112
        %v5174 = vadd.f32 %v5046, %v5117
        %v5175 = vadd.f32 %v5047, %v5122
        %v5176 = vadd.f32 %v5048, %v5127
        %v5177 = vadd.f32 %v5049, %v5132
        %v5178 = vadd.f32 %v5050, %v5137
        %v5179 = vadd.f32 %v5051, %v5142
        %v5180 = vadd.f32 %v5052, %v5147
        %v5181 = vadd.f32 %v5053, %v5152
        %v5182 = vadd.f32 %v5054, %v5157
        %v5183 = vadd.f32 %v5055, %v5162
        %v5184 = vadd.f32 %v5056, %v5167
        %v5185 = vadd.f32 %v5057, %v5092
        %v5186 = vadd.f32 %v5058, %v5097
        %v5187 = vadd.f32 %v5059, %v5102
        %v5188 = vadd.f32 %v5060, %v5107
        %v5189 = vadd.f32 %v5061, %v5112
        %v5190 = vadd.f32 %v5062, %v5117
        %v5191 = vadd.f32 %v5063, %v5122
        %v5192 = vadd.f32 %v5064, %v5127
        %v5193 = vadd.f32 %v5065, %v5132
        %v5194 = vadd.f32 %v5066, %v5137
        %v5195 = vadd.f32 %v5067, %v5142
        %v5196 = vadd.f32 %v5068, %v5147
        %v5197 = vadd.f32 %v5069, %v5152
        %v5198 = vadd.f32 %v5070, %v5157
        %v5199 = vadd.f32 %v5071, %v5162
        %v5200 = vadd.f32 %v5072, %v5167
        %s5201 = sld [smem:[#allocation3 + $0x2]]
        %s5202 = smul.u32 %s39, 8192
        %v5203 = vmul.u32 %v1957, 32
        %v5204 = vmul.u32 %v1958, 32
        %v5205 = vmul.u32 %v1959, 32
        %v5206 = vmul.u32 %v1960, 32
        %v5207 = vmul.u32 %v1961, 32
        %v5208 = vmul.u32 %v1962, 32
        %v5209 = vmul.u32 %v1963, 32
        %v5210 = vmul.u32 %v1964, 32
        %v5211 = vmul.u32 %v1965, 32
        %v5212 = vmul.u32 %v1966, 32
        %v5213 = vmul.u32 %v1967, 32
        %v5214 = vmul.u32 %v1968, 32
        %v5215 = vmul.u32 %v1969, 32
        %v5216 = vmul.u32 %v1970, 32
        %v5217 = vmul.u32 %v1971, 32
        %v5218 = vmul.u32 %v1972, 32
        %v5219 = vmul.u32 %v1973, 32
        %v5220 = vmul.u32 %v1974, 32
        %v5221 = vmul.u32 %v1975, 32
        %v5222 = vmul.u32 %v1976, 32
        %v5223 = vmul.u32 %v1977, 32
        %v5224 = vmul.u32 %v1978, 32
        %v5225 = vmul.u32 %v1979, 32
        %v5226 = vmul.u32 %v1980, 32
        %v5227 = vmul.u32 %v1981, 32
        %v5228 = vmul.u32 %v1982, 32
        %v5229 = vmul.u32 %v1983, 32
        %v5230 = vmul.u32 %v1984, 32
        %v5231 = vmul.u32 %v1985, 32
        %v5232 = vmul.u32 %v1986, 32
        %v5233 = vmul.u32 %v1987, 32
        %v5234 = vmul.u32 %v1988, 32
        %v5235 = vstv %s5202
        %v5236 = vadd.s32 %v5235, %v5203
        %v5237 = vadd.s32 %v5235, %v5204
        %v5238 = vadd.s32 %v5235, %v5205
        %v5239 = vadd.s32 %v5235, %v5206
        %v5240 = vadd.s32 %v5235, %v5207
        %v5241 = vadd.s32 %v5235, %v5208
        %v5242 = vadd.s32 %v5235, %v5209
        %v5243 = vadd.s32 %v5235, %v5210
        %v5244 = vadd.s32 %v5235, %v5211
        %v5245 = vadd.s32 %v5235, %v5212
        %v5246 = vadd.s32 %v5235, %v5213
        %v5247 = vadd.s32 %v5235, %v5214
        %v5248 = vadd.s32 %v5235, %v5215
        %v5249 = vadd.s32 %v5235, %v5216
        %v5250 = vadd.s32 %v5235, %v5217
        %v5251 = vadd.s32 %v5235, %v5218
        %v5252 = vadd.s32 %v5235, %v5219
        %v5253 = vadd.s32 %v5235, %v5220
        %v5254 = vadd.s32 %v5235, %v5221
        %v5255 = vadd.s32 %v5235, %v5222
        %v5256 = vadd.s32 %v5235, %v5223
        %v5257 = vadd.s32 %v5235, %v5224
        %v5258 = vadd.s32 %v5235, %v5225
        %v5259 = vadd.s32 %v5235, %v5226
        %v5260 = vadd.s32 %v5235, %v5227
        %v5261 = vadd.s32 %v5235, %v5228
        %v5262 = vadd.s32 %v5235, %v5229
        %v5263 = vadd.s32 %v5235, %v5230
        %v5264 = vadd.s32 %v5235, %v5231
        %v5265 = vadd.s32 %v5235, %v5232
        %v5266 = vadd.s32 %v5235, %v5233
        %v5267 = vadd.s32 %v5235, %v5234
        %v5268 = vadd.s32 %v5236, %v1990
        %v5269 = vadd.s32 %v5237, %v1990
        %v5270 = vadd.s32 %v5238, %v1990
        %v5271 = vadd.s32 %v5239, %v1990
        %v5272 = vadd.s32 %v5240, %v1990
        %v5273 = vadd.s32 %v5241, %v1990
        %v5274 = vadd.s32 %v5242, %v1990
        %v5275 = vadd.s32 %v5243, %v1990
        %v5276 = vadd.s32 %v5244, %v1990
        %v5277 = vadd.s32 %v5245, %v1990
        %v5278 = vadd.s32 %v5246, %v1990
        %v5279 = vadd.s32 %v5247, %v1990
        %v5280 = vadd.s32 %v5248, %v1990
        %v5281 = vadd.s32 %v5249, %v1990
        %v5282 = vadd.s32 %v5250, %v1990
        %v5283 = vadd.s32 %v5251, %v1990
        %v5284 = vadd.s32 %v5252, %v1990
        %v5285 = vadd.s32 %v5253, %v1990
        %v5286 = vadd.s32 %v5254, %v1990
        %v5287 = vadd.s32 %v5255, %v1990
        %v5288 = vadd.s32 %v5256, %v1990
        %v5289 = vadd.s32 %v5257, %v1990
        %v5290 = vadd.s32 %v5258, %v1990
        %v5291 = vadd.s32 %v5259, %v1990
        %v5292 = vadd.s32 %v5260, %v1990
        %v5293 = vadd.s32 %v5261, %v1990
        %v5294 = vadd.s32 %v5262, %v1990
        %v5295 = vadd.s32 %v5263, %v1990
        %v5296 = vadd.s32 %v5264, %v1990
        %v5297 = vadd.s32 %v5265, %v1990
        %v5298 = vadd.s32 %v5266, %v1990
        %v5299 = vadd.s32 %v5267, %v1990
        %s5300 = smul.u32 %s5201, 2654435769
        %v5301 = vstv %s5300
        %v5302 = vxor.u32 %v5268, %v5301
        %v5303 = vxor.u32 %v5269, %v5301
        %v5304 = vxor.u32 %v5270, %v5301
        %v5305 = vxor.u32 %v5271, %v5301
        %v5306 = vxor.u32 %v5272, %v5301
        %v5307 = vxor.u32 %v5273, %v5301
        %v5308 = vxor.u32 %v5274, %v5301
        %v5309 = vxor.u32 %v5275, %v5301
        %v5310 = vxor.u32 %v5276, %v5301
        %v5311 = vxor.u32 %v5277, %v5301
        %v5312 = vxor.u32 %v5278, %v5301
        %v5313 = vxor.u32 %v5279, %v5301
        %v5314 = vxor.u32 %v5280, %v5301
        %v5315 = vxor.u32 %v5281, %v5301
        %v5316 = vxor.u32 %v5282, %v5301
        %v5317 = vxor.u32 %v5283, %v5301
        %v5318 = vxor.u32 %v5284, %v5301
        %v5319 = vxor.u32 %v5285, %v5301
        %v5320 = vxor.u32 %v5286, %v5301
        %v5321 = vxor.u32 %v5287, %v5301
        %v5322 = vxor.u32 %v5288, %v5301
        %v5323 = vxor.u32 %v5289, %v5301
        %v5324 = vxor.u32 %v5290, %v5301
        %v5325 = vxor.u32 %v5291, %v5301
        %v5326 = vxor.u32 %v5292, %v5301
        %v5327 = vxor.u32 %v5293, %v5301
        %v5328 = vxor.u32 %v5294, %v5301
        %v5329 = vxor.u32 %v5295, %v5301
        %v5330 = vxor.u32 %v5296, %v5301
        %v5331 = vxor.u32 %v5297, %v5301
        %v5332 = vxor.u32 %v5298, %v5301
        %v5333 = vxor.u32 %v5299, %v5301
        %v5334 = vshra.s32 %v5302, 16
        %v5335 = vshra.s32 %v5303, 16
        %v5336 = vshra.s32 %v5304, 16
        %v5337 = vshra.s32 %v5305, 16
        %v5338 = vshra.s32 %v5306, 16
        %v5339 = vshra.s32 %v5307, 16
        %v5340 = vshra.s32 %v5308, 16
        %v5341 = vshra.s32 %v5309, 16
        %v5342 = vshra.s32 %v5310, 16
        %v5343 = vshra.s32 %v5311, 16
        %v5344 = vshra.s32 %v5312, 16
        %v5345 = vshra.s32 %v5313, 16
        %v5346 = vshra.s32 %v5314, 16
        %v5347 = vshra.s32 %v5315, 16
        %v5348 = vshra.s32 %v5316, 16
        %v5349 = vshra.s32 %v5317, 16
        %v5350 = vshra.s32 %v5318, 16
        %v5351 = vshra.s32 %v5319, 16
        %v5352 = vshra.s32 %v5320, 16
        %v5353 = vshra.s32 %v5321, 16
        %v5354 = vshra.s32 %v5322, 16
        %v5355 = vshra.s32 %v5323, 16
        %v5356 = vshra.s32 %v5324, 16
        %v5357 = vshra.s32 %v5325, 16
        %v5358 = vshra.s32 %v5326, 16
        %v5359 = vshra.s32 %v5327, 16
        %v5360 = vshra.s32 %v5328, 16
        %v5361 = vshra.s32 %v5329, 16
        %v5362 = vshra.s32 %v5330, 16
        %v5363 = vshra.s32 %v5331, 16
        %v5364 = vshra.s32 %v5332, 16
        %v5365 = vshra.s32 %v5333, 16
        %v5366 = vand.u32 %v5334, 65535
        %v5367 = vand.u32 %v5335, 65535
        %v5368 = vand.u32 %v5336, 65535
        %v5369 = vand.u32 %v5337, 65535
        %v5370 = vand.u32 %v5338, 65535
        %v5371 = vand.u32 %v5339, 65535
        %v5372 = vand.u32 %v5340, 65535
        %v5373 = vand.u32 %v5341, 65535
        %v5374 = vand.u32 %v5342, 65535
        %v5375 = vand.u32 %v5343, 65535
        %v5376 = vand.u32 %v5344, 65535
        %v5377 = vand.u32 %v5345, 65535
        %v5378 = vand.u32 %v5346, 65535
        %v5379 = vand.u32 %v5347, 65535
        %v5380 = vand.u32 %v5348, 65535
        %v5381 = vand.u32 %v5349, 65535
        %v5382 = vand.u32 %v5350, 65535
        %v5383 = vand.u32 %v5351, 65535
        %v5384 = vand.u32 %v5352, 65535
        %v5385 = vand.u32 %v5353, 65535
        %v5386 = vand.u32 %v5354, 65535
        %v5387 = vand.u32 %v5355, 65535
        %v5388 = vand.u32 %v5356, 65535
        %v5389 = vand.u32 %v5357, 65535
        %v5390 = vand.u32 %v5358, 65535
        %v5391 = vand.u32 %v5359, 65535
        %v5392 = vand.u32 %v5360, 65535
        %v5393 = vand.u32 %v5361, 65535
        %v5394 = vand.u32 %v5362, 65535
        %v5395 = vand.u32 %v5363, 65535
        %v5396 = vand.u32 %v5364, 65535
        %v5397 = vand.u32 %v5365, 65535
        %v5398 = vxor.u32 %v5302, %v5366
        %v5399 = vxor.u32 %v5303, %v5367
        %v5400 = vxor.u32 %v5304, %v5368
        %v5401 = vxor.u32 %v5305, %v5369
        %v5402 = vxor.u32 %v5306, %v5370
        %v5403 = vxor.u32 %v5307, %v5371
        %v5404 = vxor.u32 %v5308, %v5372
        %v5405 = vxor.u32 %v5309, %v5373
        %v5406 = vxor.u32 %v5310, %v5374
        %v5407 = vxor.u32 %v5311, %v5375
        %v5408 = vxor.u32 %v5312, %v5376
        %v5409 = vxor.u32 %v5313, %v5377
        %v5410 = vxor.u32 %v5314, %v5378
        %v5411 = vxor.u32 %v5315, %v5379
        %v5412 = vxor.u32 %v5316, %v5380
        %v5413 = vxor.u32 %v5317, %v5381
        %v5414 = vxor.u32 %v5318, %v5382
        %v5415 = vxor.u32 %v5319, %v5383
        %v5416 = vxor.u32 %v5320, %v5384
        %v5417 = vxor.u32 %v5321, %v5385
        %v5418 = vxor.u32 %v5322, %v5386
        %v5419 = vxor.u32 %v5323, %v5387
        %v5420 = vxor.u32 %v5324, %v5388
        %v5421 = vxor.u32 %v5325, %v5389
        %v5422 = vxor.u32 %v5326, %v5390
        %v5423 = vxor.u32 %v5327, %v5391
        %v5424 = vxor.u32 %v5328, %v5392
        %v5425 = vxor.u32 %v5329, %v5393
        %v5426 = vxor.u32 %v5330, %v5394
        %v5427 = vxor.u32 %v5331, %v5395
        %v5428 = vxor.u32 %v5332, %v5396
        %v5429 = vxor.u32 %v5333, %v5397
        %v5430 = vmul.u32 %v5398, 2246822507
        %v5431 = vmul.u32 %v5399, 2246822507
        %v5432 = vmul.u32 %v5400, 2246822507
        %v5433 = vmul.u32 %v5401, 2246822507
        %v5434 = vmul.u32 %v5402, 2246822507
        %v5435 = vmul.u32 %v5403, 2246822507
        %v5436 = vmul.u32 %v5404, 2246822507
        %v5437 = vmul.u32 %v5405, 2246822507
        %v5438 = vmul.u32 %v5406, 2246822507
        %v5439 = vmul.u32 %v5407, 2246822507
        %v5440 = vmul.u32 %v5408, 2246822507
        %v5441 = vmul.u32 %v5409, 2246822507
        %v5442 = vmul.u32 %v5410, 2246822507
        %v5443 = vmul.u32 %v5411, 2246822507
        %v5444 = vmul.u32 %v5412, 2246822507
        %v5445 = vmul.u32 %v5413, 2246822507
        %v5446 = vmul.u32 %v5414, 2246822507
        %v5447 = vmul.u32 %v5415, 2246822507
        %v5448 = vmul.u32 %v5416, 2246822507
        %v5449 = vmul.u32 %v5417, 2246822507
        %v5450 = vmul.u32 %v5418, 2246822507
        %v5451 = vmul.u32 %v5419, 2246822507
        %v5452 = vmul.u32 %v5420, 2246822507
        %v5453 = vmul.u32 %v5421, 2246822507
        %v5454 = vmul.u32 %v5422, 2246822507
        %v5455 = vmul.u32 %v5423, 2246822507
        %v5456 = vmul.u32 %v5424, 2246822507
        %v5457 = vmul.u32 %v5425, 2246822507
        %v5458 = vmul.u32 %v5426, 2246822507
        %v5459 = vmul.u32 %v5427, 2246822507
        %v5460 = vmul.u32 %v5428, 2246822507
        %v5461 = vmul.u32 %v5429, 2246822507
        %v5462 = vshra.s32 %v5430, 13
        %v5463 = vshra.s32 %v5431, 13
        %v5464 = vshra.s32 %v5432, 13
        %v5465 = vshra.s32 %v5433, 13
        %v5466 = vshra.s32 %v5434, 13
        %v5467 = vshra.s32 %v5435, 13
        %v5468 = vshra.s32 %v5436, 13
        %v5469 = vshra.s32 %v5437, 13
        %v5470 = vshra.s32 %v5438, 13
        %v5471 = vshra.s32 %v5439, 13
        %v5472 = vshra.s32 %v5440, 13
        %v5473 = vshra.s32 %v5441, 13
        %v5474 = vshra.s32 %v5442, 13
        %v5475 = vshra.s32 %v5443, 13
        %v5476 = vshra.s32 %v5444, 13
        %v5477 = vshra.s32 %v5445, 13
        %v5478 = vshra.s32 %v5446, 13
        %v5479 = vshra.s32 %v5447, 13
        %v5480 = vshra.s32 %v5448, 13
        %v5481 = vshra.s32 %v5449, 13
        %v5482 = vshra.s32 %v5450, 13
        %v5483 = vshra.s32 %v5451, 13
        %v5484 = vshra.s32 %v5452, 13
        %v5485 = vshra.s32 %v5453, 13
        %v5486 = vshra.s32 %v5454, 13
        %v5487 = vshra.s32 %v5455, 13
        %v5488 = vshra.s32 %v5456, 13
        %v5489 = vshra.s32 %v5457, 13
        %v5490 = vshra.s32 %v5458, 13
        %v5491 = vshra.s32 %v5459, 13
        %v5492 = vshra.s32 %v5460, 13
        %v5493 = vshra.s32 %v5461, 13
        %v5494 = vand.u32 %v5462, 524287
        %v5495 = vand.u32 %v5463, 524287
        %v5496 = vand.u32 %v5464, 524287
        %v5497 = vand.u32 %v5465, 524287
        %v5498 = vand.u32 %v5466, 524287
        %v5499 = vand.u32 %v5467, 524287
        %v5500 = vand.u32 %v5468, 524287
        %v5501 = vand.u32 %v5469, 524287
        %v5502 = vand.u32 %v5470, 524287
        %v5503 = vand.u32 %v5471, 524287
        %v5504 = vand.u32 %v5472, 524287
        %v5505 = vand.u32 %v5473, 524287
        %v5506 = vand.u32 %v5474, 524287
        %v5507 = vand.u32 %v5475, 524287
        %v5508 = vand.u32 %v5476, 524287
        %v5509 = vand.u32 %v5477, 524287
        %v5510 = vand.u32 %v5478, 524287
        %v5511 = vand.u32 %v5479, 524287
        %v5512 = vand.u32 %v5480, 524287
        %v5513 = vand.u32 %v5481, 524287
        %v5514 = vand.u32 %v5482, 524287
        %v5515 = vand.u32 %v5483, 524287
        %v5516 = vand.u32 %v5484, 524287
        %v5517 = vand.u32 %v5485, 524287
        %v5518 = vand.u32 %v5486, 524287
        %v5519 = vand.u32 %v5487, 524287
        %v5520 = vand.u32 %v5488, 524287
        %v5521 = vand.u32 %v5489, 524287
        %v5522 = vand.u32 %v5490, 524287
        %v5523 = vand.u32 %v5491, 524287
        %v5524 = vand.u32 %v5492, 524287
        %v5525 = vand.u32 %v5493, 524287
        %v5526 = vxor.u32 %v5430, %v5494
        %v5527 = vxor.u32 %v5431, %v5495
        %v5528 = vxor.u32 %v5432, %v5496
        %v5529 = vxor.u32 %v5433, %v5497
        %v5530 = vxor.u32 %v5434, %v5498
        %v5531 = vxor.u32 %v5435, %v5499
        %v5532 = vxor.u32 %v5436, %v5500
        %v5533 = vxor.u32 %v5437, %v5501
        %v5534 = vxor.u32 %v5438, %v5502
        %v5535 = vxor.u32 %v5439, %v5503
        %v5536 = vxor.u32 %v5440, %v5504
        %v5537 = vxor.u32 %v5441, %v5505
        %v5538 = vxor.u32 %v5442, %v5506
        %v5539 = vxor.u32 %v5443, %v5507
        %v5540 = vxor.u32 %v5444, %v5508
        %v5541 = vxor.u32 %v5445, %v5509
        %v5542 = vxor.u32 %v5446, %v5510
        %v5543 = vxor.u32 %v5447, %v5511
        %v5544 = vxor.u32 %v5448, %v5512
        %v5545 = vxor.u32 %v5449, %v5513
        %v5546 = vxor.u32 %v5450, %v5514
        %v5547 = vxor.u32 %v5451, %v5515
        %v5548 = vxor.u32 %v5452, %v5516
        %v5549 = vxor.u32 %v5453, %v5517
        %v5550 = vxor.u32 %v5454, %v5518
        %v5551 = vxor.u32 %v5455, %v5519
        %v5552 = vxor.u32 %v5456, %v5520
        %v5553 = vxor.u32 %v5457, %v5521
        %v5554 = vxor.u32 %v5458, %v5522
        %v5555 = vxor.u32 %v5459, %v5523
        %v5556 = vxor.u32 %v5460, %v5524
        %v5557 = vxor.u32 %v5461, %v5525
        %v5558 = vmul.u32 %v5526, 3266489909
        %v5559 = vmul.u32 %v5527, 3266489909
        %v5560 = vmul.u32 %v5528, 3266489909
        %v5561 = vmul.u32 %v5529, 3266489909
        %v5562 = vmul.u32 %v5530, 3266489909
        %v5563 = vmul.u32 %v5531, 3266489909
        %v5564 = vmul.u32 %v5532, 3266489909
        %v5565 = vmul.u32 %v5533, 3266489909
        %v5566 = vmul.u32 %v5534, 3266489909
        %v5567 = vmul.u32 %v5535, 3266489909
        %v5568 = vmul.u32 %v5536, 3266489909
        %v5569 = vmul.u32 %v5537, 3266489909
        %v5570 = vmul.u32 %v5538, 3266489909
        %v5571 = vmul.u32 %v5539, 3266489909
        %v5572 = vmul.u32 %v5540, 3266489909
        %v5573 = vmul.u32 %v5541, 3266489909
        %v5574 = vmul.u32 %v5542, 3266489909
        %v5575 = vmul.u32 %v5543, 3266489909
        %v5576 = vmul.u32 %v5544, 3266489909
        %v5577 = vmul.u32 %v5545, 3266489909
        %v5578 = vmul.u32 %v5546, 3266489909
        %v5579 = vmul.u32 %v5547, 3266489909
        %v5580 = vmul.u32 %v5548, 3266489909
        %v5581 = vmul.u32 %v5549, 3266489909
        %v5582 = vmul.u32 %v5550, 3266489909
        %v5583 = vmul.u32 %v5551, 3266489909
        %v5584 = vmul.u32 %v5552, 3266489909
        %v5585 = vmul.u32 %v5553, 3266489909
        %v5586 = vmul.u32 %v5554, 3266489909
        %v5587 = vmul.u32 %v5555, 3266489909
        %v5588 = vmul.u32 %v5556, 3266489909
        %v5589 = vmul.u32 %v5557, 3266489909
        %v5590 = vshra.s32 %v5558, 16
        %v5591 = vshra.s32 %v5559, 16
        %v5592 = vshra.s32 %v5560, 16
        %v5593 = vshra.s32 %v5561, 16
        %v5594 = vshra.s32 %v5562, 16
        %v5595 = vshra.s32 %v5563, 16
        %v5596 = vshra.s32 %v5564, 16
        %v5597 = vshra.s32 %v5565, 16
        %v5598 = vshra.s32 %v5566, 16
        %v5599 = vshra.s32 %v5567, 16
        %v5600 = vshra.s32 %v5568, 16
        %v5601 = vshra.s32 %v5569, 16
        %v5602 = vshra.s32 %v5570, 16
        %v5603 = vshra.s32 %v5571, 16
        %v5604 = vshra.s32 %v5572, 16
        %v5605 = vshra.s32 %v5573, 16
        %v5606 = vshra.s32 %v5574, 16
        %v5607 = vshra.s32 %v5575, 16
        %v5608 = vshra.s32 %v5576, 16
        %v5609 = vshra.s32 %v5577, 16
        %v5610 = vshra.s32 %v5578, 16
        %v5611 = vshra.s32 %v5579, 16
        %v5612 = vshra.s32 %v5580, 16
        %v5613 = vshra.s32 %v5581, 16
        %v5614 = vshra.s32 %v5582, 16
        %v5615 = vshra.s32 %v5583, 16
        %v5616 = vshra.s32 %v5584, 16
        %v5617 = vshra.s32 %v5585, 16
        %v5618 = vshra.s32 %v5586, 16
        %v5619 = vshra.s32 %v5587, 16
        %v5620 = vshra.s32 %v5588, 16
        %v5621 = vshra.s32 %v5589, 16
        %v5622 = vand.u32 %v5590, 65535
        %v5623 = vand.u32 %v5591, 65535
        %v5624 = vand.u32 %v5592, 65535
        %v5625 = vand.u32 %v5593, 65535
        %v5626 = vand.u32 %v5594, 65535
        %v5627 = vand.u32 %v5595, 65535
        %v5628 = vand.u32 %v5596, 65535
        %v5629 = vand.u32 %v5597, 65535
        %v5630 = vand.u32 %v5598, 65535
        %v5631 = vand.u32 %v5599, 65535
        %v5632 = vand.u32 %v5600, 65535
        %v5633 = vand.u32 %v5601, 65535
        %v5634 = vand.u32 %v5602, 65535
        %v5635 = vand.u32 %v5603, 65535
        %v5636 = vand.u32 %v5604, 65535
        %v5637 = vand.u32 %v5605, 65535
        %v5638 = vand.u32 %v5606, 65535
        %v5639 = vand.u32 %v5607, 65535
        %v5640 = vand.u32 %v5608, 65535
        %v5641 = vand.u32 %v5609, 65535
        %v5642 = vand.u32 %v5610, 65535
        %v5643 = vand.u32 %v5611, 65535
        %v5644 = vand.u32 %v5612, 65535
        %v5645 = vand.u32 %v5613, 65535
        %v5646 = vand.u32 %v5614, 65535
        %v5647 = vand.u32 %v5615, 65535
        %v5648 = vand.u32 %v5616, 65535
        %v5649 = vand.u32 %v5617, 65535
        %v5650 = vand.u32 %v5618, 65535
        %v5651 = vand.u32 %v5619, 65535
        %v5652 = vand.u32 %v5620, 65535
        %v5653 = vand.u32 %v5621, 65535
        %v5654 = vxor.u32 %v5558, %v5622
        %v5655 = vxor.u32 %v5559, %v5623
        %v5656 = vxor.u32 %v5560, %v5624
        %v5657 = vxor.u32 %v5561, %v5625
        %v5658 = vxor.u32 %v5562, %v5626
        %v5659 = vxor.u32 %v5563, %v5627
        %v5660 = vxor.u32 %v5564, %v5628
        %v5661 = vxor.u32 %v5565, %v5629
        %v5662 = vxor.u32 %v5566, %v5630
        %v5663 = vxor.u32 %v5567, %v5631
        %v5664 = vxor.u32 %v5568, %v5632
        %v5665 = vxor.u32 %v5569, %v5633
        %v5666 = vxor.u32 %v5570, %v5634
        %v5667 = vxor.u32 %v5571, %v5635
        %v5668 = vxor.u32 %v5572, %v5636
        %v5669 = vxor.u32 %v5573, %v5637
        %v5670 = vxor.u32 %v5574, %v5638
        %v5671 = vxor.u32 %v5575, %v5639
        %v5672 = vxor.u32 %v5576, %v5640
        %v5673 = vxor.u32 %v5577, %v5641
        %v5674 = vxor.u32 %v5578, %v5642
        %v5675 = vxor.u32 %v5579, %v5643
        %v5676 = vxor.u32 %v5580, %v5644
        %v5677 = vxor.u32 %v5581, %v5645
        %v5678 = vxor.u32 %v5582, %v5646
        %v5679 = vxor.u32 %v5583, %v5647
        %v5680 = vxor.u32 %v5584, %v5648
        %v5681 = vxor.u32 %v5585, %v5649
        %v5682 = vxor.u32 %v5586, %v5650
        %v5683 = vxor.u32 %v5587, %v5651
        %v5684 = vxor.u32 %v5588, %v5652
        %v5685 = vxor.u32 %v5589, %v5653
        %v5686 = vand.u32 %v5654, 16777215
        %v5687 = vand.u32 %v5655, 16777215
        %v5688 = vand.u32 %v5656, 16777215
        %v5689 = vand.u32 %v5657, 16777215
        %v5690 = vand.u32 %v5658, 16777215
        %v5691 = vand.u32 %v5659, 16777215
        %v5692 = vand.u32 %v5660, 16777215
        %v5693 = vand.u32 %v5661, 16777215
        %v5694 = vand.u32 %v5662, 16777215
        %v5695 = vand.u32 %v5663, 16777215
        %v5696 = vand.u32 %v5664, 16777215
        %v5697 = vand.u32 %v5665, 16777215
        %v5698 = vand.u32 %v5666, 16777215
        %v5699 = vand.u32 %v5667, 16777215
        %v5700 = vand.u32 %v5668, 16777215
        %v5701 = vand.u32 %v5669, 16777215
        %v5702 = vand.u32 %v5670, 16777215
        %v5703 = vand.u32 %v5671, 16777215
        %v5704 = vand.u32 %v5672, 16777215
        %v5705 = vand.u32 %v5673, 16777215
        %v5706 = vand.u32 %v5674, 16777215
        %v5707 = vand.u32 %v5675, 16777215
        %v5708 = vand.u32 %v5676, 16777215
        %v5709 = vand.u32 %v5677, 16777215
        %v5710 = vand.u32 %v5678, 16777215
        %v5711 = vand.u32 %v5679, 16777215
        %v5712 = vand.u32 %v5680, 16777215
        %v5713 = vand.u32 %v5681, 16777215
        %v5714 = vand.u32 %v5682, 16777215
        %v5715 = vand.u32 %v5683, 16777215
        %v5716 = vand.u32 %v5684, 16777215
        %v5717 = vand.u32 %v5685, 16777215
        %vm5718 = vcmp.ge.s32.totalorder %v5686, 1677722
        %vm5719 = vcmp.ge.s32.totalorder %v5687, 1677722
        %vm5720 = vcmp.ge.s32.totalorder %v5688, 1677722
        %vm5721 = vcmp.ge.s32.totalorder %v5689, 1677722
        %vm5722 = vcmp.ge.s32.totalorder %v5690, 1677722
        %vm5723 = vcmp.ge.s32.totalorder %v5691, 1677722
        %vm5724 = vcmp.ge.s32.totalorder %v5692, 1677722
        %vm5725 = vcmp.ge.s32.totalorder %v5693, 1677722
        %vm5726 = vcmp.ge.s32.totalorder %v5694, 1677722
        %vm5727 = vcmp.ge.s32.totalorder %v5695, 1677722
        %vm5728 = vcmp.ge.s32.totalorder %v5696, 1677722
        %vm5729 = vcmp.ge.s32.totalorder %v5697, 1677722
        %vm5730 = vcmp.ge.s32.totalorder %v5698, 1677722
        %vm5731 = vcmp.ge.s32.totalorder %v5699, 1677722
        %vm5732 = vcmp.ge.s32.totalorder %v5700, 1677722
        %vm5733 = vcmp.ge.s32.totalorder %v5701, 1677722
        %vm5734 = vcmp.ge.s32.totalorder %v5702, 1677722
        %vm5735 = vcmp.ge.s32.totalorder %v5703, 1677722
        %vm5736 = vcmp.ge.s32.totalorder %v5704, 1677722
        %vm5737 = vcmp.ge.s32.totalorder %v5705, 1677722
        %vm5738 = vcmp.ge.s32.totalorder %v5706, 1677722
        %vm5739 = vcmp.ge.s32.totalorder %v5707, 1677722
        %vm5740 = vcmp.ge.s32.totalorder %v5708, 1677722
        %vm5741 = vcmp.ge.s32.totalorder %v5709, 1677722
        %vm5742 = vcmp.ge.s32.totalorder %v5710, 1677722
        %vm5743 = vcmp.ge.s32.totalorder %v5711, 1677722
        %vm5744 = vcmp.ge.s32.totalorder %v5712, 1677722
        %vm5745 = vcmp.ge.s32.totalorder %v5713, 1677722
        %vm5746 = vcmp.ge.s32.totalorder %v5714, 1677722
        %vm5747 = vcmp.ge.s32.totalorder %v5715, 1677722
        %vm5748 = vcmp.ge.s32.totalorder %v5716, 1677722
        %vm5749 = vcmp.ge.s32.totalorder %v5717, 1677722
        %v5750 = vmul.f32 %v5169, 1.1111112
        %v5751 = vmul.f32 %v5170, 1.1111112
        %v5752 = vmul.f32 %v5171, 1.1111112
        %v5753 = vmul.f32 %v5172, 1.1111112
        %v5754 = vmul.f32 %v5173, 1.1111112
        %v5755 = vmul.f32 %v5174, 1.1111112
        %v5756 = vmul.f32 %v5175, 1.1111112
        %v5757 = vmul.f32 %v5176, 1.1111112
        %v5758 = vmul.f32 %v5177, 1.1111112
        %v5759 = vmul.f32 %v5178, 1.1111112
        %v5760 = vmul.f32 %v5179, 1.1111112
        %v5761 = vmul.f32 %v5180, 1.1111112
        %v5762 = vmul.f32 %v5181, 1.1111112
        %v5763 = vmul.f32 %v5182, 1.1111112
        %v5764 = vmul.f32 %v5183, 1.1111112
        %v5765 = vmul.f32 %v5184, 1.1111112
        %v5766 = vmul.f32 %v5185, 1.1111112
        %v5767 = vmul.f32 %v5186, 1.1111112
        %v5768 = vmul.f32 %v5187, 1.1111112
        %v5769 = vmul.f32 %v5188, 1.1111112
        %v5770 = vmul.f32 %v5189, 1.1111112
        %v5771 = vmul.f32 %v5190, 1.1111112
        %v5772 = vmul.f32 %v5191, 1.1111112
        %v5773 = vmul.f32 %v5192, 1.1111112
        %v5774 = vmul.f32 %v5193, 1.1111112
        %v5775 = vmul.f32 %v5194, 1.1111112
        %v5776 = vmul.f32 %v5195, 1.1111112
        %v5777 = vmul.f32 %v5196, 1.1111112
        %v5778 = vmul.f32 %v5197, 1.1111112
        %v5779 = vmul.f32 %v5198, 1.1111112
        %v5780 = vmul.f32 %v5199, 1.1111112
        %v5781 = vmul.f32 %v5200, 1.1111112
        %v5782 = vsel %vm5718, %v5750, 0.0
        %v5783 = vsel %vm5719, %v5751, 0.0
        %v5784 = vsel %vm5720, %v5752, 0.0
        %v5785 = vsel %vm5721, %v5753, 0.0
        %v5786 = vsel %vm5722, %v5754, 0.0
        %v5787 = vsel %vm5723, %v5755, 0.0
        %v5788 = vsel %vm5724, %v5756, 0.0
        %v5789 = vsel %vm5725, %v5757, 0.0
        %v5790 = vsel %vm5726, %v5758, 0.0
        %v5791 = vsel %vm5727, %v5759, 0.0
        %v5792 = vsel %vm5728, %v5760, 0.0
        %v5793 = vsel %vm5729, %v5761, 0.0
        %v5794 = vsel %vm5730, %v5762, 0.0
        %v5795 = vsel %vm5731, %v5763, 0.0
        %v5796 = vsel %vm5732, %v5764, 0.0
        %v5797 = vsel %vm5733, %v5765, 0.0
        %v5798 = vsel %vm5734, %v5766, 0.0
        %v5799 = vsel %vm5735, %v5767, 0.0
        %v5800 = vsel %vm5736, %v5768, 0.0
        %v5801 = vsel %vm5737, %v5769, 0.0
        %v5802 = vsel %vm5738, %v5770, 0.0
        %v5803 = vsel %vm5739, %v5771, 0.0
        %v5804 = vsel %vm5740, %v5772, 0.0
        %v5805 = vsel %vm5741, %v5773, 0.0
        %v5806 = vsel %vm5742, %v5774, 0.0
        %v5807 = vsel %vm5743, %v5775, 0.0
        %v5808 = vsel %vm5744, %v5776, 0.0
        %v5809 = vsel %vm5745, %v5777, 0.0
        %v5810 = vsel %vm5746, %v5778, 0.0
        %v5811 = vsel %vm5747, %v5779, 0.0
        %v5812 = vsel %vm5748, %v5780, 0.0
        %v5813 = vsel %vm5749, %v5781, 0.0
        %v5814 = vmax.f32 %v5782, 0.0
        %v5815 = vmax.f32 %v5783, 0.0
        %v5816 = vmax.f32 %v5784, 0.0
        %v5817 = vmax.f32 %v5785, 0.0
        %v5818 = vmax.f32 %v5786, 0.0
        %v5819 = vmax.f32 %v5787, 0.0
        %v5820 = vmax.f32 %v5788, 0.0
        %v5821 = vmax.f32 %v5789, 0.0
        %v5822 = vmax.f32 %v5790, 0.0
        %v5823 = vmax.f32 %v5791, 0.0
        %v5824 = vmax.f32 %v5792, 0.0
        %v5825 = vmax.f32 %v5793, 0.0
        %v5826 = vmax.f32 %v5794, 0.0
        %v5827 = vmax.f32 %v5795, 0.0
        %v5828 = vmax.f32 %v5796, 0.0
        %v5829 = vmax.f32 %v5797, 0.0
        %v5830 = vmax.f32 %v5798, 0.0
        %v5831 = vmax.f32 %v5799, 0.0
        %v5832 = vmax.f32 %v5800, 0.0
        %v5833 = vmax.f32 %v5801, 0.0
        %v5834 = vmax.f32 %v5802, 0.0
        %v5835 = vmax.f32 %v5803, 0.0
        %v5836 = vmax.f32 %v5804, 0.0
        %v5837 = vmax.f32 %v5805, 0.0
        %v5838 = vmax.f32 %v5806, 0.0
        %v5839 = vmax.f32 %v5807, 0.0
        %v5840 = vmax.f32 %v5808, 0.0
        %v5841 = vmax.f32 %v5809, 0.0
        %v5842 = vmax.f32 %v5810, 0.0
        %v5843 = vmax.f32 %v5811, 0.0
        %v5844 = vmax.f32 %v5812, 0.0
        %v5845 = vmax.f32 %v5813, 0.0
        %v5846 = vpack.c.bf16 %v5815, %v5814
        %v5847 = vpack.c.bf16 %v5817, %v5816
        %v5848 = vpack.c.bf16 %v5819, %v5818
        %v5849 = vpack.c.bf16 %v5821, %v5820
        %v5850 = vpack.c.bf16 %v5823, %v5822
        %v5851 = vpack.c.bf16 %v5825, %v5824
        %v5852 = vpack.c.bf16 %v5827, %v5826
        %v5853 = vpack.c.bf16 %v5829, %v5828
        %v5854 = vpack.c.bf16 %v5831, %v5830
        %v5855 = vpack.c.bf16 %v5833, %v5832
        %v5856 = vpack.c.bf16 %v5835, %v5834
        %v5857 = vpack.c.bf16 %v5837, %v5836
        %v5858 = vpack.c.bf16 %v5839, %v5838
        %v5859 = vpack.c.bf16 %v5841, %v5840
        %v5860 = vpack.c.bf16 %v5843, %v5842
        %v5861 = vpack.c.bf16 %v5845, %v5844
        %v5862 = vld [vmem:[%s14] sm:$0xf]
        %v5863 = vld [vmem:[%s14 + $0x4] sm:$0xf]
        %v5864 = vld [vmem:[%s14 + $0x8] sm:$0xf]
        %v5865 = vld [vmem:[%s14 + $0xc] sm:$0xf]
        %v5870 = vunpack.c.l.b16 %v5862
        %v5871 = vunpack.c.l.b16 %v5863
        %v5872 = vunpack.c.l.b16 %v5864
        %v5873 = vunpack.c.l.b16 %v5865
        %v5874 = vpack.c.b16 %v5871, %v5870
        %v5875 = vpack.c.b16 %v5873, %v5872
        %v5879 = vsel %vm4528, %v5846, 0
        %v5882 = vsel %vm4528, %v5847, 0
        %v5885 = vsel %vm4528, %v5848, 0
        %v5888 = vsel %vm4528, %v5849, 0
        %v5891 = vsel %vm4528, %v5850, 0
        %v5894 = vsel %vm4528, %v5851, 0
        %v5897 = vsel %vm4528, %v5852, 0
        %v5900 = vsel %vm4528, %v5853, 0
        %v5903 = vsel %vm4528, %v5854, 0
        %v5906 = vsel %vm4528, %v5855, 0
        %v5909 = vsel %vm4528, %v5856, 0
        %v5912 = vsel %vm4528, %v5857, 0
        %v5915 = vsel %vm4528, %v5858, 0
        %v5918 = vsel %vm4528, %v5859, 0
        %v5921 = vsel %vm4528, %v5860, 0
        %v5924 = vsel %vm4528, %v5861, 0
        %5926 = vmatprep.subr.bf16.mxu0 0
        %5927 = vmatpush1.bf16.msra.mxu0 %v5874
        %5928 = vmatprep.subr.bf16.mxu0 0
        %5929 = vmatpush1.bf16.msra.mxu0 %v5875
        %5930 = vmatprep.subr.bf16.mxu0 0
        %5931 = vmatpush1.bf16.msra.mxu0 0
        %5932 = vmatprep.subr.bf16.mxu0 0
        %5933 = vmatpush1.bf16.msra.mxu0 0
        %5934 = vmatprep.subr.bf16.mxu0 0
        %5935 = vmatpush1.bf16.msra.mxu0 0
        %5936 = vmatprep.subr.bf16.mxu0 0
        %5937 = vmatpush1.bf16.msra.mxu0 0
        %5938 = vmatprep.subr.bf16.mxu0 0
        %5939 = vmatpush1.bf16.msra.mxu0 0
        %5940 = vmatprep.subr.bf16.mxu0 0
        %5941 = vmatpush1.bf16.msra.mxu0 0
        %5942 = vmatprep.subr.bf16.mxu0 0
        %5943 = vmatpush1.bf16.msra.mxu0 0
        %5944 = vmatprep.subr.bf16.mxu0 0
        %5945 = vmatpush1.bf16.msra.mxu0 0
        %5946 = vmatprep.subr.bf16.mxu0 0
        %5947 = vmatpush1.bf16.msra.mxu0 0
        %5948 = vmatprep.subr.bf16.mxu0 0
        %5949 = vmatpush1.bf16.msra.mxu0 0
        %5950 = vmatprep.subr.bf16.mxu0 0
        %5951 = vmatpush1.bf16.msra.mxu0 0
        %5952 = vmatprep.subr.bf16.mxu0 0
        %5953 = vmatpush1.bf16.msra.mxu0 0
        %5954 = vmatprep.subr.bf16.mxu0 0
        %5955 = vmatpush1.bf16.msra.mxu0 0
        %5956 = vmatprep.subr.bf16.mxu0 0
        %5957 = vmatpush1.bf16.msra.mxu0 0
        %5958 = vmatprep.mubr.bf16.mxu0 0
        %5959 = vmatmul.mubr.bf16.gmra.mrb[0].mxu0 %v5879
        %v5960 = vpop.f32.mrb[0].mxu0
        %v5961 = vadd.f32 0.0, %v5960
        %v5962 = vpop.f32.mrb[0].mxu0
        %v5963 = vpop.f32.mrb[0].mxu0
        %v5964 = vadd.f32 0.0, %v5963
        %v5965 = vpop.f32.mrb[0].mxu0
        %5966 = vmatprep.mubr.bf16.mxu0 0
        %5967 = vmatmul.mubr.bf16.gmra.mrb[0].mxu0 %v5882
        %v5968 = vpop.f32.mrb[0].mxu0
        %v5969 = vadd.f32 0.0, %v5968
        %v5970 = vpop.f32.mrb[0].mxu0
        %v5971 = vpop.f32.mrb[0].mxu0
        %v5972 = vadd.f32 0.0, %v5971
        %v5973 = vpop.f32.mrb[0].mxu0
        %5974 = vmatprep.mubr.bf16.mxu0 0
        %5975 = vmatmul.mubr.bf16.gmra.mrb[0].mxu0 %v5885
        %v5976 = vpop.f32.mrb[0].mxu0
        %v5977 = vadd.f32 0.0, %v5976
        %v5978 = vpop.f32.mrb[0].mxu0
        %v5979 = vpop.f32.mrb[0].mxu0
        %v5980 = vadd.f32 0.0, %v5979
        %v5981 = vpop.f32.mrb[0].mxu0
        %5982 = vmatprep.mubr.bf16.mxu0 0
        %5983 = vmatmul.mubr.bf16.gmra.mrb[0].mxu0 %v5888
        %v5984 = vpop.f32.mrb[0].mxu0
        %v5985 = vadd.f32 0.0, %v5984
        %v5986 = vpop.f32.mrb[0].mxu0
        %v5987 = vpop.f32.mrb[0].mxu0
        %v5988 = vadd.f32 0.0, %v5987
        %v5989 = vpop.f32.mrb[0].mxu0
        %5990 = vmatprep.mubr.bf16.mxu0 0
        %5991 = vmatmul.mubr.bf16.gmra.mrb[0].mxu0 %v5891
        %v5992 = vpop.f32.mrb[0].mxu0
        %v5993 = vadd.f32 0.0, %v5992
        %v5994 = vpop.f32.mrb[0].mxu0
        %v5995 = vpop.f32.mrb[0].mxu0
        %v5996 = vadd.f32 0.0, %v5995
        %v5997 = vpop.f32.mrb[0].mxu0
        %5998 = vmatprep.mubr.bf16.mxu0 0
        %5999 = vmatmul.mubr.bf16.gmra.mrb[0].mxu0 %v5894
        %v6000 = vpop.f32.mrb[0].mxu0
        %v6001 = vadd.f32 0.0, %v6000
        %v6002 = vpop.f32.mrb[0].mxu0
        %v6003 = vpop.f32.mrb[0].mxu0
        %v6004 = vadd.f32 0.0, %v6003
        %v6005 = vpop.f32.mrb[0].mxu0
        %6006 = vmatprep.mubr.bf16.mxu0 0
        %6007 = vmatmul.mubr.bf16.gmra.mrb[0].mxu0 %v5897
        %v6008 = vpop.f32.mrb[0].mxu0
        %v6009 = vadd.f32 0.0, %v6008
        %v6010 = vpop.f32.mrb[0].mxu0
        %v6011 = vpop.f32.mrb[0].mxu0
        %v6012 = vadd.f32 0.0, %v6011
        %v6013 = vpop.f32.mrb[0].mxu0
        %6014 = vmatprep.mubr.bf16.mxu0 0
        %6015 = vmatmul.mubr.bf16.gmra.mrb[0].mxu0 %v5900
        %v6016 = vpop.f32.mrb[0].mxu0
        %v6017 = vadd.f32 0.0, %v6016
        %v6018 = vpop.f32.mrb[0].mxu0
        %v6019 = vpop.f32.mrb[0].mxu0
        %v6020 = vadd.f32 0.0, %v6019
        %v6021 = vpop.f32.mrb[0].mxu0
        %6022 = vmatprep.mubr.bf16.mxu0 0
        %6023 = vmatmul.mubr.bf16.gmra.mrb[0].mxu0 %v5903
        %v6024 = vpop.f32.mrb[0].mxu0
        %v6025 = vadd.f32 0.0, %v6024
        %v6026 = vpop.f32.mrb[0].mxu0
        %v6027 = vpop.f32.mrb[0].mxu0
        %v6028 = vadd.f32 0.0, %v6027
        %v6029 = vpop.f32.mrb[0].mxu0
        %6030 = vmatprep.mubr.bf16.mxu0 0
        %6031 = vmatmul.mubr.bf16.gmra.mrb[0].mxu0 %v5906
        %v6032 = vpop.f32.mrb[0].mxu0
        %v6033 = vadd.f32 0.0, %v6032
        %v6034 = vpop.f32.mrb[0].mxu0
        %v6035 = vpop.f32.mrb[0].mxu0
        %v6036 = vadd.f32 0.0, %v6035
        %v6037 = vpop.f32.mrb[0].mxu0
        %6038 = vmatprep.mubr.bf16.mxu0 0
        %6039 = vmatmul.mubr.bf16.gmra.mrb[0].mxu0 %v5909
        %v6040 = vpop.f32.mrb[0].mxu0
        %v6041 = vadd.f32 0.0, %v6040
        %v6042 = vpop.f32.mrb[0].mxu0
        %v6043 = vpop.f32.mrb[0].mxu0
        %v6044 = vadd.f32 0.0, %v6043
        %v6045 = vpop.f32.mrb[0].mxu0
        %6046 = vmatprep.mubr.bf16.mxu0 0
        %6047 = vmatmul.mubr.bf16.gmra.mrb[0].mxu0 %v5912
        %v6048 = vpop.f32.mrb[0].mxu0
        %v6049 = vadd.f32 0.0, %v6048
        %v6050 = vpop.f32.mrb[0].mxu0
        %v6051 = vpop.f32.mrb[0].mxu0
        %v6052 = vadd.f32 0.0, %v6051
        %v6053 = vpop.f32.mrb[0].mxu0
        %6054 = vmatprep.mubr.bf16.mxu0 0
        %6055 = vmatmul.mubr.bf16.gmra.mrb[0].mxu0 %v5915
        %v6056 = vpop.f32.mrb[0].mxu0
        %v6057 = vadd.f32 0.0, %v6056
        %v6058 = vpop.f32.mrb[0].mxu0
        %v6059 = vpop.f32.mrb[0].mxu0
        %v6060 = vadd.f32 0.0, %v6059
        %v6061 = vpop.f32.mrb[0].mxu0
        %6062 = vmatprep.mubr.bf16.mxu0 0
        %6063 = vmatmul.mubr.bf16.gmra.mrb[0].mxu0 %v5918
        %v6064 = vpop.f32.mrb[0].mxu0
        %v6065 = vadd.f32 0.0, %v6064
        %v6066 = vpop.f32.mrb[0].mxu0
        %v6067 = vpop.f32.mrb[0].mxu0
        %v6068 = vadd.f32 0.0, %v6067
        %v6069 = vpop.f32.mrb[0].mxu0
        %6070 = vmatprep.mubr.bf16.mxu0 0
        %6071 = vmatmul.mubr.bf16.gmra.mrb[0].mxu0 %v5921
        %v6072 = vpop.f32.mrb[0].mxu0
        %v6073 = vadd.f32 0.0, %v6072
        %v6074 = vpop.f32.mrb[0].mxu0
        %v6075 = vpop.f32.mrb[0].mxu0
        %v6076 = vadd.f32 0.0, %v6075
        %v6077 = vpop.f32.mrb[0].mxu0
        %6078 = vmatprep.mubr.bf16.mxu0 0
        %6079 = vmatmul.mubr.bf16.gmra.mrb[0].mxu0 %v5924
        %v6080 = vpop.f32.mrb[0].mxu0
        %v6081 = vadd.f32 0.0, %v6080
        %v6082 = vpop.f32.mrb[0].mxu0
        %v6083 = vpop.f32.mrb[0].mxu0
        %v6084 = vadd.f32 0.0, %v6083
        %v6085 = vpop.f32.mrb[0].mxu0
        %6086 = vdwg.mxu0
        %v6087 = vld [vmem:[%s15] sm:$0x1]
        %v6089 = vlaneseq
        %v6090 = vshrl.u32 %v6089, 7
        %v6091 = vsub.s32 0, %v6090
        %v6092 = vrot.slane %v6087, %v6091
        %v6094 = vadd.f32 %v5961, %v6092
        %v6095 = vadd.f32 %v5964, %v6092
        %v6096 = vadd.f32 %v5969, %v6092
        %v6097 = vadd.f32 %v5972, %v6092
        %v6098 = vadd.f32 %v5977, %v6092
        %v6099 = vadd.f32 %v5980, %v6092
        %v6100 = vadd.f32 %v5985, %v6092
        %v6101 = vadd.f32 %v5988, %v6092
        %v6102 = vadd.f32 %v5993, %v6092
        %v6103 = vadd.f32 %v5996, %v6092
        %v6104 = vadd.f32 %v6001, %v6092
        %v6105 = vadd.f32 %v6004, %v6092
        %v6106 = vadd.f32 %v6009, %v6092
        %v6107 = vadd.f32 %v6012, %v6092
        %v6108 = vadd.f32 %v6017, %v6092
        %v6109 = vadd.f32 %v6020, %v6092
        %v6110 = vadd.f32 %v6025, %v6092
        %v6111 = vadd.f32 %v6028, %v6092
        %v6112 = vadd.f32 %v6033, %v6092
        %v6113 = vadd.f32 %v6036, %v6092
        %v6114 = vadd.f32 %v6041, %v6092
        %v6115 = vadd.f32 %v6044, %v6092
        %v6116 = vadd.f32 %v6049, %v6092
        %v6117 = vadd.f32 %v6052, %v6092
        %v6118 = vadd.f32 %v6057, %v6092
        %v6119 = vadd.f32 %v6060, %v6092
        %v6120 = vadd.f32 %v6065, %v6092
        %v6121 = vadd.f32 %v6068, %v6092
        %v6122 = vadd.f32 %v6073, %v6092
        %v6123 = vadd.f32 %v6076, %v6092
        %v6124 = vadd.f32 %v6081, %v6092
        %v6125 = vadd.f32 %v6084, %v6092
        %vm6126 = vcmask 130048
        %v6127 = vsel %vm6126, %v6094, 0.0
        %6128 = vadd.xlane.f32.xlu0 %v6127
        %v6129 = vpop.xlane.xlu0 %6128
        %v6130 = vsel %vm6126, %v6095, 0.0
        %6131 = vadd.xlane.f32.xlu0 %v6130
        %v6132 = vpop.xlane.xlu0 %6131
        %v6133 = vsel %vm6126, %v6096, 0.0
        %6134 = vadd.xlane.f32.xlu0 %v6133
        %v6135 = vpop.xlane.xlu0 %6134
        %v6136 = vsel %vm6126, %v6097, 0.0
        %6137 = vadd.xlane.f32.xlu0 %v6136
        %v6138 = vpop.xlane.xlu0 %6137
        %v6139 = vsel %vm6126, %v6098, 0.0
        %6140 = vadd.xlane.f32.xlu0 %v6139
        %v6141 = vpop.xlane.xlu0 %6140
        %v6142 = vsel %vm6126, %v6099, 0.0
        %6143 = vadd.xlane.f32.xlu0 %v6142
        %v6144 = vpop.xlane.xlu0 %6143
        %v6145 = vsel %vm6126, %v6100, 0.0
        %6146 = vadd.xlane.f32.xlu0 %v6145
        %v6147 = vpop.xlane.xlu0 %6146
        %v6148 = vsel %vm6126, %v6101, 0.0
        %6149 = vadd.xlane.f32.xlu0 %v6148
        %v6150 = vpop.xlane.xlu0 %6149
        %v6151 = vsel %vm6126, %v6102, 0.0
        %6152 = vadd.xlane.f32.xlu0 %v6151
        %v6153 = vpop.xlane.xlu0 %6152
        %v6154 = vsel %vm6126, %v6103, 0.0
        %6155 = vadd.xlane.f32.xlu0 %v6154
        %v6156 = vpop.xlane.xlu0 %6155
        %v6157 = vsel %vm6126, %v6104, 0.0
        %6158 = vadd.xlane.f32.xlu0 %v6157
        %v6159 = vpop.xlane.xlu0 %6158
        %v6160 = vsel %vm6126, %v6105, 0.0
        %6161 = vadd.xlane.f32.xlu0 %v6160
        %v6162 = vpop.xlane.xlu0 %6161
        %v6163 = vsel %vm6126, %v6106, 0.0
        %6164 = vadd.xlane.f32.xlu0 %v6163
        %v6165 = vpop.xlane.xlu0 %6164
        %v6166 = vsel %vm6126, %v6107, 0.0
        %6167 = vadd.xlane.f32.xlu0 %v6166
        %v6168 = vpop.xlane.xlu0 %6167
        %v6169 = vsel %vm6126, %v6108, 0.0
        %6170 = vadd.xlane.f32.xlu0 %v6169
        %v6171 = vpop.xlane.xlu0 %6170
        %v6172 = vsel %vm6126, %v6109, 0.0
        %6173 = vadd.xlane.f32.xlu0 %v6172
        %v6174 = vpop.xlane.xlu0 %6173
        %v6175 = vsel %vm6126, %v6110, 0.0
        %6176 = vadd.xlane.f32.xlu0 %v6175
        %v6177 = vpop.xlane.xlu0 %6176
        %v6178 = vsel %vm6126, %v6111, 0.0
        %6179 = vadd.xlane.f32.xlu0 %v6178
        %v6180 = vpop.xlane.xlu0 %6179
        %v6181 = vsel %vm6126, %v6112, 0.0
        %6182 = vadd.xlane.f32.xlu0 %v6181
        %v6183 = vpop.xlane.xlu0 %6182
        %v6184 = vsel %vm6126, %v6113, 0.0
        %6185 = vadd.xlane.f32.xlu0 %v6184
        %v6186 = vpop.xlane.xlu0 %6185
        %v6187 = vsel %vm6126, %v6114, 0.0
        %6188 = vadd.xlane.f32.xlu0 %v6187
        %v6189 = vpop.xlane.xlu0 %6188
        %v6190 = vsel %vm6126, %v6115, 0.0
        %6191 = vadd.xlane.f32.xlu0 %v6190
        %v6192 = vpop.xlane.xlu0 %6191
        %v6193 = vsel %vm6126, %v6116, 0.0
        %6194 = vadd.xlane.f32.xlu0 %v6193
        %v6195 = vpop.xlane.xlu0 %6194
        %v6196 = vsel %vm6126, %v6117, 0.0
        %6197 = vadd.xlane.f32.xlu0 %v6196
        %v6198 = vpop.xlane.xlu0 %6197
        %v6199 = vsel %vm6126, %v6118, 0.0
        %6200 = vadd.xlane.f32.xlu0 %v6199
        %v6201 = vpop.xlane.xlu0 %6200
        %v6202 = vsel %vm6126, %v6119, 0.0
        %6203 = vadd.xlane.f32.xlu0 %v6202
        %v6204 = vpop.xlane.xlu0 %6203
        %v6205 = vsel %vm6126, %v6120, 0.0
        %6206 = vadd.xlane.f32.xlu0 %v6205
        %v6207 = vpop.xlane.xlu0 %6206
        %v6208 = vsel %vm6126, %v6121, 0.0
        %6209 = vadd.xlane.f32.xlu0 %v6208
        %v6210 = vpop.xlane.xlu0 %6209
        %v6211 = vsel %vm6126, %v6122, 0.0
        %6212 = vadd.xlane.f32.xlu0 %v6211
        %v6213 = vpop.xlane.xlu0 %6212
        %v6214 = vsel %vm6126, %v6123, 0.0
        %6215 = vadd.xlane.f32.xlu0 %v6214
        %v6216 = vpop.xlane.xlu0 %6215
        %v6217 = vsel %vm6126, %v6124, 0.0
        %6218 = vadd.xlane.f32.xlu0 %v6217
        %v6219 = vpop.xlane.xlu0 %6218
        %v6220 = vsel %vm6126, %v6125, 0.0
        %6221 = vadd.xlane.f32.xlu0 %v6220
        %v6222 = vpop.xlane.xlu0 %6221
        %v6223 = vadd.f32 %v6129, %v6177
        %v6224 = vadd.f32 %v6132, %v6180
        %v6225 = vadd.f32 %v6135, %v6183
        %v6226 = vadd.f32 %v6138, %v6186
        %v6227 = vadd.f32 %v6141, %v6189
        %v6228 = vadd.f32 %v6144, %v6192
        %v6229 = vadd.f32 %v6147, %v6195
        %v6230 = vadd.f32 %v6150, %v6198
        %v6231 = vadd.f32 %v6153, %v6201
        %v6232 = vadd.f32 %v6156, %v6204
        %v6233 = vadd.f32 %v6159, %v6207
        %v6234 = vadd.f32 %v6162, %v6210
        %v6235 = vadd.f32 %v6165, %v6213
        %v6236 = vadd.f32 %v6168, %v6216
        %v6237 = vadd.f32 %v6171, %v6219
        %v6238 = vadd.f32 %v6174, %v6222
        %v6239 = vmul.f32 %v6094, %v6094
        %v6240 = vmul.f32 %v6095, %v6095
        %v6241 = vmul.f32 %v6096, %v6096
        %v6242 = vmul.f32 %v6097, %v6097
        %v6243 = vmul.f32 %v6098, %v6098
        %v6244 = vmul.f32 %v6099, %v6099
        %v6245 = vmul.f32 %v6100, %v6100
        %v6246 = vmul.f32 %v6101, %v6101
        %v6247 = vmul.f32 %v6102, %v6102
        %v6248 = vmul.f32 %v6103, %v6103
        %v6249 = vmul.f32 %v6104, %v6104
        %v6250 = vmul.f32 %v6105, %v6105
        %v6251 = vmul.f32 %v6106, %v6106
        %v6252 = vmul.f32 %v6107, %v6107
        %v6253 = vmul.f32 %v6108, %v6108
        %v6254 = vmul.f32 %v6109, %v6109
        %v6255 = vmul.f32 %v6110, %v6110
        %v6256 = vmul.f32 %v6111, %v6111
        %v6257 = vmul.f32 %v6112, %v6112
        %v6258 = vmul.f32 %v6113, %v6113
        %v6259 = vmul.f32 %v6114, %v6114
        %v6260 = vmul.f32 %v6115, %v6115
        %v6261 = vmul.f32 %v6116, %v6116
        %v6262 = vmul.f32 %v6117, %v6117
        %v6263 = vmul.f32 %v6118, %v6118
        %v6264 = vmul.f32 %v6119, %v6119
        %v6265 = vmul.f32 %v6120, %v6120
        %v6266 = vmul.f32 %v6121, %v6121
        %v6267 = vmul.f32 %v6122, %v6122
        %v6268 = vmul.f32 %v6123, %v6123
        %v6269 = vmul.f32 %v6124, %v6124
        %v6270 = vmul.f32 %v6125, %v6125
        %v6271 = vsel %vm6126, %v6239, 0.0
        %6272 = vadd.xlane.f32.xlu0 %v6271
        %v6273 = vpop.xlane.xlu0 %6272
        %v6274 = vsel %vm6126, %v6240, 0.0
        %6275 = vadd.xlane.f32.xlu0 %v6274
        %v6276 = vpop.xlane.xlu0 %6275
        %v6277 = vsel %vm6126, %v6241, 0.0
        %6278 = vadd.xlane.f32.xlu0 %v6277
        %v6279 = vpop.xlane.xlu0 %6278
        %v6280 = vsel %vm6126, %v6242, 0.0
        %6281 = vadd.xlane.f32.xlu0 %v6280
        %v6282 = vpop.xlane.xlu0 %6281
        %v6283 = vsel %vm6126, %v6243, 0.0
        %6284 = vadd.xlane.f32.xlu0 %v6283
        %v6285 = vpop.xlane.xlu0 %6284
        %v6286 = vsel %vm6126, %v6244, 0.0
        %6287 = vadd.xlane.f32.xlu0 %v6286
        %v6288 = vpop.xlane.xlu0 %6287
        %v6289 = vsel %vm6126, %v6245, 0.0
        %6290 = vadd.xlane.f32.xlu0 %v6289
        %v6291 = vpop.xlane.xlu0 %6290
        %v6292 = vsel %vm6126, %v6246, 0.0
        %6293 = vadd.xlane.f32.xlu0 %v6292
        %v6294 = vpop.xlane.xlu0 %6293
        %v6295 = vsel %vm6126, %v6247, 0.0
        %6296 = vadd.xlane.f32.xlu0 %v6295
        %v6297 = vpop.xlane.xlu0 %6296
        %v6298 = vsel %vm6126, %v6248, 0.0
        %6299 = vadd.xlane.f32.xlu0 %v6298
        %v6300 = vpop.xlane.xlu0 %6299
        %v6301 = vsel %vm6126, %v6249, 0.0
        %6302 = vadd.xlane.f32.xlu0 %v6301
        %v6303 = vpop.xlane.xlu0 %6302
        %v6304 = vsel %vm6126, %v6250, 0.0
        %6305 = vadd.xlane.f32.xlu0 %v6304
        %v6306 = vpop.xlane.xlu0 %6305
        %v6307 = vsel %vm6126, %v6251, 0.0
        %6308 = vadd.xlane.f32.xlu0 %v6307
        %v6309 = vpop.xlane.xlu0 %6308
        %v6310 = vsel %vm6126, %v6252, 0.0
        %6311 = vadd.xlane.f32.xlu0 %v6310
        %v6312 = vpop.xlane.xlu0 %6311
        %v6313 = vsel %vm6126, %v6253, 0.0
        %6314 = vadd.xlane.f32.xlu0 %v6313
        %v6315 = vpop.xlane.xlu0 %6314
        %v6316 = vsel %vm6126, %v6254, 0.0
        %6317 = vadd.xlane.f32.xlu0 %v6316
        %v6318 = vpop.xlane.xlu0 %6317
        %v6319 = vsel %vm6126, %v6255, 0.0
        %6320 = vadd.xlane.f32.xlu0 %v6319
        %v6321 = vpop.xlane.xlu0 %6320
        %v6322 = vsel %vm6126, %v6256, 0.0
        %6323 = vadd.xlane.f32.xlu0 %v6322
        %v6324 = vpop.xlane.xlu0 %6323
        %v6325 = vsel %vm6126, %v6257, 0.0
        %6326 = vadd.xlane.f32.xlu0 %v6325
        %v6327 = vpop.xlane.xlu0 %6326
        %v6328 = vsel %vm6126, %v6258, 0.0
        %6329 = vadd.xlane.f32.xlu0 %v6328
        %v6330 = vpop.xlane.xlu0 %6329
        %v6331 = vsel %vm6126, %v6259, 0.0
        %6332 = vadd.xlane.f32.xlu0 %v6331
        %v6333 = vpop.xlane.xlu0 %6332
        %v6334 = vsel %vm6126, %v6260, 0.0
        %6335 = vadd.xlane.f32.xlu0 %v6334
        %v6336 = vpop.xlane.xlu0 %6335
        %v6337 = vsel %vm6126, %v6261, 0.0
        %6338 = vadd.xlane.f32.xlu0 %v6337
        %v6339 = vpop.xlane.xlu0 %6338
        %v6340 = vsel %vm6126, %v6262, 0.0
        %6341 = vadd.xlane.f32.xlu0 %v6340
        %v6342 = vpop.xlane.xlu0 %6341
        %v6343 = vsel %vm6126, %v6263, 0.0
        %6344 = vadd.xlane.f32.xlu0 %v6343
        %v6345 = vpop.xlane.xlu0 %6344
        %v6346 = vsel %vm6126, %v6264, 0.0
        %6347 = vadd.xlane.f32.xlu0 %v6346
        %v6348 = vpop.xlane.xlu0 %6347
        %v6349 = vsel %vm6126, %v6265, 0.0
        %6350 = vadd.xlane.f32.xlu0 %v6349
        %v6351 = vpop.xlane.xlu0 %6350
        %v6352 = vsel %vm6126, %v6266, 0.0
        %6353 = vadd.xlane.f32.xlu0 %v6352
        %v6354 = vpop.xlane.xlu0 %6353
        %v6355 = vsel %vm6126, %v6267, 0.0
        %6356 = vadd.xlane.f32.xlu0 %v6355
        %v6357 = vpop.xlane.xlu0 %6356
        %v6358 = vsel %vm6126, %v6268, 0.0
        %6359 = vadd.xlane.f32.xlu0 %v6358
        %v6360 = vpop.xlane.xlu0 %6359
        %v6361 = vsel %vm6126, %v6269, 0.0
        %6362 = vadd.xlane.f32.xlu0 %v6361
        %v6363 = vpop.xlane.xlu0 %6362
        %v6364 = vsel %vm6126, %v6270, 0.0
        %6365 = vadd.xlane.f32.xlu0 %v6364
        %v6366 = vpop.xlane.xlu0 %6365
        %v6367 = vadd.f32 %v6273, %v6321
        %v6368 = vadd.f32 %v6276, %v6324
        %v6369 = vadd.f32 %v6279, %v6327
        %v6370 = vadd.f32 %v6282, %v6330
        %v6371 = vadd.f32 %v6285, %v6333
        %v6372 = vadd.f32 %v6288, %v6336
        %v6373 = vadd.f32 %v6291, %v6339
        %v6374 = vadd.f32 %v6294, %v6342
        %v6375 = vadd.f32 %v6297, %v6345
        %v6376 = vadd.f32 %v6300, %v6348
        %v6377 = vadd.f32 %v6303, %v6351
        %v6378 = vadd.f32 %v6306, %v6354
        %v6379 = vadd.f32 %v6309, %v6357
        %v6380 = vadd.f32 %v6312, %v6360
        %v6381 = vadd.f32 %v6315, %v6363
        %v6382 = vadd.f32 %v6318, %v6366
        %v6383 = vmul.f32 %v6223, 0.03125
        %v6384 = vmul.f32 %v6224, 0.03125
        %v6385 = vmul.f32 %v6225, 0.03125
        %v6386 = vmul.f32 %v6226, 0.03125
        %v6387 = vmul.f32 %v6227, 0.03125
        %v6388 = vmul.f32 %v6228, 0.03125
        %v6389 = vmul.f32 %v6229, 0.03125
        %v6390 = vmul.f32 %v6230, 0.03125
        %v6391 = vmul.f32 %v6231, 0.03125
        %v6392 = vmul.f32 %v6232, 0.03125
        %v6393 = vmul.f32 %v6233, 0.03125
        %v6394 = vmul.f32 %v6234, 0.03125
        %v6395 = vmul.f32 %v6235, 0.03125
        %v6396 = vmul.f32 %v6236, 0.03125
        %v6397 = vmul.f32 %v6237, 0.03125
        %v6398 = vmul.f32 %v6238, 0.03125
        %v6399 = vmul.f32 %v6367, 0.03125
        %v6400 = vmul.f32 %v6368, 0.03125
        %v6401 = vmul.f32 %v6369, 0.03125
        %v6402 = vmul.f32 %v6370, 0.03125
        %v6403 = vmul.f32 %v6371, 0.03125
        %v6404 = vmul.f32 %v6372, 0.03125
        %v6405 = vmul.f32 %v6373, 0.03125
        %v6406 = vmul.f32 %v6374, 0.03125
        %v6407 = vmul.f32 %v6375, 0.03125
        %v6408 = vmul.f32 %v6376, 0.03125
        %v6409 = vmul.f32 %v6377, 0.03125
        %v6410 = vmul.f32 %v6378, 0.03125
        %v6411 = vmul.f32 %v6379, 0.03125
        %v6412 = vmul.f32 %v6380, 0.03125
        %v6413 = vmul.f32 %v6381, 0.03125
        %v6414 = vmul.f32 %v6382, 0.03125
        %v6415 = vmul.f32 %v6383, %v6383
        %v6416 = vmul.f32 %v6384, %v6384
        %v6417 = vmul.f32 %v6385, %v6385
        %v6418 = vmul.f32 %v6386, %v6386
        %v6419 = vmul.f32 %v6387, %v6387
        %v6420 = vmul.f32 %v6388, %v6388
        %v6421 = vmul.f32 %v6389, %v6389
        %v6422 = vmul.f32 %v6390, %v6390
        %v6423 = vmul.f32 %v6391, %v6391
        %v6424 = vmul.f32 %v6392, %v6392
        %v6425 = vmul.f32 %v6393, %v6393
        %v6426 = vmul.f32 %v6394, %v6394
        %v6427 = vmul.f32 %v6395, %v6395
        %v6428 = vmul.f32 %v6396, %v6396
        %v6429 = vmul.f32 %v6397, %v6397
        %v6430 = vmul.f32 %v6398, %v6398
        %v6431 = vsub.f32 %v6399, %v6415
        %v6432 = vsub.f32 %v6400, %v6416
        %v6433 = vsub.f32 %v6401, %v6417
        %v6434 = vsub.f32 %v6402, %v6418
        %v6435 = vsub.f32 %v6403, %v6419
        %v6436 = vsub.f32 %v6404, %v6420
        %v6437 = vsub.f32 %v6405, %v6421
        %v6438 = vsub.f32 %v6406, %v6422
        %v6439 = vsub.f32 %v6407, %v6423
        %v6440 = vsub.f32 %v6408, %v6424
        %v6441 = vsub.f32 %v6409, %v6425
        %v6442 = vsub.f32 %v6410, %v6426
        %v6443 = vsub.f32 %v6411, %v6427
        %v6444 = vsub.f32 %v6412, %v6428
        %v6445 = vsub.f32 %v6413, %v6429
        %v6446 = vsub.f32 %v6414, %v6430
        %v6447 = vmax.f32 %v6431, 0.0
        %v6448 = vmax.f32 %v6432, 0.0
        %v6449 = vmax.f32 %v6433, 0.0
        %v6450 = vmax.f32 %v6434, 0.0
        %v6451 = vmax.f32 %v6435, 0.0
        %v6452 = vmax.f32 %v6436, 0.0
        %v6453 = vmax.f32 %v6437, 0.0
        %v6454 = vmax.f32 %v6438, 0.0
        %v6455 = vmax.f32 %v6439, 0.0
        %v6456 = vmax.f32 %v6440, 0.0
        %v6457 = vmax.f32 %v6441, 0.0
        %v6458 = vmax.f32 %v6442, 0.0
        %v6459 = vmax.f32 %v6443, 0.0
        %v6460 = vmax.f32 %v6444, 0.0
        %v6461 = vmax.f32 %v6445, 0.0
        %v6462 = vmax.f32 %v6446, 0.0
        %v6463 = vadd.f32 %v6447, 1e-05
        %v6464 = vadd.f32 %v6448, 1e-05
        %v6465 = vadd.f32 %v6449, 1e-05
        %v6466 = vadd.f32 %v6450, 1e-05
        %v6467 = vadd.f32 %v6451, 1e-05
        %v6468 = vadd.f32 %v6452, 1e-05
        %v6469 = vadd.f32 %v6453, 1e-05
        %v6470 = vadd.f32 %v6454, 1e-05
        %v6471 = vadd.f32 %v6455, 1e-05
        %v6472 = vadd.f32 %v6456, 1e-05
        %v6473 = vadd.f32 %v6457, 1e-05
        %v6474 = vadd.f32 %v6458, 1e-05
        %v6475 = vadd.f32 %v6459, 1e-05
        %v6476 = vadd.f32 %v6460, 1e-05
        %v6477 = vadd.f32 %v6461, 1e-05
        %v6478 = vadd.f32 %v6462, 1e-05
        %v6479 = vrsqrt.pop %v6463
        %v6480 = vrsqrt.pop %v6464
        %v6481 = vrsqrt.pop %v6465
        %v6482 = vrsqrt.pop %v6466
        %v6483 = vrsqrt.pop %v6467
        %v6484 = vrsqrt.pop %v6468
        %v6485 = vrsqrt.pop %v6469
        %v6486 = vrsqrt.pop %v6470
        %v6487 = vrsqrt.pop %v6471
        %v6488 = vrsqrt.pop %v6472
        %v6489 = vrsqrt.pop %v6473
        %v6490 = vrsqrt.pop %v6474
        %v6491 = vrsqrt.pop %v6475
        %v6492 = vrsqrt.pop %v6476
        %v6493 = vrsqrt.pop %v6477
        %v6494 = vrsqrt.pop %v6478
        %v6495 = vld [vmem:[%s913] sm:$0xff]
        %v6496 = vld [vmem:[%s913 + $0x8] sm:$0xff]
        %v6497 = vld [vmem:[%s913 + $0x10] sm:$0xff]
        %v6498 = vld [vmem:[%s913 + $0x18] sm:$0xff]
        %v6499 = vld [vmem:[%s913 + $0x20] sm:$0xff]
        %v6500 = vld [vmem:[%s913 + $0x28] sm:$0xff]
        %v6501 = vld [vmem:[%s913 + $0x30] sm:$0xff]
        %v6502 = vld [vmem:[%s913 + $0x38] sm:$0xff]
        %v6503 = vld [vmem:[%s913 + $0x40] sm:$0xff]
        %v6504 = vld [vmem:[%s913 + $0x48] sm:$0xff]
        %v6505 = vld [vmem:[%s913 + $0x50] sm:$0xff]
        %v6506 = vld [vmem:[%s913 + $0x58] sm:$0xff]
        %v6507 = vld [vmem:[%s913 + $0x60] sm:$0xff]
        %v6508 = vld [vmem:[%s913 + $0x68] sm:$0xff]
        %v6509 = vld [vmem:[%s913 + $0x70] sm:$0xff]
        %v6510 = vld [vmem:[%s913 + $0x78] sm:$0xff]
        %v6511 = vmul.f32 %v6479, %v6495
        %v6512 = vmul.f32 %v6480, %v6496
        %v6513 = vmul.f32 %v6481, %v6497
        %v6514 = vmul.f32 %v6482, %v6498
        %v6515 = vmul.f32 %v6483, %v6499
        %v6516 = vmul.f32 %v6484, %v6500
        %v6517 = vmul.f32 %v6485, %v6501
        %v6518 = vmul.f32 %v6486, %v6502
        %v6519 = vmul.f32 %v6487, %v6503
        %v6520 = vmul.f32 %v6488, %v6504
        %v6521 = vmul.f32 %v6489, %v6505
        %v6522 = vmul.f32 %v6490, %v6506
        %v6523 = vmul.f32 %v6491, %v6507
        %v6524 = vmul.f32 %v6492, %v6508
        %v6525 = vmul.f32 %v6493, %v6509
        %v6526 = vmul.f32 %v6494, %v6510
        %v6527 = vsub.f32 %v6094, %v6383
        %v6528 = vsub.f32 %v6095, %v6384
        %v6529 = vsub.f32 %v6096, %v6385
        %v6530 = vsub.f32 %v6097, %v6386
        %v6531 = vsub.f32 %v6098, %v6387
        %v6532 = vsub.f32 %v6099, %v6388
        %v6533 = vsub.f32 %v6100, %v6389
        %v6534 = vsub.f32 %v6101, %v6390
        %v6535 = vsub.f32 %v6102, %v6391
        %v6536 = vsub.f32 %v6103, %v6392
        %v6537 = vsub.f32 %v6104, %v6393
        %v6538 = vsub.f32 %v6105, %v6394
        %v6539 = vsub.f32 %v6106, %v6395
        %v6540 = vsub.f32 %v6107, %v6396
        %v6541 = vsub.f32 %v6108, %v6397
        %v6542 = vsub.f32 %v6109, %v6398
        %v6543 = vsub.f32 %v6110, %v6383
        %v6544 = vsub.f32 %v6111, %v6384
        %v6545 = vsub.f32 %v6112, %v6385
        %v6546 = vsub.f32 %v6113, %v6386
        %v6547 = vsub.f32 %v6114, %v6387
        %v6548 = vsub.f32 %v6115, %v6388
        %v6549 = vsub.f32 %v6116, %v6389
        %v6550 = vsub.f32 %v6117, %v6390
        %v6551 = vsub.f32 %v6118, %v6391
        %v6552 = vsub.f32 %v6119, %v6392
        %v6553 = vsub.f32 %v6120, %v6393
        %v6554 = vsub.f32 %v6121, %v6394
        %v6555 = vsub.f32 %v6122, %v6395
        %v6556 = vsub.f32 %v6123, %v6396
        %v6557 = vsub.f32 %v6124, %v6397
        %v6558 = vsub.f32 %v6125, %v6398
        %6560 = vset.pattern.permute.xlu0 0
        %6561 = vperm.xlu0 %6560, %v6511
        %v6562 = vpop.permute.xlu0 %6561
        %6565 = vset.pattern.permute.xlu0 0
        %6566 = vperm.xlu0 %6565, %v6512
        %v6567 = vpop.permute.xlu0 %6566
        %6570 = vset.pattern.permute.xlu0 0
        %6571 = vperm.xlu0 %6570, %v6513
        %v6572 = vpop.permute.xlu0 %6571
        %6575 = vset.pattern.permute.xlu0 0
        %6576 = vperm.xlu0 %6575, %v6514
        %v6577 = vpop.permute.xlu0 %6576
        %6580 = vset.pattern.permute.xlu0 0
        %6581 = vperm.xlu0 %6580, %v6515
        %v6582 = vpop.permute.xlu0 %6581
        %6585 = vset.pattern.permute.xlu0 0
        %6586 = vperm.xlu0 %6585, %v6516
        %v6587 = vpop.permute.xlu0 %6586
        %6590 = vset.pattern.permute.xlu0 0
        %6591 = vperm.xlu0 %6590, %v6517
        %v6592 = vpop.permute.xlu0 %6591
        %6595 = vset.pattern.permute.xlu0 0
        %6596 = vperm.xlu0 %6595, %v6518
        %v6597 = vpop.permute.xlu0 %6596
        %6600 = vset.pattern.permute.xlu0 0
        %6601 = vperm.xlu0 %6600, %v6519
        %v6602 = vpop.permute.xlu0 %6601
        %6605 = vset.pattern.permute.xlu0 0
        %6606 = vperm.xlu0 %6605, %v6520
        %v6607 = vpop.permute.xlu0 %6606
        %6610 = vset.pattern.permute.xlu0 0
        %6611 = vperm.xlu0 %6610, %v6521
        %v6612 = vpop.permute.xlu0 %6611
        %6615 = vset.pattern.permute.xlu0 0
        %6616 = vperm.xlu0 %6615, %v6522
        %v6617 = vpop.permute.xlu0 %6616
        %6620 = vset.pattern.permute.xlu0 0
        %6621 = vperm.xlu0 %6620, %v6523
        %v6622 = vpop.permute.xlu0 %6621
        %6625 = vset.pattern.permute.xlu0 0
        %6626 = vperm.xlu0 %6625, %v6524
        %v6627 = vpop.permute.xlu0 %6626
        %6630 = vset.pattern.permute.xlu0 0
        %6631 = vperm.xlu0 %6630, %v6525
        %v6632 = vpop.permute.xlu0 %6631
        %6635 = vset.pattern.permute.xlu0 0
        %6636 = vperm.xlu0 %6635, %v6526
        %v6637 = vpop.permute.xlu0 %6636
        %v6639 = vmul.f32 %v6527, %v6562
        %v6640 = vmul.f32 %v6528, %v6567
        %v6641 = vmul.f32 %v6529, %v6572
        %v6642 = vmul.f32 %v6530, %v6577
        %v6643 = vmul.f32 %v6531, %v6582
        %v6644 = vmul.f32 %v6532, %v6587
        %v6645 = vmul.f32 %v6533, %v6592
        %v6646 = vmul.f32 %v6534, %v6597
        %v6647 = vmul.f32 %v6535, %v6602
        %v6648 = vmul.f32 %v6536, %v6607
        %v6649 = vmul.f32 %v6537, %v6612
        %v6650 = vmul.f32 %v6538, %v6617
        %v6651 = vmul.f32 %v6539, %v6622
        %v6652 = vmul.f32 %v6540, %v6627
        %v6653 = vmul.f32 %v6541, %v6632
        %v6654 = vmul.f32 %v6542, %v6637
        %v6655 = vmul.f32 %v6543, %v6562
        %v6656 = vmul.f32 %v6544, %v6567
        %v6657 = vmul.f32 %v6545, %v6572
        %v6658 = vmul.f32 %v6546, %v6577
        %v6659 = vmul.f32 %v6547, %v6582
        %v6660 = vmul.f32 %v6548, %v6587
        %v6661 = vmul.f32 %v6549, %v6592
        %v6662 = vmul.f32 %v6550, %v6597
        %v6663 = vmul.f32 %v6551, %v6602
        %v6664 = vmul.f32 %v6552, %v6607
        %v6665 = vmul.f32 %v6553, %v6612
        %v6666 = vmul.f32 %v6554, %v6617
        %v6667 = vmul.f32 %v6555, %v6622
        %v6668 = vmul.f32 %v6556, %v6627
        %v6669 = vmul.f32 %v6557, %v6632
        %v6670 = vmul.f32 %v6558, %v6637
        %v6671 = vld [vmem:[%s919] sm:$0xff]
        %v6672 = vld [vmem:[%s919 + $0x8] sm:$0xff]
        %v6673 = vld [vmem:[%s919 + $0x10] sm:$0xff]
        %v6674 = vld [vmem:[%s919 + $0x18] sm:$0xff]
        %v6675 = vld [vmem:[%s919 + $0x20] sm:$0xff]
        %v6676 = vld [vmem:[%s919 + $0x28] sm:$0xff]
        %v6677 = vld [vmem:[%s919 + $0x30] sm:$0xff]
        %v6678 = vld [vmem:[%s919 + $0x38] sm:$0xff]
        %v6679 = vld [vmem:[%s919 + $0x40] sm:$0xff]
        %v6680 = vld [vmem:[%s919 + $0x48] sm:$0xff]
        %v6681 = vld [vmem:[%s919 + $0x50] sm:$0xff]
        %v6682 = vld [vmem:[%s919 + $0x58] sm:$0xff]
        %v6683 = vld [vmem:[%s919 + $0x60] sm:$0xff]
        %v6684 = vld [vmem:[%s919 + $0x68] sm:$0xff]
        %v6685 = vld [vmem:[%s919 + $0x70] sm:$0xff]
        %v6686 = vld [vmem:[%s919 + $0x78] sm:$0xff]
        %6688 = vset.pattern.permute.xlu0 0
        %6689 = vperm.xlu0 %6688, %v6671
        %v6690 = vpop.permute.xlu0 %6689
        %6693 = vset.pattern.permute.xlu0 0
        %6694 = vperm.xlu0 %6693, %v6672
        %v6695 = vpop.permute.xlu0 %6694
        %6698 = vset.pattern.permute.xlu0 0
        %6699 = vperm.xlu0 %6698, %v6673
        %v6700 = vpop.permute.xlu0 %6699
        %6703 = vset.pattern.permute.xlu0 0
        %6704 = vperm.xlu0 %6703, %v6674
        %v6705 = vpop.permute.xlu0 %6704
        %6708 = vset.pattern.permute.xlu0 0
        %6709 = vperm.xlu0 %6708, %v6675
        %v6710 = vpop.permute.xlu0 %6709
        %6713 = vset.pattern.permute.xlu0 0
        %6714 = vperm.xlu0 %6713, %v6676
        %v6715 = vpop.permute.xlu0 %6714
        %6718 = vset.pattern.permute.xlu0 0
        %6719 = vperm.xlu0 %6718, %v6677
        %v6720 = vpop.permute.xlu0 %6719
        %6723 = vset.pattern.permute.xlu0 0
        %6724 = vperm.xlu0 %6723, %v6678
        %v6725 = vpop.permute.xlu0 %6724
        %6728 = vset.pattern.permute.xlu0 0
        %6729 = vperm.xlu0 %6728, %v6679
        %v6730 = vpop.permute.xlu0 %6729
        %6733 = vset.pattern.permute.xlu0 0
        %6734 = vperm.xlu0 %6733, %v6680
        %v6735 = vpop.permute.xlu0 %6734
        %6738 = vset.pattern.permute.xlu0 0
        %6739 = vperm.xlu0 %6738, %v6681
        %v6740 = vpop.permute.xlu0 %6739
        %6743 = vset.pattern.permute.xlu0 0
        %6744 = vperm.xlu0 %6743, %v6682
        %v6745 = vpop.permute.xlu0 %6744
        %6748 = vset.pattern.permute.xlu0 0
        %6749 = vperm.xlu0 %6748, %v6683
        %v6750 = vpop.permute.xlu0 %6749
        %6753 = vset.pattern.permute.xlu0 0
        %6754 = vperm.xlu0 %6753, %v6684
        %v6755 = vpop.permute.xlu0 %6754
        %6758 = vset.pattern.permute.xlu0 0
        %6759 = vperm.xlu0 %6758, %v6685
        %v6760 = vpop.permute.xlu0 %6759
        %6763 = vset.pattern.permute.xlu0 0
        %6764 = vperm.xlu0 %6763, %v6686
        %v6765 = vpop.permute.xlu0 %6764
        %v6767 = vadd.f32 %v6639, %v6690
        %v6768 = vadd.f32 %v6640, %v6695
        %v6769 = vadd.f32 %v6641, %v6700
        %v6770 = vadd.f32 %v6642, %v6705
        %v6771 = vadd.f32 %v6643, %v6710
        %v6772 = vadd.f32 %v6644, %v6715
        %v6773 = vadd.f32 %v6645, %v6720
        %v6774 = vadd.f32 %v6646, %v6725
        %v6775 = vadd.f32 %v6647, %v6730
        %v6776 = vadd.f32 %v6648, %v6735
        %v6777 = vadd.f32 %v6649, %v6740
        %v6778 = vadd.f32 %v6650, %v6745
        %v6779 = vadd.f32 %v6651, %v6750
        %v6780 = vadd.f32 %v6652, %v6755
        %v6781 = vadd.f32 %v6653, %v6760
        %v6782 = vadd.f32 %v6654, %v6765
        %v6783 = vadd.f32 %v6655, %v6690
        %v6784 = vadd.f32 %v6656, %v6695
        %v6785 = vadd.f32 %v6657, %v6700
        %v6786 = vadd.f32 %v6658, %v6705
        %v6787 = vadd.f32 %v6659, %v6710
        %v6788 = vadd.f32 %v6660, %v6715
        %v6789 = vadd.f32 %v6661, %v6720
        %v6790 = vadd.f32 %v6662, %v6725
        %v6791 = vadd.f32 %v6663, %v6730
        %v6792 = vadd.f32 %v6664, %v6735
        %v6793 = vadd.f32 %v6665, %v6740
        %v6794 = vadd.f32 %v6666, %v6745
        %v6795 = vadd.f32 %v6667, %v6750
        %v6796 = vadd.f32 %v6668, %v6755
        %v6797 = vadd.f32 %v6669, %v6760
        %v6798 = vadd.f32 %v6670, %v6765
        %s6799 = sld [smem:[#allocation3 + $0x3]]
        %s6800 = smul.u32 %s39, 4096
        %v6801 = vmul.u32 %v1957, 16
        %v6802 = vmul.u32 %v1958, 16
        %v6803 = vmul.u32 %v1959, 16
        %v6804 = vmul.u32 %v1960, 16
        %v6805 = vmul.u32 %v1961, 16
        %v6806 = vmul.u32 %v1962, 16
        %v6807 = vmul.u32 %v1963, 16
        %v6808 = vmul.u32 %v1964, 16
        %v6809 = vmul.u32 %v1965, 16
        %v6810 = vmul.u32 %v1966, 16
        %v6811 = vmul.u32 %v1967, 16
        %v6812 = vmul.u32 %v1968, 16
        %v6813 = vmul.u32 %v1969, 16
        %v6814 = vmul.u32 %v1970, 16
        %v6815 = vmul.u32 %v1971, 16
        %v6816 = vmul.u32 %v1972, 16
        %v6817 = vmul.u32 %v1973, 16
        %v6818 = vmul.u32 %v1974, 16
        %v6819 = vmul.u32 %v1975, 16
        %v6820 = vmul.u32 %v1976, 16
        %v6821 = vmul.u32 %v1977, 16
        %v6822 = vmul.u32 %v1978, 16
        %v6823 = vmul.u32 %v1979, 16
        %v6824 = vmul.u32 %v1980, 16
        %v6825 = vmul.u32 %v1981, 16
        %v6826 = vmul.u32 %v1982, 16
        %v6827 = vmul.u32 %v1983, 16
        %v6828 = vmul.u32 %v1984, 16
        %v6829 = vmul.u32 %v1985, 16
        %v6830 = vmul.u32 %v1986, 16
        %v6831 = vmul.u32 %v1987, 16
        %v6832 = vmul.u32 %v1988, 16
        %v6833 = vstv %s6800
        %v6834 = vadd.s32 %v6833, %v6801
        %v6835 = vadd.s32 %v6833, %v6802
        %v6836 = vadd.s32 %v6833, %v6803
        %v6837 = vadd.s32 %v6833, %v6804
        %v6838 = vadd.s32 %v6833, %v6805
        %v6839 = vadd.s32 %v6833, %v6806
        %v6840 = vadd.s32 %v6833, %v6807
        %v6841 = vadd.s32 %v6833, %v6808
        %v6842 = vadd.s32 %v6833, %v6809
        %v6843 = vadd.s32 %v6833, %v6810
        %v6844 = vadd.s32 %v6833, %v6811
        %v6845 = vadd.s32 %v6833, %v6812
        %v6846 = vadd.s32 %v6833, %v6813
        %v6847 = vadd.s32 %v6833, %v6814
        %v6848 = vadd.s32 %v6833, %v6815
        %v6849 = vadd.s32 %v6833, %v6816
        %v6850 = vadd.s32 %v6833, %v6817
        %v6851 = vadd.s32 %v6833, %v6818
        %v6852 = vadd.s32 %v6833, %v6819
        %v6853 = vadd.s32 %v6833, %v6820
        %v6854 = vadd.s32 %v6833, %v6821
        %v6855 = vadd.s32 %v6833, %v6822
        %v6856 = vadd.s32 %v6833, %v6823
        %v6857 = vadd.s32 %v6833, %v6824
        %v6858 = vadd.s32 %v6833, %v6825
        %v6859 = vadd.s32 %v6833, %v6826
        %v6860 = vadd.s32 %v6833, %v6827
        %v6861 = vadd.s32 %v6833, %v6828
        %v6862 = vadd.s32 %v6833, %v6829
        %v6863 = vadd.s32 %v6833, %v6830
        %v6864 = vadd.s32 %v6833, %v6831
        %v6865 = vadd.s32 %v6833, %v6832
        %v6866 = vadd.s32 %v6834, %v1990
        %v6867 = vadd.s32 %v6835, %v1990
        %v6868 = vadd.s32 %v6836, %v1990
        %v6869 = vadd.s32 %v6837, %v1990
        %v6870 = vadd.s32 %v6838, %v1990
        %v6871 = vadd.s32 %v6839, %v1990
        %v6872 = vadd.s32 %v6840, %v1990
        %v6873 = vadd.s32 %v6841, %v1990
        %v6874 = vadd.s32 %v6842, %v1990
        %v6875 = vadd.s32 %v6843, %v1990
        %v6876 = vadd.s32 %v6844, %v1990
        %v6877 = vadd.s32 %v6845, %v1990
        %v6878 = vadd.s32 %v6846, %v1990
        %v6879 = vadd.s32 %v6847, %v1990
        %v6880 = vadd.s32 %v6848, %v1990
        %v6881 = vadd.s32 %v6849, %v1990
        %v6882 = vadd.s32 %v6850, %v1990
        %v6883 = vadd.s32 %v6851, %v1990
        %v6884 = vadd.s32 %v6852, %v1990
        %v6885 = vadd.s32 %v6853, %v1990
        %v6886 = vadd.s32 %v6854, %v1990
        %v6887 = vadd.s32 %v6855, %v1990
        %v6888 = vadd.s32 %v6856, %v1990
        %v6889 = vadd.s32 %v6857, %v1990
        %v6890 = vadd.s32 %v6858, %v1990
        %v6891 = vadd.s32 %v6859, %v1990
        %v6892 = vadd.s32 %v6860, %v1990
        %v6893 = vadd.s32 %v6861, %v1990
        %v6894 = vadd.s32 %v6862, %v1990
        %v6895 = vadd.s32 %v6863, %v1990
        %v6896 = vadd.s32 %v6864, %v1990
        %v6897 = vadd.s32 %v6865, %v1990
        %s6898 = smul.u32 %s6799, 2654435769
        %v6899 = vstv %s6898
        %v6900 = vxor.u32 %v6866, %v6899
        %v6901 = vxor.u32 %v6867, %v6899
        %v6902 = vxor.u32 %v6868, %v6899
        %v6903 = vxor.u32 %v6869, %v6899
        %v6904 = vxor.u32 %v6870, %v6899
        %v6905 = vxor.u32 %v6871, %v6899
        %v6906 = vxor.u32 %v6872, %v6899
        %v6907 = vxor.u32 %v6873, %v6899
        %v6908 = vxor.u32 %v6874, %v6899
        %v6909 = vxor.u32 %v6875, %v6899
        %v6910 = vxor.u32 %v6876, %v6899
        %v6911 = vxor.u32 %v6877, %v6899
        %v6912 = vxor.u32 %v6878, %v6899
        %v6913 = vxor.u32 %v6879, %v6899
        %v6914 = vxor.u32 %v6880, %v6899
        %v6915 = vxor.u32 %v6881, %v6899
        %v6916 = vxor.u32 %v6882, %v6899
        %v6917 = vxor.u32 %v6883, %v6899
        %v6918 = vxor.u32 %v6884, %v6899
        %v6919 = vxor.u32 %v6885, %v6899
        %v6920 = vxor.u32 %v6886, %v6899
        %v6921 = vxor.u32 %v6887, %v6899
        %v6922 = vxor.u32 %v6888, %v6899
        %v6923 = vxor.u32 %v6889, %v6899
        %v6924 = vxor.u32 %v6890, %v6899
        %v6925 = vxor.u32 %v6891, %v6899
        %v6926 = vxor.u32 %v6892, %v6899
        %v6927 = vxor.u32 %v6893, %v6899
        %v6928 = vxor.u32 %v6894, %v6899
        %v6929 = vxor.u32 %v6895, %v6899
        %v6930 = vxor.u32 %v6896, %v6899
        %v6931 = vxor.u32 %v6897, %v6899
        %v6932 = vshra.s32 %v6900, 16
        %v6933 = vshra.s32 %v6901, 16
        %v6934 = vshra.s32 %v6902, 16
        %v6935 = vshra.s32 %v6903, 16
        %v6936 = vshra.s32 %v6904, 16
        %v6937 = vshra.s32 %v6905, 16
        %v6938 = vshra.s32 %v6906, 16
        %v6939 = vshra.s32 %v6907, 16
        %v6940 = vshra.s32 %v6908, 16
        %v6941 = vshra.s32 %v6909, 16
        %v6942 = vshra.s32 %v6910, 16
        %v6943 = vshra.s32 %v6911, 16
        %v6944 = vshra.s32 %v6912, 16
        %v6945 = vshra.s32 %v6913, 16
        %v6946 = vshra.s32 %v6914, 16
        %v6947 = vshra.s32 %v6915, 16
        %v6948 = vshra.s32 %v6916, 16
        %v6949 = vshra.s32 %v6917, 16
        %v6950 = vshra.s32 %v6918, 16
        %v6951 = vshra.s32 %v6919, 16
        %v6952 = vshra.s32 %v6920, 16
        %v6953 = vshra.s32 %v6921, 16
        %v6954 = vshra.s32 %v6922, 16
        %v6955 = vshra.s32 %v6923, 16
        %v6956 = vshra.s32 %v6924, 16
        %v6957 = vshra.s32 %v6925, 16
        %v6958 = vshra.s32 %v6926, 16
        %v6959 = vshra.s32 %v6927, 16
        %v6960 = vshra.s32 %v6928, 16
        %v6961 = vshra.s32 %v6929, 16
        %v6962 = vshra.s32 %v6930, 16
        %v6963 = vshra.s32 %v6931, 16
        %v6964 = vand.u32 %v6932, 65535
        %v6965 = vand.u32 %v6933, 65535
        %v6966 = vand.u32 %v6934, 65535
        %v6967 = vand.u32 %v6935, 65535
        %v6968 = vand.u32 %v6936, 65535
        %v6969 = vand.u32 %v6937, 65535
        %v6970 = vand.u32 %v6938, 65535
        %v6971 = vand.u32 %v6939, 65535
        %v6972 = vand.u32 %v6940, 65535
        %v6973 = vand.u32 %v6941, 65535
        %v6974 = vand.u32 %v6942, 65535
        %v6975 = vand.u32 %v6943, 65535
        %v6976 = vand.u32 %v6944, 65535
        %v6977 = vand.u32 %v6945, 65535
        %v6978 = vand.u32 %v6946, 65535
        %v6979 = vand.u32 %v6947, 65535
        %v6980 = vand.u32 %v6948, 65535
        %v6981 = vand.u32 %v6949, 65535
        %v6982 = vand.u32 %v6950, 65535
        %v6983 = vand.u32 %v6951, 65535
        %v6984 = vand.u32 %v6952, 65535
        %v6985 = vand.u32 %v6953, 65535
        %v6986 = vand.u32 %v6954, 65535
        %v6987 = vand.u32 %v6955, 65535
        %v6988 = vand.u32 %v6956, 65535
        %v6989 = vand.u32 %v6957, 65535
        %v6990 = vand.u32 %v6958, 65535
        %v6991 = vand.u32 %v6959, 65535
        %v6992 = vand.u32 %v6960, 65535
        %v6993 = vand.u32 %v6961, 65535
        %v6994 = vand.u32 %v6962, 65535
        %v6995 = vand.u32 %v6963, 65535
        %v6996 = vxor.u32 %v6900, %v6964
        %v6997 = vxor.u32 %v6901, %v6965
        %v6998 = vxor.u32 %v6902, %v6966
        %v6999 = vxor.u32 %v6903, %v6967
        %v7000 = vxor.u32 %v6904, %v6968
        %v7001 = vxor.u32 %v6905, %v6969
        %v7002 = vxor.u32 %v6906, %v6970
        %v7003 = vxor.u32 %v6907, %v6971
        %v7004 = vxor.u32 %v6908, %v6972
        %v7005 = vxor.u32 %v6909, %v6973
        %v7006 = vxor.u32 %v6910, %v6974
        %v7007 = vxor.u32 %v6911, %v6975
        %v7008 = vxor.u32 %v6912, %v6976
        %v7009 = vxor.u32 %v6913, %v6977
        %v7010 = vxor.u32 %v6914, %v6978
        %v7011 = vxor.u32 %v6915, %v6979
        %v7012 = vxor.u32 %v6916, %v6980
        %v7013 = vxor.u32 %v6917, %v6981
        %v7014 = vxor.u32 %v6918, %v6982
        %v7015 = vxor.u32 %v6919, %v6983
        %v7016 = vxor.u32 %v6920, %v6984
        %v7017 = vxor.u32 %v6921, %v6985
        %v7018 = vxor.u32 %v6922, %v6986
        %v7019 = vxor.u32 %v6923, %v6987
        %v7020 = vxor.u32 %v6924, %v6988
        %v7021 = vxor.u32 %v6925, %v6989
        %v7022 = vxor.u32 %v6926, %v6990
        %v7023 = vxor.u32 %v6927, %v6991
        %v7024 = vxor.u32 %v6928, %v6992
        %v7025 = vxor.u32 %v6929, %v6993
        %v7026 = vxor.u32 %v6930, %v6994
        %v7027 = vxor.u32 %v6931, %v6995
        %v7028 = vmul.u32 %v6996, 2246822507
        %v7029 = vmul.u32 %v6997, 2246822507
        %v7030 = vmul.u32 %v6998, 2246822507
        %v7031 = vmul.u32 %v6999, 2246822507
        %v7032 = vmul.u32 %v7000, 2246822507
        %v7033 = vmul.u32 %v7001, 2246822507
        %v7034 = vmul.u32 %v7002, 2246822507
        %v7035 = vmul.u32 %v7003, 2246822507
        %v7036 = vmul.u32 %v7004, 2246822507
        %v7037 = vmul.u32 %v7005, 2246822507
        %v7038 = vmul.u32 %v7006, 2246822507
        %v7039 = vmul.u32 %v7007, 2246822507
        %v7040 = vmul.u32 %v7008, 2246822507
        %v7041 = vmul.u32 %v7009, 2246822507
        %v7042 = vmul.u32 %v7010, 2246822507
        %v7043 = vmul.u32 %v7011, 2246822507
        %v7044 = vmul.u32 %v7012, 2246822507
        %v7045 = vmul.u32 %v7013, 2246822507
        %v7046 = vmul.u32 %v7014, 2246822507
        %v7047 = vmul.u32 %v7015, 2246822507
        %v7048 = vmul.u32 %v7016, 2246822507
        %v7049 = vmul.u32 %v7017, 2246822507
        %v7050 = vmul.u32 %v7018, 2246822507
        %v7051 = vmul.u32 %v7019, 2246822507
        %v7052 = vmul.u32 %v7020, 2246822507
        %v7053 = vmul.u32 %v7021, 2246822507
        %v7054 = vmul.u32 %v7022, 2246822507
        %v7055 = vmul.u32 %v7023, 2246822507
        %v7056 = vmul.u32 %v7024, 2246822507
        %v7057 = vmul.u32 %v7025, 2246822507
        %v7058 = vmul.u32 %v7026, 2246822507
        %v7059 = vmul.u32 %v7027, 2246822507
        %v7060 = vshra.s32 %v7028, 13
        %v7061 = vshra.s32 %v7029, 13
        %v7062 = vshra.s32 %v7030, 13
        %v7063 = vshra.s32 %v7031, 13
        %v7064 = vshra.s32 %v7032, 13
        %v7065 = vshra.s32 %v7033, 13
        %v7066 = vshra.s32 %v7034, 13
        %v7067 = vshra.s32 %v7035, 13
        %v7068 = vshra.s32 %v7036, 13
        %v7069 = vshra.s32 %v7037, 13
        %v7070 = vshra.s32 %v7038, 13
        %v7071 = vshra.s32 %v7039, 13
        %v7072 = vshra.s32 %v7040, 13
        %v7073 = vshra.s32 %v7041, 13
        %v7074 = vshra.s32 %v7042, 13
        %v7075 = vshra.s32 %v7043, 13
        %v7076 = vshra.s32 %v7044, 13
        %v7077 = vshra.s32 %v7045, 13
        %v7078 = vshra.s32 %v7046, 13
        %v7079 = vshra.s32 %v7047, 13
        %v7080 = vshra.s32 %v7048, 13
        %v7081 = vshra.s32 %v7049, 13
        %v7082 = vshra.s32 %v7050, 13
        %v7083 = vshra.s32 %v7051, 13
        %v7084 = vshra.s32 %v7052, 13
        %v7085 = vshra.s32 %v7053, 13
        %v7086 = vshra.s32 %v7054, 13
        %v7087 = vshra.s32 %v7055, 13
        %v7088 = vshra.s32 %v7056, 13
        %v7089 = vshra.s32 %v7057, 13
        %v7090 = vshra.s32 %v7058, 13
        %v7091 = vshra.s32 %v7059, 13
        %v7092 = vand.u32 %v7060, 524287
        %v7093 = vand.u32 %v7061, 524287
        %v7094 = vand.u32 %v7062, 524287
        %v7095 = vand.u32 %v7063, 524287
        %v7096 = vand.u32 %v7064, 524287
        %v7097 = vand.u32 %v7065, 524287
        %v7098 = vand.u32 %v7066, 524287
        %v7099 = vand.u32 %v7067, 524287
        %v7100 = vand.u32 %v7068, 524287
        %v7101 = vand.u32 %v7069, 524287
        %v7102 = vand.u32 %v7070, 524287
        %v7103 = vand.u32 %v7071, 524287
        %v7104 = vand.u32 %v7072, 524287
        %v7105 = vand.u32 %v7073, 524287
        %v7106 = vand.u32 %v7074, 524287
        %v7107 = vand.u32 %v7075, 524287
        %v7108 = vand.u32 %v7076, 524287
        %v7109 = vand.u32 %v7077, 524287
        %v7110 = vand.u32 %v7078, 524287
        %v7111 = vand.u32 %v7079, 524287
        %v7112 = vand.u32 %v7080, 524287
        %v7113 = vand.u32 %v7081, 524287
        %v7114 = vand.u32 %v7082, 524287
        %v7115 = vand.u32 %v7083, 524287
        %v7116 = vand.u32 %v7084, 524287
        %v7117 = vand.u32 %v7085, 524287
        %v7118 = vand.u32 %v7086, 524287
        %v7119 = vand.u32 %v7087, 524287
        %v7120 = vand.u32 %v7088, 524287
        %v7121 = vand.u32 %v7089, 524287
        %v7122 = vand.u32 %v7090, 524287
        %v7123 = vand.u32 %v7091, 524287
        %v7124 = vxor.u32 %v7028, %v7092
        %v7125 = vxor.u32 %v7029, %v7093
        %v7126 = vxor.u32 %v7030, %v7094
        %v7127 = vxor.u32 %v7031, %v7095
        %v7128 = vxor.u32 %v7032, %v7096
        %v7129 = vxor.u32 %v7033, %v7097
        %v7130 = vxor.u32 %v7034, %v7098
        %v7131 = vxor.u32 %v7035, %v7099
        %v7132 = vxor.u32 %v7036, %v7100
        %v7133 = vxor.u32 %v7037, %v7101
        %v7134 = vxor.u32 %v7038, %v7102
        %v7135 = vxor.u32 %v7039, %v7103
        %v7136 = vxor.u32 %v7040, %v7104
        %v7137 = vxor.u32 %v7041, %v7105
        %v7138 = vxor.u32 %v7042, %v7106
        %v7139 = vxor.u32 %v7043, %v7107
        %v7140 = vxor.u32 %v7044, %v7108
        %v7141 = vxor.u32 %v7045, %v7109
        %v7142 = vxor.u32 %v7046, %v7110
        %v7143 = vxor.u32 %v7047, %v7111
        %v7144 = vxor.u32 %v7048, %v7112
        %v7145 = vxor.u32 %v7049, %v7113
        %v7146 = vxor.u32 %v7050, %v7114
        %v7147 = vxor.u32 %v7051, %v7115
        %v7148 = vxor.u32 %v7052, %v7116
        %v7149 = vxor.u32 %v7053, %v7117
        %v7150 = vxor.u32 %v7054, %v7118
        %v7151 = vxor.u32 %v7055, %v7119
        %v7152 = vxor.u32 %v7056, %v7120
        %v7153 = vxor.u32 %v7057, %v7121
        %v7154 = vxor.u32 %v7058, %v7122
        %v7155 = vxor.u32 %v7059, %v7123
        %v7156 = vmul.u32 %v7124, 3266489909
        %v7157 = vmul.u32 %v7125, 3266489909
        %v7158 = vmul.u32 %v7126, 3266489909
        %v7159 = vmul.u32 %v7127, 3266489909
        %v7160 = vmul.u32 %v7128, 3266489909
        %v7161 = vmul.u32 %v7129, 3266489909
        %v7162 = vmul.u32 %v7130, 3266489909
        %v7163 = vmul.u32 %v7131, 3266489909
        %v7164 = vmul.u32 %v7132, 3266489909
        %v7165 = vmul.u32 %v7133, 3266489909
        %v7166 = vmul.u32 %v7134, 3266489909
        %v7167 = vmul.u32 %v7135, 3266489909
        %v7168 = vmul.u32 %v7136, 3266489909
        %v7169 = vmul.u32 %v7137, 3266489909
        %v7170 = vmul.u32 %v7138, 3266489909
        %v7171 = vmul.u32 %v7139, 3266489909
        %v7172 = vmul.u32 %v7140, 3266489909
        %v7173 = vmul.u32 %v7141, 3266489909
        %v7174 = vmul.u32 %v7142, 3266489909
        %v7175 = vmul.u32 %v7143, 3266489909
        %v7176 = vmul.u32 %v7144, 3266489909
        %v7177 = vmul.u32 %v7145, 3266489909
        %v7178 = vmul.u32 %v7146, 3266489909
        %v7179 = vmul.u32 %v7147, 3266489909
        %v7180 = vmul.u32 %v7148, 3266489909
        %v7181 = vmul.u32 %v7149, 3266489909
        %v7182 = vmul.u32 %v7150, 3266489909
        %v7183 = vmul.u32 %v7151, 3266489909
        %v7184 = vmul.u32 %v7152, 3266489909
        %v7185 = vmul.u32 %v7153, 3266489909
        %v7186 = vmul.u32 %v7154, 3266489909
        %v7187 = vmul.u32 %v7155, 3266489909
        %v7188 = vshra.s32 %v7156, 16
        %v7189 = vshra.s32 %v7157, 16
        %v7190 = vshra.s32 %v7158, 16
        %v7191 = vshra.s32 %v7159, 16
        %v7192 = vshra.s32 %v7160, 16
        %v7193 = vshra.s32 %v7161, 16
        %v7194 = vshra.s32 %v7162, 16
        %v7195 = vshra.s32 %v7163, 16
        %v7196 = vshra.s32 %v7164, 16
        %v7197 = vshra.s32 %v7165, 16
        %v7198 = vshra.s32 %v7166, 16
        %v7199 = vshra.s32 %v7167, 16
        %v7200 = vshra.s32 %v7168, 16
        %v7201 = vshra.s32 %v7169, 16
        %v7202 = vshra.s32 %v7170, 16
        %v7203 = vshra.s32 %v7171, 16
        %v7204 = vshra.s32 %v7172, 16
        %v7205 = vshra.s32 %v7173, 16
        %v7206 = vshra.s32 %v7174, 16
        %v7207 = vshra.s32 %v7175, 16
        %v7208 = vshra.s32 %v7176, 16
        %v7209 = vshra.s32 %v7177, 16
        %v7210 = vshra.s32 %v7178, 16
        %v7211 = vshra.s32 %v7179, 16
        %v7212 = vshra.s32 %v7180, 16
        %v7213 = vshra.s32 %v7181, 16
        %v7214 = vshra.s32 %v7182, 16
        %v7215 = vshra.s32 %v7183, 16
        %v7216 = vshra.s32 %v7184, 16
        %v7217 = vshra.s32 %v7185, 16
        %v7218 = vshra.s32 %v7186, 16
        %v7219 = vshra.s32 %v7187, 16
        %v7220 = vand.u32 %v7188, 65535
        %v7221 = vand.u32 %v7189, 65535
        %v7222 = vand.u32 %v7190, 65535
        %v7223 = vand.u32 %v7191, 65535
        %v7224 = vand.u32 %v7192, 65535
        %v7225 = vand.u32 %v7193, 65535
        %v7226 = vand.u32 %v7194, 65535
        %v7227 = vand.u32 %v7195, 65535
        %v7228 = vand.u32 %v7196, 65535
        %v7229 = vand.u32 %v7197, 65535
        %v7230 = vand.u32 %v7198, 65535
        %v7231 = vand.u32 %v7199, 65535
        %v7232 = vand.u32 %v7200, 65535
        %v7233 = vand.u32 %v7201, 65535
        %v7234 = vand.u32 %v7202, 65535
        %v7235 = vand.u32 %v7203, 65535
        %v7236 = vand.u32 %v7204, 65535
        %v7237 = vand.u32 %v7205, 65535
        %v7238 = vand.u32 %v7206, 65535
        %v7239 = vand.u32 %v7207, 65535
        %v7240 = vand.u32 %v7208, 65535
        %v7241 = vand.u32 %v7209, 65535
        %v7242 = vand.u32 %v7210, 65535
        %v7243 = vand.u32 %v7211, 65535
        %v7244 = vand.u32 %v7212, 65535
        %v7245 = vand.u32 %v7213, 65535
        %v7246 = vand.u32 %v7214, 65535
        %v7247 = vand.u32 %v7215, 65535
        %v7248 = vand.u32 %v7216, 65535
        %v7249 = vand.u32 %v7217, 65535
        %v7250 = vand.u32 %v7218, 65535
        %v7251 = vand.u32 %v7219, 65535
        %v7252 = vxor.u32 %v7156, %v7220
        %v7253 = vxor.u32 %v7157, %v7221
        %v7254 = vxor.u32 %v7158, %v7222
        %v7255 = vxor.u32 %v7159, %v7223
        %v7256 = vxor.u32 %v7160, %v7224
        %v7257 = vxor.u32 %v7161, %v7225
        %v7258 = vxor.u32 %v7162, %v7226
        %v7259 = vxor.u32 %v7163, %v7227
        %v7260 = vxor.u32 %v7164, %v7228
        %v7261 = vxor.u32 %v7165, %v7229
        %v7262 = vxor.u32 %v7166, %v7230
        %v7263 = vxor.u32 %v7167, %v7231
        %v7264 = vxor.u32 %v7168, %v7232
        %v7265 = vxor.u32 %v7169, %v7233
        %v7266 = vxor.u32 %v7170, %v7234
        %v7267 = vxor.u32 %v7171, %v7235
        %v7268 = vxor.u32 %v7172, %v7236
        %v7269 = vxor.u32 %v7173, %v7237
        %v7270 = vxor.u32 %v7174, %v7238
        %v7271 = vxor.u32 %v7175, %v7239
        %v7272 = vxor.u32 %v7176, %v7240
        %v7273 = vxor.u32 %v7177, %v7241
        %v7274 = vxor.u32 %v7178, %v7242
        %v7275 = vxor.u32 %v7179, %v7243
        %v7276 = vxor.u32 %v7180, %v7244
        %v7277 = vxor.u32 %v7181, %v7245
        %v7278 = vxor.u32 %v7182, %v7246
        %v7279 = vxor.u32 %v7183, %v7247
        %v7280 = vxor.u32 %v7184, %v7248
        %v7281 = vxor.u32 %v7185, %v7249
        %v7282 = vxor.u32 %v7186, %v7250
        %v7283 = vxor.u32 %v7187, %v7251
        %v7284 = vand.u32 %v7252, 16777215
        %v7285 = vand.u32 %v7253, 16777215
        %v7286 = vand.u32 %v7254, 16777215
        %v7287 = vand.u32 %v7255, 16777215
        %v7288 = vand.u32 %v7256, 16777215
        %v7289 = vand.u32 %v7257, 16777215
        %v7290 = vand.u32 %v7258, 16777215
        %v7291 = vand.u32 %v7259, 16777215
        %v7292 = vand.u32 %v7260, 16777215
        %v7293 = vand.u32 %v7261, 16777215
        %v7294 = vand.u32 %v7262, 16777215
        %v7295 = vand.u32 %v7263, 16777215
        %v7296 = vand.u32 %v7264, 16777215
        %v7297 = vand.u32 %v7265, 16777215
        %v7298 = vand.u32 %v7266, 16777215
        %v7299 = vand.u32 %v7267, 16777215
        %v7300 = vand.u32 %v7268, 16777215
        %v7301 = vand.u32 %v7269, 16777215
        %v7302 = vand.u32 %v7270, 16777215
        %v7303 = vand.u32 %v7271, 16777215
        %v7304 = vand.u32 %v7272, 16777215
        %v7305 = vand.u32 %v7273, 16777215
        %v7306 = vand.u32 %v7274, 16777215
        %v7307 = vand.u32 %v7275, 16777215
        %v7308 = vand.u32 %v7276, 16777215
        %v7309 = vand.u32 %v7277, 16777215
        %v7310 = vand.u32 %v7278, 16777215
        %v7311 = vand.u32 %v7279, 16777215
        %v7312 = vand.u32 %v7280, 16777215
        %v7313 = vand.u32 %v7281, 16777215
        %v7314 = vand.u32 %v7282, 16777215
        %v7315 = vand.u32 %v7283, 16777215
        %vm7316 = vcmp.ge.s32.totalorder %v7284, 1677722
        %vm7317 = vcmp.ge.s32.totalorder %v7285, 1677722
        %vm7318 = vcmp.ge.s32.totalorder %v7286, 1677722
        %vm7319 = vcmp.ge.s32.totalorder %v7287, 1677722
        %vm7320 = vcmp.ge.s32.totalorder %v7288, 1677722
        %vm7321 = vcmp.ge.s32.totalorder %v7289, 1677722
        %vm7322 = vcmp.ge.s32.totalorder %v7290, 1677722
        %vm7323 = vcmp.ge.s32.totalorder %v7291, 1677722
        %vm7324 = vcmp.ge.s32.totalorder %v7292, 1677722
        %vm7325 = vcmp.ge.s32.totalorder %v7293, 1677722
        %vm7326 = vcmp.ge.s32.totalorder %v7294, 1677722
        %vm7327 = vcmp.ge.s32.totalorder %v7295, 1677722
        %vm7328 = vcmp.ge.s32.totalorder %v7296, 1677722
        %vm7329 = vcmp.ge.s32.totalorder %v7297, 1677722
        %vm7330 = vcmp.ge.s32.totalorder %v7298, 1677722
        %vm7331 = vcmp.ge.s32.totalorder %v7299, 1677722
        %vm7332 = vcmp.ge.s32.totalorder %v7300, 1677722
        %vm7333 = vcmp.ge.s32.totalorder %v7301, 1677722
        %vm7334 = vcmp.ge.s32.totalorder %v7302, 1677722
        %vm7335 = vcmp.ge.s32.totalorder %v7303, 1677722
        %vm7336 = vcmp.ge.s32.totalorder %v7304, 1677722
        %vm7337 = vcmp.ge.s32.totalorder %v7305, 1677722
        %vm7338 = vcmp.ge.s32.totalorder %v7306, 1677722
        %vm7339 = vcmp.ge.s32.totalorder %v7307, 1677722
        %vm7340 = vcmp.ge.s32.totalorder %v7308, 1677722
        %vm7341 = vcmp.ge.s32.totalorder %v7309, 1677722
        %vm7342 = vcmp.ge.s32.totalorder %v7310, 1677722
        %vm7343 = vcmp.ge.s32.totalorder %v7311, 1677722
        %vm7344 = vcmp.ge.s32.totalorder %v7312, 1677722
        %vm7345 = vcmp.ge.s32.totalorder %v7313, 1677722
        %vm7346 = vcmp.ge.s32.totalorder %v7314, 1677722
        %vm7347 = vcmp.ge.s32.totalorder %v7315, 1677722
        %v7348 = vmul.f32 %v6767, 1.1111112
        %v7349 = vmul.f32 %v6768, 1.1111112
        %v7350 = vmul.f32 %v6769, 1.1111112
        %v7351 = vmul.f32 %v6770, 1.1111112
        %v7352 = vmul.f32 %v6771, 1.1111112
        %v7353 = vmul.f32 %v6772, 1.1111112
        %v7354 = vmul.f32 %v6773, 1.1111112
        %v7355 = vmul.f32 %v6774, 1.1111112
        %v7356 = vmul.f32 %v6775, 1.1111112
        %v7357 = vmul.f32 %v6776, 1.1111112
        %v7358 = vmul.f32 %v6777, 1.1111112
        %v7359 = vmul.f32 %v6778, 1.1111112
        %v7360 = vmul.f32 %v6779, 1.1111112
        %v7361 = vmul.f32 %v6780, 1.1111112
        %v7362 = vmul.f32 %v6781, 1.1111112
        %v7363 = vmul.f32 %v6782, 1.1111112
        %v7364 = vmul.f32 %v6783, 1.1111112
        %v7365 = vmul.f32 %v6784, 1.1111112
        %v7366 = vmul.f32 %v6785, 1.1111112
        %v7367 = vmul.f32 %v6786, 1.1111112
        %v7368 = vmul.f32 %v6787, 1.1111112
        %v7369 = vmul.f32 %v6788, 1.1111112
        %v7370 = vmul.f32 %v6789, 1.1111112
        %v7371 = vmul.f32 %v6790, 1.1111112
        %v7372 = vmul.f32 %v6791, 1.1111112
        %v7373 = vmul.f32 %v6792, 1.1111112
        %v7374 = vmul.f32 %v6793, 1.1111112
        %v7375 = vmul.f32 %v6794, 1.1111112
        %v7376 = vmul.f32 %v6795, 1.1111112
        %v7377 = vmul.f32 %v6796, 1.1111112
        %v7378 = vmul.f32 %v6797, 1.1111112
        %v7379 = vmul.f32 %v6798, 1.1111112
        %v7380 = vsel %vm7316, %v7348, 0.0
        %v7381 = vsel %vm7317, %v7349, 0.0
        %v7382 = vsel %vm7318, %v7350, 0.0
        %v7383 = vsel %vm7319, %v7351, 0.0
        %v7384 = vsel %vm7320, %v7352, 0.0
        %v7385 = vsel %vm7321, %v7353, 0.0
        %v7386 = vsel %vm7322, %v7354, 0.0
        %v7387 = vsel %vm7323, %v7355, 0.0
        %v7388 = vsel %vm7324, %v7356, 0.0
        %v7389 = vsel %vm7325, %v7357, 0.0
        %v7390 = vsel %vm7326, %v7358, 0.0
        %v7391 = vsel %vm7327, %v7359, 0.0
        %v7392 = vsel %vm7328, %v7360, 0.0
        %v7393 = vsel %vm7329, %v7361, 0.0
        %v7394 = vsel %vm7330, %v7362, 0.0
        %v7395 = vsel %vm7331, %v7363, 0.0
        %v7396 = vsel %vm7332, %v7364, 0.0
        %v7397 = vsel %vm7333, %v7365, 0.0
        %v7398 = vsel %vm7334, %v7366, 0.0
        %v7399 = vsel %vm7335, %v7367, 0.0
        %v7400 = vsel %vm7336, %v7368, 0.0
        %v7401 = vsel %vm7337, %v7369, 0.0
        %v7402 = vsel %vm7338, %v7370, 0.0
        %v7403 = vsel %vm7339, %v7371, 0.0
        %v7404 = vsel %vm7340, %v7372, 0.0
        %v7405 = vsel %vm7341, %v7373, 0.0
        %v7406 = vsel %vm7342, %v7374, 0.0
        %v7407 = vsel %vm7343, %v7375, 0.0
        %v7408 = vsel %vm7344, %v7376, 0.0
        %v7409 = vsel %vm7345, %v7377, 0.0
        %v7410 = vsel %vm7346, %v7378, 0.0
        %v7411 = vsel %vm7347, %v7379, 0.0
        %v7412 = vmax.f32 %v7380, 0.0
        %v7413 = vmax.f32 %v7381, 0.0
        %v7414 = vmax.f32 %v7382, 0.0
        %v7415 = vmax.f32 %v7383, 0.0
        %v7416 = vmax.f32 %v7384, 0.0
        %v7417 = vmax.f32 %v7385, 0.0
        %v7418 = vmax.f32 %v7386, 0.0
        %v7419 = vmax.f32 %v7387, 0.0
        %v7420 = vmax.f32 %v7388, 0.0
        %v7421 = vmax.f32 %v7389, 0.0
        %v7422 = vmax.f32 %v7390, 0.0
        %v7423 = vmax.f32 %v7391, 0.0
        %v7424 = vmax.f32 %v7392, 0.0
        %v7425 = vmax.f32 %v7393, 0.0
        %v7426 = vmax.f32 %v7394, 0.0
        %v7427 = vmax.f32 %v7395, 0.0
        %v7428 = vmax.f32 %v7396, 0.0
        %v7429 = vmax.f32 %v7397, 0.0
        %v7430 = vmax.f32 %v7398, 0.0
        %v7431 = vmax.f32 %v7399, 0.0
        %v7432 = vmax.f32 %v7400, 0.0
        %v7433 = vmax.f32 %v7401, 0.0
        %v7434 = vmax.f32 %v7402, 0.0
        %v7435 = vmax.f32 %v7403, 0.0
        %v7436 = vmax.f32 %v7404, 0.0
        %v7437 = vmax.f32 %v7405, 0.0
        %v7438 = vmax.f32 %v7406, 0.0
        %v7439 = vmax.f32 %v7407, 0.0
        %v7440 = vmax.f32 %v7408, 0.0
        %v7441 = vmax.f32 %v7409, 0.0
        %v7442 = vmax.f32 %v7410, 0.0
        %v7443 = vmax.f32 %v7411, 0.0
        %v7444 = vsel %vm6126, %v7412, 0.0
        %v7445 = vsel %vm6126, %v7413, 0.0
        %v7446 = vadd.f32 %v7444, %v7445
        %v7447 = vsel %vm6126, %v7414, 0.0
        %v7448 = vadd.f32 %v7446, %v7447
        %v7449 = vsel %vm6126, %v7415, 0.0
        %v7450 = vadd.f32 %v7448, %v7449
        %v7451 = vsel %vm6126, %v7416, 0.0
        %v7452 = vadd.f32 %v7450, %v7451
        %v7453 = vsel %vm6126, %v7417, 0.0
        %v7454 = vadd.f32 %v7452, %v7453
        %v7455 = vsel %vm6126, %v7418, 0.0
        %v7456 = vadd.f32 %v7454, %v7455
        %v7457 = vsel %vm6126, %v7419, 0.0
        %v7458 = vadd.f32 %v7456, %v7457
        %v7459 = vsel %vm6126, %v7420, 0.0
        %v7460 = vadd.f32 %v7458, %v7459
        %v7461 = vsel %vm6126, %v7421, 0.0
        %v7462 = vadd.f32 %v7460, %v7461
        %v7463 = vsel %vm6126, %v7422, 0.0
        %v7464 = vadd.f32 %v7462, %v7463
        %v7465 = vsel %vm6126, %v7423, 0.0
        %v7466 = vadd.f32 %v7464, %v7465
        %v7467 = vsel %vm6126, %v7424, 0.0
        %v7468 = vadd.f32 %v7466, %v7467
        %v7469 = vsel %vm6126, %v7425, 0.0
        %v7470 = vadd.f32 %v7468, %v7469
        %v7471 = vsel %vm6126, %v7426, 0.0
        %v7472 = vadd.f32 %v7470, %v7471
        %v7473 = vsel %vm6126, %v7427, 0.0
        %v7474 = vadd.f32 %v7472, %v7473
        %v7475 = vrot.slane %v7474, 4
        %v7476 = vadd.f32 %v7474, %v7475
        %v7477 = vrot.slane %v7476, 2
        %v7478 = vadd.f32 %v7476, %v7477
        %v7479 = vrot.slane %v7478, 1
        %v7480 = vadd.f32 %v7478, %v7479
        %v7481 = vsel %vm6126, %v7428, 0.0
        %v7482 = vsel %vm6126, %v7429, 0.0
        %v7483 = vadd.f32 %v7481, %v7482
        %v7484 = vsel %vm6126, %v7430, 0.0
        %v7485 = vadd.f32 %v7483, %v7484
        %v7486 = vsel %vm6126, %v7431, 0.0
        %v7487 = vadd.f32 %v7485, %v7486
        %v7488 = vsel %vm6126, %v7432, 0.0
        %v7489 = vadd.f32 %v7487, %v7488
        %v7490 = vsel %vm6126, %v7433, 0.0
        %v7491 = vadd.f32 %v7489, %v7490
        %v7492 = vsel %vm6126, %v7434, 0.0
        %v7493 = vadd.f32 %v7491, %v7492
        %v7494 = vsel %vm6126, %v7435, 0.0
        %v7495 = vadd.f32 %v7493, %v7494
        %v7496 = vsel %vm6126, %v7436, 0.0
        %v7497 = vadd.f32 %v7495, %v7496
        %v7498 = vsel %vm6126, %v7437, 0.0
        %v7499 = vadd.f32 %v7497, %v7498
        %v7500 = vsel %vm6126, %v7438, 0.0
        %v7501 = vadd.f32 %v7499, %v7500
        %v7502 = vsel %vm6126, %v7439, 0.0
        %v7503 = vadd.f32 %v7501, %v7502
        %v7504 = vsel %vm6126, %v7440, 0.0
        %v7505 = vadd.f32 %v7503, %v7504
        %v7506 = vsel %vm6126, %v7441, 0.0
        %v7507 = vadd.f32 %v7505, %v7506
        %v7508 = vsel %vm6126, %v7442, 0.0
        %v7509 = vadd.f32 %v7507, %v7508
        %v7510 = vsel %vm6126, %v7443, 0.0
        %v7511 = vadd.f32 %v7509, %v7510
        %v7512 = vrot.slane %v7511, 4
        %v7513 = vadd.f32 %v7511, %v7512
        %v7514 = vrot.slane %v7513, 2
        %v7515 = vadd.f32 %v7513, %v7514
        %v7516 = vrot.slane %v7515, 1
        %v7517 = vadd.f32 %v7515, %v7516
        %v7518 = vld [vmem:[%s18] sm:$0x1]
        %v7520 = vlaneseq
        %v7521 = vshrl.u32 %v7520, 7
        %v7522 = vsub.s32 0, %v7521
        %v7523 = vrot.slane %v7518, %v7522
        %v7525 = vmul.f32 %v7480, %v7523
        %v7526 = vmul.f32 %v7517, %v7523
        %v7529 = vrot.slane %v7526, 7
        %vm7530 = vcmask 1041409
        %v7531 = vsel %vm7530, %v7529, %v7525
        %vm7533 = vcmask 123904
        %v7534 = vsel %vm7533, %v7531, 0.0
        %7535 = vadd.xlane.f32.xlu0 %v7534
        %v7536 = vpop.xlane.xlu0 %7535
        %p7537 = scmp.eq.s32.totalorder %s39, 0
        // Predicated region
        $region120: #{kairos_ad_forward.1} parent=114 // pred_check
          %p7538 = pneg %p7537
        $region121: #{kairos_ad_forward.1} parent=114 // pred_check_branch
          %7540 = sbr.rel (%p7538) target = $region123
        $region122: #{kairos_ad_forward.1} parent=114 // pred_region
          %vm7541 = vcmask 1024
          %7542 = vst.msk [vmem:[%s20] sm:$0x3] %vm7541, 0.0
        $region123: #{kairos_ad_forward.1} parent=114 // pred_fallthru
          _
        %v7543 = vld [vmem:[%s20] sm:$0x3]
        %v7544 = vadd.f32 %v7543, %v7536
        %vm7545 = vcmask 1024
        %7546 = vst.msk [vmem:[%s20] sm:$0x3] %vm7545, %v7544
        %p7547 = scmp.eq.s32.totalorder %s39, 1
        // Predicated region
        $region124: #{kairos_ad_forward.1} parent=114 // pred_check
          %p7548 = pneg %p7547
        $region125: #{kairos_ad_forward.1} parent=114 // pred_check_branch
          %7550 = sbr.rel (%p7548) target = $region127
        $region126: #{kairos_ad_forward.1} parent=114 // pred_region
          %v7551 = vld [vmem:[%s20] sm:$0x3]
          %v7552 = vmul.f32 %v7551, 0.00390625
          %v7553 = vld [vmem:[#allocation4] sm:$0x1]
          %v7555 = vlaneseq
          %v7556 = vshrl.u32 %v7555, 7
          %v7557 = vsub.s32 0, %v7556
          %v7558 = vrot.slane %v7553, %v7557
          %v7560 = vadd.f32 %v7552, %v7558
          %7561 = vst.msk [vmem:[%s20] sm:$0x3] %vm7545, %v7560
        $region127: #{kairos_ad_forward.1} parent=114 // pred_fallthru
          _
        // Predicated region
        $region128: #{kairos_ad_forward.1} parent=114 // pred_check
          %p7562 = pneg %p496
        $region129: #{kairos_ad_forward.1} parent=114 // pred_check_branch
          %7564 = sbr.rel (%p7562) target = $region131
        $region130: #{kairos_ad_forward.1} parent=114 // pred_region
          _
        $region131: #{kairos_ad_forward.1} parent=114 // pred_fallthru
          _
        // Predicated region
        $region132: #{kairos_ad_forward.1} parent=114 // pred_check
          %p7565 = pneg %p496
        $region133: #{kairos_ad_forward.1} parent=114 // pred_check_branch
          %7567 = sbr.rel (%p7565) target = $region135
        $region134: #{kairos_ad_forward.1} parent=114 // pred_region
          _
        $region135: #{kairos_ad_forward.1} parent=114 // pred_fallthru
          _
      $region115: #{kairos_ad_forward.1} parent=5 // pred_fallthru
        _
      %p7568 = scmp.le.s32.totalorder 2, %s34
      // Predicated region
      $region136: #{kairos_ad_forward.1} parent=5 // pred_check
        %p7569 = pneg %p7568
      $region137: #{kairos_ad_forward.1} parent=5 // pred_check_branch
        %7571 = sbr.rel (%p7569) target = $region139
      $region138: #{kairos_ad_forward.1} parent=5 // pred_region
        %s7572 = ssub.s32 %s34, 2
      $region139: #{kairos_ad_forward.1} parent=5 // pred_fallthru
        _
    $region6: #{kairos_ad_forward.1} parent=1 // loop_footer
      %s38 = sadd.s32 1, %s34
    $region7: #{kairos_ad_forward.1} parent=1 // loop_footer_branch
      %33 = sbr.rel target = $region3
    $region8: #{kairos_ad_forward.1} parent=1 // loop_exit
      _

</llo_original>
